<compile_context>
chip_gen: v5e
topology: v5e:2x2
jax: 0.10.0
libtpu: 0.0.40
codegen_flags: <defaults>
</compile_context>

<pallas_src>
import functools

import jax
import jax.numpy as jnp
from jax.experimental import pallas as pl
from jax.experimental.pallas import tpu as pltpu


def _round_up(x, m):
    return ((x + m - 1) // m) * m


def _ffn_kernel(x_ref, w1_ref, b1_ref, w2_ref, b2_ref, o_ref, acc_ref):
    """One (row-tile i, hidden-slab k) step of Linear -> ReLU -> Linear."""
    k = pl.program_id(1)

    @pl.when(k == 0)
    def _():
        acc_ref[...] = jnp.zeros_like(acc_ref)

    # First matmul (MXU, bf16 operands, f32 accumulation) on the current hidden slab,
    # then bias + ReLU in f32 on the VPU.
    h = jnp.dot(x_ref[...], w1_ref[...], preferred_element_type=jnp.float32)
    h = jnp.maximum(h + b1_ref[...], 0.0)

    # Second matmul for this slab, accumulated into the resident f32 scratch.
    acc_ref[...] += jnp.dot(h.astype(w2_ref.dtype), w2_ref[...],
                            preferred_element_type=jnp.float32)

    # Finalize: add b2 exactly once and write the output tile.
    @pl.when(k == pl.num_programs(1) - 1)
    def _():
        o_ref[...] = (acc_ref[...] + b2_ref[...]).astype(o_ref.dtype)


def feed_forward(x, w1, b1, w2, b2, *, tile_m=512, tile_h=512,
                 compute_dtype=jnp.bfloat16):
    """Fused FeedForward: relu(x @ w1 + b1) @ w2 + b2.

    x : (M, D)            w1: (D, H)   b1: (1, H)
    w2: (H, D)            b2: (1, D)
    Any M / H; padded internally to tile multiples.
    """
    M, D = x.shape
    H = w1.shape[1]
    out_dtype = x.dtype

    # Row tile: for small M use the smallest legal sublane multiple (8) so tiny inputs
    # don't pay for padded MXU rows; otherwise a 512-row tile (multiple of 128) to
    # maximize reuse of each streamed weight slab.
    if M <= tile_m:
        tm = _round_up(M, 8)
    else:
        tm = tile_m
    th = min(tile_h, _round_up(H, 128))

    M_pad = _round_up(M, tm)
    H_pad = _round_up(H, th)

    # Zero padding: extra x rows are sliced off at the end; zero W1 columns / b1 entries
    # / W2 rows contribute exactly 0 to the accumulator.
    xp = jnp.pad(x, ((0, M_pad - M), (0, 0))).astype(compute_dtype)
    w1p = jnp.pad(w1, ((0, 0), (0, H_pad - H))).astype(compute_dtype)
    b1p = jnp.pad(b1, ((0, 0), (0, H_pad - H))).astype(jnp.float32)
    w2p = jnp.pad(w2, ((0, H_pad - H), (0, 0))).astype(compute_dtype)
    b2p = b2.astype(jnp.float32)

    grid = (M_pad // tm, H_pad // th)

    out = pl.pallas_call(
        _ffn_kernel,
        out_shape=jax.ShapeDtypeStruct((M_pad, D), out_dtype),
        grid_spec=pltpu.PrefetchScalarGridSpec(
            num_scalar_prefetch=0,
            grid=grid,
            in_specs=[
                pl.BlockSpec((tm, D), lambda i, k: (i, 0)),   # x row-tile (resident over k)
                pl.BlockSpec((D, th), lambda i, k: (0, k)),   # W1 hidden slab (streamed)
                pl.BlockSpec((1, th), lambda i, k: (0, k)),   # b1 slab
                pl.BlockSpec((th, D), lambda i, k: (k, 0)),   # W2 hidden slab (streamed)
                pl.BlockSpec((1, D), lambda i, k: (0, 0)),    # b2 (resident)
                # TODO(synk): bump W1/W2 specs to pipeline_mode=pl.Buffered(3) if xprof
                # shows exposed weight DMA at small th.
            ],
            out_specs=pl.BlockSpec((tm, D), lambda i, k: (i, 0)),
            scratch_shapes=[pltpu.VMEM((tm, D), jnp.float32)],
        ),
        compiler_params=pltpu.CompilerParams(
            dimension_semantics=("parallel", "arbitrary"),
            vmem_limit_bytes=48 * 1024 * 1024,   # headroom under v7x's 64 MiB VMEM/TC
        ),
    )(xp, w1p, b1p, w2p, b2p)

    return out[:M]


def init_params(key, n_embed, projection_scale):
    """Deterministic init matching torch.nn.Linear defaults (Kaiming-uniform-ish)."""
    hidden = projection_scale * n_embed
    k1, k2, k3, k4 = jax.random.split(key, 4)
    bound1 = 1.0 / jnp.sqrt(n_embed)
    bound2 = 1.0 / jnp.sqrt(hidden)
    # Stored as (in, out) so the kernel does x @ W directly.
    w1 = jax.random.uniform(k1, (n_embed, hidden), jnp.float32, -bound1, bound1)
    b1 = jax.random.uniform(k2, (1, hidden), jnp.float32, -bound1, bound1)
    w2 = jax.random.uniform(k3, (hidden, n_embed), jnp.float32, -bound2, bound2)
    b2 = jax.random.uniform(k4, (1, n_embed), jnp.float32, -bound2, bound2)
    return w1, b1, w2, b2


if __name__ == "__main__":
    # Shapes implied by the module: n_embed=1947, projection_scale=4 (hidden=7788),
    # with a small batch/seq so the example stays light.
    n_embed, projection_scale = 1947, 4
    batch, seq = 2, 8

    key = jax.random.PRNGKey(0)
    kx, kp = jax.random.split(key)
    x = jax.random.normal(kx, (batch, seq, n_embed), jnp.float32)
    w1, b1, w2, b2 = init_params(kp, n_embed, projection_scale)

    # Glue: flatten leading dims (Linear acts on the last dim only). jit so the
    # padding / casts fuse into one compiled program around the pallas_call.
    ffn = jax.jit(functools.partial(feed_forward, tile_m=512, tile_h=512))
    x2d = x.reshape(batch * seq, n_embed)
    out2d = ffn(x2d, w1, b1, w2, b2)
    out = out2d.reshape(batch, seq, n_embed)
    jax.block_until_ready(out)

    # Reference with matching bf16 matmul operands / f32 accumulation.
    xb = x2d.astype(jnp.bfloat16)
    w1b = w1.astype(jnp.bfloat16)
    w2b = w2.astype(jnp.bfloat16)
    h_ref = jnp.maximum(
        jnp.dot(xb, w1b, preferred_element_type=jnp.float32) + b1, 0.0)
    ref = jnp.dot(h_ref.astype(jnp.bfloat16), w2b,
                  preferred_element_type=jnp.float32) + b2

    assert out2d.shape == ref.shape
    max_err = float(jnp.max(jnp.abs(out2d - ref)))
    assert jnp.allclose(out2d, ref, atol=2e-2, rtol=2e-2), max_err

    print("KERNEL_OK")
</pallas_src>

<mosaic_0001>
module attributes {stable_mosaic.version = 11 : i64} {
  func.func @_ffn_kernel(%arg0: i32, %arg1: i32, %arg2: memref<16x1947xbf16, #tpu.memory_space<vmem>>, %arg3: memref<1947x512xbf16, #tpu.memory_space<vmem>>, %arg4: memref<1x512xf32, #tpu.memory_space<vmem>>, %arg5: memref<512x1947xbf16, #tpu.memory_space<vmem>>, %arg6: memref<1x1947xf32, #tpu.memory_space<vmem>>, %arg7: memref<16x1947xf32, #tpu.memory_space<vmem>>, %arg8: memref<16x1947xf32, #tpu.memory_space<vmem>>) attributes {dimension_semantics = [#tpu.dimension_semantics<parallel>, #tpu.dimension_semantics<arbitrary>], iteration_bounds = array<i64: 1, 16>, scalar_prefetch = 0 : i64, scratch_operands = 1 : i64, tpu.core_type = #tpu.core_type<tc>, window_params = [{transform_indices = @transform_0, window_bounds = array<i64: 16, 1947>}, {transform_indices = @transform_1, window_bounds = array<i64: 1947, 512>}, {transform_indices = @transform_2, window_bounds = array<i64: 1, 512>}, {transform_indices = @transform_3, window_bounds = array<i64: 512, 1947>}, {pipeline_mode = #tpu.pipeline_mode<synchronous>, transform_indices = @transform_4, window_bounds = array<i64: 1, 1947>}, {transform_indices = @transform_5, window_bounds = array<i64: 16, 1947>}]} {
    %c0_i32 = arith.constant 0 : i32
    %0 = arith.cmpi eq, %arg1, %c0_i32 : i32
    %1 = arith.extui %0 : i1 to i32
    %c0_i32_0 = arith.constant 0 : i32
    %2 = arith.cmpi ne, %1, %c0_i32_0 : i32
    scf.if %2 {
      %cst_15 = arith.constant 0.000000e+00 : f32
      %20 = vector.broadcast %cst_15 : f32 to vector<16x1947xf32>
      %c0_16 = arith.constant 0 : index
      %c0_17 = arith.constant 0 : index
      %21 = vector.load %arg8[%c0_16, %c0_17] : memref<16x1947xf32, #tpu.memory_space<vmem>>, vector<16x1947xf32>
      tpu.vector_store %arg8[%c0_16, %c0_17], %20 {strides = array<i32>} : memref<16x1947xf32, #tpu.memory_space<vmem>>, vector<16x1947xf32>,
    } else {
    }
    %c0 = arith.constant 0 : index
    %c0_1 = arith.constant 0 : index
    %3 = vector.load %arg2[%c0, %c0_1] : memref<16x1947xbf16, #tpu.memory_space<vmem>>, vector<16x1947xbf16>
    %c0_2 = arith.constant 0 : index
    %c0_3 = arith.constant 0 : index
    %4 = vector.load %arg3[%c0_2, %c0_3] : memref<1947x512xbf16, #tpu.memory_space<vmem>>, vector<1947x512xbf16>
    %cst = arith.constant dense<0.000000e+00> : vector<16x512xf32>
    %5 = tpu.matmul %3, %4, %cst {dimension_numbers = #tpu.dot_dimension_numbers<[1], [0], [0], [1], [0, 0, 1, 1], [], []>} : vector<16x1947xbf16>, vector<1947x512xbf16>, vector<16x512xf32> -> vector<16x512xf32>
    %c0_4 = arith.constant 0 : index
    %c0_5 = arith.constant 0 : index
    %6 = vector.load %arg4[%c0_4, %c0_5] : memref<1x512xf32, #tpu.memory_space<vmem>>, vector<1x512xf32>
    %7 = vector.broadcast %6 : vector<1x512xf32> to vector<16x512xf32>
    %8 = arith.addf %5, %7 : vector<16x512xf32>
    %cst_6 = arith.constant 0.000000e+00 : f32
    %9 = vector.broadcast %cst_6 : f32 to vector<16x512xf32>
    %10 = arith.maximumf %8, %9 : vector<16x512xf32>
    %c0_7 = arith.constant 0 : index
    %c0_8 = arith.constant 0 : index
    %11 = vector.load %arg8[%c0_7, %c0_8] : memref<16x1947xf32, #tpu.memory_space<vmem>>, vector<16x1947xf32>
    %12 = arith.truncf %10 : vector<16x512xf32> to vector<16x512xbf16>
    %c0_9 = arith.constant 0 : index
    %c0_10 = arith.constant 0 : index
    %13 = vector.load %arg5[%c0_9, %c0_10] : memref<512x1947xbf16, #tpu.memory_space<vmem>>, vector<512x1947xbf16>
    %cst_11 = arith.constant dense<0.000000e+00> : vector<16x1947xf32>
    %14 = tpu.matmul %12, %13, %cst_11 {dimension_numbers = #tpu.dot_dimension_numbers<[1], [0], [0], [1], [0, 0, 1, 1], [], []>} : vector<16x512xbf16>, vector<512x1947xbf16>, vector<16x1947xf32> -> vector<16x1947xf32>
    %15 = arith.addf %11, %14 : vector<16x1947xf32>
    %c0_12 = arith.constant 0 : index
    %c0_13 = arith.constant 0 : index
    %16 = vector.load %arg8[%c0_12, %c0_13] : memref<16x1947xf32, #tpu.memory_space<vmem>>, vector<16x1947xf32>
    tpu.vector_store %arg8[%c0_12, %c0_13], %15 {strides = array<i32>} : memref<16x1947xf32, #tpu.memory_space<vmem>>, vector<16x1947xf32>,
    %c15_i32 = arith.constant 15 : i32
    %17 = arith.cmpi eq, %arg1, %c15_i32 : i32
    %18 = arith.extui %17 : i1 to i32
    %c0_i32_14 = arith.constant 0 : i32
    %19 = arith.cmpi ne, %18, %c0_i32_14 : i32
    scf.if %19 {
      %c0_15 = arith.constant 0 : index
      %c0_16 = arith.constant 0 : index
      %20 = vector.load %arg8[%c0_15, %c0_16] : memref<16x1947xf32, #tpu.memory_space<vmem>>, vector<16x1947xf32>
      %c0_17 = arith.constant 0 : index
      %c0_18 = arith.constant 0 : index
      %21 = vector.load %arg6[%c0_17, %c0_18] : memref<1x1947xf32, #tpu.memory_space<vmem>>, vector<1x1947xf32>
      %22 = vector.broadcast %21 : vector<1x1947xf32> to vector<16x1947xf32>
      %23 = arith.addf %20, %22 : vector<16x1947xf32>
      %c0_19 = arith.constant 0 : index
      %c0_20 = arith.constant 0 : index
      %24 = vector.load %arg7[%c0_19, %c0_20] : memref<16x1947xf32, #tpu.memory_space<vmem>>, vector<16x1947xf32>
      tpu.vector_store %arg7[%c0_19, %c0_20], %23 {strides = array<i32>} : memref<16x1947xf32, #tpu.memory_space<vmem>>, vector<16x1947xf32>,
    } else {
    }
    return
  }
  func.func @transform_0(%arg0: i32, %arg1: i32) -> (i32, i32) {
    %c0_i32 = arith.constant 0 : i32
    %c0_i32_0 = arith.constant 0 : i32
    return %arg0, %c0_i32 : i32, i32
  }
  func.func @transform_1(%arg0: i32, %arg1: i32) -> (i32, i32) {
    %c0_i32 = arith.constant 0 : i32
    %c0_i32_0 = arith.constant 0 : i32
    return %c0_i32, %arg1 : i32, i32
  }
  func.func @transform_2(%arg0: i32, %arg1: i32) -> (i32, i32) {
    %c0_i32 = arith.constant 0 : i32
    %c0_i32_0 = arith.constant 0 : i32
    return %c0_i32, %arg1 : i32, i32
  }
  func.func @transform_3(%arg0: i32, %arg1: i32) -> (i32, i32) {
    %c0_i32 = arith.constant 0 : i32
    %c0_i32_0 = arith.constant 0 : i32
    return %arg1, %c0_i32 : i32, i32
  }
  func.func @transform_4(%arg0: i32, %arg1: i32) -> (i32, i32) {
    %c0_i32 = arith.constant 0 : i32
    %c0_i32_0 = arith.constant 0 : i32
    %c0_i32_1 = arith.constant 0 : i32
    return %c0_i32, %c0_i32_0 : i32, i32
  }
  func.func @transform_5(%arg0: i32, %arg1: i32) -> (i32, i32) {
    %c0_i32 = arith.constant 0 : i32
    %c0_i32_0 = arith.constant 0 : i32
    return %arg0, %c0_i32 : i32, i32
  }
}

</mosaic_0001>

<llo_original>
// kernel: feed_forward.1
$region0: #{feed_forward.1}
  #allocation0 [shape = 'u32[]', space=smem, size = 0x4, offset = 0x4, fixed_abs, tag = 'smem constant byte address 0x4 - core index']
  #allocation1 [shape = 'u32[72,128]{1,0:T(1,128)}', space=vmem, size = 0x9000, scoped, tag = 'internal scratch']
  #allocation2 [shape = 'f32[16,1947]{1,0:T(8,128)}', space=vmem, size = 0x20000, scoped, tag = 'scratch operand']
  %s0 = inlined_call_operand.vmem [shape: bf16[16,1947], index: 0, kind: input, shape index: {}]
  %s1 = inlined_call_operand.vmem [shape: bf16[1947,8192], index: 1, kind: input, shape index: {}]
  %s2 = inlined_call_operand.vmem [shape: f32[1,8192], index: 2, kind: input, shape index: {}]
  %s3 = inlined_call_operand.vmem [shape: bf16[8192,1947], index: 3, kind: input, shape index: {}]
  %s4 = inlined_call_operand.vmem [shape: f32[1,1947], index: 4, kind: input, shape index: {}]
  %s5 = inlined_call_operand.hbm [shape: f32[16,1947], index: 5, kind: output, shape index: {}]
  %s6 = sld [smem:[#allocation0]]
  $region84: #{feed_forward.1} parent=0
    _
  %s8 = ssub.s32 1, %s6
  %s9 = scalar_select 0, %s8, %s6
  $region1: #{feed_forward.1} parent=0
    #allocation3 [shape = 'u8[3997696]{0}', space=vmem, size = 0x3d0000, scoped, tag = 'input window, operand 1']
    #allocation4 [shape = 'u8[131072]{0}', space=vmem, size = 0x20000, scoped, tag = 'output window, operand 0, single buffered']
    #allocation5 [shape = 's32[2]{0}', space=sflag, size = 0x8, scoped, tag = 'scoped memory for feed_forward.1']
    %10 = vsyncpa [#allocation5], 0
    loop: start=0, step=1, limit=18
    $region2: #{feed_forward.1} parent=1 // loop_pre_header
      _
    $region3: #{feed_forward.1} parent=1 // loop_header
      %s12 = sphi 0, %s16
      %p13 = scmp.ge.s32.totalorder %s12, 18
      %s19 = sphi 0, %s31
      %s20 = sphi 0, %s27
      %s21 = sphi 0, %s19
      %s22 = sphi 0, %s20
      %s23 = sphi 0, %s21
      %s24 = sphi 0, %s22
      %s34 = sphi 0, %s36
      %s37 = sphi 0, %s34
      %s38 = sphi 0, %s37
      %s54 = sphi 0, %s38
      %s60 = sphi 0, %s62
      %s63 = sphi 0, %s60
      %s64 = sphi 0, %s63
      %s80 = sphi 0, %s64
      %s86 = sphi 0, %s88
      %s89 = sphi 0, %s86
      %s90 = sphi 0, %s89
      %s106 = sphi 0, %s90
      %s112 = sphi 0, %s114
      %s115 = sphi 0, %s112
      %s116 = sphi 0, %s115
      %s132 = sphi 0, %s116
      %s136 = sphi 0, %s136
      %s138 = sphi 0, %s136
      %s139 = sphi 0, %s138
      %s153 = sphi 0, %s139
      %s159 = sphi 0, %s161
      %s162 = sphi 0, %s159
      %s163 = sphi 0, %s162
      %s179 = sphi 0, %s163
    $region4: #{feed_forward.1} parent=1 // loop_header_branch
      %15 = sbr.rel (%p13) target = $region8
    $region5: #{feed_forward.1} parent=1 // loop_body
      %s17 = ssub.s32 %s12, 1
      %s18 = ssub.s32 %s12, 2
      %s25 = sadd.s32 1, %s20
      %p26 = scmp.ge.s32.totalorder %s25, 16
      %s27 = scalar_select %p26, 0, %s25
      %s28 = sadd.s32 1, %s19
      %s29 = scalar_select %p26, %s28, %s19
      %p30 = scmp.ge.s32.totalorder %s29, 1
      %s31 = scalar_select %p30, 0, %s29
      %s32 = ssub.s32 %s19, %s31
      %p33 = scmp.eq.s32.totalorder %s32, 0
      %s35 = sadd.s32 %s34, 1
      %s36 = scalar_select %p33, %s34, %s35
      %p39 = pneg %p33
      %p40 = scmp.eq.s32.totalorder %s12, 15
      %p41 = por %p39, %p40
      %p42 = scmp.ne.s32.totalorder %s34, %s37
      %p43 = scmp.eq.s32.totalorder %s12, 0
      %p44 = por %p42, %p43
      %p45 = scmp.ne.s32.totalorder %s34, %s37
      %p46 = scmp.eq.s32.totalorder %s17, 15
      %p47 = por %p45, %p46
      %p48 = scmp.ne.s32.totalorder %s37, %s38
      %p49 = scmp.eq.s32.totalorder %s17, 0
      %p50 = por %p48, %p49
      %p51 = scmp.ne.s32.totalorder %s37, %s38
      %p52 = scmp.eq.s32.totalorder %s18, 15
      %p53 = por %p51, %p52
      %p55 = scmp.ne.s32.totalorder %s38, %s54
      %p56 = scmp.eq.s32.totalorder %s18, 0
      %p57 = por %p55, %p56
      %s58 = ssub.s32 %s20, %s27
      %p59 = scmp.eq.s32.totalorder %s58, 0
      %s61 = sadd.s32 %s60, 1
      %s62 = scalar_select %p59, %s60, %s61
      %p65 = pneg %p59
      %p66 = scmp.eq.s32.totalorder %s12, 15
      %p67 = por %p65, %p66
      %p68 = scmp.ne.s32.totalorder %s60, %s63
      %p69 = scmp.eq.s32.totalorder %s12, 0
      %p70 = por %p68, %p69
      %p71 = scmp.ne.s32.totalorder %s60, %s63
      %p72 = scmp.eq.s32.totalorder %s17, 15
      %p73 = por %p71, %p72
      %p74 = scmp.ne.s32.totalorder %s63, %s64
      %p75 = scmp.eq.s32.totalorder %s17, 0
      %p76 = por %p74, %p75
      %p77 = scmp.ne.s32.totalorder %s63, %s64
      %p78 = scmp.eq.s32.totalorder %s18, 15
      %p79 = por %p77, %p78
      %p81 = scmp.ne.s32.totalorder %s64, %s80
      %p82 = scmp.eq.s32.totalorder %s18, 0
      %p83 = por %p81, %p82
      %s84 = ssub.s32 %s20, %s27
      %p85 = scmp.eq.s32.totalorder %s84, 0
      %s87 = sadd.s32 %s86, 1
      %s88 = scalar_select %p85, %s86, %s87
      %p91 = pneg %p85
      %p92 = scmp.eq.s32.totalorder %s12, 15
      %p93 = por %p91, %p92
      %p94 = scmp.ne.s32.totalorder %s86, %s89
      %p95 = scmp.eq.s32.totalorder %s12, 0
      %p96 = por %p94, %p95
      %p97 = scmp.ne.s32.totalorder %s86, %s89
      %p98 = scmp.eq.s32.totalorder %s17, 15
      %p99 = por %p97, %p98
      %p100 = scmp.ne.s32.totalorder %s89, %s90
      %p101 = scmp.eq.s32.totalorder %s17, 0
      %p102 = por %p100, %p101
      %p103 = scmp.ne.s32.totalorder %s89, %s90
      %p104 = scmp.eq.s32.totalorder %s18, 15
      %p105 = por %p103, %p104
      %p107 = scmp.ne.s32.totalorder %s90, %s106
      %p108 = scmp.eq.s32.totalorder %s18, 0
      %p109 = por %p107, %p108
      %s110 = ssub.s32 %s20, %s27
      %p111 = scmp.eq.s32.totalorder %s110, 0
      %s113 = sadd.s32 %s112, 1
      %s114 = scalar_select %p111, %s112, %s113
      %p117 = pneg %p111
      %p118 = scmp.eq.s32.totalorder %s12, 15
      %p119 = por %p117, %p118
      %p120 = scmp.ne.s32.totalorder %s112, %s115
      %p121 = scmp.eq.s32.totalorder %s12, 0
      %p122 = por %p120, %p121
      %p123 = scmp.ne.s32.totalorder %s112, %s115
      %p124 = scmp.eq.s32.totalorder %s17, 15
      %p125 = por %p123, %p124
      %p126 = scmp.ne.s32.totalorder %s115, %s116
      %p127 = scmp.eq.s32.totalorder %s17, 0
      %p128 = por %p126, %p127
      %p129 = scmp.ne.s32.totalorder %s115, %s116
      %p130 = scmp.eq.s32.totalorder %s18, 15
      %p131 = por %p129, %p130
      %p133 = scmp.ne.s32.totalorder %s116, %s132
      %p134 = scmp.eq.s32.totalorder %s18, 0
      %p135 = por %p133, %p134
      %s137 = sadd.s32 %s136, 1
      %p140 = scmp.eq.s32.totalorder %s12, 15
      %p141 = scmp.ne.s32.totalorder %s136, %s138
      %p142 = scmp.eq.s32.totalorder %s12, 0
      %p143 = por %p141, %p142
      %p144 = scmp.ne.s32.totalorder %s136, %s138
      %p145 = scmp.eq.s32.totalorder %s17, 15
      %p146 = por %p144, %p145
      %p147 = scmp.ne.s32.totalorder %s138, %s139
      %p148 = scmp.eq.s32.totalorder %s17, 0
      %p149 = por %p147, %p148
      %p150 = scmp.ne.s32.totalorder %s138, %s139
      %p151 = scmp.eq.s32.totalorder %s18, 15
      %p152 = por %p150, %p151
      %p154 = scmp.ne.s32.totalorder %s139, %s153
      %p155 = scmp.eq.s32.totalorder %s18, 0
      %p156 = por %p154, %p155
      %s157 = ssub.s32 %s19, %s31
      %p158 = scmp.eq.s32.totalorder %s157, 0
      %s160 = sadd.s32 %s159, 1
      %s161 = scalar_select %p158, %s159, %s160
      %p164 = pneg %p158
      %p165 = scmp.eq.s32.totalorder %s12, 15
      %p166 = por %p164, %p165
      %p167 = scmp.ne.s32.totalorder %s159, %s162
      %p168 = scmp.eq.s32.totalorder %s12, 0
      %p169 = por %p167, %p168
      %p170 = scmp.ne.s32.totalorder %s159, %s162
      %p171 = scmp.eq.s32.totalorder %s17, 15
      %p172 = por %p170, %p171
      %p173 = scmp.ne.s32.totalorder %s162, %s163
      %p174 = scmp.eq.s32.totalorder %s17, 0
      %p175 = por %p173, %p174
      %p176 = scmp.ne.s32.totalorder %s162, %s163
      %p177 = scmp.eq.s32.totalorder %s18, 15
      %p178 = por %p176, %p177
      %p180 = scmp.ne.s32.totalorder %s163, %s179
      %p181 = scmp.eq.s32.totalorder %s18, 0
      %p182 = por %p180, %p181
      %p183 = scmp.le.s32.totalorder 1, %s12
      %p184 = scmp.lt.s32.totalorder %s12, 17
      %p185 = pnand %p183, %p184
      %p186 = pneg %p185
      // Predicated region
      $region9: #{feed_forward.1} parent=5 // pred_check
        _
      $region10: #{feed_forward.1} parent=5 // pred_check_branch
        %188 = sbr.rel (%p185) target = $region12
      $region11: #{feed_forward.1} parent=5 // pred_region
        %s189 = ssub.s32 %s12, 1
        // Predicated region
        $region13: #{feed_forward.1} parent=11 // pred_check
          %p190 = pneg %p50
        $region14: #{feed_forward.1} parent=11 // pred_check_branch
          %192 = sbr.rel (%p190) target = $region16
        $region15: #{feed_forward.1} parent=11 // pred_region
          %s193 = smul.u32 2, %s21
          %p194 = scmp.lt.s32.totalorder %s193, 1
          %s195 = scalar_select %p194, %s193, 1
          %s196 = smul.addr %s195, 16
          %s197 = smul.addr %s196, 4
          %s198 = scalar_lea.vmem %s0, %s197
          %s199 = smul.u32 2, %s21
        $region16: #{feed_forward.1} parent=11 // pred_fallthru
          _
        // Predicated region
        $region17: #{feed_forward.1} parent=11 // pred_check
          %p200 = pneg %p149
        $region18: #{feed_forward.1} parent=11 // pred_check_branch
          %202 = sbr.rel (%p200) target = $region20
        $region19: #{feed_forward.1} parent=11 // pred_region
          _
        $region20: #{feed_forward.1} parent=11 // pred_fallthru
          _
      $region12: #{feed_forward.1} parent=5 // pred_fallthru
        _
      %p203 = scmp.lt.s32.totalorder %s12, 16
      // Predicated region
      $region21: #{feed_forward.1} parent=5 // pred_check
        %p204 = pneg %p203
      $region22: #{feed_forward.1} parent=5 // pred_check_branch
        %206 = sbr.rel (%p204) target = $region24
      $region23: #{feed_forward.1} parent=5 // pred_region
        // Predicated region
        $region25: #{feed_forward.1} parent=23 // pred_check
          %p207 = pneg %p70
        $region26: #{feed_forward.1} parent=23 // pred_check_branch
          %209 = sbr.rel (%p207) target = $region28
        $region27: #{feed_forward.1} parent=23 // pred_region
          %s210 = sand.u32 %s60, 1
          %s211 = sand.u32 %s60, 1
          %s212 = smul.addr %s211, 3904
          %s213 = scalar_lea.vmem [#allocation3], %s212
          %s214 = smul.u32 4, %s20
          %s215 = smul.addr %s214, 4
          %s216 = scalar_lea.vmem %s1, %s215
          // Predicated region
          $region29: #{feed_forward.1} parent=27 // pred_check
            _
          $region30: #{feed_forward.1} parent=27 // pred_check_branch
            %218 = sbr.rel (0) target = $region32
          $region31: #{feed_forward.1} parent=27 // pred_region
            // Predicated region
            $region33: #{feed_forward.1} parent=31 // pred_check
              _
            $region34: #{feed_forward.1} parent=31 // pred_check_branch
              %220 = sbr.rel (0) target = $region36
            $region35: #{feed_forward.1} parent=31 // pred_region
              loop: start=0, step=1, limit=1
              $region37: #{feed_forward.1} parent=35 // loop_pre_header
                _
              $region38: #{feed_forward.1} parent=35 // loop_header
                %s222 = sphi 0, %s226
                %p223 = scmp.ge.s32.totalorder %s222, 1
                %s227 = sphi %s216, %s216
                %s228 = sphi %s213, %s213
              $region39: #{feed_forward.1} parent=35 // loop_header_branch
                %225 = sbr.rel (%p223) target = $region43
              $region40: #{feed_forward.1} parent=35 // loop_body
                %v229 = vld [vmem:[%s227] sm:$0xff]
                %230 = vst [vmem:[%s228] sm:$0xff] %v229
                %v231 = vld [vmem:[%s227 + $0x8] sm:$0xff]
                %232 = vst [vmem:[%s228 + $0x8] sm:$0xff] %v231
                %v233 = vld [vmem:[%s227 + $0x100] sm:$0xff]
                %234 = vst [vmem:[%s228 + $0x10] sm:$0xff] %v233
                %v235 = vld [vmem:[%s227 + $0x108] sm:$0xff]
                %236 = vst [vmem:[%s228 + $0x18] sm:$0xff] %v235
                %v237 = vld [vmem:[%s227 + $0x200] sm:$0xff]
                %238 = vst [vmem:[%s228 + $0x20] sm:$0xff] %v237
                %v239 = vld [vmem:[%s227 + $0x208] sm:$0xff]
                %240 = vst [vmem:[%s228 + $0x28] sm:$0xff] %v239
                %v241 = vld [vmem:[%s227 + $0x300] sm:$0xff]
                %242 = vst [vmem:[%s228 + $0x30] sm:$0xff] %v241
                %v243 = vld [vmem:[%s227 + $0x308] sm:$0xff]
                %244 = vst [vmem:[%s228 + $0x38] sm:$0xff] %v243
                %v245 = vld [vmem:[%s227 + $0x400] sm:$0xff]
                %246 = vst [vmem:[%s228 + $0x40] sm:$0xff] %v245
                %v247 = vld [vmem:[%s227 + $0x408] sm:$0xff]
                %248 = vst [vmem:[%s228 + $0x48] sm:$0xff] %v247
                %v249 = vld [vmem:[%s227 + $0x500] sm:$0xff]
                %250 = vst [vmem:[%s228 + $0x50] sm:$0xff] %v249
                %v251 = vld [vmem:[%s227 + $0x508] sm:$0xff]
                %252 = vst [vmem:[%s228 + $0x58] sm:$0xff] %v251
                %v253 = vld [vmem:[%s227 + $0x600] sm:$0xff]
                %254 = vst [vmem:[%s228 + $0x60] sm:$0xff] %v253
                %v255 = vld [vmem:[%s227 + $0x608] sm:$0xff]
                %256 = vst [vmem:[%s228 + $0x68] sm:$0xff] %v255
                %v257 = vld [vmem:[%s227 + $0x700] sm:$0xff]
                %258 = vst [vmem:[%s228 + $0x70] sm:$0xff] %v257
                %v259 = vld [vmem:[%s227 + $0x708] sm:$0xff]
                %260 = vst [vmem:[%s228 + $0x78] sm:$0xff] %v259
                %v261 = vld [vmem:[%s227 + $0x800] sm:$0xff]
                %262 = vst [vmem:[%s228 + $0x80] sm:$0xff] %v261
                %v263 = vld [vmem:[%s227 + $0x808] sm:$0xff]
                %264 = vst [vmem:[%s228 + $0x88] sm:$0xff] %v263
                %v265 = vld [vmem:[%s227 + $0x900] sm:$0xff]
                %266 = vst [vmem:[%s228 + $0x90] sm:$0xff] %v265
                %v267 = vld [vmem:[%s227 + $0x908] sm:$0xff]
                %268 = vst [vmem:[%s228 + $0x98] sm:$0xff] %v267
                %v269 = vld [vmem:[%s227 + $0xa00] sm:$0xff]
                %270 = vst [vmem:[%s228 + $0xa0] sm:$0xff] %v269
                %v271 = vld [vmem:[%s227 + $0xa08] sm:$0xff]
                %272 = vst [vmem:[%s228 + $0xa8] sm:$0xff] %v271
                %v273 = vld [vmem:[%s227 + $0xb00] sm:$0xff]
                %274 = vst [vmem:[%s228 + $0xb0] sm:$0xff] %v273
                %v275 = vld [vmem:[%s227 + $0xb08] sm:$0xff]
                %276 = vst [vmem:[%s228 + $0xb8] sm:$0xff] %v275
                %v277 = vld [vmem:[%s227 + $0xc00] sm:$0xff]
                %278 = vst [vmem:[%s228 + $0xc0] sm:$0xff] %v277
                %v279 = vld [vmem:[%s227 + $0xc08] sm:$0xff]
                %280 = vst [vmem:[%s228 + $0xc8] sm:$0xff] %v279
                %v281 = vld [vmem:[%s227 + $0xd00] sm:$0xff]
                %282 = vst [vmem:[%s228 + $0xd0] sm:$0xff] %v281
                %v283 = vld [vmem:[%s227 + $0xd08] sm:$0xff]
                %284 = vst [vmem:[%s228 + $0xd8] sm:$0xff] %v283
                %v285 = vld [vmem:[%s227 + $0xe00] sm:$0xff]
                %286 = vst [vmem:[%s228 + $0xe0] sm:$0xff] %v285
                %v287 = vld [vmem:[%s227 + $0xe08] sm:$0xff]
                %288 = vst [vmem:[%s228 + $0xe8] sm:$0xff] %v287
                %v289 = vld [vmem:[%s227 + $0xf00] sm:$0xff]
                %290 = vst [vmem:[%s228 + $0xf0] sm:$0xff] %v289
                %v291 = vld [vmem:[%s227 + $0xf08] sm:$0xff]
                %292 = vst [vmem:[%s228 + $0xf8] sm:$0xff] %v291
                %v293 = vld [vmem:[%s227 + $0x1000] sm:$0xff]
                %294 = vst [vmem:[%s228 + $0x100] sm:$0xff] %v293
                %v295 = vld [vmem:[%s227 + $0x1008] sm:$0xff]
                %296 = vst [vmem:[%s228 + $0x108] sm:$0xff] %v295
                %v297 = vld [vmem:[%s227 + $0x1100] sm:$0xff]
                %298 = vst [vmem:[%s228 + $0x110] sm:$0xff] %v297
                %v299 = vld [vmem:[%s227 + $0x1108] sm:$0xff]
                %300 = vst [vmem:[%s228 + $0x118] sm:$0xff] %v299
                %v301 = vld [vmem:[%s227 + $0x1200] sm:$0xff]
                %302 = vst [vmem:[%s228 + $0x120] sm:$0xff] %v301
                %v303 = vld [vmem:[%s227 + $0x1208] sm:$0xff]
                %304 = vst [vmem:[%s228 + $0x128] sm:$0xff] %v303
                %v305 = vld [vmem:[%s227 + $0x1300] sm:$0xff]
                %306 = vst [vmem:[%s228 + $0x130] sm:$0xff] %v305
                %v307 = vld [vmem:[%s227 + $0x1308] sm:$0xff]
                %308 = vst [vmem:[%s228 + $0x138] sm:$0xff] %v307
                %v309 = vld [vmem:[%s227 + $0x1400] sm:$0xff]
                %310 = vst [vmem:[%s228 + $0x140] sm:$0xff] %v309
                %v311 = vld [vmem:[%s227 + $0x1408] sm:$0xff]
                %312 = vst [vmem:[%s228 + $0x148] sm:$0xff] %v311
                %v313 = vld [vmem:[%s227 + $0x1500] sm:$0xff]
                %314 = vst [vmem:[%s228 + $0x150] sm:$0xff] %v313
                %v315 = vld [vmem:[%s227 + $0x1508] sm:$0xff]
                %316 = vst [vmem:[%s228 + $0x158] sm:$0xff] %v315
                %v317 = vld [vmem:[%s227 + $0x1600] sm:$0xff]
                %318 = vst [vmem:[%s228 + $0x160] sm:$0xff] %v317
                %v319 = vld [vmem:[%s227 + $0x1608] sm:$0xff]
                %320 = vst [vmem:[%s228 + $0x168] sm:$0xff] %v319
                %v321 = vld [vmem:[%s227 + $0x1700] sm:$0xff]
                %322 = vst [vmem:[%s228 + $0x170] sm:$0xff] %v321
                %v323 = vld [vmem:[%s227 + $0x1708] sm:$0xff]
                %324 = vst [vmem:[%s228 + $0x178] sm:$0xff] %v323
                %v325 = vld [vmem:[%s227 + $0x1800] sm:$0xff]
                %326 = vst [vmem:[%s228 + $0x180] sm:$0xff] %v325
                %v327 = vld [vmem:[%s227 + $0x1808] sm:$0xff]
                %328 = vst [vmem:[%s228 + $0x188] sm:$0xff] %v327
                %v329 = vld [vmem:[%s227 + $0x1900] sm:$0xff]
                %330 = vst [vmem:[%s228 + $0x190] sm:$0xff] %v329
                %v331 = vld [vmem:[%s227 + $0x1908] sm:$0xff]
                %332 = vst [vmem:[%s228 + $0x198] sm:$0xff] %v331
                %v333 = vld [vmem:[%s227 + $0x1a00] sm:$0xff]
                %334 = vst [vmem:[%s228 + $0x1a0] sm:$0xff] %v333
                %v335 = vld [vmem:[%s227 + $0x1a08] sm:$0xff]
                %336 = vst [vmem:[%s228 + $0x1a8] sm:$0xff] %v335
                %v337 = vld [vmem:[%s227 + $0x1b00] sm:$0xff]
                %338 = vst [vmem:[%s228 + $0x1b0] sm:$0xff] %v337
                %v339 = vld [vmem:[%s227 + $0x1b08] sm:$0xff]
                %340 = vst [vmem:[%s228 + $0x1b8] sm:$0xff] %v339
                %v341 = vld [vmem:[%s227 + $0x1c00] sm:$0xff]
                %342 = vst [vmem:[%s228 + $0x1c0] sm:$0xff] %v341
                %v343 = vld [vmem:[%s227 + $0x1c08] sm:$0xff]
                %344 = vst [vmem:[%s228 + $0x1c8] sm:$0xff] %v343
                %v345 = vld [vmem:[%s227 + $0x1d00] sm:$0xff]
                %346 = vst [vmem:[%s228 + $0x1d0] sm:$0xff] %v345
                %v347 = vld [vmem:[%s227 + $0x1d08] sm:$0xff]
                %348 = vst [vmem:[%s228 + $0x1d8] sm:$0xff] %v347
                %v349 = vld [vmem:[%s227 + $0x1e00] sm:$0xff]
                %350 = vst [vmem:[%s228 + $0x1e0] sm:$0xff] %v349
                %v351 = vld [vmem:[%s227 + $0x1e08] sm:$0xff]
                %352 = vst [vmem:[%s228 + $0x1e8] sm:$0xff] %v351
                %v353 = vld [vmem:[%s227 + $0x1f00] sm:$0xff]
                %354 = vst [vmem:[%s228 + $0x1f0] sm:$0xff] %v353
                %v355 = vld [vmem:[%s227 + $0x1f08] sm:$0xff]
                %356 = vst [vmem:[%s228 + $0x1f8] sm:$0xff] %v355
                %v357 = vld [vmem:[%s227 + $0x2000] sm:$0xff]
                %358 = vst [vmem:[%s228 + $0x200] sm:$0xff] %v357
                %v359 = vld [vmem:[%s227 + $0x2008] sm:$0xff]
                %360 = vst [vmem:[%s228 + $0x208] sm:$0xff] %v359
                %v361 = vld [vmem:[%s227 + $0x2100] sm:$0xff]
                %362 = vst [vmem:[%s228 + $0x210] sm:$0xff] %v361
                %v363 = vld [vmem:[%s227 + $0x2108] sm:$0xff]
                %364 = vst [vmem:[%s228 + $0x218] sm:$0xff] %v363
                %v365 = vld [vmem:[%s227 + $0x2200] sm:$0xff]
                %366 = vst [vmem:[%s228 + $0x220] sm:$0xff] %v365
                %v367 = vld [vmem:[%s227 + $0x2208] sm:$0xff]
                %368 = vst [vmem:[%s228 + $0x228] sm:$0xff] %v367
                %v369 = vld [vmem:[%s227 + $0x2300] sm:$0xff]
                %370 = vst [vmem:[%s228 + $0x230] sm:$0xff] %v369
                %v371 = vld [vmem:[%s227 + $0x2308] sm:$0xff]
                %372 = vst [vmem:[%s228 + $0x238] sm:$0xff] %v371
                %v373 = vld [vmem:[%s227 + $0x2400] sm:$0xff]
                %374 = vst [vmem:[%s228 + $0x240] sm:$0xff] %v373
                %v375 = vld [vmem:[%s227 + $0x2408] sm:$0xff]
                %376 = vst [vmem:[%s228 + $0x248] sm:$0xff] %v375
                %v377 = vld [vmem:[%s227 + $0x2500] sm:$0xff]
                %378 = vst [vmem:[%s228 + $0x250] sm:$0xff] %v377
                %v379 = vld [vmem:[%s227 + $0x2508] sm:$0xff]
                %380 = vst [vmem:[%s228 + $0x258] sm:$0xff] %v379
                %v381 = vld [vmem:[%s227 + $0x2600] sm:$0xff]
                %382 = vst [vmem:[%s228 + $0x260] sm:$0xff] %v381
                %v383 = vld [vmem:[%s227 + $0x2608] sm:$0xff]
                %384 = vst [vmem:[%s228 + $0x268] sm:$0xff] %v383
                %v385 = vld [vmem:[%s227 + $0x2700] sm:$0xff]
                %386 = vst [vmem:[%s228 + $0x270] sm:$0xff] %v385
                %v387 = vld [vmem:[%s227 + $0x2708] sm:$0xff]
                %388 = vst [vmem:[%s228 + $0x278] sm:$0xff] %v387
                %v389 = vld [vmem:[%s227 + $0x2800] sm:$0xff]
                %390 = vst [vmem:[%s228 + $0x280] sm:$0xff] %v389
                %v391 = vld [vmem:[%s227 + $0x2808] sm:$0xff]
                %392 = vst [vmem:[%s228 + $0x288] sm:$0xff] %v391
                %v393 = vld [vmem:[%s227 + $0x2900] sm:$0xff]
                %394 = vst [vmem:[%s228 + $0x290] sm:$0xff] %v393
                %v395 = vld [vmem:[%s227 + $0x2908] sm:$0xff]
                %396 = vst [vmem:[%s228 + $0x298] sm:$0xff] %v395
                %v397 = vld [vmem:[%s227 + $0x2a00] sm:$0xff]
                %398 = vst [vmem:[%s228 + $0x2a0] sm:$0xff] %v397
                %v399 = vld [vmem:[%s227 + $0x2a08] sm:$0xff]
                %400 = vst [vmem:[%s228 + $0x2a8] sm:$0xff] %v399
                %v401 = vld [vmem:[%s227 + $0x2b00] sm:$0xff]
                %402 = vst [vmem:[%s228 + $0x2b0] sm:$0xff] %v401
                %v403 = vld [vmem:[%s227 + $0x2b08] sm:$0xff]
                %404 = vst [vmem:[%s228 + $0x2b8] sm:$0xff] %v403
                %v405 = vld [vmem:[%s227 + $0x2c00] sm:$0xff]
                %406 = vst [vmem:[%s228 + $0x2c0] sm:$0xff] %v405
                %v407 = vld [vmem:[%s227 + $0x2c08] sm:$0xff]
                %408 = vst [vmem:[%s228 + $0x2c8] sm:$0xff] %v407
                %v409 = vld [vmem:[%s227 + $0x2d00] sm:$0xff]
                %410 = vst [vmem:[%s228 + $0x2d0] sm:$0xff] %v409
                %v411 = vld [vmem:[%s227 + $0x2d08] sm:$0xff]
                %412 = vst [vmem:[%s228 + $0x2d8] sm:$0xff] %v411
                %v413 = vld [vmem:[%s227 + $0x2e00] sm:$0xff]
                %414 = vst [vmem:[%s228 + $0x2e0] sm:$0xff] %v413
                %v415 = vld [vmem:[%s227 + $0x2e08] sm:$0xff]
                %416 = vst [vmem:[%s228 + $0x2e8] sm:$0xff] %v415
                %v417 = vld [vmem:[%s227 + $0x2f00] sm:$0xff]
                %418 = vst [vmem:[%s228 + $0x2f0] sm:$0xff] %v417
                %v419 = vld [vmem:[%s227 + $0x2f08] sm:$0xff]
                %420 = vst [vmem:[%s228 + $0x2f8] sm:$0xff] %v419
                %v421 = vld [vmem:[%s227 + $0x3000] sm:$0xff]
                %422 = vst [vmem:[%s228 + $0x300] sm:$0xff] %v421
                %v423 = vld [vmem:[%s227 + $0x3008] sm:$0xff]
                %424 = vst [vmem:[%s228 + $0x308] sm:$0xff] %v423
                %v425 = vld [vmem:[%s227 + $0x3100] sm:$0xff]
                %426 = vst [vmem:[%s228 + $0x310] sm:$0xff] %v425
                %v427 = vld [vmem:[%s227 + $0x3108] sm:$0xff]
                %428 = vst [vmem:[%s228 + $0x318] sm:$0xff] %v427
                %v429 = vld [vmem:[%s227 + $0x3200] sm:$0xff]
                %430 = vst [vmem:[%s228 + $0x320] sm:$0xff] %v429
                %v431 = vld [vmem:[%s227 + $0x3208] sm:$0xff]
                %432 = vst [vmem:[%s228 + $0x328] sm:$0xff] %v431
                %v433 = vld [vmem:[%s227 + $0x3300] sm:$0xff]
                %434 = vst [vmem:[%s228 + $0x330] sm:$0xff] %v433
                %v435 = vld [vmem:[%s227 + $0x3308] sm:$0xff]
                %436 = vst [vmem:[%s228 + $0x338] sm:$0xff] %v435
                %v437 = vld [vmem:[%s227 + $0x3400] sm:$0xff]
                %438 = vst [vmem:[%s228 + $0x340] sm:$0xff] %v437
                %v439 = vld [vmem:[%s227 + $0x3408] sm:$0xff]
                %440 = vst [vmem:[%s228 + $0x348] sm:$0xff] %v439
                %v441 = vld [vmem:[%s227 + $0x3500] sm:$0xff]
                %442 = vst [vmem:[%s228 + $0x350] sm:$0xff] %v441
                %v443 = vld [vmem:[%s227 + $0x3508] sm:$0xff]
                %444 = vst [vmem:[%s228 + $0x358] sm:$0xff] %v443
                %v445 = vld [vmem:[%s227 + $0x3600] sm:$0xff]
                %446 = vst [vmem:[%s228 + $0x360] sm:$0xff] %v445
                %v447 = vld [vmem:[%s227 + $0x3608] sm:$0xff]
                %448 = vst [vmem:[%s228 + $0x368] sm:$0xff] %v447
                %v449 = vld [vmem:[%s227 + $0x3700] sm:$0xff]
                %450 = vst [vmem:[%s228 + $0x370] sm:$0xff] %v449
                %v451 = vld [vmem:[%s227 + $0x3708] sm:$0xff]
                %452 = vst [vmem:[%s228 + $0x378] sm:$0xff] %v451
                %v453 = vld [vmem:[%s227 + $0x3800] sm:$0xff]
                %454 = vst [vmem:[%s228 + $0x380] sm:$0xff] %v453
                %v455 = vld [vmem:[%s227 + $0x3808] sm:$0xff]
                %456 = vst [vmem:[%s228 + $0x388] sm:$0xff] %v455
                %v457 = vld [vmem:[%s227 + $0x3900] sm:$0xff]
                %458 = vst [vmem:[%s228 + $0x390] sm:$0xff] %v457
                %v459 = vld [vmem:[%s227 + $0x3908] sm:$0xff]
                %460 = vst [vmem:[%s228 + $0x398] sm:$0xff] %v459
                %v461 = vld [vmem:[%s227 + $0x3a00] sm:$0xff]
                %462 = vst [vmem:[%s228 + $0x3a0] sm:$0xff] %v461
                %v463 = vld [vmem:[%s227 + $0x3a08] sm:$0xff]
                %464 = vst [vmem:[%s228 + $0x3a8] sm:$0xff] %v463
                %v465 = vld [vmem:[%s227 + $0x3b00] sm:$0xff]
                %466 = vst [vmem:[%s228 + $0x3b0] sm:$0xff] %v465
                %v467 = vld [vmem:[%s227 + $0x3b08] sm:$0xff]
                %468 = vst [vmem:[%s228 + $0x3b8] sm:$0xff] %v467
                %v469 = vld [vmem:[%s227 + $0x3c00] sm:$0xff]
                %470 = vst [vmem:[%s228 + $0x3c0] sm:$0xff] %v469
                %v471 = vld [vmem:[%s227 + $0x3c08] sm:$0xff]
                %472 = vst [vmem:[%s228 + $0x3c8] sm:$0xff] %v471
                %v473 = vld [vmem:[%s227 + $0x3d00] sm:$0xff]
                %474 = vst [vmem:[%s228 + $0x3d0] sm:$0xff] %v473
                %v475 = vld [vmem:[%s227 + $0x3d08] sm:$0xff]
                %476 = vst [vmem:[%s228 + $0x3d8] sm:$0xff] %v475
                %v477 = vld [vmem:[%s227 + $0x3e00] sm:$0xff]
                %478 = vst [vmem:[%s228 + $0x3e0] sm:$0xff] %v477
                %v479 = vld [vmem:[%s227 + $0x3e08] sm:$0xff]
                %480 = vst [vmem:[%s228 + $0x3e8] sm:$0xff] %v479
                %v481 = vld [vmem:[%s227 + $0x3f00] sm:$0xff]
                %482 = vst [vmem:[%s228 + $0x3f0] sm:$0xff] %v481
                %v483 = vld [vmem:[%s227 + $0x3f08] sm:$0xff]
                %484 = vst [vmem:[%s228 + $0x3f8] sm:$0xff] %v483
                %v485 = vld [vmem:[%s227 + $0x4000] sm:$0xff]
                %486 = vst [vmem:[%s228 + $0x400] sm:$0xff] %v485
                %v487 = vld [vmem:[%s227 + $0x4008] sm:$0xff]
                %488 = vst [vmem:[%s228 + $0x408] sm:$0xff] %v487
                %v489 = vld [vmem:[%s227 + $0x4100] sm:$0xff]
                %490 = vst [vmem:[%s228 + $0x410] sm:$0xff] %v489
                %v491 = vld [vmem:[%s227 + $0x4108] sm:$0xff]
                %492 = vst [vmem:[%s228 + $0x418] sm:$0xff] %v491
                %v493 = vld [vmem:[%s227 + $0x4200] sm:$0xff]
                %494 = vst [vmem:[%s228 + $0x420] sm:$0xff] %v493
                %v495 = vld [vmem:[%s227 + $0x4208] sm:$0xff]
                %496 = vst [vmem:[%s228 + $0x428] sm:$0xff] %v495
                %v497 = vld [vmem:[%s227 + $0x4300] sm:$0xff]
                %498 = vst [vmem:[%s228 + $0x430] sm:$0xff] %v497
                %v499 = vld [vmem:[%s227 + $0x4308] sm:$0xff]
                %500 = vst [vmem:[%s228 + $0x438] sm:$0xff] %v499
                %v501 = vld [vmem:[%s227 + $0x4400] sm:$0xff]
                %502 = vst [vmem:[%s228 + $0x440] sm:$0xff] %v501
                %v503 = vld [vmem:[%s227 + $0x4408] sm:$0xff]
                %504 = vst [vmem:[%s228 + $0x448] sm:$0xff] %v503
                %v505 = vld [vmem:[%s227 + $0x4500] sm:$0xff]
                %506 = vst [vmem:[%s228 + $0x450] sm:$0xff] %v505
                %v507 = vld [vmem:[%s227 + $0x4508] sm:$0xff]
                %508 = vst [vmem:[%s228 + $0x458] sm:$0xff] %v507
                %v509 = vld [vmem:[%s227 + $0x4600] sm:$0xff]
                %510 = vst [vmem:[%s228 + $0x460] sm:$0xff] %v509
                %v511 = vld [vmem:[%s227 + $0x4608] sm:$0xff]
                %512 = vst [vmem:[%s228 + $0x468] sm:$0xff] %v511
                %v513 = vld [vmem:[%s227 + $0x4700] sm:$0xff]
                %514 = vst [vmem:[%s228 + $0x470] sm:$0xff] %v513
                %v515 = vld [vmem:[%s227 + $0x4708] sm:$0xff]
                %516 = vst [vmem:[%s228 + $0x478] sm:$0xff] %v515
                %v517 = vld [vmem:[%s227 + $0x4800] sm:$0xff]
                %518 = vst [vmem:[%s228 + $0x480] sm:$0xff] %v517
                %v519 = vld [vmem:[%s227 + $0x4808] sm:$0xff]
                %520 = vst [vmem:[%s228 + $0x488] sm:$0xff] %v519
                %v521 = vld [vmem:[%s227 + $0x4900] sm:$0xff]
                %522 = vst [vmem:[%s228 + $0x490] sm:$0xff] %v521
                %v523 = vld [vmem:[%s227 + $0x4908] sm:$0xff]
                %524 = vst [vmem:[%s228 + $0x498] sm:$0xff] %v523
                %v525 = vld [vmem:[%s227 + $0x4a00] sm:$0xff]
                %526 = vst [vmem:[%s228 + $0x4a0] sm:$0xff] %v525
                %v527 = vld [vmem:[%s227 + $0x4a08] sm:$0xff]
                %528 = vst [vmem:[%s228 + $0x4a8] sm:$0xff] %v527
                %v529 = vld [vmem:[%s227 + $0x4b00] sm:$0xff]
                %530 = vst [vmem:[%s228 + $0x4b0] sm:$0xff] %v529
                %v531 = vld [vmem:[%s227 + $0x4b08] sm:$0xff]
                %532 = vst [vmem:[%s228 + $0x4b8] sm:$0xff] %v531
                %v533 = vld [vmem:[%s227 + $0x4c00] sm:$0xff]
                %534 = vst [vmem:[%s228 + $0x4c0] sm:$0xff] %v533
                %v535 = vld [vmem:[%s227 + $0x4c08] sm:$0xff]
                %536 = vst [vmem:[%s228 + $0x4c8] sm:$0xff] %v535
                %v537 = vld [vmem:[%s227 + $0x4d00] sm:$0xff]
                %538 = vst [vmem:[%s228 + $0x4d0] sm:$0xff] %v537
                %v539 = vld [vmem:[%s227 + $0x4d08] sm:$0xff]
                %540 = vst [vmem:[%s228 + $0x4d8] sm:$0xff] %v539
                %v541 = vld [vmem:[%s227 + $0x4e00] sm:$0xff]
                %542 = vst [vmem:[%s228 + $0x4e0] sm:$0xff] %v541
                %v543 = vld [vmem:[%s227 + $0x4e08] sm:$0xff]
                %544 = vst [vmem:[%s228 + $0x4e8] sm:$0xff] %v543
                %v545 = vld [vmem:[%s227 + $0x4f00] sm:$0xff]
                %546 = vst [vmem:[%s228 + $0x4f0] sm:$0xff] %v545
                %v547 = vld [vmem:[%s227 + $0x4f08] sm:$0xff]
                %548 = vst [vmem:[%s228 + $0x4f8] sm:$0xff] %v547
                %v549 = vld [vmem:[%s227 + $0x5000] sm:$0xff]
                %550 = vst [vmem:[%s228 + $0x500] sm:$0xff] %v549
                %v551 = vld [vmem:[%s227 + $0x5008] sm:$0xff]
                %552 = vst [vmem:[%s228 + $0x508] sm:$0xff] %v551
                %v553 = vld [vmem:[%s227 + $0x5100] sm:$0xff]
                %554 = vst [vmem:[%s228 + $0x510] sm:$0xff] %v553
                %v555 = vld [vmem:[%s227 + $0x5108] sm:$0xff]
                %556 = vst [vmem:[%s228 + $0x518] sm:$0xff] %v555
                %v557 = vld [vmem:[%s227 + $0x5200] sm:$0xff]
                %558 = vst [vmem:[%s228 + $0x520] sm:$0xff] %v557
                %v559 = vld [vmem:[%s227 + $0x5208] sm:$0xff]
                %560 = vst [vmem:[%s228 + $0x528] sm:$0xff] %v559
                %v561 = vld [vmem:[%s227 + $0x5300] sm:$0xff]
                %562 = vst [vmem:[%s228 + $0x530] sm:$0xff] %v561
                %v563 = vld [vmem:[%s227 + $0x5308] sm:$0xff]
                %564 = vst [vmem:[%s228 + $0x538] sm:$0xff] %v563
                %v565 = vld [vmem:[%s227 + $0x5400] sm:$0xff]
                %566 = vst [vmem:[%s228 + $0x540] sm:$0xff] %v565
                %v567 = vld [vmem:[%s227 + $0x5408] sm:$0xff]
                %568 = vst [vmem:[%s228 + $0x548] sm:$0xff] %v567
                %v569 = vld [vmem:[%s227 + $0x5500] sm:$0xff]
                %570 = vst [vmem:[%s228 + $0x550] sm:$0xff] %v569
                %v571 = vld [vmem:[%s227 + $0x5508] sm:$0xff]
                %572 = vst [vmem:[%s228 + $0x558] sm:$0xff] %v571
                %v573 = vld [vmem:[%s227 + $0x5600] sm:$0xff]
                %574 = vst [vmem:[%s228 + $0x560] sm:$0xff] %v573
                %v575 = vld [vmem:[%s227 + $0x5608] sm:$0xff]
                %576 = vst [vmem:[%s228 + $0x568] sm:$0xff] %v575
                %v577 = vld [vmem:[%s227 + $0x5700] sm:$0xff]
                %578 = vst [vmem:[%s228 + $0x570] sm:$0xff] %v577
                %v579 = vld [vmem:[%s227 + $0x5708] sm:$0xff]
                %580 = vst [vmem:[%s228 + $0x578] sm:$0xff] %v579
                %v581 = vld [vmem:[%s227 + $0x5800] sm:$0xff]
                %582 = vst [vmem:[%s228 + $0x580] sm:$0xff] %v581
                %v583 = vld [vmem:[%s227 + $0x5808] sm:$0xff]
                %584 = vst [vmem:[%s228 + $0x588] sm:$0xff] %v583
                %v585 = vld [vmem:[%s227 + $0x5900] sm:$0xff]
                %586 = vst [vmem:[%s228 + $0x590] sm:$0xff] %v585
                %v587 = vld [vmem:[%s227 + $0x5908] sm:$0xff]
                %588 = vst [vmem:[%s228 + $0x598] sm:$0xff] %v587
                %v589 = vld [vmem:[%s227 + $0x5a00] sm:$0xff]
                %590 = vst [vmem:[%s228 + $0x5a0] sm:$0xff] %v589
                %v591 = vld [vmem:[%s227 + $0x5a08] sm:$0xff]
                %592 = vst [vmem:[%s228 + $0x5a8] sm:$0xff] %v591
                %v593 = vld [vmem:[%s227 + $0x5b00] sm:$0xff]
                %594 = vst [vmem:[%s228 + $0x5b0] sm:$0xff] %v593
                %v595 = vld [vmem:[%s227 + $0x5b08] sm:$0xff]
                %596 = vst [vmem:[%s228 + $0x5b8] sm:$0xff] %v595
                %v597 = vld [vmem:[%s227 + $0x5c00] sm:$0xff]
                %598 = vst [vmem:[%s228 + $0x5c0] sm:$0xff] %v597
                %v599 = vld [vmem:[%s227 + $0x5c08] sm:$0xff]
                %600 = vst [vmem:[%s228 + $0x5c8] sm:$0xff] %v599
                %v601 = vld [vmem:[%s227 + $0x5d00] sm:$0xff]
                %602 = vst [vmem:[%s228 + $0x5d0] sm:$0xff] %v601
                %v603 = vld [vmem:[%s227 + $0x5d08] sm:$0xff]
                %604 = vst [vmem:[%s228 + $0x5d8] sm:$0xff] %v603
                %v605 = vld [vmem:[%s227 + $0x5e00] sm:$0xff]
                %606 = vst [vmem:[%s228 + $0x5e0] sm:$0xff] %v605
                %v607 = vld [vmem:[%s227 + $0x5e08] sm:$0xff]
                %608 = vst [vmem:[%s228 + $0x5e8] sm:$0xff] %v607
                %v609 = vld [vmem:[%s227 + $0x5f00] sm:$0xff]
                %610 = vst [vmem:[%s228 + $0x5f0] sm:$0xff] %v609
                %v611 = vld [vmem:[%s227 + $0x5f08] sm:$0xff]
                %612 = vst [vmem:[%s228 + $0x5f8] sm:$0xff] %v611
                %v613 = vld [vmem:[%s227 + $0x6000] sm:$0xff]
                %614 = vst [vmem:[%s228 + $0x600] sm:$0xff] %v613
                %v615 = vld [vmem:[%s227 + $0x6008] sm:$0xff]
                %616 = vst [vmem:[%s228 + $0x608] sm:$0xff] %v615
                %v617 = vld [vmem:[%s227 + $0x6100] sm:$0xff]
                %618 = vst [vmem:[%s228 + $0x610] sm:$0xff] %v617
                %v619 = vld [vmem:[%s227 + $0x6108] sm:$0xff]
                %620 = vst [vmem:[%s228 + $0x618] sm:$0xff] %v619
                %v621 = vld [vmem:[%s227 + $0x6200] sm:$0xff]
                %622 = vst [vmem:[%s228 + $0x620] sm:$0xff] %v621
                %v623 = vld [vmem:[%s227 + $0x6208] sm:$0xff]
                %624 = vst [vmem:[%s228 + $0x628] sm:$0xff] %v623
                %v625 = vld [vmem:[%s227 + $0x6300] sm:$0xff]
                %626 = vst [vmem:[%s228 + $0x630] sm:$0xff] %v625
                %v627 = vld [vmem:[%s227 + $0x6308] sm:$0xff]
                %628 = vst [vmem:[%s228 + $0x638] sm:$0xff] %v627
                %v629 = vld [vmem:[%s227 + $0x6400] sm:$0xff]
                %630 = vst [vmem:[%s228 + $0x640] sm:$0xff] %v629
                %v631 = vld [vmem:[%s227 + $0x6408] sm:$0xff]
                %632 = vst [vmem:[%s228 + $0x648] sm:$0xff] %v631
                %v633 = vld [vmem:[%s227 + $0x6500] sm:$0xff]
                %634 = vst [vmem:[%s228 + $0x650] sm:$0xff] %v633
                %v635 = vld [vmem:[%s227 + $0x6508] sm:$0xff]
                %636 = vst [vmem:[%s228 + $0x658] sm:$0xff] %v635
                %v637 = vld [vmem:[%s227 + $0x6600] sm:$0xff]
                %638 = vst [vmem:[%s228 + $0x660] sm:$0xff] %v637
                %v639 = vld [vmem:[%s227 + $0x6608] sm:$0xff]
                %640 = vst [vmem:[%s228 + $0x668] sm:$0xff] %v639
                %v641 = vld [vmem:[%s227 + $0x6700] sm:$0xff]
                %642 = vst [vmem:[%s228 + $0x670] sm:$0xff] %v641
                %v643 = vld [vmem:[%s227 + $0x6708] sm:$0xff]
                %644 = vst [vmem:[%s228 + $0x678] sm:$0xff] %v643
                %v645 = vld [vmem:[%s227 + $0x6800] sm:$0xff]
                %646 = vst [vmem:[%s228 + $0x680] sm:$0xff] %v645
                %v647 = vld [vmem:[%s227 + $0x6808] sm:$0xff]
                %648 = vst [vmem:[%s228 + $0x688] sm:$0xff] %v647
                %v649 = vld [vmem:[%s227 + $0x6900] sm:$0xff]
                %650 = vst [vmem:[%s228 + $0x690] sm:$0xff] %v649
                %v651 = vld [vmem:[%s227 + $0x6908] sm:$0xff]
                %652 = vst [vmem:[%s228 + $0x698] sm:$0xff] %v651
                %v653 = vld [vmem:[%s227 + $0x6a00] sm:$0xff]
                %654 = vst [vmem:[%s228 + $0x6a0] sm:$0xff] %v653
                %v655 = vld [vmem:[%s227 + $0x6a08] sm:$0xff]
                %656 = vst [vmem:[%s228 + $0x6a8] sm:$0xff] %v655
                %v657 = vld [vmem:[%s227 + $0x6b00] sm:$0xff]
                %658 = vst [vmem:[%s228 + $0x6b0] sm:$0xff] %v657
                %v659 = vld [vmem:[%s227 + $0x6b08] sm:$0xff]
                %660 = vst [vmem:[%s228 + $0x6b8] sm:$0xff] %v659
                %v661 = vld [vmem:[%s227 + $0x6c00] sm:$0xff]
                %662 = vst [vmem:[%s228 + $0x6c0] sm:$0xff] %v661
                %v663 = vld [vmem:[%s227 + $0x6c08] sm:$0xff]
                %664 = vst [vmem:[%s228 + $0x6c8] sm:$0xff] %v663
                %v665 = vld [vmem:[%s227 + $0x6d00] sm:$0xff]
                %666 = vst [vmem:[%s228 + $0x6d0] sm:$0xff] %v665
                %v667 = vld [vmem:[%s227 + $0x6d08] sm:$0xff]
                %668 = vst [vmem:[%s228 + $0x6d8] sm:$0xff] %v667
                %v669 = vld [vmem:[%s227 + $0x6e00] sm:$0xff]
                %670 = vst [vmem:[%s228 + $0x6e0] sm:$0xff] %v669
                %v671 = vld [vmem:[%s227 + $0x6e08] sm:$0xff]
                %672 = vst [vmem:[%s228 + $0x6e8] sm:$0xff] %v671
                %v673 = vld [vmem:[%s227 + $0x6f00] sm:$0xff]
                %674 = vst [vmem:[%s228 + $0x6f0] sm:$0xff] %v673
                %v675 = vld [vmem:[%s227 + $0x6f08] sm:$0xff]
                %676 = vst [vmem:[%s228 + $0x6f8] sm:$0xff] %v675
                %v677 = vld [vmem:[%s227 + $0x7000] sm:$0xff]
                %678 = vst [vmem:[%s228 + $0x700] sm:$0xff] %v677
                %v679 = vld [vmem:[%s227 + $0x7008] sm:$0xff]
                %680 = vst [vmem:[%s228 + $0x708] sm:$0xff] %v679
                %v681 = vld [vmem:[%s227 + $0x7100] sm:$0xff]
                %682 = vst [vmem:[%s228 + $0x710] sm:$0xff] %v681
                %v683 = vld [vmem:[%s227 + $0x7108] sm:$0xff]
                %684 = vst [vmem:[%s228 + $0x718] sm:$0xff] %v683
                %v685 = vld [vmem:[%s227 + $0x7200] sm:$0xff]
                %686 = vst [vmem:[%s228 + $0x720] sm:$0xff] %v685
                %v687 = vld [vmem:[%s227 + $0x7208] sm:$0xff]
                %688 = vst [vmem:[%s228 + $0x728] sm:$0xff] %v687
                %v689 = vld [vmem:[%s227 + $0x7300] sm:$0xff]
                %690 = vst [vmem:[%s228 + $0x730] sm:$0xff] %v689
                %v691 = vld [vmem:[%s227 + $0x7308] sm:$0xff]
                %692 = vst [vmem:[%s228 + $0x738] sm:$0xff] %v691
                %v693 = vld [vmem:[%s227 + $0x7400] sm:$0xff]
                %694 = vst [vmem:[%s228 + $0x740] sm:$0xff] %v693
                %v695 = vld [vmem:[%s227 + $0x7408] sm:$0xff]
                %696 = vst [vmem:[%s228 + $0x748] sm:$0xff] %v695
                %v697 = vld [vmem:[%s227 + $0x7500] sm:$0xff]
                %698 = vst [vmem:[%s228 + $0x750] sm:$0xff] %v697
                %v699 = vld [vmem:[%s227 + $0x7508] sm:$0xff]
                %700 = vst [vmem:[%s228 + $0x758] sm:$0xff] %v699
                %v701 = vld [vmem:[%s227 + $0x7600] sm:$0xff]
                %702 = vst [vmem:[%s228 + $0x760] sm:$0xff] %v701
                %v703 = vld [vmem:[%s227 + $0x7608] sm:$0xff]
                %704 = vst [vmem:[%s228 + $0x768] sm:$0xff] %v703
                %v705 = vld [vmem:[%s227 + $0x7700] sm:$0xff]
                %706 = vst [vmem:[%s228 + $0x770] sm:$0xff] %v705
                %v707 = vld [vmem:[%s227 + $0x7708] sm:$0xff]
                %708 = vst [vmem:[%s228 + $0x778] sm:$0xff] %v707
                %v709 = vld [vmem:[%s227 + $0x7800] sm:$0xff]
                %710 = vst [vmem:[%s228 + $0x780] sm:$0xff] %v709
                %v711 = vld [vmem:[%s227 + $0x7808] sm:$0xff]
                %712 = vst [vmem:[%s228 + $0x788] sm:$0xff] %v711
                %v713 = vld [vmem:[%s227 + $0x7900] sm:$0xff]
                %714 = vst [vmem:[%s228 + $0x790] sm:$0xff] %v713
                %v715 = vld [vmem:[%s227 + $0x7908] sm:$0xff]
                %716 = vst [vmem:[%s228 + $0x798] sm:$0xff] %v715
                %v717 = vld [vmem:[%s227 + $0x7a00] sm:$0xff]
                %718 = vst [vmem:[%s228 + $0x7a0] sm:$0xff] %v717
                %v719 = vld [vmem:[%s227 + $0x7a08] sm:$0xff]
                %720 = vst [vmem:[%s228 + $0x7a8] sm:$0xff] %v719
                %v721 = vld [vmem:[%s227 + $0x7b00] sm:$0xff]
                %722 = vst [vmem:[%s228 + $0x7b0] sm:$0xff] %v721
                %v723 = vld [vmem:[%s227 + $0x7b08] sm:$0xff]
                %724 = vst [vmem:[%s228 + $0x7b8] sm:$0xff] %v723
                %v725 = vld [vmem:[%s227 + $0x7c00] sm:$0xff]
                %726 = vst [vmem:[%s228 + $0x7c0] sm:$0xff] %v725
                %v727 = vld [vmem:[%s227 + $0x7c08] sm:$0xff]
                %728 = vst [vmem:[%s228 + $0x7c8] sm:$0xff] %v727
                %v729 = vld [vmem:[%s227 + $0x7d00] sm:$0xff]
                %730 = vst [vmem:[%s228 + $0x7d0] sm:$0xff] %v729
                %v731 = vld [vmem:[%s227 + $0x7d08] sm:$0xff]
                %732 = vst [vmem:[%s228 + $0x7d8] sm:$0xff] %v731
                %v733 = vld [vmem:[%s227 + $0x7e00] sm:$0xff]
                %734 = vst [vmem:[%s228 + $0x7e0] sm:$0xff] %v733
                %v735 = vld [vmem:[%s227 + $0x7e08] sm:$0xff]
                %736 = vst [vmem:[%s228 + $0x7e8] sm:$0xff] %v735
                %v737 = vld [vmem:[%s227 + $0x7f00] sm:$0xff]
                %738 = vst [vmem:[%s228 + $0x7f0] sm:$0xff] %v737
                %v739 = vld [vmem:[%s227 + $0x7f08] sm:$0xff]
                %740 = vst [vmem:[%s228 + $0x7f8] sm:$0xff] %v739
                %v741 = vld [vmem:[%s227 + $0x8000] sm:$0xff]
                %742 = vst [vmem:[%s228 + $0x800] sm:$0xff] %v741
                %v743 = vld [vmem:[%s227 + $0x8008] sm:$0xff]
                %744 = vst [vmem:[%s228 + $0x808] sm:$0xff] %v743
                %v745 = vld [vmem:[%s227 + $0x8100] sm:$0xff]
                %746 = vst [vmem:[%s228 + $0x810] sm:$0xff] %v745
                %v747 = vld [vmem:[%s227 + $0x8108] sm:$0xff]
                %748 = vst [vmem:[%s228 + $0x818] sm:$0xff] %v747
                %v749 = vld [vmem:[%s227 + $0x8200] sm:$0xff]
                %750 = vst [vmem:[%s228 + $0x820] sm:$0xff] %v749
                %v751 = vld [vmem:[%s227 + $0x8208] sm:$0xff]
                %752 = vst [vmem:[%s228 + $0x828] sm:$0xff] %v751
                %v753 = vld [vmem:[%s227 + $0x8300] sm:$0xff]
                %754 = vst [vmem:[%s228 + $0x830] sm:$0xff] %v753
                %v755 = vld [vmem:[%s227 + $0x8308] sm:$0xff]
                %756 = vst [vmem:[%s228 + $0x838] sm:$0xff] %v755
                %v757 = vld [vmem:[%s227 + $0x8400] sm:$0xff]
                %758 = vst [vmem:[%s228 + $0x840] sm:$0xff] %v757
                %v759 = vld [vmem:[%s227 + $0x8408] sm:$0xff]
                %760 = vst [vmem:[%s228 + $0x848] sm:$0xff] %v759
                %v761 = vld [vmem:[%s227 + $0x8500] sm:$0xff]
                %762 = vst [vmem:[%s228 + $0x850] sm:$0xff] %v761
                %v763 = vld [vmem:[%s227 + $0x8508] sm:$0xff]
                %764 = vst [vmem:[%s228 + $0x858] sm:$0xff] %v763
                %v765 = vld [vmem:[%s227 + $0x8600] sm:$0xff]
                %766 = vst [vmem:[%s228 + $0x860] sm:$0xff] %v765
                %v767 = vld [vmem:[%s227 + $0x8608] sm:$0xff]
                %768 = vst [vmem:[%s228 + $0x868] sm:$0xff] %v767
                %v769 = vld [vmem:[%s227 + $0x8700] sm:$0xff]
                %770 = vst [vmem:[%s228 + $0x870] sm:$0xff] %v769
                %v771 = vld [vmem:[%s227 + $0x8708] sm:$0xff]
                %772 = vst [vmem:[%s228 + $0x878] sm:$0xff] %v771
                %v773 = vld [vmem:[%s227 + $0x8800] sm:$0xff]
                %774 = vst [vmem:[%s228 + $0x880] sm:$0xff] %v773
                %v775 = vld [vmem:[%s227 + $0x8808] sm:$0xff]
                %776 = vst [vmem:[%s228 + $0x888] sm:$0xff] %v775
                %v777 = vld [vmem:[%s227 + $0x8900] sm:$0xff]
                %778 = vst [vmem:[%s228 + $0x890] sm:$0xff] %v777
                %v779 = vld [vmem:[%s227 + $0x8908] sm:$0xff]
                %780 = vst [vmem:[%s228 + $0x898] sm:$0xff] %v779
                %v781 = vld [vmem:[%s227 + $0x8a00] sm:$0xff]
                %782 = vst [vmem:[%s228 + $0x8a0] sm:$0xff] %v781
                %v783 = vld [vmem:[%s227 + $0x8a08] sm:$0xff]
                %784 = vst [vmem:[%s228 + $0x8a8] sm:$0xff] %v783
                %v785 = vld [vmem:[%s227 + $0x8b00] sm:$0xff]
                %786 = vst [vmem:[%s228 + $0x8b0] sm:$0xff] %v785
                %v787 = vld [vmem:[%s227 + $0x8b08] sm:$0xff]
                %788 = vst [vmem:[%s228 + $0x8b8] sm:$0xff] %v787
                %v789 = vld [vmem:[%s227 + $0x8c00] sm:$0xff]
                %790 = vst [vmem:[%s228 + $0x8c0] sm:$0xff] %v789
                %v791 = vld [vmem:[%s227 + $0x8c08] sm:$0xff]
                %792 = vst [vmem:[%s228 + $0x8c8] sm:$0xff] %v791
                %v793 = vld [vmem:[%s227 + $0x8d00] sm:$0xff]
                %794 = vst [vmem:[%s228 + $0x8d0] sm:$0xff] %v793
                %v795 = vld [vmem:[%s227 + $0x8d08] sm:$0xff]
                %796 = vst [vmem:[%s228 + $0x8d8] sm:$0xff] %v795
                %v797 = vld [vmem:[%s227 + $0x8e00] sm:$0xff]
                %798 = vst [vmem:[%s228 + $0x8e0] sm:$0xff] %v797
                %v799 = vld [vmem:[%s227 + $0x8e08] sm:$0xff]
                %800 = vst [vmem:[%s228 + $0x8e8] sm:$0xff] %v799
                %v801 = vld [vmem:[%s227 + $0x8f00] sm:$0xff]
                %802 = vst [vmem:[%s228 + $0x8f0] sm:$0xff] %v801
                %v803 = vld [vmem:[%s227 + $0x8f08] sm:$0xff]
                %804 = vst [vmem:[%s228 + $0x8f8] sm:$0xff] %v803
                %v805 = vld [vmem:[%s227 + $0x9000] sm:$0xff]
                %806 = vst [vmem:[%s228 + $0x900] sm:$0xff] %v805
                %v807 = vld [vmem:[%s227 + $0x9008] sm:$0xff]
                %808 = vst [vmem:[%s228 + $0x908] sm:$0xff] %v807
                %v809 = vld [vmem:[%s227 + $0x9100] sm:$0xff]
                %810 = vst [vmem:[%s228 + $0x910] sm:$0xff] %v809
                %v811 = vld [vmem:[%s227 + $0x9108] sm:$0xff]
                %812 = vst [vmem:[%s228 + $0x918] sm:$0xff] %v811
                %v813 = vld [vmem:[%s227 + $0x9200] sm:$0xff]
                %814 = vst [vmem:[%s228 + $0x920] sm:$0xff] %v813
                %v815 = vld [vmem:[%s227 + $0x9208] sm:$0xff]
                %816 = vst [vmem:[%s228 + $0x928] sm:$0xff] %v815
                %v817 = vld [vmem:[%s227 + $0x9300] sm:$0xff]
                %818 = vst [vmem:[%s228 + $0x930] sm:$0xff] %v817
                %v819 = vld [vmem:[%s227 + $0x9308] sm:$0xff]
                %820 = vst [vmem:[%s228 + $0x938] sm:$0xff] %v819
                %v821 = vld [vmem:[%s227 + $0x9400] sm:$0xff]
                %822 = vst [vmem:[%s228 + $0x940] sm:$0xff] %v821
                %v823 = vld [vmem:[%s227 + $0x9408] sm:$0xff]
                %824 = vst [vmem:[%s228 + $0x948] sm:$0xff] %v823
                %v825 = vld [vmem:[%s227 + $0x9500] sm:$0xff]
                %826 = vst [vmem:[%s228 + $0x950] sm:$0xff] %v825
                %v827 = vld [vmem:[%s227 + $0x9508] sm:$0xff]
                %828 = vst [vmem:[%s228 + $0x958] sm:$0xff] %v827
                %v829 = vld [vmem:[%s227 + $0x9600] sm:$0xff]
                %830 = vst [vmem:[%s228 + $0x960] sm:$0xff] %v829
                %v831 = vld [vmem:[%s227 + $0x9608] sm:$0xff]
                %832 = vst [vmem:[%s228 + $0x968] sm:$0xff] %v831
                %v833 = vld [vmem:[%s227 + $0x9700] sm:$0xff]
                %834 = vst [vmem:[%s228 + $0x970] sm:$0xff] %v833
                %v835 = vld [vmem:[%s227 + $0x9708] sm:$0xff]
                %836 = vst [vmem:[%s228 + $0x978] sm:$0xff] %v835
                %v837 = vld [vmem:[%s227 + $0x9800] sm:$0xff]
                %838 = vst [vmem:[%s228 + $0x980] sm:$0xff] %v837
                %v839 = vld [vmem:[%s227 + $0x9808] sm:$0xff]
                %840 = vst [vmem:[%s228 + $0x988] sm:$0xff] %v839
                %v841 = vld [vmem:[%s227 + $0x9900] sm:$0xff]
                %842 = vst [vmem:[%s228 + $0x990] sm:$0xff] %v841
                %v843 = vld [vmem:[%s227 + $0x9908] sm:$0xff]
                %844 = vst [vmem:[%s228 + $0x998] sm:$0xff] %v843
                %v845 = vld [vmem:[%s227 + $0x9a00] sm:$0xff]
                %846 = vst [vmem:[%s228 + $0x9a0] sm:$0xff] %v845
                %v847 = vld [vmem:[%s227 + $0x9a08] sm:$0xff]
                %848 = vst [vmem:[%s228 + $0x9a8] sm:$0xff] %v847
                %v849 = vld [vmem:[%s227 + $0x9b00] sm:$0xff]
                %850 = vst [vmem:[%s228 + $0x9b0] sm:$0xff] %v849
                %v851 = vld [vmem:[%s227 + $0x9b08] sm:$0xff]
                %852 = vst [vmem:[%s228 + $0x9b8] sm:$0xff] %v851
                %v853 = vld [vmem:[%s227 + $0x9c00] sm:$0xff]
                %854 = vst [vmem:[%s228 + $0x9c0] sm:$0xff] %v853
                %v855 = vld [vmem:[%s227 + $0x9c08] sm:$0xff]
                %856 = vst [vmem:[%s228 + $0x9c8] sm:$0xff] %v855
                %v857 = vld [vmem:[%s227 + $0x9d00] sm:$0xff]
                %858 = vst [vmem:[%s228 + $0x9d0] sm:$0xff] %v857
                %v859 = vld [vmem:[%s227 + $0x9d08] sm:$0xff]
                %860 = vst [vmem:[%s228 + $0x9d8] sm:$0xff] %v859
                %v861 = vld [vmem:[%s227 + $0x9e00] sm:$0xff]
                %862 = vst [vmem:[%s228 + $0x9e0] sm:$0xff] %v861
                %v863 = vld [vmem:[%s227 + $0x9e08] sm:$0xff]
                %864 = vst [vmem:[%s228 + $0x9e8] sm:$0xff] %v863
                %v865 = vld [vmem:[%s227 + $0x9f00] sm:$0xff]
                %866 = vst [vmem:[%s228 + $0x9f0] sm:$0xff] %v865
                %v867 = vld [vmem:[%s227 + $0x9f08] sm:$0xff]
                %868 = vst [vmem:[%s228 + $0x9f8] sm:$0xff] %v867
                %v869 = vld [vmem:[%s227 + $0xa000] sm:$0xff]
                %870 = vst [vmem:[%s228 + $0xa00] sm:$0xff] %v869
                %v871 = vld [vmem:[%s227 + $0xa008] sm:$0xff]
                %872 = vst [vmem:[%s228 + $0xa08] sm:$0xff] %v871
                %v873 = vld [vmem:[%s227 + $0xa100] sm:$0xff]
                %874 = vst [vmem:[%s228 + $0xa10] sm:$0xff] %v873
                %v875 = vld [vmem:[%s227 + $0xa108] sm:$0xff]
                %876 = vst [vmem:[%s228 + $0xa18] sm:$0xff] %v875
                %v877 = vld [vmem:[%s227 + $0xa200] sm:$0xff]
                %878 = vst [vmem:[%s228 + $0xa20] sm:$0xff] %v877
                %v879 = vld [vmem:[%s227 + $0xa208] sm:$0xff]
                %880 = vst [vmem:[%s228 + $0xa28] sm:$0xff] %v879
                %v881 = vld [vmem:[%s227 + $0xa300] sm:$0xff]
                %882 = vst [vmem:[%s228 + $0xa30] sm:$0xff] %v881
                %v883 = vld [vmem:[%s227 + $0xa308] sm:$0xff]
                %884 = vst [vmem:[%s228 + $0xa38] sm:$0xff] %v883
                %v885 = vld [vmem:[%s227 + $0xa400] sm:$0xff]
                %886 = vst [vmem:[%s228 + $0xa40] sm:$0xff] %v885
                %v887 = vld [vmem:[%s227 + $0xa408] sm:$0xff]
                %888 = vst [vmem:[%s228 + $0xa48] sm:$0xff] %v887
                %v889 = vld [vmem:[%s227 + $0xa500] sm:$0xff]
                %890 = vst [vmem:[%s228 + $0xa50] sm:$0xff] %v889
                %v891 = vld [vmem:[%s227 + $0xa508] sm:$0xff]
                %892 = vst [vmem:[%s228 + $0xa58] sm:$0xff] %v891
                %v893 = vld [vmem:[%s227 + $0xa600] sm:$0xff]
                %894 = vst [vmem:[%s228 + $0xa60] sm:$0xff] %v893
                %v895 = vld [vmem:[%s227 + $0xa608] sm:$0xff]
                %896 = vst [vmem:[%s228 + $0xa68] sm:$0xff] %v895
                %v897 = vld [vmem:[%s227 + $0xa700] sm:$0xff]
                %898 = vst [vmem:[%s228 + $0xa70] sm:$0xff] %v897
                %v899 = vld [vmem:[%s227 + $0xa708] sm:$0xff]
                %900 = vst [vmem:[%s228 + $0xa78] sm:$0xff] %v899
                %v901 = vld [vmem:[%s227 + $0xa800] sm:$0xff]
                %902 = vst [vmem:[%s228 + $0xa80] sm:$0xff] %v901
                %v903 = vld [vmem:[%s227 + $0xa808] sm:$0xff]
                %904 = vst [vmem:[%s228 + $0xa88] sm:$0xff] %v903
                %v905 = vld [vmem:[%s227 + $0xa900] sm:$0xff]
                %906 = vst [vmem:[%s228 + $0xa90] sm:$0xff] %v905
                %v907 = vld [vmem:[%s227 + $0xa908] sm:$0xff]
                %908 = vst [vmem:[%s228 + $0xa98] sm:$0xff] %v907
                %v909 = vld [vmem:[%s227 + $0xaa00] sm:$0xff]
                %910 = vst [vmem:[%s228 + $0xaa0] sm:$0xff] %v909
                %v911 = vld [vmem:[%s227 + $0xaa08] sm:$0xff]
                %912 = vst [vmem:[%s228 + $0xaa8] sm:$0xff] %v911
                %v913 = vld [vmem:[%s227 + $0xab00] sm:$0xff]
                %914 = vst [vmem:[%s228 + $0xab0] sm:$0xff] %v913
                %v915 = vld [vmem:[%s227 + $0xab08] sm:$0xff]
                %916 = vst [vmem:[%s228 + $0xab8] sm:$0xff] %v915
                %v917 = vld [vmem:[%s227 + $0xac00] sm:$0xff]
                %918 = vst [vmem:[%s228 + $0xac0] sm:$0xff] %v917
                %v919 = vld [vmem:[%s227 + $0xac08] sm:$0xff]
                %920 = vst [vmem:[%s228 + $0xac8] sm:$0xff] %v919
                %v921 = vld [vmem:[%s227 + $0xad00] sm:$0xff]
                %922 = vst [vmem:[%s228 + $0xad0] sm:$0xff] %v921
                %v923 = vld [vmem:[%s227 + $0xad08] sm:$0xff]
                %924 = vst [vmem:[%s228 + $0xad8] sm:$0xff] %v923
                %v925 = vld [vmem:[%s227 + $0xae00] sm:$0xff]
                %926 = vst [vmem:[%s228 + $0xae0] sm:$0xff] %v925
                %v927 = vld [vmem:[%s227 + $0xae08] sm:$0xff]
                %928 = vst [vmem:[%s228 + $0xae8] sm:$0xff] %v927
                %v929 = vld [vmem:[%s227 + $0xaf00] sm:$0xff]
                %930 = vst [vmem:[%s228 + $0xaf0] sm:$0xff] %v929
                %v931 = vld [vmem:[%s227 + $0xaf08] sm:$0xff]
                %932 = vst [vmem:[%s228 + $0xaf8] sm:$0xff] %v931
                %v933 = vld [vmem:[%s227 + $0xb000] sm:$0xff]
                %934 = vst [vmem:[%s228 + $0xb00] sm:$0xff] %v933
                %v935 = vld [vmem:[%s227 + $0xb008] sm:$0xff]
                %936 = vst [vmem:[%s228 + $0xb08] sm:$0xff] %v935
                %v937 = vld [vmem:[%s227 + $0xb100] sm:$0xff]
                %938 = vst [vmem:[%s228 + $0xb10] sm:$0xff] %v937
                %v939 = vld [vmem:[%s227 + $0xb108] sm:$0xff]
                %940 = vst [vmem:[%s228 + $0xb18] sm:$0xff] %v939
                %v941 = vld [vmem:[%s227 + $0xb200] sm:$0xff]
                %942 = vst [vmem:[%s228 + $0xb20] sm:$0xff] %v941
                %v943 = vld [vmem:[%s227 + $0xb208] sm:$0xff]
                %944 = vst [vmem:[%s228 + $0xb28] sm:$0xff] %v943
                %v945 = vld [vmem:[%s227 + $0xb300] sm:$0xff]
                %946 = vst [vmem:[%s228 + $0xb30] sm:$0xff] %v945
                %v947 = vld [vmem:[%s227 + $0xb308] sm:$0xff]
                %948 = vst [vmem:[%s228 + $0xb38] sm:$0xff] %v947
                %v949 = vld [vmem:[%s227 + $0xb400] sm:$0xff]
                %950 = vst [vmem:[%s228 + $0xb40] sm:$0xff] %v949
                %v951 = vld [vmem:[%s227 + $0xb408] sm:$0xff]
                %952 = vst [vmem:[%s228 + $0xb48] sm:$0xff] %v951
                %v953 = vld [vmem:[%s227 + $0xb500] sm:$0xff]
                %954 = vst [vmem:[%s228 + $0xb50] sm:$0xff] %v953
                %v955 = vld [vmem:[%s227 + $0xb508] sm:$0xff]
                %956 = vst [vmem:[%s228 + $0xb58] sm:$0xff] %v955
                %v957 = vld [vmem:[%s227 + $0xb600] sm:$0xff]
                %958 = vst [vmem:[%s228 + $0xb60] sm:$0xff] %v957
                %v959 = vld [vmem:[%s227 + $0xb608] sm:$0xff]
                %960 = vst [vmem:[%s228 + $0xb68] sm:$0xff] %v959
                %v961 = vld [vmem:[%s227 + $0xb700] sm:$0xff]
                %962 = vst [vmem:[%s228 + $0xb70] sm:$0xff] %v961
                %v963 = vld [vmem:[%s227 + $0xb708] sm:$0xff]
                %964 = vst [vmem:[%s228 + $0xb78] sm:$0xff] %v963
                %v965 = vld [vmem:[%s227 + $0xb800] sm:$0xff]
                %966 = vst [vmem:[%s228 + $0xb80] sm:$0xff] %v965
                %v967 = vld [vmem:[%s227 + $0xb808] sm:$0xff]
                %968 = vst [vmem:[%s228 + $0xb88] sm:$0xff] %v967
                %v969 = vld [vmem:[%s227 + $0xb900] sm:$0xff]
                %970 = vst [vmem:[%s228 + $0xb90] sm:$0xff] %v969
                %v971 = vld [vmem:[%s227 + $0xb908] sm:$0xff]
                %972 = vst [vmem:[%s228 + $0xb98] sm:$0xff] %v971
                %v973 = vld [vmem:[%s227 + $0xba00] sm:$0xff]
                %974 = vst [vmem:[%s228 + $0xba0] sm:$0xff] %v973
                %v975 = vld [vmem:[%s227 + $0xba08] sm:$0xff]
                %976 = vst [vmem:[%s228 + $0xba8] sm:$0xff] %v975
                %v977 = vld [vmem:[%s227 + $0xbb00] sm:$0xff]
                %978 = vst [vmem:[%s228 + $0xbb0] sm:$0xff] %v977
                %v979 = vld [vmem:[%s227 + $0xbb08] sm:$0xff]
                %980 = vst [vmem:[%s228 + $0xbb8] sm:$0xff] %v979
                %v981 = vld [vmem:[%s227 + $0xbc00] sm:$0xff]
                %982 = vst [vmem:[%s228 + $0xbc0] sm:$0xff] %v981
                %v983 = vld [vmem:[%s227 + $0xbc08] sm:$0xff]
                %984 = vst [vmem:[%s228 + $0xbc8] sm:$0xff] %v983
                %v985 = vld [vmem:[%s227 + $0xbd00] sm:$0xff]
                %986 = vst [vmem:[%s228 + $0xbd0] sm:$0xff] %v985
                %v987 = vld [vmem:[%s227 + $0xbd08] sm:$0xff]
                %988 = vst [vmem:[%s228 + $0xbd8] sm:$0xff] %v987
                %v989 = vld [vmem:[%s227 + $0xbe00] sm:$0xff]
                %990 = vst [vmem:[%s228 + $0xbe0] sm:$0xff] %v989
                %v991 = vld [vmem:[%s227 + $0xbe08] sm:$0xff]
                %992 = vst [vmem:[%s228 + $0xbe8] sm:$0xff] %v991
                %v993 = vld [vmem:[%s227 + $0xbf00] sm:$0xff]
                %994 = vst [vmem:[%s228 + $0xbf0] sm:$0xff] %v993
                %v995 = vld [vmem:[%s227 + $0xbf08] sm:$0xff]
                %996 = vst [vmem:[%s228 + $0xbf8] sm:$0xff] %v995
                %v997 = vld [vmem:[%s227 + $0xc000] sm:$0xff]
                %998 = vst [vmem:[%s228 + $0xc00] sm:$0xff] %v997
                %v999 = vld [vmem:[%s227 + $0xc008] sm:$0xff]
                %1000 = vst [vmem:[%s228 + $0xc08] sm:$0xff] %v999
                %v1001 = vld [vmem:[%s227 + $0xc100] sm:$0xff]
                %1002 = vst [vmem:[%s228 + $0xc10] sm:$0xff] %v1001
                %v1003 = vld [vmem:[%s227 + $0xc108] sm:$0xff]
                %1004 = vst [vmem:[%s228 + $0xc18] sm:$0xff] %v1003
                %v1005 = vld [vmem:[%s227 + $0xc200] sm:$0xff]
                %1006 = vst [vmem:[%s228 + $0xc20] sm:$0xff] %v1005
                %v1007 = vld [vmem:[%s227 + $0xc208] sm:$0xff]
                %1008 = vst [vmem:[%s228 + $0xc28] sm:$0xff] %v1007
                %v1009 = vld [vmem:[%s227 + $0xc300] sm:$0xff]
                %1010 = vst [vmem:[%s228 + $0xc30] sm:$0xff] %v1009
                %v1011 = vld [vmem:[%s227 + $0xc308] sm:$0xff]
                %1012 = vst [vmem:[%s228 + $0xc38] sm:$0xff] %v1011
                %v1013 = vld [vmem:[%s227 + $0xc400] sm:$0xff]
                %1014 = vst [vmem:[%s228 + $0xc40] sm:$0xff] %v1013
                %v1015 = vld [vmem:[%s227 + $0xc408] sm:$0xff]
                %1016 = vst [vmem:[%s228 + $0xc48] sm:$0xff] %v1015
                %v1017 = vld [vmem:[%s227 + $0xc500] sm:$0xff]
                %1018 = vst [vmem:[%s228 + $0xc50] sm:$0xff] %v1017
                %v1019 = vld [vmem:[%s227 + $0xc508] sm:$0xff]
                %1020 = vst [vmem:[%s228 + $0xc58] sm:$0xff] %v1019
                %v1021 = vld [vmem:[%s227 + $0xc600] sm:$0xff]
                %1022 = vst [vmem:[%s228 + $0xc60] sm:$0xff] %v1021
                %v1023 = vld [vmem:[%s227 + $0xc608] sm:$0xff]
                %1024 = vst [vmem:[%s228 + $0xc68] sm:$0xff] %v1023
                %v1025 = vld [vmem:[%s227 + $0xc700] sm:$0xff]
                %1026 = vst [vmem:[%s228 + $0xc70] sm:$0xff] %v1025
                %v1027 = vld [vmem:[%s227 + $0xc708] sm:$0xff]
                %1028 = vst [vmem:[%s228 + $0xc78] sm:$0xff] %v1027
                %v1029 = vld [vmem:[%s227 + $0xc800] sm:$0xff]
                %1030 = vst [vmem:[%s228 + $0xc80] sm:$0xff] %v1029
                %v1031 = vld [vmem:[%s227 + $0xc808] sm:$0xff]
                %1032 = vst [vmem:[%s228 + $0xc88] sm:$0xff] %v1031
                %v1033 = vld [vmem:[%s227 + $0xc900] sm:$0xff]
                %1034 = vst [vmem:[%s228 + $0xc90] sm:$0xff] %v1033
                %v1035 = vld [vmem:[%s227 + $0xc908] sm:$0xff]
                %1036 = vst [vmem:[%s228 + $0xc98] sm:$0xff] %v1035
                %v1037 = vld [vmem:[%s227 + $0xca00] sm:$0xff]
                %1038 = vst [vmem:[%s228 + $0xca0] sm:$0xff] %v1037
                %v1039 = vld [vmem:[%s227 + $0xca08] sm:$0xff]
                %1040 = vst [vmem:[%s228 + $0xca8] sm:$0xff] %v1039
                %v1041 = vld [vmem:[%s227 + $0xcb00] sm:$0xff]
                %1042 = vst [vmem:[%s228 + $0xcb0] sm:$0xff] %v1041
                %v1043 = vld [vmem:[%s227 + $0xcb08] sm:$0xff]
                %1044 = vst [vmem:[%s228 + $0xcb8] sm:$0xff] %v1043
                %v1045 = vld [vmem:[%s227 + $0xcc00] sm:$0xff]
                %1046 = vst [vmem:[%s228 + $0xcc0] sm:$0xff] %v1045
                %v1047 = vld [vmem:[%s227 + $0xcc08] sm:$0xff]
                %1048 = vst [vmem:[%s228 + $0xcc8] sm:$0xff] %v1047
                %v1049 = vld [vmem:[%s227 + $0xcd00] sm:$0xff]
                %1050 = vst [vmem:[%s228 + $0xcd0] sm:$0xff] %v1049
                %v1051 = vld [vmem:[%s227 + $0xcd08] sm:$0xff]
                %1052 = vst [vmem:[%s228 + $0xcd8] sm:$0xff] %v1051
                %v1053 = vld [vmem:[%s227 + $0xce00] sm:$0xff]
                %1054 = vst [vmem:[%s228 + $0xce0] sm:$0xff] %v1053
                %v1055 = vld [vmem:[%s227 + $0xce08] sm:$0xff]
                %1056 = vst [vmem:[%s228 + $0xce8] sm:$0xff] %v1055
                %v1057 = vld [vmem:[%s227 + $0xcf00] sm:$0xff]
                %1058 = vst [vmem:[%s228 + $0xcf0] sm:$0xff] %v1057
                %v1059 = vld [vmem:[%s227 + $0xcf08] sm:$0xff]
                %1060 = vst [vmem:[%s228 + $0xcf8] sm:$0xff] %v1059
                %v1061 = vld [vmem:[%s227 + $0xd000] sm:$0xff]
                %1062 = vst [vmem:[%s228 + $0xd00] sm:$0xff] %v1061
                %v1063 = vld [vmem:[%s227 + $0xd008] sm:$0xff]
                %1064 = vst [vmem:[%s228 + $0xd08] sm:$0xff] %v1063
                %v1065 = vld [vmem:[%s227 + $0xd100] sm:$0xff]
                %1066 = vst [vmem:[%s228 + $0xd10] sm:$0xff] %v1065
                %v1067 = vld [vmem:[%s227 + $0xd108] sm:$0xff]
                %1068 = vst [vmem:[%s228 + $0xd18] sm:$0xff] %v1067
                %v1069 = vld [vmem:[%s227 + $0xd200] sm:$0xff]
                %1070 = vst [vmem:[%s228 + $0xd20] sm:$0xff] %v1069
                %v1071 = vld [vmem:[%s227 + $0xd208] sm:$0xff]
                %1072 = vst [vmem:[%s228 + $0xd28] sm:$0xff] %v1071
                %v1073 = vld [vmem:[%s227 + $0xd300] sm:$0xff]
                %1074 = vst [vmem:[%s228 + $0xd30] sm:$0xff] %v1073
                %v1075 = vld [vmem:[%s227 + $0xd308] sm:$0xff]
                %1076 = vst [vmem:[%s228 + $0xd38] sm:$0xff] %v1075
                %v1077 = vld [vmem:[%s227 + $0xd400] sm:$0xff]
                %1078 = vst [vmem:[%s228 + $0xd40] sm:$0xff] %v1077
                %v1079 = vld [vmem:[%s227 + $0xd408] sm:$0xff]
                %1080 = vst [vmem:[%s228 + $0xd48] sm:$0xff] %v1079
                %v1081 = vld [vmem:[%s227 + $0xd500] sm:$0xff]
                %1082 = vst [vmem:[%s228 + $0xd50] sm:$0xff] %v1081
                %v1083 = vld [vmem:[%s227 + $0xd508] sm:$0xff]
                %1084 = vst [vmem:[%s228 + $0xd58] sm:$0xff] %v1083
                %v1085 = vld [vmem:[%s227 + $0xd600] sm:$0xff]
                %1086 = vst [vmem:[%s228 + $0xd60] sm:$0xff] %v1085
                %v1087 = vld [vmem:[%s227 + $0xd608] sm:$0xff]
                %1088 = vst [vmem:[%s228 + $0xd68] sm:$0xff] %v1087
                %v1089 = vld [vmem:[%s227 + $0xd700] sm:$0xff]
                %1090 = vst [vmem:[%s228 + $0xd70] sm:$0xff] %v1089
                %v1091 = vld [vmem:[%s227 + $0xd708] sm:$0xff]
                %1092 = vst [vmem:[%s228 + $0xd78] sm:$0xff] %v1091
                %v1093 = vld [vmem:[%s227 + $0xd800] sm:$0xff]
                %1094 = vst [vmem:[%s228 + $0xd80] sm:$0xff] %v1093
                %v1095 = vld [vmem:[%s227 + $0xd808] sm:$0xff]
                %1096 = vst [vmem:[%s228 + $0xd88] sm:$0xff] %v1095
                %v1097 = vld [vmem:[%s227 + $0xd900] sm:$0xff]
                %1098 = vst [vmem:[%s228 + $0xd90] sm:$0xff] %v1097
                %v1099 = vld [vmem:[%s227 + $0xd908] sm:$0xff]
                %1100 = vst [vmem:[%s228 + $0xd98] sm:$0xff] %v1099
                %v1101 = vld [vmem:[%s227 + $0xda00] sm:$0xff]
                %1102 = vst [vmem:[%s228 + $0xda0] sm:$0xff] %v1101
                %v1103 = vld [vmem:[%s227 + $0xda08] sm:$0xff]
                %1104 = vst [vmem:[%s228 + $0xda8] sm:$0xff] %v1103
                %v1105 = vld [vmem:[%s227 + $0xdb00] sm:$0xff]
                %1106 = vst [vmem:[%s228 + $0xdb0] sm:$0xff] %v1105
                %v1107 = vld [vmem:[%s227 + $0xdb08] sm:$0xff]
                %1108 = vst [vmem:[%s228 + $0xdb8] sm:$0xff] %v1107
                %v1109 = vld [vmem:[%s227 + $0xdc00] sm:$0xff]
                %1110 = vst [vmem:[%s228 + $0xdc0] sm:$0xff] %v1109
                %v1111 = vld [vmem:[%s227 + $0xdc08] sm:$0xff]
                %1112 = vst [vmem:[%s228 + $0xdc8] sm:$0xff] %v1111
                %v1113 = vld [vmem:[%s227 + $0xdd00] sm:$0xff]
                %1114 = vst [vmem:[%s228 + $0xdd0] sm:$0xff] %v1113
                %v1115 = vld [vmem:[%s227 + $0xdd08] sm:$0xff]
                %1116 = vst [vmem:[%s228 + $0xdd8] sm:$0xff] %v1115
                %v1117 = vld [vmem:[%s227 + $0xde00] sm:$0xff]
                %1118 = vst [vmem:[%s228 + $0xde0] sm:$0xff] %v1117
                %v1119 = vld [vmem:[%s227 + $0xde08] sm:$0xff]
                %1120 = vst [vmem:[%s228 + $0xde8] sm:$0xff] %v1119
                %v1121 = vld [vmem:[%s227 + $0xdf00] sm:$0xff]
                %1122 = vst [vmem:[%s228 + $0xdf0] sm:$0xff] %v1121
                %v1123 = vld [vmem:[%s227 + $0xdf08] sm:$0xff]
                %1124 = vst [vmem:[%s228 + $0xdf8] sm:$0xff] %v1123
                %v1125 = vld [vmem:[%s227 + $0xe000] sm:$0xff]
                %1126 = vst [vmem:[%s228 + $0xe00] sm:$0xff] %v1125
                %v1127 = vld [vmem:[%s227 + $0xe008] sm:$0xff]
                %1128 = vst [vmem:[%s228 + $0xe08] sm:$0xff] %v1127
                %v1129 = vld [vmem:[%s227 + $0xe100] sm:$0xff]
                %1130 = vst [vmem:[%s228 + $0xe10] sm:$0xff] %v1129
                %v1131 = vld [vmem:[%s227 + $0xe108] sm:$0xff]
                %1132 = vst [vmem:[%s228 + $0xe18] sm:$0xff] %v1131
                %v1133 = vld [vmem:[%s227 + $0xe200] sm:$0xff]
                %1134 = vst [vmem:[%s228 + $0xe20] sm:$0xff] %v1133
                %v1135 = vld [vmem:[%s227 + $0xe208] sm:$0xff]
                %1136 = vst [vmem:[%s228 + $0xe28] sm:$0xff] %v1135
                %v1137 = vld [vmem:[%s227 + $0xe300] sm:$0xff]
                %1138 = vst [vmem:[%s228 + $0xe30] sm:$0xff] %v1137
                %v1139 = vld [vmem:[%s227 + $0xe308] sm:$0xff]
                %1140 = vst [vmem:[%s228 + $0xe38] sm:$0xff] %v1139
                %v1141 = vld [vmem:[%s227 + $0xe400] sm:$0xff]
                %1142 = vst [vmem:[%s228 + $0xe40] sm:$0xff] %v1141
                %v1143 = vld [vmem:[%s227 + $0xe408] sm:$0xff]
                %1144 = vst [vmem:[%s228 + $0xe48] sm:$0xff] %v1143
                %v1145 = vld [vmem:[%s227 + $0xe500] sm:$0xff]
                %1146 = vst [vmem:[%s228 + $0xe50] sm:$0xff] %v1145
                %v1147 = vld [vmem:[%s227 + $0xe508] sm:$0xff]
                %1148 = vst [vmem:[%s228 + $0xe58] sm:$0xff] %v1147
                %v1149 = vld [vmem:[%s227 + $0xe600] sm:$0xff]
                %1150 = vst [vmem:[%s228 + $0xe60] sm:$0xff] %v1149
                %v1151 = vld [vmem:[%s227 + $0xe608] sm:$0xff]
                %1152 = vst [vmem:[%s228 + $0xe68] sm:$0xff] %v1151
                %v1153 = vld [vmem:[%s227 + $0xe700] sm:$0xff]
                %1154 = vst [vmem:[%s228 + $0xe70] sm:$0xff] %v1153
                %v1155 = vld [vmem:[%s227 + $0xe708] sm:$0xff]
                %1156 = vst [vmem:[%s228 + $0xe78] sm:$0xff] %v1155
                %v1157 = vld [vmem:[%s227 + $0xe800] sm:$0xff]
                %1158 = vst [vmem:[%s228 + $0xe80] sm:$0xff] %v1157
                %v1159 = vld [vmem:[%s227 + $0xe808] sm:$0xff]
                %1160 = vst [vmem:[%s228 + $0xe88] sm:$0xff] %v1159
                %v1161 = vld [vmem:[%s227 + $0xe900] sm:$0xff]
                %1162 = vst [vmem:[%s228 + $0xe90] sm:$0xff] %v1161
                %v1163 = vld [vmem:[%s227 + $0xe908] sm:$0xff]
                %1164 = vst [vmem:[%s228 + $0xe98] sm:$0xff] %v1163
                %v1165 = vld [vmem:[%s227 + $0xea00] sm:$0xff]
                %1166 = vst [vmem:[%s228 + $0xea0] sm:$0xff] %v1165
                %v1167 = vld [vmem:[%s227 + $0xea08] sm:$0xff]
                %1168 = vst [vmem:[%s228 + $0xea8] sm:$0xff] %v1167
                %v1169 = vld [vmem:[%s227 + $0xeb00] sm:$0xff]
                %1170 = vst [vmem:[%s228 + $0xeb0] sm:$0xff] %v1169
                %v1171 = vld [vmem:[%s227 + $0xeb08] sm:$0xff]
                %1172 = vst [vmem:[%s228 + $0xeb8] sm:$0xff] %v1171
                %v1173 = vld [vmem:[%s227 + $0xec00] sm:$0xff]
                %1174 = vst [vmem:[%s228 + $0xec0] sm:$0xff] %v1173
                %v1175 = vld [vmem:[%s227 + $0xec08] sm:$0xff]
                %1176 = vst [vmem:[%s228 + $0xec8] sm:$0xff] %v1175
                %v1177 = vld [vmem:[%s227 + $0xed00] sm:$0xff]
                %1178 = vst [vmem:[%s228 + $0xed0] sm:$0xff] %v1177
                %v1179 = vld [vmem:[%s227 + $0xed08] sm:$0xff]
                %1180 = vst [vmem:[%s228 + $0xed8] sm:$0xff] %v1179
                %v1181 = vld [vmem:[%s227 + $0xee00] sm:$0xff]
                %1182 = vst [vmem:[%s228 + $0xee0] sm:$0xff] %v1181
                %v1183 = vld [vmem:[%s227 + $0xee08] sm:$0xff]
                %1184 = vst [vmem:[%s228 + $0xee8] sm:$0xff] %v1183
                %v1185 = vld [vmem:[%s227 + $0xef00] sm:$0xff]
                %1186 = vst [vmem:[%s228 + $0xef0] sm:$0xff] %v1185
                %v1187 = vld [vmem:[%s227 + $0xef08] sm:$0xff]
                %1188 = vst [vmem:[%s228 + $0xef8] sm:$0xff] %v1187
                %v1189 = vld [vmem:[%s227 + $0xf000] sm:$0xff]
                %1190 = vst [vmem:[%s228 + $0xf00] sm:$0xff] %v1189
                %v1191 = vld [vmem:[%s227 + $0xf008] sm:$0xff]
                %1192 = vst [vmem:[%s228 + $0xf08] sm:$0xff] %v1191
                %v1193 = vld [vmem:[%s227 + $0xf100] sm:$0xff]
                %1194 = vst [vmem:[%s228 + $0xf10] sm:$0xff] %v1193
                %v1195 = vld [vmem:[%s227 + $0xf108] sm:$0xff]
                %1196 = vst [vmem:[%s228 + $0xf18] sm:$0xff] %v1195
                %v1197 = vld [vmem:[%s227 + $0xf200] sm:$0xff]
                %1198 = vst [vmem:[%s228 + $0xf20] sm:$0xff] %v1197
                %v1199 = vld [vmem:[%s227 + $0xf208] sm:$0xff]
                %1200 = vst [vmem:[%s228 + $0xf28] sm:$0xff] %v1199
                %v1201 = vld [vmem:[%s227 + $0xf300] sm:$0xff]
                %1202 = vst [vmem:[%s228 + $0xf30] sm:$0xff] %v1201
                %v1203 = vld [vmem:[%s227 + $0xf308] sm:$0xff]
                %1204 = vst [vmem:[%s228 + $0xf38] sm:$0xff] %v1203
              $region41: #{feed_forward.1} parent=35 // loop_footer
                %s226 = sadd.s32 1, %s222
              $region42: #{feed_forward.1} parent=35 // loop_footer_branch
                %221 = sbr.rel target = $region38
              $region43: #{feed_forward.1} parent=35 // loop_exit
                _
            $region36: #{feed_forward.1} parent=31 // pred_fallthru
              _
            // Predicated region
            $region44: #{feed_forward.1} parent=31 // pred_check
              _
            $region45: #{feed_forward.1} parent=31 // pred_check_branch
              %1206 = sbr.rel target = $region47
            $region46: #{feed_forward.1} parent=31 // pred_region
              _
            $region47: #{feed_forward.1} parent=31 // pred_fallthru
              _
          $region32: #{feed_forward.1} parent=27 // pred_fallthru
            _
          %1207 = vnop
        $region28: #{feed_forward.1} parent=23 // pred_fallthru
          _
        // Predicated region
        $region48: #{feed_forward.1} parent=23 // pred_check
          %p1208 = pneg %p96
        $region49: #{feed_forward.1} parent=23 // pred_check_branch
          %1210 = sbr.rel (%p1208) target = $region51
        $region50: #{feed_forward.1} parent=23 // pred_region
          %s1211 = smul.u32 4, %s20
          %p1212 = scmp.lt.s32.totalorder %s1211, 63
          %s1213 = scalar_select %p1212, %s1211, 63
          %s1214 = scalar_lea.vmem %s2, %s1213
          %s1215 = smul.u32 4, %s20
        $region51: #{feed_forward.1} parent=23 // pred_fallthru
          _
        // Predicated region
        $region52: #{feed_forward.1} parent=23 // pred_check
          %p1216 = pneg %p122
        $region53: #{feed_forward.1} parent=23 // pred_check_branch
          %1218 = sbr.rel (%p1216) target = $region55
        $region54: #{feed_forward.1} parent=23 // pred_region
          %s1219 = smul.u32 64, %s20
          %p1220 = scmp.lt.s32.totalorder %s1219, 1023
          %s1221 = scalar_select %p1220, %s1219, 1023
          %s1222 = smul.addr %s1221, 16
          %s1223 = smul.addr %s1222, 4
          %s1224 = scalar_lea.vmem %s3, %s1223
          %s1225 = smul.u32 64, %s20
        $region55: #{feed_forward.1} parent=23 // pred_fallthru
          _
      $region24: #{feed_forward.1} parent=5 // pred_fallthru
        _
      %p1226 = scmp.le.s32.totalorder 1, %s12
      %p1227 = scmp.lt.s32.totalorder %s12, 17
      %p1228 = pnand %p1226, %p1227
      %p1229 = pneg %p1228
      // Predicated region
      $region56: #{feed_forward.1} parent=5 // pred_check
        _
      $region57: #{feed_forward.1} parent=5 // pred_check_branch
        %1231 = sbr.rel (%p1228) target = $region59
      $region58: #{feed_forward.1} parent=5 // pred_region
        %s1232 = ssub.s32 %s12, 1
        %s1233 = sand.u32 %s63, 1
        %s1234 = sand.u32 %s63, 1
        %s1235 = smul.addr %s1234, 3904
        %s1236 = scalar_lea.vmem [#allocation3], %s1235
        // Predicated region
        $region60: #{feed_forward.1} parent=58 // pred_check
          %p1237 = pneg %p76
        $region61: #{feed_forward.1} parent=58 // pred_check_branch
          %1239 = sbr.rel (%p1237) target = $region63
        $region62: #{feed_forward.1} parent=58 // pred_region
          _
        $region63: #{feed_forward.1} parent=58 // pred_fallthru
          _
        %s1240 = smul.u32 2, %s21
        %p1241 = scmp.lt.s32.totalorder %s1240, 1
        %s1242 = scalar_select %p1241, %s1240, 1
        %s1243 = smul.addr %s1242, 16
        %s1244 = smul.addr %s1243, 4
        %s1245 = scalar_lea.vmem %s0, %s1244
        %p1246 = pneg %p50
        %p1247 = pneg %p47
        %s1248 = sand.u32 %s63, 1
        %s1249 = sand.u32 %s63, 1
        %s1250 = smul.addr %s1249, 3904
        %s1251 = scalar_lea.vmem [#allocation3], %s1250
        %p1252 = pneg %p76
        %p1253 = pneg %p73
        %s1254 = smul.u32 4, %s22
        %p1255 = scmp.lt.s32.totalorder %s1254, 63
        %s1256 = scalar_select %p1255, %s1254, 63
        %s1257 = scalar_lea.vmem %s2, %s1256
        %p1258 = pneg %p102
        %p1259 = pneg %p99
        %s1260 = smul.u32 64, %s22
        %p1261 = scmp.lt.s32.totalorder %s1260, 1023
        %s1262 = scalar_select %p1261, %s1260, 1023
        %s1263 = smul.addr %s1262, 16
        %s1264 = smul.addr %s1263, 4
        %s1265 = scalar_lea.vmem %s3, %s1264
        %p1266 = pneg %p128
        %p1267 = pneg %p125
        %p1268 = pneg %p149
        %p1269 = pneg %p146
        %p1270 = pneg %p175
        %p1271 = pneg %p172
        %s1272 = smul.u32 2, %s21
        %p1273 = scmp.lt.s32.totalorder %s1272, 1
        %s1274 = scalar_select %p1273, %s1272, 1
        %s1275 = smul.addr %s1274, 16
        %s1276 = smul.addr %s1275, 4
        %s1277 = scalar_lea.vmem %s0, %s1276
        %s1278 = smul.u32 2, %s21
        %s1279 = smul.u32 4, %s22
        %s1280 = smul.u32 4, %s22
        %p1281 = scmp.lt.s32.totalorder %s1280, 63
        %s1282 = scalar_select %p1281, %s1280, 63
        %s1283 = scalar_lea.vmem %s2, %s1282
        %s1284 = smul.u32 4, %s22
        %s1285 = smul.u32 64, %s22
        %p1286 = scmp.lt.s32.totalorder %s1285, 1023
        %s1287 = scalar_select %p1286, %s1285, 1023
        %s1288 = smul.addr %s1287, 16
        %s1289 = smul.addr %s1288, 4
        %s1290 = scalar_lea.vmem %s3, %s1289
        %s1291 = smul.u32 64, %s22
        %s1292 = smul.u32 2, %s21
        %p1294 = scmp.eq.s32.totalorder %s22, 0
        // Predicated region
        $region64: #{feed_forward.1} parent=58 // pred_check
          %p1295 = pneg %p1294
        $region65: #{feed_forward.1} parent=58 // pred_check_branch
          %1297 = sbr.rel (%p1295) target = $region67
        $region66: #{feed_forward.1} parent=58 // pred_region
          %1298 = vst [vmem:[#allocation2] sm:$0xff] 0.0
          %1299 = vst [vmem:[#allocation2 + $0x8] sm:$0xff] 0.0
          %1300 = vst [vmem:[#allocation2 + $0x10] sm:$0xff] 0.0
          %1301 = vst [vmem:[#allocation2 + $0x18] sm:$0xff] 0.0
          %1302 = vst [vmem:[#allocation2 + $0x20] sm:$0xff] 0.0
          %1303 = vst [vmem:[#allocation2 + $0x28] sm:$0xff] 0.0
          %1304 = vst [vmem:[#allocation2 + $0x30] sm:$0xff] 0.0
          %1305 = vst [vmem:[#allocation2 + $0x38] sm:$0xff] 0.0
          %1306 = vst [vmem:[#allocation2 + $0x40] sm:$0xff] 0.0
          %1307 = vst [vmem:[#allocation2 + $0x48] sm:$0xff] 0.0
          %1308 = vst [vmem:[#allocation2 + $0x50] sm:$0xff] 0.0
          %1309 = vst [vmem:[#allocation2 + $0x58] sm:$0xff] 0.0
          %1310 = vst [vmem:[#allocation2 + $0x60] sm:$0xff] 0.0
          %1311 = vst [vmem:[#allocation2 + $0x68] sm:$0xff] 0.0
          %1312 = vst [vmem:[#allocation2 + $0x70] sm:$0xff] 0.0
          %vm1313 = vcmask 220160
          %1314 = vst.msk [vmem:[#allocation2 + $0x78] sm:$0xff] %vm1313, 0.0
          %1315 = vst [vmem:[#allocation2 + $0x80] sm:$0xff] 0.0
          %1316 = vst [vmem:[#allocation2 + $0x88] sm:$0xff] 0.0
          %1317 = vst [vmem:[#allocation2 + $0x90] sm:$0xff] 0.0
          %1318 = vst [vmem:[#allocation2 + $0x98] sm:$0xff] 0.0
          %1319 = vst [vmem:[#allocation2 + $0xa0] sm:$0xff] 0.0
          %1320 = vst [vmem:[#allocation2 + $0xa8] sm:$0xff] 0.0
          %1321 = vst [vmem:[#allocation2 + $0xb0] sm:$0xff] 0.0
          %1322 = vst [vmem:[#allocation2 + $0xb8] sm:$0xff] 0.0
          %1323 = vst [vmem:[#allocation2 + $0xc0] sm:$0xff] 0.0
          %1324 = vst [vmem:[#allocation2 + $0xc8] sm:$0xff] 0.0
          %1325 = vst [vmem:[#allocation2 + $0xd0] sm:$0xff] 0.0
          %1326 = vst [vmem:[#allocation2 + $0xd8] sm:$0xff] 0.0
          %1327 = vst [vmem:[#allocation2 + $0xe0] sm:$0xff] 0.0
          %1328 = vst [vmem:[#allocation2 + $0xe8] sm:$0xff] 0.0
          %1329 = vst [vmem:[#allocation2 + $0xf0] sm:$0xff] 0.0
          %1330 = vst.msk [vmem:[#allocation2 + $0xf8] sm:$0xff] %vm1313, 0.0
        $region67: #{feed_forward.1} parent=58 // pred_fallthru
          _
        %v1331 = vld [vmem:[%s1277] sm:$0xff]
        %v1332 = vld [vmem:[%s1277 + $0x8] sm:$0xff]
        %v1333 = vld [vmem:[%s1277 + $0x10] sm:$0xff]
        %v1334 = vld [vmem:[%s1277 + $0x18] sm:$0xff]
        %v1335 = vld [vmem:[%s1277 + $0x20] sm:$0xff]
        %v1336 = vld [vmem:[%s1277 + $0x28] sm:$0xff]
        %v1337 = vld [vmem:[%s1277 + $0x30] sm:$0xff]
        %v1338 = vld [vmem:[%s1277 + $0x38] sm:$0xff]
        %v1339 = vld [vmem:[%s1277 + $0x40] sm:$0xff]
        %v1340 = vld [vmem:[%s1277 + $0x48] sm:$0xff]
        %v1341 = vld [vmem:[%s1277 + $0x50] sm:$0xff]
        %v1342 = vld [vmem:[%s1277 + $0x58] sm:$0xff]
        %v1343 = vld [vmem:[%s1277 + $0x60] sm:$0xff]
        %v1344 = vld [vmem:[%s1277 + $0x68] sm:$0xff]
        %v1345 = vld [vmem:[%s1277 + $0x70] sm:$0xff]
        %v1346 = vld [vmem:[%s1277 + $0x78] sm:$0xff]
        %v1347 = vld [vmem:[%s1236] sm:$0xff]
        %v1348 = vld [vmem:[%s1236 + $0x8] sm:$0xff]
        %v1349 = vld [vmem:[%s1236 + $0x10] sm:$0xff]
        %v1350 = vld [vmem:[%s1236 + $0x18] sm:$0xff]
        %v1351 = vld [vmem:[%s1236 + $0x20] sm:$0xff]
        %v1352 = vld [vmem:[%s1236 + $0x28] sm:$0xff]
        %v1353 = vld [vmem:[%s1236 + $0x30] sm:$0xff]
        %v1354 = vld [vmem:[%s1236 + $0x38] sm:$0xff]
        %v1355 = vld [vmem:[%s1236 + $0x40] sm:$0xff]
        %v1356 = vld [vmem:[%s1236 + $0x48] sm:$0xff]
        %v1357 = vld [vmem:[%s1236 + $0x50] sm:$0xff]
        %v1358 = vld [vmem:[%s1236 + $0x58] sm:$0xff]
        %v1359 = vld [vmem:[%s1236 + $0x60] sm:$0xff]
        %v1360 = vld [vmem:[%s1236 + $0x68] sm:$0xff]
        %v1361 = vld [vmem:[%s1236 + $0x70] sm:$0xff]
        %v1362 = vld [vmem:[%s1236 + $0x78] sm:$0xff]
        %v1363 = vld [vmem:[%s1236 + $0x80] sm:$0xff]
        %v1364 = vld [vmem:[%s1236 + $0x88] sm:$0xff]
        %v1365 = vld [vmem:[%s1236 + $0x90] sm:$0xff]
        %v1366 = vld [vmem:[%s1236 + $0x98] sm:$0xff]
        %v1367 = vld [vmem:[%s1236 + $0xa0] sm:$0xff]
        %v1368 = vld [vmem:[%s1236 + $0xa8] sm:$0xff]
        %v1369 = vld [vmem:[%s1236 + $0xb0] sm:$0xff]
        %v1370 = vld [vmem:[%s1236 + $0xb8] sm:$0xff]
        %v1371 = vld [vmem:[%s1236 + $0xc0] sm:$0xff]
        %v1372 = vld [vmem:[%s1236 + $0xc8] sm:$0xff]
        %v1373 = vld [vmem:[%s1236 + $0xd0] sm:$0xff]
        %v1374 = vld [vmem:[%s1236 + $0xd8] sm:$0xff]
        %v1375 = vld [vmem:[%s1236 + $0xe0] sm:$0xff]
        %v1376 = vld [vmem:[%s1236 + $0xe8] sm:$0xff]
        %v1377 = vld [vmem:[%s1236 + $0xf0] sm:$0xff]
        %v1378 = vld [vmem:[%s1236 + $0xf8] sm:$0xff]
        %v1379 = vld [vmem:[%s1236 + $0x100] sm:$0xff]
        %v1380 = vld [vmem:[%s1236 + $0x108] sm:$0xff]
        %v1381 = vld [vmem:[%s1236 + $0x110] sm:$0xff]
        %v1382 = vld [vmem:[%s1236 + $0x118] sm:$0xff]
        %v1383 = vld [vmem:[%s1236 + $0x120] sm:$0xff]
        %v1384 = vld [vmem:[%s1236 + $0x128] sm:$0xff]
        %v1385 = vld [vmem:[%s1236 + $0x130] sm:$0xff]
        %v1386 = vld [vmem:[%s1236 + $0x138] sm:$0xff]
        %v1387 = vld [vmem:[%s1236 + $0x140] sm:$0xff]
        %v1388 = vld [vmem:[%s1236 + $0x148] sm:$0xff]
        %v1389 = vld [vmem:[%s1236 + $0x150] sm:$0xff]
        %v1390 = vld [vmem:[%s1236 + $0x158] sm:$0xff]
        %v1391 = vld [vmem:[%s1236 + $0x160] sm:$0xff]
        %v1392 = vld [vmem:[%s1236 + $0x168] sm:$0xff]
        %v1393 = vld [vmem:[%s1236 + $0x170] sm:$0xff]
        %v1394 = vld [vmem:[%s1236 + $0x178] sm:$0xff]
        %v1395 = vld [vmem:[%s1236 + $0x180] sm:$0xff]
        %v1396 = vld [vmem:[%s1236 + $0x188] sm:$0xff]
        %v1397 = vld [vmem:[%s1236 + $0x190] sm:$0xff]
        %v1398 = vld [vmem:[%s1236 + $0x198] sm:$0xff]
        %v1399 = vld [vmem:[%s1236 + $0x1a0] sm:$0xff]
        %v1400 = vld [vmem:[%s1236 + $0x1a8] sm:$0xff]
        %v1401 = vld [vmem:[%s1236 + $0x1b0] sm:$0xff]
        %v1402 = vld [vmem:[%s1236 + $0x1b8] sm:$0xff]
        %v1403 = vld [vmem:[%s1236 + $0x1c0] sm:$0xff]
        %v1404 = vld [vmem:[%s1236 + $0x1c8] sm:$0xff]
        %v1405 = vld [vmem:[%s1236 + $0x1d0] sm:$0xff]
        %v1406 = vld [vmem:[%s1236 + $0x1d8] sm:$0xff]
        %v1407 = vld [vmem:[%s1236 + $0x1e0] sm:$0xff]
        %v1408 = vld [vmem:[%s1236 + $0x1e8] sm:$0xff]
        %v1409 = vld [vmem:[%s1236 + $0x1f0] sm:$0xff]
        %v1410 = vld [vmem:[%s1236 + $0x1f8] sm:$0xff]
        %v1411 = vld [vmem:[%s1236 + $0x200] sm:$0xff]
        %v1412 = vld [vmem:[%s1236 + $0x208] sm:$0xff]
        %v1413 = vld [vmem:[%s1236 + $0x210] sm:$0xff]
        %v1414 = vld [vmem:[%s1236 + $0x218] sm:$0xff]
        %v1415 = vld [vmem:[%s1236 + $0x220] sm:$0xff]
        %v1416 = vld [vmem:[%s1236 + $0x228] sm:$0xff]
        %v1417 = vld [vmem:[%s1236 + $0x230] sm:$0xff]
        %v1418 = vld [vmem:[%s1236 + $0x238] sm:$0xff]
        %v1419 = vld [vmem:[%s1236 + $0x240] sm:$0xff]
        %v1420 = vld [vmem:[%s1236 + $0x248] sm:$0xff]
        %v1421 = vld [vmem:[%s1236 + $0x250] sm:$0xff]
        %v1422 = vld [vmem:[%s1236 + $0x258] sm:$0xff]
        %v1423 = vld [vmem:[%s1236 + $0x260] sm:$0xff]
        %v1424 = vld [vmem:[%s1236 + $0x268] sm:$0xff]
        %v1425 = vld [vmem:[%s1236 + $0x270] sm:$0xff]
        %v1426 = vld [vmem:[%s1236 + $0x278] sm:$0xff]
        %v1427 = vld [vmem:[%s1236 + $0x280] sm:$0xff]
        %v1428 = vld [vmem:[%s1236 + $0x288] sm:$0xff]
        %v1429 = vld [vmem:[%s1236 + $0x290] sm:$0xff]
        %v1430 = vld [vmem:[%s1236 + $0x298] sm:$0xff]
        %v1431 = vld [vmem:[%s1236 + $0x2a0] sm:$0xff]
        %v1432 = vld [vmem:[%s1236 + $0x2a8] sm:$0xff]
        %v1433 = vld [vmem:[%s1236 + $0x2b0] sm:$0xff]
        %v1434 = vld [vmem:[%s1236 + $0x2b8] sm:$0xff]
        %v1435 = vld [vmem:[%s1236 + $0x2c0] sm:$0xff]
        %v1436 = vld [vmem:[%s1236 + $0x2c8] sm:$0xff]
        %v1437 = vld [vmem:[%s1236 + $0x2d0] sm:$0xff]
        %v1438 = vld [vmem:[%s1236 + $0x2d8] sm:$0xff]
        %v1439 = vld [vmem:[%s1236 + $0x2e0] sm:$0xff]
        %v1440 = vld [vmem:[%s1236 + $0x2e8] sm:$0xff]
        %v1441 = vld [vmem:[%s1236 + $0x2f0] sm:$0xff]
        %v1442 = vld [vmem:[%s1236 + $0x2f8] sm:$0xff]
        %v1443 = vld [vmem:[%s1236 + $0x300] sm:$0xff]
        %v1444 = vld [vmem:[%s1236 + $0x308] sm:$0xff]
        %v1445 = vld [vmem:[%s1236 + $0x310] sm:$0xff]
        %v1446 = vld [vmem:[%s1236 + $0x318] sm:$0xff]
        %v1447 = vld [vmem:[%s1236 + $0x320] sm:$0xff]
        %v1448 = vld [vmem:[%s1236 + $0x328] sm:$0xff]
        %v1449 = vld [vmem:[%s1236 + $0x330] sm:$0xff]
        %v1450 = vld [vmem:[%s1236 + $0x338] sm:$0xff]
        %v1451 = vld [vmem:[%s1236 + $0x340] sm:$0xff]
        %v1452 = vld [vmem:[%s1236 + $0x348] sm:$0xff]
        %v1453 = vld [vmem:[%s1236 + $0x350] sm:$0xff]
        %v1454 = vld [vmem:[%s1236 + $0x358] sm:$0xff]
        %v1455 = vld [vmem:[%s1236 + $0x360] sm:$0xff]
        %v1456 = vld [vmem:[%s1236 + $0x368] sm:$0xff]
        %v1457 = vld [vmem:[%s1236 + $0x370] sm:$0xff]
        %v1458 = vld [vmem:[%s1236 + $0x378] sm:$0xff]
        %v1459 = vld [vmem:[%s1236 + $0x380] sm:$0xff]
        %v1460 = vld [vmem:[%s1236 + $0x388] sm:$0xff]
        %v1461 = vld [vmem:[%s1236 + $0x390] sm:$0xff]
        %v1462 = vld [vmem:[%s1236 + $0x398] sm:$0xff]
        %v1463 = vld [vmem:[%s1236 + $0x3a0] sm:$0xff]
        %v1464 = vld [vmem:[%s1236 + $0x3a8] sm:$0xff]
        %v1465 = vld [vmem:[%s1236 + $0x3b0] sm:$0xff]
        %v1466 = vld [vmem:[%s1236 + $0x3b8] sm:$0xff]
        %v1467 = vld [vmem:[%s1236 + $0x3c0] sm:$0xff]
        %v1468 = vld [vmem:[%s1236 + $0x3c8] sm:$0xff]
        %v1469 = vld [vmem:[%s1236 + $0x3d0] sm:$0xff]
        %v1470 = vld [vmem:[%s1236 + $0x3d8] sm:$0xff]
        %v1471 = vld [vmem:[%s1236 + $0x3e0] sm:$0xff]
        %v1472 = vld [vmem:[%s1236 + $0x3e8] sm:$0xff]
        %v1473 = vld [vmem:[%s1236 + $0x3f0] sm:$0xff]
        %v1474 = vld [vmem:[%s1236 + $0x3f8] sm:$0xff]
        %v1475 = vld [vmem:[%s1236 + $0x400] sm:$0xff]
        %v1476 = vld [vmem:[%s1236 + $0x408] sm:$0xff]
        %v1477 = vld [vmem:[%s1236 + $0x410] sm:$0xff]
        %v1478 = vld [vmem:[%s1236 + $0x418] sm:$0xff]
        %v1479 = vld [vmem:[%s1236 + $0x420] sm:$0xff]
        %v1480 = vld [vmem:[%s1236 + $0x428] sm:$0xff]
        %v1481 = vld [vmem:[%s1236 + $0x430] sm:$0xff]
        %v1482 = vld [vmem:[%s1236 + $0x438] sm:$0xff]
        %v1483 = vld [vmem:[%s1236 + $0x440] sm:$0xff]
        %v1484 = vld [vmem:[%s1236 + $0x448] sm:$0xff]
        %v1485 = vld [vmem:[%s1236 + $0x450] sm:$0xff]
        %v1486 = vld [vmem:[%s1236 + $0x458] sm:$0xff]
        %v1487 = vld [vmem:[%s1236 + $0x460] sm:$0xff]
        %v1488 = vld [vmem:[%s1236 + $0x468] sm:$0xff]
        %v1489 = vld [vmem:[%s1236 + $0x470] sm:$0xff]
        %v1490 = vld [vmem:[%s1236 + $0x478] sm:$0xff]
        %v1491 = vld [vmem:[%s1236 + $0x480] sm:$0xff]
        %v1492 = vld [vmem:[%s1236 + $0x488] sm:$0xff]
        %v1493 = vld [vmem:[%s1236 + $0x490] sm:$0xff]
        %v1494 = vld [vmem:[%s1236 + $0x498] sm:$0xff]
        %v1495 = vld [vmem:[%s1236 + $0x4a0] sm:$0xff]
        %v1496 = vld [vmem:[%s1236 + $0x4a8] sm:$0xff]
        %v1497 = vld [vmem:[%s1236 + $0x4b0] sm:$0xff]
        %v1498 = vld [vmem:[%s1236 + $0x4b8] sm:$0xff]
        %v1499 = vld [vmem:[%s1236 + $0x4c0] sm:$0xff]
        %v1500 = vld [vmem:[%s1236 + $0x4c8] sm:$0xff]
        %v1501 = vld [vmem:[%s1236 + $0x4d0] sm:$0xff]
        %v1502 = vld [vmem:[%s1236 + $0x4d8] sm:$0xff]
        %v1503 = vld [vmem:[%s1236 + $0x4e0] sm:$0xff]
        %v1504 = vld [vmem:[%s1236 + $0x4e8] sm:$0xff]
        %v1505 = vld [vmem:[%s1236 + $0x4f0] sm:$0xff]
        %v1506 = vld [vmem:[%s1236 + $0x4f8] sm:$0xff]
        %v1507 = vld [vmem:[%s1236 + $0x500] sm:$0xff]
        %v1508 = vld [vmem:[%s1236 + $0x508] sm:$0xff]
        %v1509 = vld [vmem:[%s1236 + $0x510] sm:$0xff]
        %v1510 = vld [vmem:[%s1236 + $0x518] sm:$0xff]
        %v1511 = vld [vmem:[%s1236 + $0x520] sm:$0xff]
        %v1512 = vld [vmem:[%s1236 + $0x528] sm:$0xff]
        %v1513 = vld [vmem:[%s1236 + $0x530] sm:$0xff]
        %v1514 = vld [vmem:[%s1236 + $0x538] sm:$0xff]
        %v1515 = vld [vmem:[%s1236 + $0x540] sm:$0xff]
        %v1516 = vld [vmem:[%s1236 + $0x548] sm:$0xff]
        %v1517 = vld [vmem:[%s1236 + $0x550] sm:$0xff]
        %v1518 = vld [vmem:[%s1236 + $0x558] sm:$0xff]
        %v1519 = vld [vmem:[%s1236 + $0x560] sm:$0xff]
        %v1520 = vld [vmem:[%s1236 + $0x568] sm:$0xff]
        %v1521 = vld [vmem:[%s1236 + $0x570] sm:$0xff]
        %v1522 = vld [vmem:[%s1236 + $0x578] sm:$0xff]
        %v1523 = vld [vmem:[%s1236 + $0x580] sm:$0xff]
        %v1524 = vld [vmem:[%s1236 + $0x588] sm:$0xff]
        %v1525 = vld [vmem:[%s1236 + $0x590] sm:$0xff]
        %v1526 = vld [vmem:[%s1236 + $0x598] sm:$0xff]
        %v1527 = vld [vmem:[%s1236 + $0x5a0] sm:$0xff]
        %v1528 = vld [vmem:[%s1236 + $0x5a8] sm:$0xff]
        %v1529 = vld [vmem:[%s1236 + $0x5b0] sm:$0xff]
        %v1530 = vld [vmem:[%s1236 + $0x5b8] sm:$0xff]
        %v1531 = vld [vmem:[%s1236 + $0x5c0] sm:$0xff]
        %v1532 = vld [vmem:[%s1236 + $0x5c8] sm:$0xff]
        %v1533 = vld [vmem:[%s1236 + $0x5d0] sm:$0xff]
        %v1534 = vld [vmem:[%s1236 + $0x5d8] sm:$0xff]
        %v1535 = vld [vmem:[%s1236 + $0x5e0] sm:$0xff]
        %v1536 = vld [vmem:[%s1236 + $0x5e8] sm:$0xff]
        %v1537 = vld [vmem:[%s1236 + $0x5f0] sm:$0xff]
        %v1538 = vld [vmem:[%s1236 + $0x5f8] sm:$0xff]
        %v1539 = vld [vmem:[%s1236 + $0x600] sm:$0xff]
        %v1540 = vld [vmem:[%s1236 + $0x608] sm:$0xff]
        %v1541 = vld [vmem:[%s1236 + $0x610] sm:$0xff]
        %v1542 = vld [vmem:[%s1236 + $0x618] sm:$0xff]
        %v1543 = vld [vmem:[%s1236 + $0x620] sm:$0xff]
        %v1544 = vld [vmem:[%s1236 + $0x628] sm:$0xff]
        %v1545 = vld [vmem:[%s1236 + $0x630] sm:$0xff]
        %v1546 = vld [vmem:[%s1236 + $0x638] sm:$0xff]
        %v1547 = vld [vmem:[%s1236 + $0x640] sm:$0xff]
        %v1548 = vld [vmem:[%s1236 + $0x648] sm:$0xff]
        %v1549 = vld [vmem:[%s1236 + $0x650] sm:$0xff]
        %v1550 = vld [vmem:[%s1236 + $0x658] sm:$0xff]
        %v1551 = vld [vmem:[%s1236 + $0x660] sm:$0xff]
        %v1552 = vld [vmem:[%s1236 + $0x668] sm:$0xff]
        %v1553 = vld [vmem:[%s1236 + $0x670] sm:$0xff]
        %v1554 = vld [vmem:[%s1236 + $0x678] sm:$0xff]
        %v1555 = vld [vmem:[%s1236 + $0x680] sm:$0xff]
        %v1556 = vld [vmem:[%s1236 + $0x688] sm:$0xff]
        %v1557 = vld [vmem:[%s1236 + $0x690] sm:$0xff]
        %v1558 = vld [vmem:[%s1236 + $0x698] sm:$0xff]
        %v1559 = vld [vmem:[%s1236 + $0x6a0] sm:$0xff]
        %v1560 = vld [vmem:[%s1236 + $0x6a8] sm:$0xff]
        %v1561 = vld [vmem:[%s1236 + $0x6b0] sm:$0xff]
        %v1562 = vld [vmem:[%s1236 + $0x6b8] sm:$0xff]
        %v1563 = vld [vmem:[%s1236 + $0x6c0] sm:$0xff]
        %v1564 = vld [vmem:[%s1236 + $0x6c8] sm:$0xff]
        %v1565 = vld [vmem:[%s1236 + $0x6d0] sm:$0xff]
        %v1566 = vld [vmem:[%s1236 + $0x6d8] sm:$0xff]
        %v1567 = vld [vmem:[%s1236 + $0x6e0] sm:$0xff]
        %v1568 = vld [vmem:[%s1236 + $0x6e8] sm:$0xff]
        %v1569 = vld [vmem:[%s1236 + $0x6f0] sm:$0xff]
        %v1570 = vld [vmem:[%s1236 + $0x6f8] sm:$0xff]
        %v1571 = vld [vmem:[%s1236 + $0x700] sm:$0xff]
        %v1572 = vld [vmem:[%s1236 + $0x708] sm:$0xff]
        %v1573 = vld [vmem:[%s1236 + $0x710] sm:$0xff]
        %v1574 = vld [vmem:[%s1236 + $0x718] sm:$0xff]
        %v1575 = vld [vmem:[%s1236 + $0x720] sm:$0xff]
        %v1576 = vld [vmem:[%s1236 + $0x728] sm:$0xff]
        %v1577 = vld [vmem:[%s1236 + $0x730] sm:$0xff]
        %v1578 = vld [vmem:[%s1236 + $0x738] sm:$0xff]
        %v1579 = vld [vmem:[%s1236 + $0x740] sm:$0xff]
        %v1580 = vld [vmem:[%s1236 + $0x748] sm:$0xff]
        %v1581 = vld [vmem:[%s1236 + $0x750] sm:$0xff]
        %v1582 = vld [vmem:[%s1236 + $0x758] sm:$0xff]
        %v1583 = vld [vmem:[%s1236 + $0x760] sm:$0xff]
        %v1584 = vld [vmem:[%s1236 + $0x768] sm:$0xff]
        %v1585 = vld [vmem:[%s1236 + $0x770] sm:$0xff]
        %v1586 = vld [vmem:[%s1236 + $0x778] sm:$0xff]
        %v1587 = vld [vmem:[%s1236 + $0x780] sm:$0xff]
        %v1588 = vld [vmem:[%s1236 + $0x788] sm:$0xff]
        %v1589 = vld [vmem:[%s1236 + $0x790] sm:$0xff]
        %v1590 = vld [vmem:[%s1236 + $0x798] sm:$0xff]
        %v1591 = vld [vmem:[%s1236 + $0x7a0] sm:$0xff]
        %v1592 = vld [vmem:[%s1236 + $0x7a8] sm:$0xff]
        %v1593 = vld [vmem:[%s1236 + $0x7b0] sm:$0xff]
        %v1594 = vld [vmem:[%s1236 + $0x7b8] sm:$0xff]
        %v1595 = vld [vmem:[%s1236 + $0x7c0] sm:$0xff]
        %v1596 = vld [vmem:[%s1236 + $0x7c8] sm:$0xff]
        %v1597 = vld [vmem:[%s1236 + $0x7d0] sm:$0xff]
        %v1598 = vld [vmem:[%s1236 + $0x7d8] sm:$0xff]
        %v1599 = vld [vmem:[%s1236 + $0x7e0] sm:$0xff]
        %v1600 = vld [vmem:[%s1236 + $0x7e8] sm:$0xff]
        %v1601 = vld [vmem:[%s1236 + $0x7f0] sm:$0xff]
        %v1602 = vld [vmem:[%s1236 + $0x7f8] sm:$0xff]
        %v1603 = vld [vmem:[%s1236 + $0x800] sm:$0xff]
        %v1604 = vld [vmem:[%s1236 + $0x808] sm:$0xff]
        %v1605 = vld [vmem:[%s1236 + $0x810] sm:$0xff]
        %v1606 = vld [vmem:[%s1236 + $0x818] sm:$0xff]
        %v1607 = vld [vmem:[%s1236 + $0x820] sm:$0xff]
        %v1608 = vld [vmem:[%s1236 + $0x828] sm:$0xff]
        %v1609 = vld [vmem:[%s1236 + $0x830] sm:$0xff]
        %v1610 = vld [vmem:[%s1236 + $0x838] sm:$0xff]
        %v1611 = vld [vmem:[%s1236 + $0x840] sm:$0xff]
        %v1612 = vld [vmem:[%s1236 + $0x848] sm:$0xff]
        %v1613 = vld [vmem:[%s1236 + $0x850] sm:$0xff]
        %v1614 = vld [vmem:[%s1236 + $0x858] sm:$0xff]
        %v1615 = vld [vmem:[%s1236 + $0x860] sm:$0xff]
        %v1616 = vld [vmem:[%s1236 + $0x868] sm:$0xff]
        %v1617 = vld [vmem:[%s1236 + $0x870] sm:$0xff]
        %v1618 = vld [vmem:[%s1236 + $0x878] sm:$0xff]
        %v1619 = vld [vmem:[%s1236 + $0x880] sm:$0xff]
        %v1620 = vld [vmem:[%s1236 + $0x888] sm:$0xff]
        %v1621 = vld [vmem:[%s1236 + $0x890] sm:$0xff]
        %v1622 = vld [vmem:[%s1236 + $0x898] sm:$0xff]
        %v1623 = vld [vmem:[%s1236 + $0x8a0] sm:$0xff]
        %v1624 = vld [vmem:[%s1236 + $0x8a8] sm:$0xff]
        %v1625 = vld [vmem:[%s1236 + $0x8b0] sm:$0xff]
        %v1626 = vld [vmem:[%s1236 + $0x8b8] sm:$0xff]
        %v1627 = vld [vmem:[%s1236 + $0x8c0] sm:$0xff]
        %v1628 = vld [vmem:[%s1236 + $0x8c8] sm:$0xff]
        %v1629 = vld [vmem:[%s1236 + $0x8d0] sm:$0xff]
        %v1630 = vld [vmem:[%s1236 + $0x8d8] sm:$0xff]
        %v1631 = vld [vmem:[%s1236 + $0x8e0] sm:$0xff]
        %v1632 = vld [vmem:[%s1236 + $0x8e8] sm:$0xff]
        %v1633 = vld [vmem:[%s1236 + $0x8f0] sm:$0xff]
        %v1634 = vld [vmem:[%s1236 + $0x8f8] sm:$0xff]
        %v1635 = vld [vmem:[%s1236 + $0x900] sm:$0xff]
        %v1636 = vld [vmem:[%s1236 + $0x908] sm:$0xff]
        %v1637 = vld [vmem:[%s1236 + $0x910] sm:$0xff]
        %v1638 = vld [vmem:[%s1236 + $0x918] sm:$0xff]
        %v1639 = vld [vmem:[%s1236 + $0x920] sm:$0xff]
        %v1640 = vld [vmem:[%s1236 + $0x928] sm:$0xff]
        %v1641 = vld [vmem:[%s1236 + $0x930] sm:$0xff]
        %v1642 = vld [vmem:[%s1236 + $0x938] sm:$0xff]
        %v1643 = vld [vmem:[%s1236 + $0x940] sm:$0xff]
        %v1644 = vld [vmem:[%s1236 + $0x948] sm:$0xff]
        %v1645 = vld [vmem:[%s1236 + $0x950] sm:$0xff]
        %v1646 = vld [vmem:[%s1236 + $0x958] sm:$0xff]
        %v1647 = vld [vmem:[%s1236 + $0x960] sm:$0xff]
        %v1648 = vld [vmem:[%s1236 + $0x968] sm:$0xff]
        %v1649 = vld [vmem:[%s1236 + $0x970] sm:$0xff]
        %v1650 = vld [vmem:[%s1236 + $0x978] sm:$0xff]
        %v1651 = vld [vmem:[%s1236 + $0x980] sm:$0xff]
        %v1652 = vld [vmem:[%s1236 + $0x988] sm:$0xff]
        %v1653 = vld [vmem:[%s1236 + $0x990] sm:$0xff]
        %v1654 = vld [vmem:[%s1236 + $0x998] sm:$0xff]
        %v1655 = vld [vmem:[%s1236 + $0x9a0] sm:$0xff]
        %v1656 = vld [vmem:[%s1236 + $0x9a8] sm:$0xff]
        %v1657 = vld [vmem:[%s1236 + $0x9b0] sm:$0xff]
        %v1658 = vld [vmem:[%s1236 + $0x9b8] sm:$0xff]
        %v1659 = vld [vmem:[%s1236 + $0x9c0] sm:$0xff]
        %v1660 = vld [vmem:[%s1236 + $0x9c8] sm:$0xff]
        %v1661 = vld [vmem:[%s1236 + $0x9d0] sm:$0xff]
        %v1662 = vld [vmem:[%s1236 + $0x9d8] sm:$0xff]
        %v1663 = vld [vmem:[%s1236 + $0x9e0] sm:$0xff]
        %v1664 = vld [vmem:[%s1236 + $0x9e8] sm:$0xff]
        %v1665 = vld [vmem:[%s1236 + $0x9f0] sm:$0xff]
        %v1666 = vld [vmem:[%s1236 + $0x9f8] sm:$0xff]
        %v1667 = vld [vmem:[%s1236 + $0xa00] sm:$0xff]
        %v1668 = vld [vmem:[%s1236 + $0xa08] sm:$0xff]
        %v1669 = vld [vmem:[%s1236 + $0xa10] sm:$0xff]
        %v1670 = vld [vmem:[%s1236 + $0xa18] sm:$0xff]
        %v1671 = vld [vmem:[%s1236 + $0xa20] sm:$0xff]
        %v1672 = vld [vmem:[%s1236 + $0xa28] sm:$0xff]
        %v1673 = vld [vmem:[%s1236 + $0xa30] sm:$0xff]
        %v1674 = vld [vmem:[%s1236 + $0xa38] sm:$0xff]
        %v1675 = vld [vmem:[%s1236 + $0xa40] sm:$0xff]
        %v1676 = vld [vmem:[%s1236 + $0xa48] sm:$0xff]
        %v1677 = vld [vmem:[%s1236 + $0xa50] sm:$0xff]
        %v1678 = vld [vmem:[%s1236 + $0xa58] sm:$0xff]
        %v1679 = vld [vmem:[%s1236 + $0xa60] sm:$0xff]
        %v1680 = vld [vmem:[%s1236 + $0xa68] sm:$0xff]
        %v1681 = vld [vmem:[%s1236 + $0xa70] sm:$0xff]
        %v1682 = vld [vmem:[%s1236 + $0xa78] sm:$0xff]
        %v1683 = vld [vmem:[%s1236 + $0xa80] sm:$0xff]
        %v1684 = vld [vmem:[%s1236 + $0xa88] sm:$0xff]
        %v1685 = vld [vmem:[%s1236 + $0xa90] sm:$0xff]
        %v1686 = vld [vmem:[%s1236 + $0xa98] sm:$0xff]
        %v1687 = vld [vmem:[%s1236 + $0xaa0] sm:$0xff]
        %v1688 = vld [vmem:[%s1236 + $0xaa8] sm:$0xff]
        %v1689 = vld [vmem:[%s1236 + $0xab0] sm:$0xff]
        %v1690 = vld [vmem:[%s1236 + $0xab8] sm:$0xff]
        %v1691 = vld [vmem:[%s1236 + $0xac0] sm:$0xff]
        %v1692 = vld [vmem:[%s1236 + $0xac8] sm:$0xff]
        %v1693 = vld [vmem:[%s1236 + $0xad0] sm:$0xff]
        %v1694 = vld [vmem:[%s1236 + $0xad8] sm:$0xff]
        %v1695 = vld [vmem:[%s1236 + $0xae0] sm:$0xff]
        %v1696 = vld [vmem:[%s1236 + $0xae8] sm:$0xff]
        %v1697 = vld [vmem:[%s1236 + $0xaf0] sm:$0xff]
        %v1698 = vld [vmem:[%s1236 + $0xaf8] sm:$0xff]
        %v1699 = vld [vmem:[%s1236 + $0xb00] sm:$0xff]
        %v1700 = vld [vmem:[%s1236 + $0xb08] sm:$0xff]
        %v1701 = vld [vmem:[%s1236 + $0xb10] sm:$0xff]
        %v1702 = vld [vmem:[%s1236 + $0xb18] sm:$0xff]
        %v1703 = vld [vmem:[%s1236 + $0xb20] sm:$0xff]
        %v1704 = vld [vmem:[%s1236 + $0xb28] sm:$0xff]
        %v1705 = vld [vmem:[%s1236 + $0xb30] sm:$0xff]
        %v1706 = vld [vmem:[%s1236 + $0xb38] sm:$0xff]
        %v1707 = vld [vmem:[%s1236 + $0xb40] sm:$0xff]
        %v1708 = vld [vmem:[%s1236 + $0xb48] sm:$0xff]
        %v1709 = vld [vmem:[%s1236 + $0xb50] sm:$0xff]
        %v1710 = vld [vmem:[%s1236 + $0xb58] sm:$0xff]
        %v1711 = vld [vmem:[%s1236 + $0xb60] sm:$0xff]
        %v1712 = vld [vmem:[%s1236 + $0xb68] sm:$0xff]
        %v1713 = vld [vmem:[%s1236 + $0xb70] sm:$0xff]
        %v1714 = vld [vmem:[%s1236 + $0xb78] sm:$0xff]
        %v1715 = vld [vmem:[%s1236 + $0xb80] sm:$0xff]
        %v1716 = vld [vmem:[%s1236 + $0xb88] sm:$0xff]
        %v1717 = vld [vmem:[%s1236 + $0xb90] sm:$0xff]
        %v1718 = vld [vmem:[%s1236 + $0xb98] sm:$0xff]
        %v1719 = vld [vmem:[%s1236 + $0xba0] sm:$0xff]
        %v1720 = vld [vmem:[%s1236 + $0xba8] sm:$0xff]
        %v1721 = vld [vmem:[%s1236 + $0xbb0] sm:$0xff]
        %v1722 = vld [vmem:[%s1236 + $0xbb8] sm:$0xff]
        %v1723 = vld [vmem:[%s1236 + $0xbc0] sm:$0xff]
        %v1724 = vld [vmem:[%s1236 + $0xbc8] sm:$0xff]
        %v1725 = vld [vmem:[%s1236 + $0xbd0] sm:$0xff]
        %v1726 = vld [vmem:[%s1236 + $0xbd8] sm:$0xff]
        %v1727 = vld [vmem:[%s1236 + $0xbe0] sm:$0xff]
        %v1728 = vld [vmem:[%s1236 + $0xbe8] sm:$0xff]
        %v1729 = vld [vmem:[%s1236 + $0xbf0] sm:$0xff]
        %v1730 = vld [vmem:[%s1236 + $0xbf8] sm:$0xff]
        %v1731 = vld [vmem:[%s1236 + $0xc00] sm:$0xff]
        %v1732 = vld [vmem:[%s1236 + $0xc08] sm:$0xff]
        %v1733 = vld [vmem:[%s1236 + $0xc10] sm:$0xff]
        %v1734 = vld [vmem:[%s1236 + $0xc18] sm:$0xff]
        %v1735 = vld [vmem:[%s1236 + $0xc20] sm:$0xff]
        %v1736 = vld [vmem:[%s1236 + $0xc28] sm:$0xff]
        %v1737 = vld [vmem:[%s1236 + $0xc30] sm:$0xff]
        %v1738 = vld [vmem:[%s1236 + $0xc38] sm:$0xff]
        %v1739 = vld [vmem:[%s1236 + $0xc40] sm:$0xff]
        %v1740 = vld [vmem:[%s1236 + $0xc48] sm:$0xff]
        %v1741 = vld [vmem:[%s1236 + $0xc50] sm:$0xff]
        %v1742 = vld [vmem:[%s1236 + $0xc58] sm:$0xff]
        %v1743 = vld [vmem:[%s1236 + $0xc60] sm:$0xff]
        %v1744 = vld [vmem:[%s1236 + $0xc68] sm:$0xff]
        %v1745 = vld [vmem:[%s1236 + $0xc70] sm:$0xff]
        %v1746 = vld [vmem:[%s1236 + $0xc78] sm:$0xff]
        %v1747 = vld [vmem:[%s1236 + $0xc80] sm:$0xff]
        %v1748 = vld [vmem:[%s1236 + $0xc88] sm:$0xff]
        %v1749 = vld [vmem:[%s1236 + $0xc90] sm:$0xff]
        %v1750 = vld [vmem:[%s1236 + $0xc98] sm:$0xff]
        %v1751 = vld [vmem:[%s1236 + $0xca0] sm:$0xff]
        %v1752 = vld [vmem:[%s1236 + $0xca8] sm:$0xff]
        %v1753 = vld [vmem:[%s1236 + $0xcb0] sm:$0xff]
        %v1754 = vld [vmem:[%s1236 + $0xcb8] sm:$0xff]
        %v1755 = vld [vmem:[%s1236 + $0xcc0] sm:$0xff]
        %v1756 = vld [vmem:[%s1236 + $0xcc8] sm:$0xff]
        %v1757 = vld [vmem:[%s1236 + $0xcd0] sm:$0xff]
        %v1758 = vld [vmem:[%s1236 + $0xcd8] sm:$0xff]
        %v1759 = vld [vmem:[%s1236 + $0xce0] sm:$0xff]
        %v1760 = vld [vmem:[%s1236 + $0xce8] sm:$0xff]
        %v1761 = vld [vmem:[%s1236 + $0xcf0] sm:$0xff]
        %v1762 = vld [vmem:[%s1236 + $0xcf8] sm:$0xff]
        %v1763 = vld [vmem:[%s1236 + $0xd00] sm:$0xff]
        %v1764 = vld [vmem:[%s1236 + $0xd08] sm:$0xff]
        %v1765 = vld [vmem:[%s1236 + $0xd10] sm:$0xff]
        %v1766 = vld [vmem:[%s1236 + $0xd18] sm:$0xff]
        %v1767 = vld [vmem:[%s1236 + $0xd20] sm:$0xff]
        %v1768 = vld [vmem:[%s1236 + $0xd28] sm:$0xff]
        %v1769 = vld [vmem:[%s1236 + $0xd30] sm:$0xff]
        %v1770 = vld [vmem:[%s1236 + $0xd38] sm:$0xff]
        %v1771 = vld [vmem:[%s1236 + $0xd40] sm:$0xff]
        %v1772 = vld [vmem:[%s1236 + $0xd48] sm:$0xff]
        %v1773 = vld [vmem:[%s1236 + $0xd50] sm:$0xff]
        %v1774 = vld [vmem:[%s1236 + $0xd58] sm:$0xff]
        %v1775 = vld [vmem:[%s1236 + $0xd60] sm:$0xff]
        %v1776 = vld [vmem:[%s1236 + $0xd68] sm:$0xff]
        %v1777 = vld [vmem:[%s1236 + $0xd70] sm:$0xff]
        %v1778 = vld [vmem:[%s1236 + $0xd78] sm:$0xff]
        %v1779 = vld [vmem:[%s1236 + $0xd80] sm:$0xff]
        %v1780 = vld [vmem:[%s1236 + $0xd88] sm:$0xff]
        %v1781 = vld [vmem:[%s1236 + $0xd90] sm:$0xff]
        %v1782 = vld [vmem:[%s1236 + $0xd98] sm:$0xff]
        %v1783 = vld [vmem:[%s1236 + $0xda0] sm:$0xff]
        %v1784 = vld [vmem:[%s1236 + $0xda8] sm:$0xff]
        %v1785 = vld [vmem:[%s1236 + $0xdb0] sm:$0xff]
        %v1786 = vld [vmem:[%s1236 + $0xdb8] sm:$0xff]
        %v1787 = vld [vmem:[%s1236 + $0xdc0] sm:$0xff]
        %v1788 = vld [vmem:[%s1236 + $0xdc8] sm:$0xff]
        %v1789 = vld [vmem:[%s1236 + $0xdd0] sm:$0xff]
        %v1790 = vld [vmem:[%s1236 + $0xdd8] sm:$0xff]
        %v1791 = vld [vmem:[%s1236 + $0xde0] sm:$0xff]
        %v1792 = vld [vmem:[%s1236 + $0xde8] sm:$0xff]
        %v1793 = vld [vmem:[%s1236 + $0xdf0] sm:$0xff]
        %v1794 = vld [vmem:[%s1236 + $0xdf8] sm:$0xff]
        %v1795 = vld [vmem:[%s1236 + $0xe00] sm:$0xff]
        %v1796 = vld [vmem:[%s1236 + $0xe08] sm:$0xff]
        %v1797 = vld [vmem:[%s1236 + $0xe10] sm:$0xff]
        %v1798 = vld [vmem:[%s1236 + $0xe18] sm:$0xff]
        %v1799 = vld [vmem:[%s1236 + $0xe20] sm:$0xff]
        %v1800 = vld [vmem:[%s1236 + $0xe28] sm:$0xff]
        %v1801 = vld [vmem:[%s1236 + $0xe30] sm:$0xff]
        %v1802 = vld [vmem:[%s1236 + $0xe38] sm:$0xff]
        %v1803 = vld [vmem:[%s1236 + $0xe40] sm:$0xff]
        %v1804 = vld [vmem:[%s1236 + $0xe48] sm:$0xff]
        %v1805 = vld [vmem:[%s1236 + $0xe50] sm:$0xff]
        %v1806 = vld [vmem:[%s1236 + $0xe58] sm:$0xff]
        %v1807 = vld [vmem:[%s1236 + $0xe60] sm:$0xff]
        %v1808 = vld [vmem:[%s1236 + $0xe68] sm:$0xff]
        %v1809 = vld [vmem:[%s1236 + $0xe70] sm:$0xff]
        %v1810 = vld [vmem:[%s1236 + $0xe78] sm:$0xff]
        %v1811 = vld [vmem:[%s1236 + $0xe80] sm:$0xff]
        %v1812 = vld [vmem:[%s1236 + $0xe88] sm:$0xff]
        %v1813 = vld [vmem:[%s1236 + $0xe90] sm:$0xff]
        %v1814 = vld [vmem:[%s1236 + $0xe98] sm:$0xff]
        %v1815 = vld [vmem:[%s1236 + $0xea0] sm:$0xff]
        %v1816 = vld [vmem:[%s1236 + $0xea8] sm:$0xff]
        %v1817 = vld [vmem:[%s1236 + $0xeb0] sm:$0xff]
        %v1818 = vld [vmem:[%s1236 + $0xeb8] sm:$0xff]
        %v1819 = vld [vmem:[%s1236 + $0xec0] sm:$0xff]
        %v1820 = vld [vmem:[%s1236 + $0xec8] sm:$0xff]
        %v1821 = vld [vmem:[%s1236 + $0xed0] sm:$0xff]
        %v1822 = vld [vmem:[%s1236 + $0xed8] sm:$0xff]
        %v1823 = vld [vmem:[%s1236 + $0xee0] sm:$0xff]
        %v1824 = vld [vmem:[%s1236 + $0xee8] sm:$0xff]
        %v1825 = vld [vmem:[%s1236 + $0xef0] sm:$0xff]
        %v1826 = vld [vmem:[%s1236 + $0xef8] sm:$0xff]
        %v1827 = vld [vmem:[%s1236 + $0xf00] sm:$0xff]
        %v1828 = vld [vmem:[%s1236 + $0xf08] sm:$0xff]
        %v1829 = vld [vmem:[%s1236 + $0xf10] sm:$0xff]
        %v1830 = vld [vmem:[%s1236 + $0xf18] sm:$0xff]
        %v1831 = vld [vmem:[%s1236 + $0xf20] sm:$0xff]
        %v1832 = vld [vmem:[%s1236 + $0xf28] sm:$0xff]
        %v1833 = vld [vmem:[%s1236 + $0xf30] sm:$0x33]
        %v1834 = vld [vmem:[%s1236 + $0xf38] sm:$0x33]
        %v1835 = vld [vmem:[%s1283] sm:$0xf]
        %v1837 = vperm.slane %v1835, 0
        %v1838 = vperm.slane %v1835, 1
        %v1839 = vperm.slane %v1835, 2
        %v1840 = vperm.slane %v1835, 3
        %v1861 = vunpack.c.l.b16 %v1331
        %v1862 = vunpack.c.h.b16 %v1331
        %v1863 = vunpack.c.l.b16 %v1332
        %v1864 = vunpack.c.h.b16 %v1332
        %v1865 = vunpack.c.l.b16 %v1333
        %v1866 = vunpack.c.h.b16 %v1333
        %v1867 = vunpack.c.l.b16 %v1334
        %v1868 = vunpack.c.h.b16 %v1334
        %v1869 = vunpack.c.l.b16 %v1335
        %v1870 = vunpack.c.h.b16 %v1335
        %v1871 = vunpack.c.l.b16 %v1336
        %v1872 = vunpack.c.h.b16 %v1336
        %v1873 = vunpack.c.l.b16 %v1337
        %v1874 = vunpack.c.h.b16 %v1337
        %v1875 = vunpack.c.l.b16 %v1338
        %v1876 = vunpack.c.h.b16 %v1338
        %v1877 = vunpack.c.l.b16 %v1339
        %v1878 = vunpack.c.h.b16 %v1339
        %v1879 = vunpack.c.l.b16 %v1340
        %v1880 = vunpack.c.h.b16 %v1340
        %v1881 = vunpack.c.l.b16 %v1341
        %v1882 = vunpack.c.h.b16 %v1341
        %v1883 = vunpack.c.l.b16 %v1342
        %v1884 = vunpack.c.h.b16 %v1342
        %v1885 = vunpack.c.l.b16 %v1343
        %v1886 = vunpack.c.h.b16 %v1343
        %v1887 = vunpack.c.l.b16 %v1344
        %v1888 = vunpack.c.h.b16 %v1344
        %v1889 = vunpack.c.l.b16 %v1345
        %v1890 = vunpack.c.h.b16 %v1345
        %v1891 = vunpack.c.l.b16 %v1346
        %v1892 = vunpack.c.h.b16 %v1346
        %v1893 = vpack.c.b16 %v1877, %v1861
        %v1894 = vpack.c.b16 %v1878, %v1862
        %v1895 = vpack.c.b16 %v1879, %v1863
        %v1896 = vpack.c.b16 %v1880, %v1864
        %v1897 = vpack.c.b16 %v1881, %v1865
        %v1898 = vpack.c.b16 %v1882, %v1866
        %v1899 = vpack.c.b16 %v1883, %v1867
        %v1900 = vpack.c.b16 %v1884, %v1868
        %v1901 = vpack.c.b16 %v1885, %v1869
        %v1902 = vpack.c.b16 %v1886, %v1870
        %v1903 = vpack.c.b16 %v1887, %v1871
        %v1904 = vpack.c.b16 %v1888, %v1872
        %v1905 = vpack.c.b16 %v1889, %v1873
        %v1906 = vpack.c.b16 %v1890, %v1874
        %v1907 = vpack.c.b16 %v1891, %v1875
        %v1908 = vpack.c.b16 %v1892, %v1876
        %v2412 = vunpack.c.l.b16 %v1347
        %v2413 = vunpack.c.h.b16 %v1347
        %v2414 = vunpack.c.l.b16 %v1348
        %v2415 = vunpack.c.h.b16 %v1348
        %v2416 = vunpack.c.l.b16 %v1349
        %v2417 = vunpack.c.h.b16 %v1349
        %v2418 = vunpack.c.l.b16 %v1350
        %v2419 = vunpack.c.h.b16 %v1350
        %v2420 = vunpack.c.l.b16 %v1351
        %v2421 = vunpack.c.h.b16 %v1351
        %v2422 = vunpack.c.l.b16 %v1352
        %v2423 = vunpack.c.h.b16 %v1352
        %v2424 = vunpack.c.l.b16 %v1353
        %v2425 = vunpack.c.h.b16 %v1353
        %v2426 = vunpack.c.l.b16 %v1354
        %v2427 = vunpack.c.h.b16 %v1354
        %v2428 = vunpack.c.l.b16 %v1355
        %v2429 = vunpack.c.h.b16 %v1355
        %v2430 = vunpack.c.l.b16 %v1356
        %v2431 = vunpack.c.h.b16 %v1356
        %v2432 = vunpack.c.l.b16 %v1357
        %v2433 = vunpack.c.h.b16 %v1357
        %v2434 = vunpack.c.l.b16 %v1358
        %v2435 = vunpack.c.h.b16 %v1358
        %v2436 = vunpack.c.l.b16 %v1359
        %v2437 = vunpack.c.h.b16 %v1359
        %v2438 = vunpack.c.l.b16 %v1360
        %v2439 = vunpack.c.h.b16 %v1360
        %v2440 = vunpack.c.l.b16 %v1361
        %v2441 = vunpack.c.h.b16 %v1361
        %v2442 = vunpack.c.l.b16 %v1362
        %v2443 = vunpack.c.h.b16 %v1362
        %v2444 = vunpack.c.l.b16 %v1363
        %v2445 = vunpack.c.h.b16 %v1363
        %v2446 = vunpack.c.l.b16 %v1364
        %v2447 = vunpack.c.h.b16 %v1364
        %v2448 = vunpack.c.l.b16 %v1365
        %v2449 = vunpack.c.h.b16 %v1365
        %v2450 = vunpack.c.l.b16 %v1366
        %v2451 = vunpack.c.h.b16 %v1366
        %v2452 = vunpack.c.l.b16 %v1367
        %v2453 = vunpack.c.h.b16 %v1367
        %v2454 = vunpack.c.l.b16 %v1368
        %v2455 = vunpack.c.h.b16 %v1368
        %v2456 = vunpack.c.l.b16 %v1369
        %v2457 = vunpack.c.h.b16 %v1369
        %v2458 = vunpack.c.l.b16 %v1370
        %v2459 = vunpack.c.h.b16 %v1370
        %v2460 = vunpack.c.l.b16 %v1371
        %v2461 = vunpack.c.h.b16 %v1371
        %v2462 = vunpack.c.l.b16 %v1372
        %v2463 = vunpack.c.h.b16 %v1372
        %v2464 = vunpack.c.l.b16 %v1373
        %v2465 = vunpack.c.h.b16 %v1373
        %v2466 = vunpack.c.l.b16 %v1374
        %v2467 = vunpack.c.h.b16 %v1374
        %v2468 = vunpack.c.l.b16 %v1375
        %v2469 = vunpack.c.h.b16 %v1375
        %v2470 = vunpack.c.l.b16 %v1376
        %v2471 = vunpack.c.h.b16 %v1376
        %v2472 = vunpack.c.l.b16 %v1377
        %v2473 = vunpack.c.h.b16 %v1377
        %v2474 = vunpack.c.l.b16 %v1378
        %v2475 = vunpack.c.h.b16 %v1378
        %v2476 = vunpack.c.l.b16 %v1379
        %v2477 = vunpack.c.h.b16 %v1379
        %v2478 = vunpack.c.l.b16 %v1380
        %v2479 = vunpack.c.h.b16 %v1380
        %v2480 = vunpack.c.l.b16 %v1381
        %v2481 = vunpack.c.h.b16 %v1381
        %v2482 = vunpack.c.l.b16 %v1382
        %v2483 = vunpack.c.h.b16 %v1382
        %v2484 = vunpack.c.l.b16 %v1383
        %v2485 = vunpack.c.h.b16 %v1383
        %v2486 = vunpack.c.l.b16 %v1384
        %v2487 = vunpack.c.h.b16 %v1384
        %v2488 = vunpack.c.l.b16 %v1385
        %v2489 = vunpack.c.h.b16 %v1385
        %v2490 = vunpack.c.l.b16 %v1386
        %v2491 = vunpack.c.h.b16 %v1386
        %v2492 = vunpack.c.l.b16 %v1387
        %v2493 = vunpack.c.h.b16 %v1387
        %v2494 = vunpack.c.l.b16 %v1388
        %v2495 = vunpack.c.h.b16 %v1388
        %v2496 = vunpack.c.l.b16 %v1389
        %v2497 = vunpack.c.h.b16 %v1389
        %v2498 = vunpack.c.l.b16 %v1390
        %v2499 = vunpack.c.h.b16 %v1390
        %v2500 = vunpack.c.l.b16 %v1391
        %v2501 = vunpack.c.h.b16 %v1391
        %v2502 = vunpack.c.l.b16 %v1392
        %v2503 = vunpack.c.h.b16 %v1392
        %v2504 = vunpack.c.l.b16 %v1393
        %v2505 = vunpack.c.h.b16 %v1393
        %v2506 = vunpack.c.l.b16 %v1394
        %v2507 = vunpack.c.h.b16 %v1394
        %v2508 = vunpack.c.l.b16 %v1395
        %v2509 = vunpack.c.h.b16 %v1395
        %v2510 = vunpack.c.l.b16 %v1396
        %v2511 = vunpack.c.h.b16 %v1396
        %v2512 = vunpack.c.l.b16 %v1397
        %v2513 = vunpack.c.h.b16 %v1397
        %v2514 = vunpack.c.l.b16 %v1398
        %v2515 = vunpack.c.h.b16 %v1398
        %v2516 = vunpack.c.l.b16 %v1399
        %v2517 = vunpack.c.h.b16 %v1399
        %v2518 = vunpack.c.l.b16 %v1400
        %v2519 = vunpack.c.h.b16 %v1400
        %v2520 = vunpack.c.l.b16 %v1401
        %v2521 = vunpack.c.h.b16 %v1401
        %v2522 = vunpack.c.l.b16 %v1402
        %v2523 = vunpack.c.h.b16 %v1402
        %v2524 = vunpack.c.l.b16 %v1403
        %v2525 = vunpack.c.h.b16 %v1403
        %v2526 = vunpack.c.l.b16 %v1404
        %v2527 = vunpack.c.h.b16 %v1404
        %v2528 = vunpack.c.l.b16 %v1405
        %v2529 = vunpack.c.h.b16 %v1405
        %v2530 = vunpack.c.l.b16 %v1406
        %v2531 = vunpack.c.h.b16 %v1406
        %v2532 = vunpack.c.l.b16 %v1407
        %v2533 = vunpack.c.h.b16 %v1407
        %v2534 = vunpack.c.l.b16 %v1408
        %v2535 = vunpack.c.h.b16 %v1408
        %v2536 = vunpack.c.l.b16 %v1409
        %v2537 = vunpack.c.h.b16 %v1409
        %v2538 = vunpack.c.l.b16 %v1410
        %v2539 = vunpack.c.h.b16 %v1410
        %v2540 = vunpack.c.l.b16 %v1411
        %v2541 = vunpack.c.h.b16 %v1411
        %v2542 = vunpack.c.l.b16 %v1412
        %v2543 = vunpack.c.h.b16 %v1412
        %v2544 = vunpack.c.l.b16 %v1413
        %v2545 = vunpack.c.h.b16 %v1413
        %v2546 = vunpack.c.l.b16 %v1414
        %v2547 = vunpack.c.h.b16 %v1414
        %v2548 = vunpack.c.l.b16 %v1415
        %v2549 = vunpack.c.h.b16 %v1415
        %v2550 = vunpack.c.l.b16 %v1416
        %v2551 = vunpack.c.h.b16 %v1416
        %v2552 = vunpack.c.l.b16 %v1417
        %v2553 = vunpack.c.h.b16 %v1417
        %v2554 = vunpack.c.l.b16 %v1418
        %v2555 = vunpack.c.h.b16 %v1418
        %v2556 = vunpack.c.l.b16 %v1419
        %v2557 = vunpack.c.h.b16 %v1419
        %v2558 = vunpack.c.l.b16 %v1420
        %v2559 = vunpack.c.h.b16 %v1420
        %v2560 = vunpack.c.l.b16 %v1421
        %v2561 = vunpack.c.h.b16 %v1421
        %v2562 = vunpack.c.l.b16 %v1422
        %v2563 = vunpack.c.h.b16 %v1422
        %v2564 = vunpack.c.l.b16 %v1423
        %v2565 = vunpack.c.h.b16 %v1423
        %v2566 = vunpack.c.l.b16 %v1424
        %v2567 = vunpack.c.h.b16 %v1424
        %v2568 = vunpack.c.l.b16 %v1425
        %v2569 = vunpack.c.h.b16 %v1425
        %v2570 = vunpack.c.l.b16 %v1426
        %v2571 = vunpack.c.h.b16 %v1426
        %v2572 = vunpack.c.l.b16 %v1427
        %v2573 = vunpack.c.h.b16 %v1427
        %v2574 = vunpack.c.l.b16 %v1428
        %v2575 = vunpack.c.h.b16 %v1428
        %v2576 = vunpack.c.l.b16 %v1429
        %v2577 = vunpack.c.h.b16 %v1429
        %v2578 = vunpack.c.l.b16 %v1430
        %v2579 = vunpack.c.h.b16 %v1430
        %v2580 = vunpack.c.l.b16 %v1431
        %v2581 = vunpack.c.h.b16 %v1431
        %v2582 = vunpack.c.l.b16 %v1432
        %v2583 = vunpack.c.h.b16 %v1432
        %v2584 = vunpack.c.l.b16 %v1433
        %v2585 = vunpack.c.h.b16 %v1433
        %v2586 = vunpack.c.l.b16 %v1434
        %v2587 = vunpack.c.h.b16 %v1434
        %v2588 = vunpack.c.l.b16 %v1435
        %v2589 = vunpack.c.h.b16 %v1435
        %v2590 = vunpack.c.l.b16 %v1436
        %v2591 = vunpack.c.h.b16 %v1436
        %v2592 = vunpack.c.l.b16 %v1437
        %v2593 = vunpack.c.h.b16 %v1437
        %v2594 = vunpack.c.l.b16 %v1438
        %v2595 = vunpack.c.h.b16 %v1438
        %v2596 = vunpack.c.l.b16 %v1439
        %v2597 = vunpack.c.h.b16 %v1439
        %v2598 = vunpack.c.l.b16 %v1440
        %v2599 = vunpack.c.h.b16 %v1440
        %v2600 = vunpack.c.l.b16 %v1441
        %v2601 = vunpack.c.h.b16 %v1441
        %v2602 = vunpack.c.l.b16 %v1442
        %v2603 = vunpack.c.h.b16 %v1442
        %v2604 = vunpack.c.l.b16 %v1443
        %v2605 = vunpack.c.h.b16 %v1443
        %v2606 = vunpack.c.l.b16 %v1444
        %v2607 = vunpack.c.h.b16 %v1444
        %v2608 = vunpack.c.l.b16 %v1445
        %v2609 = vunpack.c.h.b16 %v1445
        %v2610 = vunpack.c.l.b16 %v1446
        %v2611 = vunpack.c.h.b16 %v1446
        %v2612 = vunpack.c.l.b16 %v1447
        %v2613 = vunpack.c.h.b16 %v1447
        %v2614 = vunpack.c.l.b16 %v1448
        %v2615 = vunpack.c.h.b16 %v1448
        %v2616 = vunpack.c.l.b16 %v1449
        %v2617 = vunpack.c.h.b16 %v1449
        %v2618 = vunpack.c.l.b16 %v1450
        %v2619 = vunpack.c.h.b16 %v1450
        %v2620 = vunpack.c.l.b16 %v1451
        %v2621 = vunpack.c.h.b16 %v1451
        %v2622 = vunpack.c.l.b16 %v1452
        %v2623 = vunpack.c.h.b16 %v1452
        %v2624 = vunpack.c.l.b16 %v1453
        %v2625 = vunpack.c.h.b16 %v1453
        %v2626 = vunpack.c.l.b16 %v1454
        %v2627 = vunpack.c.h.b16 %v1454
        %v2628 = vunpack.c.l.b16 %v1455
        %v2629 = vunpack.c.h.b16 %v1455
        %v2630 = vunpack.c.l.b16 %v1456
        %v2631 = vunpack.c.h.b16 %v1456
        %v2632 = vunpack.c.l.b16 %v1457
        %v2633 = vunpack.c.h.b16 %v1457
        %v2634 = vunpack.c.l.b16 %v1458
        %v2635 = vunpack.c.h.b16 %v1458
        %v2636 = vunpack.c.l.b16 %v1459
        %v2637 = vunpack.c.h.b16 %v1459
        %v2638 = vunpack.c.l.b16 %v1460
        %v2639 = vunpack.c.h.b16 %v1460
        %v2640 = vunpack.c.l.b16 %v1461
        %v2641 = vunpack.c.h.b16 %v1461
        %v2642 = vunpack.c.l.b16 %v1462
        %v2643 = vunpack.c.h.b16 %v1462
        %v2644 = vunpack.c.l.b16 %v1463
        %v2645 = vunpack.c.h.b16 %v1463
        %v2646 = vunpack.c.l.b16 %v1464
        %v2647 = vunpack.c.h.b16 %v1464
        %v2648 = vunpack.c.l.b16 %v1465
        %v2649 = vunpack.c.h.b16 %v1465
        %v2650 = vunpack.c.l.b16 %v1466
        %v2651 = vunpack.c.h.b16 %v1466
        %v2652 = vunpack.c.l.b16 %v1467
        %v2653 = vunpack.c.h.b16 %v1467
        %v2654 = vunpack.c.l.b16 %v1468
        %v2655 = vunpack.c.h.b16 %v1468
        %v2656 = vunpack.c.l.b16 %v1469
        %v2657 = vunpack.c.h.b16 %v1469
        %v2658 = vunpack.c.l.b16 %v1470
        %v2659 = vunpack.c.h.b16 %v1470
        %v2660 = vunpack.c.l.b16 %v1471
        %v2661 = vunpack.c.h.b16 %v1471
        %v2662 = vunpack.c.l.b16 %v1472
        %v2663 = vunpack.c.h.b16 %v1472
        %v2664 = vunpack.c.l.b16 %v1473
        %v2665 = vunpack.c.h.b16 %v1473
        %v2666 = vunpack.c.l.b16 %v1474
        %v2667 = vunpack.c.h.b16 %v1474
        %v2668 = vunpack.c.l.b16 %v1475
        %v2669 = vunpack.c.h.b16 %v1475
        %v2670 = vunpack.c.l.b16 %v1476
        %v2671 = vunpack.c.h.b16 %v1476
        %v2672 = vunpack.c.l.b16 %v1477
        %v2673 = vunpack.c.h.b16 %v1477
        %v2674 = vunpack.c.l.b16 %v1478
        %v2675 = vunpack.c.h.b16 %v1478
        %v2676 = vunpack.c.l.b16 %v1479
        %v2677 = vunpack.c.h.b16 %v1479
        %v2678 = vunpack.c.l.b16 %v1480
        %v2679 = vunpack.c.h.b16 %v1480
        %v2680 = vunpack.c.l.b16 %v1481
        %v2681 = vunpack.c.h.b16 %v1481
        %v2682 = vunpack.c.l.b16 %v1482
        %v2683 = vunpack.c.h.b16 %v1482
        %v2684 = vunpack.c.l.b16 %v1483
        %v2685 = vunpack.c.h.b16 %v1483
        %v2686 = vunpack.c.l.b16 %v1484
        %v2687 = vunpack.c.h.b16 %v1484
        %v2688 = vunpack.c.l.b16 %v1485
        %v2689 = vunpack.c.h.b16 %v1485
        %v2690 = vunpack.c.l.b16 %v1486
        %v2691 = vunpack.c.h.b16 %v1486
        %v2692 = vunpack.c.l.b16 %v1487
        %v2693 = vunpack.c.h.b16 %v1487
        %v2694 = vunpack.c.l.b16 %v1488
        %v2695 = vunpack.c.h.b16 %v1488
        %v2696 = vunpack.c.l.b16 %v1489
        %v2697 = vunpack.c.h.b16 %v1489
        %v2698 = vunpack.c.l.b16 %v1490
        %v2699 = vunpack.c.h.b16 %v1490
        %v2700 = vunpack.c.l.b16 %v1491
        %v2701 = vunpack.c.h.b16 %v1491
        %v2702 = vunpack.c.l.b16 %v1492
        %v2703 = vunpack.c.h.b16 %v1492
        %v2704 = vunpack.c.l.b16 %v1493
        %v2705 = vunpack.c.h.b16 %v1493
        %v2706 = vunpack.c.l.b16 %v1494
        %v2707 = vunpack.c.h.b16 %v1494
        %v2708 = vunpack.c.l.b16 %v1495
        %v2709 = vunpack.c.h.b16 %v1495
        %v2710 = vunpack.c.l.b16 %v1496
        %v2711 = vunpack.c.h.b16 %v1496
        %v2712 = vunpack.c.l.b16 %v1497
        %v2713 = vunpack.c.h.b16 %v1497
        %v2714 = vunpack.c.l.b16 %v1498
        %v2715 = vunpack.c.h.b16 %v1498
        %v2716 = vunpack.c.l.b16 %v1499
        %v2717 = vunpack.c.h.b16 %v1499
        %v2718 = vunpack.c.l.b16 %v1500
        %v2719 = vunpack.c.h.b16 %v1500
        %v2720 = vunpack.c.l.b16 %v1501
        %v2721 = vunpack.c.h.b16 %v1501
        %v2722 = vunpack.c.l.b16 %v1502
        %v2723 = vunpack.c.h.b16 %v1502
        %v2724 = vunpack.c.l.b16 %v1503
        %v2725 = vunpack.c.h.b16 %v1503
        %v2726 = vunpack.c.l.b16 %v1504
        %v2727 = vunpack.c.h.b16 %v1504
        %v2728 = vunpack.c.l.b16 %v1505
        %v2729 = vunpack.c.h.b16 %v1505
        %v2730 = vunpack.c.l.b16 %v1506
        %v2731 = vunpack.c.h.b16 %v1506
        %v2732 = vunpack.c.l.b16 %v1507
        %v2733 = vunpack.c.h.b16 %v1507
        %v2734 = vunpack.c.l.b16 %v1508
        %v2735 = vunpack.c.h.b16 %v1508
        %v2736 = vunpack.c.l.b16 %v1509
        %v2737 = vunpack.c.h.b16 %v1509
        %v2738 = vunpack.c.l.b16 %v1510
        %v2739 = vunpack.c.h.b16 %v1510
        %v2740 = vunpack.c.l.b16 %v1511
        %v2741 = vunpack.c.h.b16 %v1511
        %v2742 = vunpack.c.l.b16 %v1512
        %v2743 = vunpack.c.h.b16 %v1512
        %v2744 = vunpack.c.l.b16 %v1513
        %v2745 = vunpack.c.h.b16 %v1513
        %v2746 = vunpack.c.l.b16 %v1514
        %v2747 = vunpack.c.h.b16 %v1514
        %v2748 = vunpack.c.l.b16 %v1515
        %v2749 = vunpack.c.h.b16 %v1515
        %v2750 = vunpack.c.l.b16 %v1516
        %v2751 = vunpack.c.h.b16 %v1516
        %v2752 = vunpack.c.l.b16 %v1517
        %v2753 = vunpack.c.h.b16 %v1517
        %v2754 = vunpack.c.l.b16 %v1518
        %v2755 = vunpack.c.h.b16 %v1518
        %v2756 = vunpack.c.l.b16 %v1519
        %v2757 = vunpack.c.h.b16 %v1519
        %v2758 = vunpack.c.l.b16 %v1520
        %v2759 = vunpack.c.h.b16 %v1520
        %v2760 = vunpack.c.l.b16 %v1521
        %v2761 = vunpack.c.h.b16 %v1521
        %v2762 = vunpack.c.l.b16 %v1522
        %v2763 = vunpack.c.h.b16 %v1522
        %v2764 = vunpack.c.l.b16 %v1523
        %v2765 = vunpack.c.h.b16 %v1523
        %v2766 = vunpack.c.l.b16 %v1524
        %v2767 = vunpack.c.h.b16 %v1524
        %v2768 = vunpack.c.l.b16 %v1525
        %v2769 = vunpack.c.h.b16 %v1525
        %v2770 = vunpack.c.l.b16 %v1526
        %v2771 = vunpack.c.h.b16 %v1526
        %v2772 = vunpack.c.l.b16 %v1527
        %v2773 = vunpack.c.h.b16 %v1527
        %v2774 = vunpack.c.l.b16 %v1528
        %v2775 = vunpack.c.h.b16 %v1528
        %v2776 = vunpack.c.l.b16 %v1529
        %v2777 = vunpack.c.h.b16 %v1529
        %v2778 = vunpack.c.l.b16 %v1530
        %v2779 = vunpack.c.h.b16 %v1530
        %v2780 = vunpack.c.l.b16 %v1531
        %v2781 = vunpack.c.h.b16 %v1531
        %v2782 = vunpack.c.l.b16 %v1532
        %v2783 = vunpack.c.h.b16 %v1532
        %v2784 = vunpack.c.l.b16 %v1533
        %v2785 = vunpack.c.h.b16 %v1533
        %v2786 = vunpack.c.l.b16 %v1534
        %v2787 = vunpack.c.h.b16 %v1534
        %v2788 = vunpack.c.l.b16 %v1535
        %v2789 = vunpack.c.h.b16 %v1535
        %v2790 = vunpack.c.l.b16 %v1536
        %v2791 = vunpack.c.h.b16 %v1536
        %v2792 = vunpack.c.l.b16 %v1537
        %v2793 = vunpack.c.h.b16 %v1537
        %v2794 = vunpack.c.l.b16 %v1538
        %v2795 = vunpack.c.h.b16 %v1538
        %v2796 = vunpack.c.l.b16 %v1539
        %v2797 = vunpack.c.h.b16 %v1539
        %v2798 = vunpack.c.l.b16 %v1540
        %v2799 = vunpack.c.h.b16 %v1540
        %v2800 = vunpack.c.l.b16 %v1541
        %v2801 = vunpack.c.h.b16 %v1541
        %v2802 = vunpack.c.l.b16 %v1542
        %v2803 = vunpack.c.h.b16 %v1542
        %v2804 = vunpack.c.l.b16 %v1543
        %v2805 = vunpack.c.h.b16 %v1543
        %v2806 = vunpack.c.l.b16 %v1544
        %v2807 = vunpack.c.h.b16 %v1544
        %v2808 = vunpack.c.l.b16 %v1545
        %v2809 = vunpack.c.h.b16 %v1545
        %v2810 = vunpack.c.l.b16 %v1546
        %v2811 = vunpack.c.h.b16 %v1546
        %v2812 = vunpack.c.l.b16 %v1547
        %v2813 = vunpack.c.h.b16 %v1547
        %v2814 = vunpack.c.l.b16 %v1548
        %v2815 = vunpack.c.h.b16 %v1548
        %v2816 = vunpack.c.l.b16 %v1549
        %v2817 = vunpack.c.h.b16 %v1549
        %v2818 = vunpack.c.l.b16 %v1550
        %v2819 = vunpack.c.h.b16 %v1550
        %v2820 = vunpack.c.l.b16 %v1551
        %v2821 = vunpack.c.h.b16 %v1551
        %v2822 = vunpack.c.l.b16 %v1552
        %v2823 = vunpack.c.h.b16 %v1552
        %v2824 = vunpack.c.l.b16 %v1553
        %v2825 = vunpack.c.h.b16 %v1553
        %v2826 = vunpack.c.l.b16 %v1554
        %v2827 = vunpack.c.h.b16 %v1554
        %v2828 = vunpack.c.l.b16 %v1555
        %v2829 = vunpack.c.h.b16 %v1555
        %v2830 = vunpack.c.l.b16 %v1556
        %v2831 = vunpack.c.h.b16 %v1556
        %v2832 = vunpack.c.l.b16 %v1557
        %v2833 = vunpack.c.h.b16 %v1557
        %v2834 = vunpack.c.l.b16 %v1558
        %v2835 = vunpack.c.h.b16 %v1558
        %v2836 = vunpack.c.l.b16 %v1559
        %v2837 = vunpack.c.h.b16 %v1559
        %v2838 = vunpack.c.l.b16 %v1560
        %v2839 = vunpack.c.h.b16 %v1560
        %v2840 = vunpack.c.l.b16 %v1561
        %v2841 = vunpack.c.h.b16 %v1561
        %v2842 = vunpack.c.l.b16 %v1562
        %v2843 = vunpack.c.h.b16 %v1562
        %v2844 = vunpack.c.l.b16 %v1563
        %v2845 = vunpack.c.h.b16 %v1563
        %v2846 = vunpack.c.l.b16 %v1564
        %v2847 = vunpack.c.h.b16 %v1564
        %v2848 = vunpack.c.l.b16 %v1565
        %v2849 = vunpack.c.h.b16 %v1565
        %v2850 = vunpack.c.l.b16 %v1566
        %v2851 = vunpack.c.h.b16 %v1566
        %v2852 = vunpack.c.l.b16 %v1567
        %v2853 = vunpack.c.h.b16 %v1567
        %v2854 = vunpack.c.l.b16 %v1568
        %v2855 = vunpack.c.h.b16 %v1568
        %v2856 = vunpack.c.l.b16 %v1569
        %v2857 = vunpack.c.h.b16 %v1569
        %v2858 = vunpack.c.l.b16 %v1570
        %v2859 = vunpack.c.h.b16 %v1570
        %v2860 = vunpack.c.l.b16 %v1571
        %v2861 = vunpack.c.h.b16 %v1571
        %v2862 = vunpack.c.l.b16 %v1572
        %v2863 = vunpack.c.h.b16 %v1572
        %v2864 = vunpack.c.l.b16 %v1573
        %v2865 = vunpack.c.h.b16 %v1573
        %v2866 = vunpack.c.l.b16 %v1574
        %v2867 = vunpack.c.h.b16 %v1574
        %v2868 = vunpack.c.l.b16 %v1575
        %v2869 = vunpack.c.h.b16 %v1575
        %v2870 = vunpack.c.l.b16 %v1576
        %v2871 = vunpack.c.h.b16 %v1576
        %v2872 = vunpack.c.l.b16 %v1577
        %v2873 = vunpack.c.h.b16 %v1577
        %v2874 = vunpack.c.l.b16 %v1578
        %v2875 = vunpack.c.h.b16 %v1578
        %v2876 = vunpack.c.l.b16 %v1579
        %v2877 = vunpack.c.h.b16 %v1579
        %v2878 = vunpack.c.l.b16 %v1580
        %v2879 = vunpack.c.h.b16 %v1580
        %v2880 = vunpack.c.l.b16 %v1581
        %v2881 = vunpack.c.h.b16 %v1581
        %v2882 = vunpack.c.l.b16 %v1582
        %v2883 = vunpack.c.h.b16 %v1582
        %v2884 = vunpack.c.l.b16 %v1583
        %v2885 = vunpack.c.h.b16 %v1583
        %v2886 = vunpack.c.l.b16 %v1584
        %v2887 = vunpack.c.h.b16 %v1584
        %v2888 = vunpack.c.l.b16 %v1585
        %v2889 = vunpack.c.h.b16 %v1585
        %v2890 = vunpack.c.l.b16 %v1586
        %v2891 = vunpack.c.h.b16 %v1586
        %v2892 = vunpack.c.l.b16 %v1587
        %v2893 = vunpack.c.h.b16 %v1587
        %v2894 = vunpack.c.l.b16 %v1588
        %v2895 = vunpack.c.h.b16 %v1588
        %v2896 = vunpack.c.l.b16 %v1589
        %v2897 = vunpack.c.h.b16 %v1589
        %v2898 = vunpack.c.l.b16 %v1590
        %v2899 = vunpack.c.h.b16 %v1590
        %v2900 = vunpack.c.l.b16 %v1591
        %v2901 = vunpack.c.h.b16 %v1591
        %v2902 = vunpack.c.l.b16 %v1592
        %v2903 = vunpack.c.h.b16 %v1592
        %v2904 = vunpack.c.l.b16 %v1593
        %v2905 = vunpack.c.h.b16 %v1593
        %v2906 = vunpack.c.l.b16 %v1594
        %v2907 = vunpack.c.h.b16 %v1594
        %v2908 = vunpack.c.l.b16 %v1595
        %v2909 = vunpack.c.h.b16 %v1595
        %v2910 = vunpack.c.l.b16 %v1596
        %v2911 = vunpack.c.h.b16 %v1596
        %v2912 = vunpack.c.l.b16 %v1597
        %v2913 = vunpack.c.h.b16 %v1597
        %v2914 = vunpack.c.l.b16 %v1598
        %v2915 = vunpack.c.h.b16 %v1598
        %v2916 = vunpack.c.l.b16 %v1599
        %v2917 = vunpack.c.h.b16 %v1599
        %v2918 = vunpack.c.l.b16 %v1600
        %v2919 = vunpack.c.h.b16 %v1600
        %v2920 = vunpack.c.l.b16 %v1601
        %v2921 = vunpack.c.h.b16 %v1601
        %v2922 = vunpack.c.l.b16 %v1602
        %v2923 = vunpack.c.h.b16 %v1602
        %v2924 = vunpack.c.l.b16 %v1603
        %v2925 = vunpack.c.h.b16 %v1603
        %v2926 = vunpack.c.l.b16 %v1604
        %v2927 = vunpack.c.h.b16 %v1604
        %v2928 = vunpack.c.l.b16 %v1605
        %v2929 = vunpack.c.h.b16 %v1605
        %v2930 = vunpack.c.l.b16 %v1606
        %v2931 = vunpack.c.h.b16 %v1606
        %v2932 = vunpack.c.l.b16 %v1607
        %v2933 = vunpack.c.h.b16 %v1607
        %v2934 = vunpack.c.l.b16 %v1608
        %v2935 = vunpack.c.h.b16 %v1608
        %v2936 = vunpack.c.l.b16 %v1609
        %v2937 = vunpack.c.h.b16 %v1609
        %v2938 = vunpack.c.l.b16 %v1610
        %v2939 = vunpack.c.h.b16 %v1610
        %v2940 = vunpack.c.l.b16 %v1611
        %v2941 = vunpack.c.h.b16 %v1611
        %v2942 = vunpack.c.l.b16 %v1612
        %v2943 = vunpack.c.h.b16 %v1612
        %v2944 = vunpack.c.l.b16 %v1613
        %v2945 = vunpack.c.h.b16 %v1613
        %v2946 = vunpack.c.l.b16 %v1614
        %v2947 = vunpack.c.h.b16 %v1614
        %v2948 = vunpack.c.l.b16 %v1615
        %v2949 = vunpack.c.h.b16 %v1615
        %v2950 = vunpack.c.l.b16 %v1616
        %v2951 = vunpack.c.h.b16 %v1616
        %v2952 = vunpack.c.l.b16 %v1617
        %v2953 = vunpack.c.h.b16 %v1617
        %v2954 = vunpack.c.l.b16 %v1618
        %v2955 = vunpack.c.h.b16 %v1618
        %v2956 = vunpack.c.l.b16 %v1619
        %v2957 = vunpack.c.h.b16 %v1619
        %v2958 = vunpack.c.l.b16 %v1620
        %v2959 = vunpack.c.h.b16 %v1620
        %v2960 = vunpack.c.l.b16 %v1621
        %v2961 = vunpack.c.h.b16 %v1621
        %v2962 = vunpack.c.l.b16 %v1622
        %v2963 = vunpack.c.h.b16 %v1622
        %v2964 = vunpack.c.l.b16 %v1623
        %v2965 = vunpack.c.h.b16 %v1623
        %v2966 = vunpack.c.l.b16 %v1624
        %v2967 = vunpack.c.h.b16 %v1624
        %v2968 = vunpack.c.l.b16 %v1625
        %v2969 = vunpack.c.h.b16 %v1625
        %v2970 = vunpack.c.l.b16 %v1626
        %v2971 = vunpack.c.h.b16 %v1626
        %v2972 = vunpack.c.l.b16 %v1627
        %v2973 = vunpack.c.h.b16 %v1627
        %v2974 = vunpack.c.l.b16 %v1628
        %v2975 = vunpack.c.h.b16 %v1628
        %v2976 = vunpack.c.l.b16 %v1629
        %v2977 = vunpack.c.h.b16 %v1629
        %v2978 = vunpack.c.l.b16 %v1630
        %v2979 = vunpack.c.h.b16 %v1630
        %v2980 = vunpack.c.l.b16 %v1631
        %v2981 = vunpack.c.h.b16 %v1631
        %v2982 = vunpack.c.l.b16 %v1632
        %v2983 = vunpack.c.h.b16 %v1632
        %v2984 = vunpack.c.l.b16 %v1633
        %v2985 = vunpack.c.h.b16 %v1633
        %v2986 = vunpack.c.l.b16 %v1634
        %v2987 = vunpack.c.h.b16 %v1634
        %v2988 = vunpack.c.l.b16 %v1635
        %v2989 = vunpack.c.h.b16 %v1635
        %v2990 = vunpack.c.l.b16 %v1636
        %v2991 = vunpack.c.h.b16 %v1636
        %v2992 = vunpack.c.l.b16 %v1637
        %v2993 = vunpack.c.h.b16 %v1637
        %v2994 = vunpack.c.l.b16 %v1638
        %v2995 = vunpack.c.h.b16 %v1638
        %v2996 = vunpack.c.l.b16 %v1639
        %v2997 = vunpack.c.h.b16 %v1639
        %v2998 = vunpack.c.l.b16 %v1640
        %v2999 = vunpack.c.h.b16 %v1640
        %v3000 = vunpack.c.l.b16 %v1641
        %v3001 = vunpack.c.h.b16 %v1641
        %v3002 = vunpack.c.l.b16 %v1642
        %v3003 = vunpack.c.h.b16 %v1642
        %v3004 = vunpack.c.l.b16 %v1643
        %v3005 = vunpack.c.h.b16 %v1643
        %v3006 = vunpack.c.l.b16 %v1644
        %v3007 = vunpack.c.h.b16 %v1644
        %v3008 = vunpack.c.l.b16 %v1645
        %v3009 = vunpack.c.h.b16 %v1645
        %v3010 = vunpack.c.l.b16 %v1646
        %v3011 = vunpack.c.h.b16 %v1646
        %v3012 = vunpack.c.l.b16 %v1647
        %v3013 = vunpack.c.h.b16 %v1647
        %v3014 = vunpack.c.l.b16 %v1648
        %v3015 = vunpack.c.h.b16 %v1648
        %v3016 = vunpack.c.l.b16 %v1649
        %v3017 = vunpack.c.h.b16 %v1649
        %v3018 = vunpack.c.l.b16 %v1650
        %v3019 = vunpack.c.h.b16 %v1650
        %v3020 = vunpack.c.l.b16 %v1651
        %v3021 = vunpack.c.h.b16 %v1651
        %v3022 = vunpack.c.l.b16 %v1652
        %v3023 = vunpack.c.h.b16 %v1652
        %v3024 = vunpack.c.l.b16 %v1653
        %v3025 = vunpack.c.h.b16 %v1653
        %v3026 = vunpack.c.l.b16 %v1654
        %v3027 = vunpack.c.h.b16 %v1654
        %v3028 = vunpack.c.l.b16 %v1655
        %v3029 = vunpack.c.h.b16 %v1655
        %v3030 = vunpack.c.l.b16 %v1656
        %v3031 = vunpack.c.h.b16 %v1656
        %v3032 = vunpack.c.l.b16 %v1657
        %v3033 = vunpack.c.h.b16 %v1657
        %v3034 = vunpack.c.l.b16 %v1658
        %v3035 = vunpack.c.h.b16 %v1658
        %v3036 = vunpack.c.l.b16 %v1659
        %v3037 = vunpack.c.h.b16 %v1659
        %v3038 = vunpack.c.l.b16 %v1660
        %v3039 = vunpack.c.h.b16 %v1660
        %v3040 = vunpack.c.l.b16 %v1661
        %v3041 = vunpack.c.h.b16 %v1661
        %v3042 = vunpack.c.l.b16 %v1662
        %v3043 = vunpack.c.h.b16 %v1662
        %v3044 = vunpack.c.l.b16 %v1663
        %v3045 = vunpack.c.h.b16 %v1663
        %v3046 = vunpack.c.l.b16 %v1664
        %v3047 = vunpack.c.h.b16 %v1664
        %v3048 = vunpack.c.l.b16 %v1665
        %v3049 = vunpack.c.h.b16 %v1665
        %v3050 = vunpack.c.l.b16 %v1666
        %v3051 = vunpack.c.h.b16 %v1666
        %v3052 = vunpack.c.l.b16 %v1667
        %v3053 = vunpack.c.h.b16 %v1667
        %v3054 = vunpack.c.l.b16 %v1668
        %v3055 = vunpack.c.h.b16 %v1668
        %v3056 = vunpack.c.l.b16 %v1669
        %v3057 = vunpack.c.h.b16 %v1669
        %v3058 = vunpack.c.l.b16 %v1670
        %v3059 = vunpack.c.h.b16 %v1670
        %v3060 = vunpack.c.l.b16 %v1671
        %v3061 = vunpack.c.h.b16 %v1671
        %v3062 = vunpack.c.l.b16 %v1672
        %v3063 = vunpack.c.h.b16 %v1672
        %v3064 = vunpack.c.l.b16 %v1673
        %v3065 = vunpack.c.h.b16 %v1673
        %v3066 = vunpack.c.l.b16 %v1674
        %v3067 = vunpack.c.h.b16 %v1674
        %v3068 = vunpack.c.l.b16 %v1675
        %v3069 = vunpack.c.h.b16 %v1675
        %v3070 = vunpack.c.l.b16 %v1676
        %v3071 = vunpack.c.h.b16 %v1676
        %v3072 = vunpack.c.l.b16 %v1677
        %v3073 = vunpack.c.h.b16 %v1677
        %v3074 = vunpack.c.l.b16 %v1678
        %v3075 = vunpack.c.h.b16 %v1678
        %v3076 = vunpack.c.l.b16 %v1679
        %v3077 = vunpack.c.h.b16 %v1679
        %v3078 = vunpack.c.l.b16 %v1680
        %v3079 = vunpack.c.h.b16 %v1680
        %v3080 = vunpack.c.l.b16 %v1681
        %v3081 = vunpack.c.h.b16 %v1681
        %v3082 = vunpack.c.l.b16 %v1682
        %v3083 = vunpack.c.h.b16 %v1682
        %v3084 = vunpack.c.l.b16 %v1683
        %v3085 = vunpack.c.h.b16 %v1683
        %v3086 = vunpack.c.l.b16 %v1684
        %v3087 = vunpack.c.h.b16 %v1684
        %v3088 = vunpack.c.l.b16 %v1685
        %v3089 = vunpack.c.h.b16 %v1685
        %v3090 = vunpack.c.l.b16 %v1686
        %v3091 = vunpack.c.h.b16 %v1686
        %v3092 = vunpack.c.l.b16 %v1687
        %v3093 = vunpack.c.h.b16 %v1687
        %v3094 = vunpack.c.l.b16 %v1688
        %v3095 = vunpack.c.h.b16 %v1688
        %v3096 = vunpack.c.l.b16 %v1689
        %v3097 = vunpack.c.h.b16 %v1689
        %v3098 = vunpack.c.l.b16 %v1690
        %v3099 = vunpack.c.h.b16 %v1690
        %v3100 = vunpack.c.l.b16 %v1691
        %v3101 = vunpack.c.h.b16 %v1691
        %v3102 = vunpack.c.l.b16 %v1692
        %v3103 = vunpack.c.h.b16 %v1692
        %v3104 = vunpack.c.l.b16 %v1693
        %v3105 = vunpack.c.h.b16 %v1693
        %v3106 = vunpack.c.l.b16 %v1694
        %v3107 = vunpack.c.h.b16 %v1694
        %v3108 = vunpack.c.l.b16 %v1695
        %v3109 = vunpack.c.h.b16 %v1695
        %v3110 = vunpack.c.l.b16 %v1696
        %v3111 = vunpack.c.h.b16 %v1696
        %v3112 = vunpack.c.l.b16 %v1697
        %v3113 = vunpack.c.h.b16 %v1697
        %v3114 = vunpack.c.l.b16 %v1698
        %v3115 = vunpack.c.h.b16 %v1698
        %v3116 = vunpack.c.l.b16 %v1699
        %v3117 = vunpack.c.h.b16 %v1699
        %v3118 = vunpack.c.l.b16 %v1700
        %v3119 = vunpack.c.h.b16 %v1700
        %v3120 = vunpack.c.l.b16 %v1701
        %v3121 = vunpack.c.h.b16 %v1701
        %v3122 = vunpack.c.l.b16 %v1702
        %v3123 = vunpack.c.h.b16 %v1702
        %v3124 = vunpack.c.l.b16 %v1703
        %v3125 = vunpack.c.h.b16 %v1703
        %v3126 = vunpack.c.l.b16 %v1704
        %v3127 = vunpack.c.h.b16 %v1704
        %v3128 = vunpack.c.l.b16 %v1705
        %v3129 = vunpack.c.h.b16 %v1705
        %v3130 = vunpack.c.l.b16 %v1706
        %v3131 = vunpack.c.h.b16 %v1706
        %v3132 = vunpack.c.l.b16 %v1707
        %v3133 = vunpack.c.h.b16 %v1707
        %v3134 = vunpack.c.l.b16 %v1708
        %v3135 = vunpack.c.h.b16 %v1708
        %v3136 = vunpack.c.l.b16 %v1709
        %v3137 = vunpack.c.h.b16 %v1709
        %v3138 = vunpack.c.l.b16 %v1710
        %v3139 = vunpack.c.h.b16 %v1710
        %v3140 = vunpack.c.l.b16 %v1711
        %v3141 = vunpack.c.h.b16 %v1711
        %v3142 = vunpack.c.l.b16 %v1712
        %v3143 = vunpack.c.h.b16 %v1712
        %v3144 = vunpack.c.l.b16 %v1713
        %v3145 = vunpack.c.h.b16 %v1713
        %v3146 = vunpack.c.l.b16 %v1714
        %v3147 = vunpack.c.h.b16 %v1714
        %v3148 = vunpack.c.l.b16 %v1715
        %v3149 = vunpack.c.h.b16 %v1715
        %v3150 = vunpack.c.l.b16 %v1716
        %v3151 = vunpack.c.h.b16 %v1716
        %v3152 = vunpack.c.l.b16 %v1717
        %v3153 = vunpack.c.h.b16 %v1717
        %v3154 = vunpack.c.l.b16 %v1718
        %v3155 = vunpack.c.h.b16 %v1718
        %v3156 = vunpack.c.l.b16 %v1719
        %v3157 = vunpack.c.h.b16 %v1719
        %v3158 = vunpack.c.l.b16 %v1720
        %v3159 = vunpack.c.h.b16 %v1720
        %v3160 = vunpack.c.l.b16 %v1721
        %v3161 = vunpack.c.h.b16 %v1721
        %v3162 = vunpack.c.l.b16 %v1722
        %v3163 = vunpack.c.h.b16 %v1722
        %v3164 = vunpack.c.l.b16 %v1723
        %v3165 = vunpack.c.h.b16 %v1723
        %v3166 = vunpack.c.l.b16 %v1724
        %v3167 = vunpack.c.h.b16 %v1724
        %v3168 = vunpack.c.l.b16 %v1725
        %v3169 = vunpack.c.h.b16 %v1725
        %v3170 = vunpack.c.l.b16 %v1726
        %v3171 = vunpack.c.h.b16 %v1726
        %v3172 = vunpack.c.l.b16 %v1727
        %v3173 = vunpack.c.h.b16 %v1727
        %v3174 = vunpack.c.l.b16 %v1728
        %v3175 = vunpack.c.h.b16 %v1728
        %v3176 = vunpack.c.l.b16 %v1729
        %v3177 = vunpack.c.h.b16 %v1729
        %v3178 = vunpack.c.l.b16 %v1730
        %v3179 = vunpack.c.h.b16 %v1730
        %v3180 = vunpack.c.l.b16 %v1731
        %v3181 = vunpack.c.h.b16 %v1731
        %v3182 = vunpack.c.l.b16 %v1732
        %v3183 = vunpack.c.h.b16 %v1732
        %v3184 = vunpack.c.l.b16 %v1733
        %v3185 = vunpack.c.h.b16 %v1733
        %v3186 = vunpack.c.l.b16 %v1734
        %v3187 = vunpack.c.h.b16 %v1734
        %v3188 = vunpack.c.l.b16 %v1735
        %v3189 = vunpack.c.h.b16 %v1735
        %v3190 = vunpack.c.l.b16 %v1736
        %v3191 = vunpack.c.h.b16 %v1736
        %v3192 = vunpack.c.l.b16 %v1737
        %v3193 = vunpack.c.h.b16 %v1737
        %v3194 = vunpack.c.l.b16 %v1738
        %v3195 = vunpack.c.h.b16 %v1738
        %v3196 = vunpack.c.l.b16 %v1739
        %v3197 = vunpack.c.h.b16 %v1739
        %v3198 = vunpack.c.l.b16 %v1740
        %v3199 = vunpack.c.h.b16 %v1740
        %v3200 = vunpack.c.l.b16 %v1741
        %v3201 = vunpack.c.h.b16 %v1741
        %v3202 = vunpack.c.l.b16 %v1742
        %v3203 = vunpack.c.h.b16 %v1742
        %v3204 = vunpack.c.l.b16 %v1743
        %v3205 = vunpack.c.h.b16 %v1743
        %v3206 = vunpack.c.l.b16 %v1744
        %v3207 = vunpack.c.h.b16 %v1744
        %v3208 = vunpack.c.l.b16 %v1745
        %v3209 = vunpack.c.h.b16 %v1745
        %v3210 = vunpack.c.l.b16 %v1746
        %v3211 = vunpack.c.h.b16 %v1746
        %v3212 = vunpack.c.l.b16 %v1747
        %v3213 = vunpack.c.h.b16 %v1747
        %v3214 = vunpack.c.l.b16 %v1748
        %v3215 = vunpack.c.h.b16 %v1748
        %v3216 = vunpack.c.l.b16 %v1749
        %v3217 = vunpack.c.h.b16 %v1749
        %v3218 = vunpack.c.l.b16 %v1750
        %v3219 = vunpack.c.h.b16 %v1750
        %v3220 = vunpack.c.l.b16 %v1751
        %v3221 = vunpack.c.h.b16 %v1751
        %v3222 = vunpack.c.l.b16 %v1752
        %v3223 = vunpack.c.h.b16 %v1752
        %v3224 = vunpack.c.l.b16 %v1753
        %v3225 = vunpack.c.h.b16 %v1753
        %v3226 = vunpack.c.l.b16 %v1754
        %v3227 = vunpack.c.h.b16 %v1754
        %v3228 = vunpack.c.l.b16 %v1755
        %v3229 = vunpack.c.h.b16 %v1755
        %v3230 = vunpack.c.l.b16 %v1756
        %v3231 = vunpack.c.h.b16 %v1756
        %v3232 = vunpack.c.l.b16 %v1757
        %v3233 = vunpack.c.h.b16 %v1757
        %v3234 = vunpack.c.l.b16 %v1758
        %v3235 = vunpack.c.h.b16 %v1758
        %v3236 = vunpack.c.l.b16 %v1759
        %v3237 = vunpack.c.h.b16 %v1759
        %v3238 = vunpack.c.l.b16 %v1760
        %v3239 = vunpack.c.h.b16 %v1760
        %v3240 = vunpack.c.l.b16 %v1761
        %v3241 = vunpack.c.h.b16 %v1761
        %v3242 = vunpack.c.l.b16 %v1762
        %v3243 = vunpack.c.h.b16 %v1762
        %v3244 = vunpack.c.l.b16 %v1763
        %v3245 = vunpack.c.h.b16 %v1763
        %v3246 = vunpack.c.l.b16 %v1764
        %v3247 = vunpack.c.h.b16 %v1764
        %v3248 = vunpack.c.l.b16 %v1765
        %v3249 = vunpack.c.h.b16 %v1765
        %v3250 = vunpack.c.l.b16 %v1766
        %v3251 = vunpack.c.h.b16 %v1766
        %v3252 = vunpack.c.l.b16 %v1767
        %v3253 = vunpack.c.h.b16 %v1767
        %v3254 = vunpack.c.l.b16 %v1768
        %v3255 = vunpack.c.h.b16 %v1768
        %v3256 = vunpack.c.l.b16 %v1769
        %v3257 = vunpack.c.h.b16 %v1769
        %v3258 = vunpack.c.l.b16 %v1770
        %v3259 = vunpack.c.h.b16 %v1770
        %v3260 = vunpack.c.l.b16 %v1771
        %v3261 = vunpack.c.h.b16 %v1771
        %v3262 = vunpack.c.l.b16 %v1772
        %v3263 = vunpack.c.h.b16 %v1772
        %v3264 = vunpack.c.l.b16 %v1773
        %v3265 = vunpack.c.h.b16 %v1773
        %v3266 = vunpack.c.l.b16 %v1774
        %v3267 = vunpack.c.h.b16 %v1774
        %v3268 = vunpack.c.l.b16 %v1775
        %v3269 = vunpack.c.h.b16 %v1775
        %v3270 = vunpack.c.l.b16 %v1776
        %v3271 = vunpack.c.h.b16 %v1776
        %v3272 = vunpack.c.l.b16 %v1777
        %v3273 = vunpack.c.h.b16 %v1777
        %v3274 = vunpack.c.l.b16 %v1778
        %v3275 = vunpack.c.h.b16 %v1778
        %v3276 = vunpack.c.l.b16 %v1779
        %v3277 = vunpack.c.h.b16 %v1779
        %v3278 = vunpack.c.l.b16 %v1780
        %v3279 = vunpack.c.h.b16 %v1780
        %v3280 = vunpack.c.l.b16 %v1781
        %v3281 = vunpack.c.h.b16 %v1781
        %v3282 = vunpack.c.l.b16 %v1782
        %v3283 = vunpack.c.h.b16 %v1782
        %v3284 = vunpack.c.l.b16 %v1783
        %v3285 = vunpack.c.h.b16 %v1783
        %v3286 = vunpack.c.l.b16 %v1784
        %v3287 = vunpack.c.h.b16 %v1784
        %v3288 = vunpack.c.l.b16 %v1785
        %v3289 = vunpack.c.h.b16 %v1785
        %v3290 = vunpack.c.l.b16 %v1786
        %v3291 = vunpack.c.h.b16 %v1786
        %v3292 = vunpack.c.l.b16 %v1787
        %v3293 = vunpack.c.h.b16 %v1787
        %v3294 = vunpack.c.l.b16 %v1788
        %v3295 = vunpack.c.h.b16 %v1788
        %v3296 = vunpack.c.l.b16 %v1789
        %v3297 = vunpack.c.h.b16 %v1789
        %v3298 = vunpack.c.l.b16 %v1790
        %v3299 = vunpack.c.h.b16 %v1790
        %v3300 = vunpack.c.l.b16 %v1791
        %v3301 = vunpack.c.h.b16 %v1791
        %v3302 = vunpack.c.l.b16 %v1792
        %v3303 = vunpack.c.h.b16 %v1792
        %v3304 = vunpack.c.l.b16 %v1793
        %v3305 = vunpack.c.h.b16 %v1793
        %v3306 = vunpack.c.l.b16 %v1794
        %v3307 = vunpack.c.h.b16 %v1794
        %v3308 = vunpack.c.l.b16 %v1795
        %v3309 = vunpack.c.h.b16 %v1795
        %v3310 = vunpack.c.l.b16 %v1796
        %v3311 = vunpack.c.h.b16 %v1796
        %v3312 = vunpack.c.l.b16 %v1797
        %v3313 = vunpack.c.h.b16 %v1797
        %v3314 = vunpack.c.l.b16 %v1798
        %v3315 = vunpack.c.h.b16 %v1798
        %v3316 = vunpack.c.l.b16 %v1799
        %v3317 = vunpack.c.h.b16 %v1799
        %v3318 = vunpack.c.l.b16 %v1800
        %v3319 = vunpack.c.h.b16 %v1800
        %v3320 = vunpack.c.l.b16 %v1801
        %v3321 = vunpack.c.h.b16 %v1801
        %v3322 = vunpack.c.l.b16 %v1802
        %v3323 = vunpack.c.h.b16 %v1802
        %v3324 = vunpack.c.l.b16 %v1803
        %v3325 = vunpack.c.h.b16 %v1803
        %v3326 = vunpack.c.l.b16 %v1804
        %v3327 = vunpack.c.h.b16 %v1804
        %v3328 = vunpack.c.l.b16 %v1805
        %v3329 = vunpack.c.h.b16 %v1805
        %v3330 = vunpack.c.l.b16 %v1806
        %v3331 = vunpack.c.h.b16 %v1806
        %v3332 = vunpack.c.l.b16 %v1807
        %v3333 = vunpack.c.h.b16 %v1807
        %v3334 = vunpack.c.l.b16 %v1808
        %v3335 = vunpack.c.h.b16 %v1808
        %v3336 = vunpack.c.l.b16 %v1809
        %v3337 = vunpack.c.h.b16 %v1809
        %v3338 = vunpack.c.l.b16 %v1810
        %v3339 = vunpack.c.h.b16 %v1810
        %v3340 = vunpack.c.l.b16 %v1811
        %v3341 = vunpack.c.h.b16 %v1811
        %v3342 = vunpack.c.l.b16 %v1812
        %v3343 = vunpack.c.h.b16 %v1812
        %v3344 = vunpack.c.l.b16 %v1813
        %v3345 = vunpack.c.h.b16 %v1813
        %v3346 = vunpack.c.l.b16 %v1814
        %v3347 = vunpack.c.h.b16 %v1814
        %v3348 = vunpack.c.l.b16 %v1815
        %v3349 = vunpack.c.h.b16 %v1815
        %v3350 = vunpack.c.l.b16 %v1816
        %v3351 = vunpack.c.h.b16 %v1816
        %v3352 = vunpack.c.l.b16 %v1817
        %v3353 = vunpack.c.h.b16 %v1817
        %v3354 = vunpack.c.l.b16 %v1818
        %v3355 = vunpack.c.h.b16 %v1818
        %v3356 = vunpack.c.l.b16 %v1819
        %v3357 = vunpack.c.h.b16 %v1819
        %v3358 = vunpack.c.l.b16 %v1820
        %v3359 = vunpack.c.h.b16 %v1820
        %v3360 = vunpack.c.l.b16 %v1821
        %v3361 = vunpack.c.h.b16 %v1821
        %v3362 = vunpack.c.l.b16 %v1822
        %v3363 = vunpack.c.h.b16 %v1822
        %v3364 = vunpack.c.l.b16 %v1823
        %v3365 = vunpack.c.h.b16 %v1823
        %v3366 = vunpack.c.l.b16 %v1824
        %v3367 = vunpack.c.h.b16 %v1824
        %v3368 = vunpack.c.l.b16 %v1825
        %v3369 = vunpack.c.h.b16 %v1825
        %v3370 = vunpack.c.l.b16 %v1826
        %v3371 = vunpack.c.h.b16 %v1826
        %v3372 = vunpack.c.l.b16 %v1827
        %v3373 = vunpack.c.h.b16 %v1827
        %v3374 = vunpack.c.l.b16 %v1828
        %v3375 = vunpack.c.h.b16 %v1828
        %v3376 = vunpack.c.l.b16 %v1829
        %v3377 = vunpack.c.h.b16 %v1829
        %v3378 = vunpack.c.l.b16 %v1830
        %v3379 = vunpack.c.h.b16 %v1830
        %v3380 = vunpack.c.l.b16 %v1831
        %v3381 = vunpack.c.h.b16 %v1831
        %v3382 = vunpack.c.l.b16 %v1832
        %v3383 = vunpack.c.h.b16 %v1832
        %v3384 = vunpack.c.l.b16 %v1833
        %v3385 = vunpack.c.h.b16 %v1833
        %v3386 = vunpack.c.l.b16 %v1834
        %v3387 = vunpack.c.h.b16 %v1834
        %v3388 = vpack.c.b16 %v2416, %v2412
        %v3389 = vpack.c.b16 %v2417, %v2413
        %v3390 = vpack.c.b16 %v2418, %v2414
        %v3391 = vpack.c.b16 %v2419, %v2415
        %v3392 = vpack.c.b16 %v2424, %v2420
        %v3393 = vpack.c.b16 %v2425, %v2421
        %v3394 = vpack.c.b16 %v2426, %v2422
        %v3395 = vpack.c.b16 %v2427, %v2423
        %v3396 = vpack.c.b16 %v2432, %v2428
        %v3397 = vpack.c.b16 %v2433, %v2429
        %v3398 = vpack.c.b16 %v2434, %v2430
        %v3399 = vpack.c.b16 %v2435, %v2431
        %v3400 = vpack.c.b16 %v2440, %v2436
        %v3401 = vpack.c.b16 %v2441, %v2437
        %v3402 = vpack.c.b16 %v2442, %v2438
        %v3403 = vpack.c.b16 %v2443, %v2439
        %v3404 = vpack.c.b16 %v2448, %v2444
        %v3405 = vpack.c.b16 %v2449, %v2445
        %v3406 = vpack.c.b16 %v2450, %v2446
        %v3407 = vpack.c.b16 %v2451, %v2447
        %v3408 = vpack.c.b16 %v2456, %v2452
        %v3409 = vpack.c.b16 %v2457, %v2453
        %v3410 = vpack.c.b16 %v2458, %v2454
        %v3411 = vpack.c.b16 %v2459, %v2455
        %v3412 = vpack.c.b16 %v2464, %v2460
        %v3413 = vpack.c.b16 %v2465, %v2461
        %v3414 = vpack.c.b16 %v2466, %v2462
        %v3415 = vpack.c.b16 %v2467, %v2463
        %v3416 = vpack.c.b16 %v2472, %v2468
        %v3417 = vpack.c.b16 %v2473, %v2469
        %v3418 = vpack.c.b16 %v2474, %v2470
        %v3419 = vpack.c.b16 %v2475, %v2471
        %v3420 = vpack.c.b16 %v2480, %v2476
        %v3421 = vpack.c.b16 %v2481, %v2477
        %v3422 = vpack.c.b16 %v2482, %v2478
        %v3423 = vpack.c.b16 %v2483, %v2479
        %v3424 = vpack.c.b16 %v2488, %v2484
        %v3425 = vpack.c.b16 %v2489, %v2485
        %v3426 = vpack.c.b16 %v2490, %v2486
        %v3427 = vpack.c.b16 %v2491, %v2487
        %v3428 = vpack.c.b16 %v2496, %v2492
        %v3429 = vpack.c.b16 %v2497, %v2493
        %v3430 = vpack.c.b16 %v2498, %v2494
        %v3431 = vpack.c.b16 %v2499, %v2495
        %v3432 = vpack.c.b16 %v2504, %v2500
        %v3433 = vpack.c.b16 %v2505, %v2501
        %v3434 = vpack.c.b16 %v2506, %v2502
        %v3435 = vpack.c.b16 %v2507, %v2503
        %v3436 = vpack.c.b16 %v2512, %v2508
        %v3437 = vpack.c.b16 %v2513, %v2509
        %v3438 = vpack.c.b16 %v2514, %v2510
        %v3439 = vpack.c.b16 %v2515, %v2511
        %v3440 = vpack.c.b16 %v2520, %v2516
        %v3441 = vpack.c.b16 %v2521, %v2517
        %v3442 = vpack.c.b16 %v2522, %v2518
        %v3443 = vpack.c.b16 %v2523, %v2519
        %v3444 = vpack.c.b16 %v2528, %v2524
        %v3445 = vpack.c.b16 %v2529, %v2525
        %v3446 = vpack.c.b16 %v2530, %v2526
        %v3447 = vpack.c.b16 %v2531, %v2527
        %v3448 = vpack.c.b16 %v2536, %v2532
        %v3449 = vpack.c.b16 %v2537, %v2533
        %v3450 = vpack.c.b16 %v2538, %v2534
        %v3451 = vpack.c.b16 %v2539, %v2535
        %v3452 = vpack.c.b16 %v2544, %v2540
        %v3453 = vpack.c.b16 %v2545, %v2541
        %v3454 = vpack.c.b16 %v2546, %v2542
        %v3455 = vpack.c.b16 %v2547, %v2543
        %v3456 = vpack.c.b16 %v2552, %v2548
        %v3457 = vpack.c.b16 %v2553, %v2549
        %v3458 = vpack.c.b16 %v2554, %v2550
        %v3459 = vpack.c.b16 %v2555, %v2551
        %v3460 = vpack.c.b16 %v2560, %v2556
        %v3461 = vpack.c.b16 %v2561, %v2557
        %v3462 = vpack.c.b16 %v2562, %v2558
        %v3463 = vpack.c.b16 %v2563, %v2559
        %v3464 = vpack.c.b16 %v2568, %v2564
        %v3465 = vpack.c.b16 %v2569, %v2565
        %v3466 = vpack.c.b16 %v2570, %v2566
        %v3467 = vpack.c.b16 %v2571, %v2567
        %v3468 = vpack.c.b16 %v2576, %v2572
        %v3469 = vpack.c.b16 %v2577, %v2573
        %v3470 = vpack.c.b16 %v2578, %v2574
        %v3471 = vpack.c.b16 %v2579, %v2575
        %v3472 = vpack.c.b16 %v2584, %v2580
        %v3473 = vpack.c.b16 %v2585, %v2581
        %v3474 = vpack.c.b16 %v2586, %v2582
        %v3475 = vpack.c.b16 %v2587, %v2583
        %v3476 = vpack.c.b16 %v2592, %v2588
        %v3477 = vpack.c.b16 %v2593, %v2589
        %v3478 = vpack.c.b16 %v2594, %v2590
        %v3479 = vpack.c.b16 %v2595, %v2591
        %v3480 = vpack.c.b16 %v2600, %v2596
        %v3481 = vpack.c.b16 %v2601, %v2597
        %v3482 = vpack.c.b16 %v2602, %v2598
        %v3483 = vpack.c.b16 %v2603, %v2599
        %v3484 = vpack.c.b16 %v2608, %v2604
        %v3485 = vpack.c.b16 %v2609, %v2605
        %v3486 = vpack.c.b16 %v2610, %v2606
        %v3487 = vpack.c.b16 %v2611, %v2607
        %v3488 = vpack.c.b16 %v2616, %v2612
        %v3489 = vpack.c.b16 %v2617, %v2613
        %v3490 = vpack.c.b16 %v2618, %v2614
        %v3491 = vpack.c.b16 %v2619, %v2615
        %v3492 = vpack.c.b16 %v2624, %v2620
        %v3493 = vpack.c.b16 %v2625, %v2621
        %v3494 = vpack.c.b16 %v2626, %v2622
        %v3495 = vpack.c.b16 %v2627, %v2623
        %v3496 = vpack.c.b16 %v2632, %v2628
        %v3497 = vpack.c.b16 %v2633, %v2629
        %v3498 = vpack.c.b16 %v2634, %v2630
        %v3499 = vpack.c.b16 %v2635, %v2631
        %v3500 = vpack.c.b16 %v2640, %v2636
        %v3501 = vpack.c.b16 %v2641, %v2637
        %v3502 = vpack.c.b16 %v2642, %v2638
        %v3503 = vpack.c.b16 %v2643, %v2639
        %v3504 = vpack.c.b16 %v2648, %v2644
        %v3505 = vpack.c.b16 %v2649, %v2645
        %v3506 = vpack.c.b16 %v2650, %v2646
        %v3507 = vpack.c.b16 %v2651, %v2647
        %v3508 = vpack.c.b16 %v2656, %v2652
        %v3509 = vpack.c.b16 %v2657, %v2653
        %v3510 = vpack.c.b16 %v2658, %v2654
        %v3511 = vpack.c.b16 %v2659, %v2655
        %v3512 = vpack.c.b16 %v2664, %v2660
        %v3513 = vpack.c.b16 %v2665, %v2661
        %v3514 = vpack.c.b16 %v2666, %v2662
        %v3515 = vpack.c.b16 %v2667, %v2663
        %v3516 = vpack.c.b16 %v2672, %v2668
        %v3517 = vpack.c.b16 %v2673, %v2669
        %v3518 = vpack.c.b16 %v2674, %v2670
        %v3519 = vpack.c.b16 %v2675, %v2671
        %v3520 = vpack.c.b16 %v2680, %v2676
        %v3521 = vpack.c.b16 %v2681, %v2677
        %v3522 = vpack.c.b16 %v2682, %v2678
        %v3523 = vpack.c.b16 %v2683, %v2679
        %v3524 = vpack.c.b16 %v2688, %v2684
        %v3525 = vpack.c.b16 %v2689, %v2685
        %v3526 = vpack.c.b16 %v2690, %v2686
        %v3527 = vpack.c.b16 %v2691, %v2687
        %v3528 = vpack.c.b16 %v2696, %v2692
        %v3529 = vpack.c.b16 %v2697, %v2693
        %v3530 = vpack.c.b16 %v2698, %v2694
        %v3531 = vpack.c.b16 %v2699, %v2695
        %v3532 = vpack.c.b16 %v2704, %v2700
        %v3533 = vpack.c.b16 %v2705, %v2701
        %v3534 = vpack.c.b16 %v2706, %v2702
        %v3535 = vpack.c.b16 %v2707, %v2703
        %v3536 = vpack.c.b16 %v2712, %v2708
        %v3537 = vpack.c.b16 %v2713, %v2709
        %v3538 = vpack.c.b16 %v2714, %v2710
        %v3539 = vpack.c.b16 %v2715, %v2711
        %v3540 = vpack.c.b16 %v2720, %v2716
        %v3541 = vpack.c.b16 %v2721, %v2717
        %v3542 = vpack.c.b16 %v2722, %v2718
        %v3543 = vpack.c.b16 %v2723, %v2719
        %v3544 = vpack.c.b16 %v2728, %v2724
        %v3545 = vpack.c.b16 %v2729, %v2725
        %v3546 = vpack.c.b16 %v2730, %v2726
        %v3547 = vpack.c.b16 %v2731, %v2727
        %v3548 = vpack.c.b16 %v2736, %v2732
        %v3549 = vpack.c.b16 %v2737, %v2733
        %v3550 = vpack.c.b16 %v2738, %v2734
        %v3551 = vpack.c.b16 %v2739, %v2735
        %v3552 = vpack.c.b16 %v2744, %v2740
        %v3553 = vpack.c.b16 %v2745, %v2741
        %v3554 = vpack.c.b16 %v2746, %v2742
        %v3555 = vpack.c.b16 %v2747, %v2743
        %v3556 = vpack.c.b16 %v2752, %v2748
        %v3557 = vpack.c.b16 %v2753, %v2749
        %v3558 = vpack.c.b16 %v2754, %v2750
        %v3559 = vpack.c.b16 %v2755, %v2751
        %v3560 = vpack.c.b16 %v2760, %v2756
        %v3561 = vpack.c.b16 %v2761, %v2757
        %v3562 = vpack.c.b16 %v2762, %v2758
        %v3563 = vpack.c.b16 %v2763, %v2759
        %v3564 = vpack.c.b16 %v2768, %v2764
        %v3565 = vpack.c.b16 %v2769, %v2765
        %v3566 = vpack.c.b16 %v2770, %v2766
        %v3567 = vpack.c.b16 %v2771, %v2767
        %v3568 = vpack.c.b16 %v2776, %v2772
        %v3569 = vpack.c.b16 %v2777, %v2773
        %v3570 = vpack.c.b16 %v2778, %v2774
        %v3571 = vpack.c.b16 %v2779, %v2775
        %v3572 = vpack.c.b16 %v2784, %v2780
        %v3573 = vpack.c.b16 %v2785, %v2781
        %v3574 = vpack.c.b16 %v2786, %v2782
        %v3575 = vpack.c.b16 %v2787, %v2783
        %v3576 = vpack.c.b16 %v2792, %v2788
        %v3577 = vpack.c.b16 %v2793, %v2789
        %v3578 = vpack.c.b16 %v2794, %v2790
        %v3579 = vpack.c.b16 %v2795, %v2791
        %v3580 = vpack.c.b16 %v2800, %v2796
        %v3581 = vpack.c.b16 %v2801, %v2797
        %v3582 = vpack.c.b16 %v2802, %v2798
        %v3583 = vpack.c.b16 %v2803, %v2799
        %v3584 = vpack.c.b16 %v2808, %v2804
        %v3585 = vpack.c.b16 %v2809, %v2805
        %v3586 = vpack.c.b16 %v2810, %v2806
        %v3587 = vpack.c.b16 %v2811, %v2807
        %v3588 = vpack.c.b16 %v2816, %v2812
        %v3589 = vpack.c.b16 %v2817, %v2813
        %v3590 = vpack.c.b16 %v2818, %v2814
        %v3591 = vpack.c.b16 %v2819, %v2815
        %v3592 = vpack.c.b16 %v2824, %v2820
        %v3593 = vpack.c.b16 %v2825, %v2821
        %v3594 = vpack.c.b16 %v2826, %v2822
        %v3595 = vpack.c.b16 %v2827, %v2823
        %v3596 = vpack.c.b16 %v2832, %v2828
        %v3597 = vpack.c.b16 %v2833, %v2829
        %v3598 = vpack.c.b16 %v2834, %v2830
        %v3599 = vpack.c.b16 %v2835, %v2831
        %v3600 = vpack.c.b16 %v2840, %v2836
        %v3601 = vpack.c.b16 %v2841, %v2837
        %v3602 = vpack.c.b16 %v2842, %v2838
        %v3603 = vpack.c.b16 %v2843, %v2839
        %v3604 = vpack.c.b16 %v2848, %v2844
        %v3605 = vpack.c.b16 %v2849, %v2845
        %v3606 = vpack.c.b16 %v2850, %v2846
        %v3607 = vpack.c.b16 %v2851, %v2847
        %v3608 = vpack.c.b16 %v2856, %v2852
        %v3609 = vpack.c.b16 %v2857, %v2853
        %v3610 = vpack.c.b16 %v2858, %v2854
        %v3611 = vpack.c.b16 %v2859, %v2855
        %v3612 = vpack.c.b16 %v2864, %v2860
        %v3613 = vpack.c.b16 %v2865, %v2861
        %v3614 = vpack.c.b16 %v2866, %v2862
        %v3615 = vpack.c.b16 %v2867, %v2863
        %v3616 = vpack.c.b16 %v2872, %v2868
        %v3617 = vpack.c.b16 %v2873, %v2869
        %v3618 = vpack.c.b16 %v2874, %v2870
        %v3619 = vpack.c.b16 %v2875, %v2871
        %v3620 = vpack.c.b16 %v2880, %v2876
        %v3621 = vpack.c.b16 %v2881, %v2877
        %v3622 = vpack.c.b16 %v2882, %v2878
        %v3623 = vpack.c.b16 %v2883, %v2879
        %v3624 = vpack.c.b16 %v2888, %v2884
        %v3625 = vpack.c.b16 %v2889, %v2885
        %v3626 = vpack.c.b16 %v2890, %v2886
        %v3627 = vpack.c.b16 %v2891, %v2887
        %v3628 = vpack.c.b16 %v2896, %v2892
        %v3629 = vpack.c.b16 %v2897, %v2893
        %v3630 = vpack.c.b16 %v2898, %v2894
        %v3631 = vpack.c.b16 %v2899, %v2895
        %v3632 = vpack.c.b16 %v2904, %v2900
        %v3633 = vpack.c.b16 %v2905, %v2901
        %v3634 = vpack.c.b16 %v2906, %v2902
        %v3635 = vpack.c.b16 %v2907, %v2903
        %v3636 = vpack.c.b16 %v2912, %v2908
        %v3637 = vpack.c.b16 %v2913, %v2909
        %v3638 = vpack.c.b16 %v2914, %v2910
        %v3639 = vpack.c.b16 %v2915, %v2911
        %v3640 = vpack.c.b16 %v2920, %v2916
        %v3641 = vpack.c.b16 %v2921, %v2917
        %v3642 = vpack.c.b16 %v2922, %v2918
        %v3643 = vpack.c.b16 %v2923, %v2919
        %v3644 = vpack.c.b16 %v2928, %v2924
        %v3645 = vpack.c.b16 %v2929, %v2925
        %v3646 = vpack.c.b16 %v2930, %v2926
        %v3647 = vpack.c.b16 %v2931, %v2927
        %v3648 = vpack.c.b16 %v2936, %v2932
        %v3649 = vpack.c.b16 %v2937, %v2933
        %v3650 = vpack.c.b16 %v2938, %v2934
        %v3651 = vpack.c.b16 %v2939, %v2935
        %v3652 = vpack.c.b16 %v2944, %v2940
        %v3653 = vpack.c.b16 %v2945, %v2941
        %v3654 = vpack.c.b16 %v2946, %v2942
        %v3655 = vpack.c.b16 %v2947, %v2943
        %v3656 = vpack.c.b16 %v2952, %v2948
        %v3657 = vpack.c.b16 %v2953, %v2949
        %v3658 = vpack.c.b16 %v2954, %v2950
        %v3659 = vpack.c.b16 %v2955, %v2951
        %v3660 = vpack.c.b16 %v2960, %v2956
        %v3661 = vpack.c.b16 %v2961, %v2957
        %v3662 = vpack.c.b16 %v2962, %v2958
        %v3663 = vpack.c.b16 %v2963, %v2959
        %v3664 = vpack.c.b16 %v2968, %v2964
        %v3665 = vpack.c.b16 %v2969, %v2965
        %v3666 = vpack.c.b16 %v2970, %v2966
        %v3667 = vpack.c.b16 %v2971, %v2967
        %v3668 = vpack.c.b16 %v2976, %v2972
        %v3669 = vpack.c.b16 %v2977, %v2973
        %v3670 = vpack.c.b16 %v2978, %v2974
        %v3671 = vpack.c.b16 %v2979, %v2975
        %v3672 = vpack.c.b16 %v2984, %v2980
        %v3673 = vpack.c.b16 %v2985, %v2981
        %v3674 = vpack.c.b16 %v2986, %v2982
        %v3675 = vpack.c.b16 %v2987, %v2983
        %v3676 = vpack.c.b16 %v2992, %v2988
        %v3677 = vpack.c.b16 %v2993, %v2989
        %v3678 = vpack.c.b16 %v2994, %v2990
        %v3679 = vpack.c.b16 %v2995, %v2991
        %v3680 = vpack.c.b16 %v3000, %v2996
        %v3681 = vpack.c.b16 %v3001, %v2997
        %v3682 = vpack.c.b16 %v3002, %v2998
        %v3683 = vpack.c.b16 %v3003, %v2999
        %v3684 = vpack.c.b16 %v3008, %v3004
        %v3685 = vpack.c.b16 %v3009, %v3005
        %v3686 = vpack.c.b16 %v3010, %v3006
        %v3687 = vpack.c.b16 %v3011, %v3007
        %v3688 = vpack.c.b16 %v3016, %v3012
        %v3689 = vpack.c.b16 %v3017, %v3013
        %v3690 = vpack.c.b16 %v3018, %v3014
        %v3691 = vpack.c.b16 %v3019, %v3015
        %v3692 = vpack.c.b16 %v3024, %v3020
        %v3693 = vpack.c.b16 %v3025, %v3021
        %v3694 = vpack.c.b16 %v3026, %v3022
        %v3695 = vpack.c.b16 %v3027, %v3023
        %v3696 = vpack.c.b16 %v3032, %v3028
        %v3697 = vpack.c.b16 %v3033, %v3029
        %v3698 = vpack.c.b16 %v3034, %v3030
        %v3699 = vpack.c.b16 %v3035, %v3031
        %v3700 = vpack.c.b16 %v3040, %v3036
        %v3701 = vpack.c.b16 %v3041, %v3037
        %v3702 = vpack.c.b16 %v3042, %v3038
        %v3703 = vpack.c.b16 %v3043, %v3039
        %v3704 = vpack.c.b16 %v3048, %v3044
        %v3705 = vpack.c.b16 %v3049, %v3045
        %v3706 = vpack.c.b16 %v3050, %v3046
        %v3707 = vpack.c.b16 %v3051, %v3047
        %v3708 = vpack.c.b16 %v3056, %v3052
        %v3709 = vpack.c.b16 %v3057, %v3053
        %v3710 = vpack.c.b16 %v3058, %v3054
        %v3711 = vpack.c.b16 %v3059, %v3055
        %v3712 = vpack.c.b16 %v3064, %v3060
        %v3713 = vpack.c.b16 %v3065, %v3061
        %v3714 = vpack.c.b16 %v3066, %v3062
        %v3715 = vpack.c.b16 %v3067, %v3063
        %v3716 = vpack.c.b16 %v3072, %v3068
        %v3717 = vpack.c.b16 %v3073, %v3069
        %v3718 = vpack.c.b16 %v3074, %v3070
        %v3719 = vpack.c.b16 %v3075, %v3071
        %v3720 = vpack.c.b16 %v3080, %v3076
        %v3721 = vpack.c.b16 %v3081, %v3077
        %v3722 = vpack.c.b16 %v3082, %v3078
        %v3723 = vpack.c.b16 %v3083, %v3079
        %v3724 = vpack.c.b16 %v3088, %v3084
        %v3725 = vpack.c.b16 %v3089, %v3085
        %v3726 = vpack.c.b16 %v3090, %v3086
        %v3727 = vpack.c.b16 %v3091, %v3087
        %v3728 = vpack.c.b16 %v3096, %v3092
        %v3729 = vpack.c.b16 %v3097, %v3093
        %v3730 = vpack.c.b16 %v3098, %v3094
        %v3731 = vpack.c.b16 %v3099, %v3095
        %v3732 = vpack.c.b16 %v3104, %v3100
        %v3733 = vpack.c.b16 %v3105, %v3101
        %v3734 = vpack.c.b16 %v3106, %v3102
        %v3735 = vpack.c.b16 %v3107, %v3103
        %v3736 = vpack.c.b16 %v3112, %v3108
        %v3737 = vpack.c.b16 %v3113, %v3109
        %v3738 = vpack.c.b16 %v3114, %v3110
        %v3739 = vpack.c.b16 %v3115, %v3111
        %v3740 = vpack.c.b16 %v3120, %v3116
        %v3741 = vpack.c.b16 %v3121, %v3117
        %v3742 = vpack.c.b16 %v3122, %v3118
        %v3743 = vpack.c.b16 %v3123, %v3119
        %v3744 = vpack.c.b16 %v3128, %v3124
        %v3745 = vpack.c.b16 %v3129, %v3125
        %v3746 = vpack.c.b16 %v3130, %v3126
        %v3747 = vpack.c.b16 %v3131, %v3127
        %v3748 = vpack.c.b16 %v3136, %v3132
        %v3749 = vpack.c.b16 %v3137, %v3133
        %v3750 = vpack.c.b16 %v3138, %v3134
        %v3751 = vpack.c.b16 %v3139, %v3135
        %v3752 = vpack.c.b16 %v3144, %v3140
        %v3753 = vpack.c.b16 %v3145, %v3141
        %v3754 = vpack.c.b16 %v3146, %v3142
        %v3755 = vpack.c.b16 %v3147, %v3143
        %v3756 = vpack.c.b16 %v3152, %v3148
        %v3757 = vpack.c.b16 %v3153, %v3149
        %v3758 = vpack.c.b16 %v3154, %v3150
        %v3759 = vpack.c.b16 %v3155, %v3151
        %v3760 = vpack.c.b16 %v3160, %v3156
        %v3761 = vpack.c.b16 %v3161, %v3157
        %v3762 = vpack.c.b16 %v3162, %v3158
        %v3763 = vpack.c.b16 %v3163, %v3159
        %v3764 = vpack.c.b16 %v3168, %v3164
        %v3765 = vpack.c.b16 %v3169, %v3165
        %v3766 = vpack.c.b16 %v3170, %v3166
        %v3767 = vpack.c.b16 %v3171, %v3167
        %v3768 = vpack.c.b16 %v3176, %v3172
        %v3769 = vpack.c.b16 %v3177, %v3173
        %v3770 = vpack.c.b16 %v3178, %v3174
        %v3771 = vpack.c.b16 %v3179, %v3175
        %v3772 = vpack.c.b16 %v3184, %v3180
        %v3773 = vpack.c.b16 %v3185, %v3181
        %v3774 = vpack.c.b16 %v3186, %v3182
        %v3775 = vpack.c.b16 %v3187, %v3183
        %v3776 = vpack.c.b16 %v3192, %v3188
        %v3777 = vpack.c.b16 %v3193, %v3189
        %v3778 = vpack.c.b16 %v3194, %v3190
        %v3779 = vpack.c.b16 %v3195, %v3191
        %v3780 = vpack.c.b16 %v3200, %v3196
        %v3781 = vpack.c.b16 %v3201, %v3197
        %v3782 = vpack.c.b16 %v3202, %v3198
        %v3783 = vpack.c.b16 %v3203, %v3199
        %v3784 = vpack.c.b16 %v3208, %v3204
        %v3785 = vpack.c.b16 %v3209, %v3205
        %v3786 = vpack.c.b16 %v3210, %v3206
        %v3787 = vpack.c.b16 %v3211, %v3207
        %v3788 = vpack.c.b16 %v3216, %v3212
        %v3789 = vpack.c.b16 %v3217, %v3213
        %v3790 = vpack.c.b16 %v3218, %v3214
        %v3791 = vpack.c.b16 %v3219, %v3215
        %v3792 = vpack.c.b16 %v3224, %v3220
        %v3793 = vpack.c.b16 %v3225, %v3221
        %v3794 = vpack.c.b16 %v3226, %v3222
        %v3795 = vpack.c.b16 %v3227, %v3223
        %v3796 = vpack.c.b16 %v3232, %v3228
        %v3797 = vpack.c.b16 %v3233, %v3229
        %v3798 = vpack.c.b16 %v3234, %v3230
        %v3799 = vpack.c.b16 %v3235, %v3231
        %v3800 = vpack.c.b16 %v3240, %v3236
        %v3801 = vpack.c.b16 %v3241, %v3237
        %v3802 = vpack.c.b16 %v3242, %v3238
        %v3803 = vpack.c.b16 %v3243, %v3239
        %v3804 = vpack.c.b16 %v3248, %v3244
        %v3805 = vpack.c.b16 %v3249, %v3245
        %v3806 = vpack.c.b16 %v3250, %v3246
        %v3807 = vpack.c.b16 %v3251, %v3247
        %v3808 = vpack.c.b16 %v3256, %v3252
        %v3809 = vpack.c.b16 %v3257, %v3253
        %v3810 = vpack.c.b16 %v3258, %v3254
        %v3811 = vpack.c.b16 %v3259, %v3255
        %v3812 = vpack.c.b16 %v3264, %v3260
        %v3813 = vpack.c.b16 %v3265, %v3261
        %v3814 = vpack.c.b16 %v3266, %v3262
        %v3815 = vpack.c.b16 %v3267, %v3263
        %v3816 = vpack.c.b16 %v3272, %v3268
        %v3817 = vpack.c.b16 %v3273, %v3269
        %v3818 = vpack.c.b16 %v3274, %v3270
        %v3819 = vpack.c.b16 %v3275, %v3271
        %v3820 = vpack.c.b16 %v3280, %v3276
        %v3821 = vpack.c.b16 %v3281, %v3277
        %v3822 = vpack.c.b16 %v3282, %v3278
        %v3823 = vpack.c.b16 %v3283, %v3279
        %v3824 = vpack.c.b16 %v3288, %v3284
        %v3825 = vpack.c.b16 %v3289, %v3285
        %v3826 = vpack.c.b16 %v3290, %v3286
        %v3827 = vpack.c.b16 %v3291, %v3287
        %v3828 = vpack.c.b16 %v3296, %v3292
        %v3829 = vpack.c.b16 %v3297, %v3293
        %v3830 = vpack.c.b16 %v3298, %v3294
        %v3831 = vpack.c.b16 %v3299, %v3295
        %v3832 = vpack.c.b16 %v3304, %v3300
        %v3833 = vpack.c.b16 %v3305, %v3301
        %v3834 = vpack.c.b16 %v3306, %v3302
        %v3835 = vpack.c.b16 %v3307, %v3303
        %v3836 = vpack.c.b16 %v3312, %v3308
        %v3837 = vpack.c.b16 %v3313, %v3309
        %v3838 = vpack.c.b16 %v3314, %v3310
        %v3839 = vpack.c.b16 %v3315, %v3311
        %v3840 = vpack.c.b16 %v3320, %v3316
        %v3841 = vpack.c.b16 %v3321, %v3317
        %v3842 = vpack.c.b16 %v3322, %v3318
        %v3843 = vpack.c.b16 %v3323, %v3319
        %v3844 = vpack.c.b16 %v3328, %v3324
        %v3845 = vpack.c.b16 %v3329, %v3325
        %v3846 = vpack.c.b16 %v3330, %v3326
        %v3847 = vpack.c.b16 %v3331, %v3327
        %v3848 = vpack.c.b16 %v3336, %v3332
        %v3849 = vpack.c.b16 %v3337, %v3333
        %v3850 = vpack.c.b16 %v3338, %v3334
        %v3851 = vpack.c.b16 %v3339, %v3335
        %v3852 = vpack.c.b16 %v3344, %v3340
        %v3853 = vpack.c.b16 %v3345, %v3341
        %v3854 = vpack.c.b16 %v3346, %v3342
        %v3855 = vpack.c.b16 %v3347, %v3343
        %v3856 = vpack.c.b16 %v3352, %v3348
        %v3857 = vpack.c.b16 %v3353, %v3349
        %v3858 = vpack.c.b16 %v3354, %v3350
        %v3859 = vpack.c.b16 %v3355, %v3351
        %v3860 = vpack.c.b16 %v3360, %v3356
        %v3861 = vpack.c.b16 %v3361, %v3357
        %v3862 = vpack.c.b16 %v3362, %v3358
        %v3863 = vpack.c.b16 %v3363, %v3359
        %v3864 = vpack.c.b16 %v3368, %v3364
        %v3865 = vpack.c.b16 %v3369, %v3365
        %v3866 = vpack.c.b16 %v3370, %v3366
        %v3867 = vpack.c.b16 %v3371, %v3367
        %v3868 = vpack.c.b16 %v3376, %v3372
        %v3869 = vpack.c.b16 %v3377, %v3373
        %v3870 = vpack.c.b16 %v3378, %v3374
        %v3871 = vpack.c.b16 %v3379, %v3375
        %v3872 = vpack.c.b16 %v3384, %v3380
        %v3873 = vpack.c.b16 %v3385, %v3381
        %v3874 = vpack.c.b16 %v3386, %v3382
        %v3875 = vpack.c.b16 %v3387, %v3383
        %vm4360 = vcmask 220160
        %v4362 = vsel %vm4360, %v1908, 0
        %vm4364 = vcmask 1044480
        %vm4365 = vcmask 1045504
        %v4366 = vsel %vm4364, 4294967295, 65535
        %v4367 = vsel %vm4365, %v4366, 0
        %v4369 = vand.u32 %v3872, %v4367
        %v4372 = vand.u32 %v3873, %v4367
        %v4375 = vand.u32 %v3874, %v4367
        %v4378 = vand.u32 %v3875, %v4367
        %4380 = vmatpush.bf16.msra.mxu0 %v3416
        %4381 = vmatpush.bf16.msra.mxu0 %v3412
        %4382 = vmatpush.bf16.msra.mxu0 %v3408
        %4383 = vmatpush.bf16.msra.mxu0 %v3404
        %4384 = vmatpush.bf16.msra.mxu0 %v3400
        %4385 = vmatpush.bf16.msra.mxu0 %v3396
        %4386 = vmatpush.bf16.msra.mxu0 %v3392
        %4387 = vmatpush.bf16.msra.mxu0 %v3388
        %4388 = vmatmul.bf16.gmra.mxu0 %v1893
        %v4389 = vpop.f32.mrf.mxu0
        %v4390 = vadd.f32 %v1837, %v4389
        %v4391 = vpop.f32.mrf.mxu0
        %v4392 = vadd.f32 %v1837, %v4391
        %4393 = vdwg.mxu0
        %4394 = vmatpush.bf16.msra.mxu0 %v3448
        %4395 = vmatpush.bf16.msra.mxu0 %v3444
        %4396 = vmatpush.bf16.msra.mxu0 %v3440
        %4397 = vmatpush.bf16.msra.mxu0 %v3436
        %4398 = vmatpush.bf16.msra.mxu0 %v3432
        %4399 = vmatpush.bf16.msra.mxu0 %v3428
        %4400 = vmatpush.bf16.msra.mxu0 %v3424
        %4401 = vmatpush.bf16.msra.mxu0 %v3420
        %4402 = vmatmul.bf16.gmra.mxu0 %v1894
        %v4403 = vpop.f32.mrf.mxu0
        %v4404 = vadd.f32 %v4390, %v4403
        %v4405 = vpop.f32.mrf.mxu0
        %v4406 = vadd.f32 %v4392, %v4405
        %4407 = vdwg.mxu0
        %4408 = vmatpush.bf16.msra.mxu0 %v3480
        %4409 = vmatpush.bf16.msra.mxu0 %v3476
        %4410 = vmatpush.bf16.msra.mxu0 %v3472
        %4411 = vmatpush.bf16.msra.mxu0 %v3468
        %4412 = vmatpush.bf16.msra.mxu0 %v3464
        %4413 = vmatpush.bf16.msra.mxu0 %v3460
        %4414 = vmatpush.bf16.msra.mxu0 %v3456
        %4415 = vmatpush.bf16.msra.mxu0 %v3452
        %4416 = vmatmul.bf16.gmra.mxu0 %v1895
        %v4417 = vpop.f32.mrf.mxu0
        %v4418 = vadd.f32 %v4404, %v4417
        %v4419 = vpop.f32.mrf.mxu0
        %v4420 = vadd.f32 %v4406, %v4419
        %4421 = vdwg.mxu0
        %4422 = vmatpush.bf16.msra.mxu0 %v3512
        %4423 = vmatpush.bf16.msra.mxu0 %v3508
        %4424 = vmatpush.bf16.msra.mxu0 %v3504
        %4425 = vmatpush.bf16.msra.mxu0 %v3500
        %4426 = vmatpush.bf16.msra.mxu0 %v3496
        %4427 = vmatpush.bf16.msra.mxu0 %v3492
        %4428 = vmatpush.bf16.msra.mxu0 %v3488
        %4429 = vmatpush.bf16.msra.mxu0 %v3484
        %4430 = vmatmul.bf16.gmra.mxu0 %v1896
        %v4431 = vpop.f32.mrf.mxu0
        %v4432 = vadd.f32 %v4418, %v4431
        %v4433 = vpop.f32.mrf.mxu0
        %v4434 = vadd.f32 %v4420, %v4433
        %4435 = vdwg.mxu0
        %4436 = vmatpush.bf16.msra.mxu0 %v3544
        %4437 = vmatpush.bf16.msra.mxu0 %v3540
        %4438 = vmatpush.bf16.msra.mxu0 %v3536
        %4439 = vmatpush.bf16.msra.mxu0 %v3532
        %4440 = vmatpush.bf16.msra.mxu0 %v3528
        %4441 = vmatpush.bf16.msra.mxu0 %v3524
        %4442 = vmatpush.bf16.msra.mxu0 %v3520
        %4443 = vmatpush.bf16.msra.mxu0 %v3516
        %4444 = vmatmul.bf16.gmra.mxu0 %v1897
        %v4445 = vpop.f32.mrf.mxu0
        %v4446 = vadd.f32 %v4432, %v4445
        %v4447 = vpop.f32.mrf.mxu0
        %v4448 = vadd.f32 %v4434, %v4447
        %4449 = vdwg.mxu0
        %4450 = vmatpush.bf16.msra.mxu0 %v3576
        %4451 = vmatpush.bf16.msra.mxu0 %v3572
        %4452 = vmatpush.bf16.msra.mxu0 %v3568
        %4453 = vmatpush.bf16.msra.mxu0 %v3564
        %4454 = vmatpush.bf16.msra.mxu0 %v3560
        %4455 = vmatpush.bf16.msra.mxu0 %v3556
        %4456 = vmatpush.bf16.msra.mxu0 %v3552
        %4457 = vmatpush.bf16.msra.mxu0 %v3548
        %4458 = vmatmul.bf16.gmra.mxu0 %v1898
        %v4459 = vpop.f32.mrf.mxu0
        %v4460 = vadd.f32 %v4446, %v4459
        %v4461 = vpop.f32.mrf.mxu0
        %v4462 = vadd.f32 %v4448, %v4461
        %4463 = vdwg.mxu0
        %4464 = vmatpush.bf16.msra.mxu0 %v3608
        %4465 = vmatpush.bf16.msra.mxu0 %v3604
        %4466 = vmatpush.bf16.msra.mxu0 %v3600
        %4467 = vmatpush.bf16.msra.mxu0 %v3596
        %4468 = vmatpush.bf16.msra.mxu0 %v3592
        %4469 = vmatpush.bf16.msra.mxu0 %v3588
        %4470 = vmatpush.bf16.msra.mxu0 %v3584
        %4471 = vmatpush.bf16.msra.mxu0 %v3580
        %4472 = vmatmul.bf16.gmra.mxu0 %v1899
        %v4473 = vpop.f32.mrf.mxu0
        %v4474 = vadd.f32 %v4460, %v4473
        %v4475 = vpop.f32.mrf.mxu0
        %v4476 = vadd.f32 %v4462, %v4475
        %4477 = vdwg.mxu0
        %4478 = vmatpush.bf16.msra.mxu0 %v3640
        %4479 = vmatpush.bf16.msra.mxu0 %v3636
        %4480 = vmatpush.bf16.msra.mxu0 %v3632
        %4481 = vmatpush.bf16.msra.mxu0 %v3628
        %4482 = vmatpush.bf16.msra.mxu0 %v3624
        %4483 = vmatpush.bf16.msra.mxu0 %v3620
        %4484 = vmatpush.bf16.msra.mxu0 %v3616
        %4485 = vmatpush.bf16.msra.mxu0 %v3612
        %4486 = vmatmul.bf16.gmra.mxu0 %v1900
        %v4487 = vpop.f32.mrf.mxu0
        %v4488 = vadd.f32 %v4474, %v4487
        %v4489 = vpop.f32.mrf.mxu0
        %v4490 = vadd.f32 %v4476, %v4489
        %4491 = vdwg.mxu0
        %4492 = vmatpush.bf16.msra.mxu0 %v3672
        %4493 = vmatpush.bf16.msra.mxu0 %v3668
        %4494 = vmatpush.bf16.msra.mxu0 %v3664
        %4495 = vmatpush.bf16.msra.mxu0 %v3660
        %4496 = vmatpush.bf16.msra.mxu0 %v3656
        %4497 = vmatpush.bf16.msra.mxu0 %v3652
        %4498 = vmatpush.bf16.msra.mxu0 %v3648
        %4499 = vmatpush.bf16.msra.mxu0 %v3644
        %4500 = vmatmul.bf16.gmra.mxu0 %v1901
        %v4501 = vpop.f32.mrf.mxu0
        %v4502 = vadd.f32 %v4488, %v4501
        %v4503 = vpop.f32.mrf.mxu0
        %v4504 = vadd.f32 %v4490, %v4503
        %4505 = vdwg.mxu0
        %4506 = vmatpush.bf16.msra.mxu0 %v3704
        %4507 = vmatpush.bf16.msra.mxu0 %v3700
        %4508 = vmatpush.bf16.msra.mxu0 %v3696
        %4509 = vmatpush.bf16.msra.mxu0 %v3692
        %4510 = vmatpush.bf16.msra.mxu0 %v3688
        %4511 = vmatpush.bf16.msra.mxu0 %v3684
        %4512 = vmatpush.bf16.msra.mxu0 %v3680
        %4513 = vmatpush.bf16.msra.mxu0 %v3676
        %4514 = vmatmul.bf16.gmra.mxu0 %v1902
        %v4515 = vpop.f32.mrf.mxu0
        %v4516 = vadd.f32 %v4502, %v4515
        %v4517 = vpop.f32.mrf.mxu0
        %v4518 = vadd.f32 %v4504, %v4517
        %4519 = vdwg.mxu0
        %4520 = vmatpush.bf16.msra.mxu0 %v3736
        %4521 = vmatpush.bf16.msra.mxu0 %v3732
        %4522 = vmatpush.bf16.msra.mxu0 %v3728
        %4523 = vmatpush.bf16.msra.mxu0 %v3724
        %4524 = vmatpush.bf16.msra.mxu0 %v3720
        %4525 = vmatpush.bf16.msra.mxu0 %v3716
        %4526 = vmatpush.bf16.msra.mxu0 %v3712
        %4527 = vmatpush.bf16.msra.mxu0 %v3708
        %4528 = vmatmul.bf16.gmra.mxu0 %v1903
        %v4529 = vpop.f32.mrf.mxu0
        %v4530 = vadd.f32 %v4516, %v4529
        %v4531 = vpop.f32.mrf.mxu0
        %v4532 = vadd.f32 %v4518, %v4531
        %4533 = vdwg.mxu0
        %4534 = vmatpush.bf16.msra.mxu0 %v3768
        %4535 = vmatpush.bf16.msra.mxu0 %v3764
        %4536 = vmatpush.bf16.msra.mxu0 %v3760
        %4537 = vmatpush.bf16.msra.mxu0 %v3756
        %4538 = vmatpush.bf16.msra.mxu0 %v3752
        %4539 = vmatpush.bf16.msra.mxu0 %v3748
        %4540 = vmatpush.bf16.msra.mxu0 %v3744
        %4541 = vmatpush.bf16.msra.mxu0 %v3740
        %4542 = vmatmul.bf16.gmra.mxu0 %v1904
        %v4543 = vpop.f32.mrf.mxu0
        %v4544 = vadd.f32 %v4530, %v4543
        %v4545 = vpop.f32.mrf.mxu0
        %v4546 = vadd.f32 %v4532, %v4545
        %4547 = vdwg.mxu0
        %4548 = vmatpush.bf16.msra.mxu0 %v3800
        %4549 = vmatpush.bf16.msra.mxu0 %v3796
        %4550 = vmatpush.bf16.msra.mxu0 %v3792
        %4551 = vmatpush.bf16.msra.mxu0 %v3788
        %4552 = vmatpush.bf16.msra.mxu0 %v3784
        %4553 = vmatpush.bf16.msra.mxu0 %v3780
        %4554 = vmatpush.bf16.msra.mxu0 %v3776
        %4555 = vmatpush.bf16.msra.mxu0 %v3772
        %4556 = vmatmul.bf16.gmra.mxu0 %v1905
        %v4557 = vpop.f32.mrf.mxu0
        %v4558 = vadd.f32 %v4544, %v4557
        %v4559 = vpop.f32.mrf.mxu0
        %v4560 = vadd.f32 %v4546, %v4559
        %4561 = vdwg.mxu0
        %4562 = vmatpush.bf16.msra.mxu0 %v3832
        %4563 = vmatpush.bf16.msra.mxu0 %v3828
        %4564 = vmatpush.bf16.msra.mxu0 %v3824
        %4565 = vmatpush.bf16.msra.mxu0 %v3820
        %4566 = vmatpush.bf16.msra.mxu0 %v3816
        %4567 = vmatpush.bf16.msra.mxu0 %v3812
        %4568 = vmatpush.bf16.msra.mxu0 %v3808
        %4569 = vmatpush.bf16.msra.mxu0 %v3804
        %4570 = vmatmul.bf16.gmra.mxu0 %v1906
        %v4571 = vpop.f32.mrf.mxu0
        %v4572 = vadd.f32 %v4558, %v4571
        %v4573 = vpop.f32.mrf.mxu0
        %v4574 = vadd.f32 %v4560, %v4573
        %4575 = vdwg.mxu0
        %4576 = vmatpush.bf16.msra.mxu0 %v3864
        %4577 = vmatpush.bf16.msra.mxu0 %v3860
        %4578 = vmatpush.bf16.msra.mxu0 %v3856
        %4579 = vmatpush.bf16.msra.mxu0 %v3852
        %4580 = vmatpush.bf16.msra.mxu0 %v3848
        %4581 = vmatpush.bf16.msra.mxu0 %v3844
        %4582 = vmatpush.bf16.msra.mxu0 %v3840
        %4583 = vmatpush.bf16.msra.mxu0 %v3836
        %4584 = vmatmul.bf16.gmra.mxu0 %v1907
        %v4585 = vpop.f32.mrf.mxu0
        %v4586 = vadd.f32 %v4572, %v4585
        %v4587 = vpop.f32.mrf.mxu0
        %v4588 = vadd.f32 %v4574, %v4587
        %4589 = vdwg.mxu0
        %4590 = vmatpush.bf16.msra.mxu0 0
        %4591 = vmatpush.bf16.msra.mxu0 0
        %4592 = vmatpush.bf16.msra.mxu0 0
        %4593 = vmatpush.bf16.msra.mxu0 0
        %4594 = vmatpush.bf16.msra.mxu0 0
        %4595 = vmatpush.bf16.msra.mxu0 0
        %4596 = vmatpush.bf16.msra.mxu0 %v4369
        %4597 = vmatpush.bf16.msra.mxu0 %v3868
        %4598 = vmatmul.bf16.gmra.mxu0 %v4362
        %v4599 = vpop.f32.mrf.mxu0
        %v4600 = vadd.f32 %v4586, %v4599
        %v4601 = vpop.f32.mrf.mxu0
        %v4602 = vadd.f32 %v4588, %v4601
        %4603 = vdwg.mxu0
        %4604 = vmatpush.bf16.msra.mxu0 %v3417
        %4605 = vmatpush.bf16.msra.mxu0 %v3413
        %4606 = vmatpush.bf16.msra.mxu0 %v3409
        %4607 = vmatpush.bf16.msra.mxu0 %v3405
        %4608 = vmatpush.bf16.msra.mxu0 %v3401
        %4609 = vmatpush.bf16.msra.mxu0 %v3397
        %4610 = vmatpush.bf16.msra.mxu0 %v3393
        %4611 = vmatpush.bf16.msra.mxu0 %v3389
        %4612 = vmatmul.bf16.gmra.mxu0 %v1893
        %v4613 = vpop.f32.mrf.mxu0
        %v4614 = vadd.f32 %v1838, %v4613
        %v4615 = vpop.f32.mrf.mxu0
        %v4616 = vadd.f32 %v1838, %v4615
        %4617 = vdwg.mxu0
        %4618 = vmatpush.bf16.msra.mxu0 %v3449
        %4619 = vmatpush.bf16.msra.mxu0 %v3445
        %4620 = vmatpush.bf16.msra.mxu0 %v3441
        %4621 = vmatpush.bf16.msra.mxu0 %v3437
        %4622 = vmatpush.bf16.msra.mxu0 %v3433
        %4623 = vmatpush.bf16.msra.mxu0 %v3429
        %4624 = vmatpush.bf16.msra.mxu0 %v3425
        %4625 = vmatpush.bf16.msra.mxu0 %v3421
        %4626 = vmatmul.bf16.gmra.mxu0 %v1894
        %v4627 = vpop.f32.mrf.mxu0
        %v4628 = vadd.f32 %v4614, %v4627
        %v4629 = vpop.f32.mrf.mxu0
        %v4630 = vadd.f32 %v4616, %v4629
        %4631 = vdwg.mxu0
        %4632 = vmatpush.bf16.msra.mxu0 %v3481
        %4633 = vmatpush.bf16.msra.mxu0 %v3477
        %4634 = vmatpush.bf16.msra.mxu0 %v3473
        %4635 = vmatpush.bf16.msra.mxu0 %v3469
        %4636 = vmatpush.bf16.msra.mxu0 %v3465
        %4637 = vmatpush.bf16.msra.mxu0 %v3461
        %4638 = vmatpush.bf16.msra.mxu0 %v3457
        %4639 = vmatpush.bf16.msra.mxu0 %v3453
        %4640 = vmatmul.bf16.gmra.mxu0 %v1895
        %v4641 = vpop.f32.mrf.mxu0
        %v4642 = vadd.f32 %v4628, %v4641
        %v4643 = vpop.f32.mrf.mxu0
        %v4644 = vadd.f32 %v4630, %v4643
        %4645 = vdwg.mxu0
        %4646 = vmatpush.bf16.msra.mxu0 %v3513
        %4647 = vmatpush.bf16.msra.mxu0 %v3509
        %4648 = vmatpush.bf16.msra.mxu0 %v3505
        %4649 = vmatpush.bf16.msra.mxu0 %v3501
        %4650 = vmatpush.bf16.msra.mxu0 %v3497
        %4651 = vmatpush.bf16.msra.mxu0 %v3493
        %4652 = vmatpush.bf16.msra.mxu0 %v3489
        %4653 = vmatpush.bf16.msra.mxu0 %v3485
        %4654 = vmatmul.bf16.gmra.mxu0 %v1896
        %v4655 = vpop.f32.mrf.mxu0
        %v4656 = vadd.f32 %v4642, %v4655
        %v4657 = vpop.f32.mrf.mxu0
        %v4658 = vadd.f32 %v4644, %v4657
        %4659 = vdwg.mxu0
        %4660 = vmatpush.bf16.msra.mxu0 %v3545
        %4661 = vmatpush.bf16.msra.mxu0 %v3541
        %4662 = vmatpush.bf16.msra.mxu0 %v3537
        %4663 = vmatpush.bf16.msra.mxu0 %v3533
        %4664 = vmatpush.bf16.msra.mxu0 %v3529
        %4665 = vmatpush.bf16.msra.mxu0 %v3525
        %4666 = vmatpush.bf16.msra.mxu0 %v3521
        %4667 = vmatpush.bf16.msra.mxu0 %v3517
        %4668 = vmatmul.bf16.gmra.mxu0 %v1897
        %v4669 = vpop.f32.mrf.mxu0
        %v4670 = vadd.f32 %v4656, %v4669
        %v4671 = vpop.f32.mrf.mxu0
        %v4672 = vadd.f32 %v4658, %v4671
        %4673 = vdwg.mxu0
        %4674 = vmatpush.bf16.msra.mxu0 %v3577
        %4675 = vmatpush.bf16.msra.mxu0 %v3573
        %4676 = vmatpush.bf16.msra.mxu0 %v3569
        %4677 = vmatpush.bf16.msra.mxu0 %v3565
        %4678 = vmatpush.bf16.msra.mxu0 %v3561
        %4679 = vmatpush.bf16.msra.mxu0 %v3557
        %4680 = vmatpush.bf16.msra.mxu0 %v3553
        %4681 = vmatpush.bf16.msra.mxu0 %v3549
        %4682 = vmatmul.bf16.gmra.mxu0 %v1898
        %v4683 = vpop.f32.mrf.mxu0
        %v4684 = vadd.f32 %v4670, %v4683
        %v4685 = vpop.f32.mrf.mxu0
        %v4686 = vadd.f32 %v4672, %v4685
        %4687 = vdwg.mxu0
        %4688 = vmatpush.bf16.msra.mxu0 %v3609
        %4689 = vmatpush.bf16.msra.mxu0 %v3605
        %4690 = vmatpush.bf16.msra.mxu0 %v3601
        %4691 = vmatpush.bf16.msra.mxu0 %v3597
        %4692 = vmatpush.bf16.msra.mxu0 %v3593
        %4693 = vmatpush.bf16.msra.mxu0 %v3589
        %4694 = vmatpush.bf16.msra.mxu0 %v3585
        %4695 = vmatpush.bf16.msra.mxu0 %v3581
        %4696 = vmatmul.bf16.gmra.mxu0 %v1899
        %v4697 = vpop.f32.mrf.mxu0
        %v4698 = vadd.f32 %v4684, %v4697
        %v4699 = vpop.f32.mrf.mxu0
        %v4700 = vadd.f32 %v4686, %v4699
        %4701 = vdwg.mxu0
        %4702 = vmatpush.bf16.msra.mxu0 %v3641
        %4703 = vmatpush.bf16.msra.mxu0 %v3637
        %4704 = vmatpush.bf16.msra.mxu0 %v3633
        %4705 = vmatpush.bf16.msra.mxu0 %v3629
        %4706 = vmatpush.bf16.msra.mxu0 %v3625
        %4707 = vmatpush.bf16.msra.mxu0 %v3621
        %4708 = vmatpush.bf16.msra.mxu0 %v3617
        %4709 = vmatpush.bf16.msra.mxu0 %v3613
        %4710 = vmatmul.bf16.gmra.mxu0 %v1900
        %v4711 = vpop.f32.mrf.mxu0
        %v4712 = vadd.f32 %v4698, %v4711
        %v4713 = vpop.f32.mrf.mxu0
        %v4714 = vadd.f32 %v4700, %v4713
        %4715 = vdwg.mxu0
        %4716 = vmatpush.bf16.msra.mxu0 %v3673
        %4717 = vmatpush.bf16.msra.mxu0 %v3669
        %4718 = vmatpush.bf16.msra.mxu0 %v3665
        %4719 = vmatpush.bf16.msra.mxu0 %v3661
        %4720 = vmatpush.bf16.msra.mxu0 %v3657
        %4721 = vmatpush.bf16.msra.mxu0 %v3653
        %4722 = vmatpush.bf16.msra.mxu0 %v3649
        %4723 = vmatpush.bf16.msra.mxu0 %v3645
        %4724 = vmatmul.bf16.gmra.mxu0 %v1901
        %v4725 = vpop.f32.mrf.mxu0
        %v4726 = vadd.f32 %v4712, %v4725
        %v4727 = vpop.f32.mrf.mxu0
        %v4728 = vadd.f32 %v4714, %v4727
        %4729 = vdwg.mxu0
        %4730 = vmatpush.bf16.msra.mxu0 %v3705
        %4731 = vmatpush.bf16.msra.mxu0 %v3701
        %4732 = vmatpush.bf16.msra.mxu0 %v3697
        %4733 = vmatpush.bf16.msra.mxu0 %v3693
        %4734 = vmatpush.bf16.msra.mxu0 %v3689
        %4735 = vmatpush.bf16.msra.mxu0 %v3685
        %4736 = vmatpush.bf16.msra.mxu0 %v3681
        %4737 = vmatpush.bf16.msra.mxu0 %v3677
        %4738 = vmatmul.bf16.gmra.mxu0 %v1902
        %v4739 = vpop.f32.mrf.mxu0
        %v4740 = vadd.f32 %v4726, %v4739
        %v4741 = vpop.f32.mrf.mxu0
        %v4742 = vadd.f32 %v4728, %v4741
        %4743 = vdwg.mxu0
        %4744 = vmatpush.bf16.msra.mxu0 %v3737
        %4745 = vmatpush.bf16.msra.mxu0 %v3733
        %4746 = vmatpush.bf16.msra.mxu0 %v3729
        %4747 = vmatpush.bf16.msra.mxu0 %v3725
        %4748 = vmatpush.bf16.msra.mxu0 %v3721
        %4749 = vmatpush.bf16.msra.mxu0 %v3717
        %4750 = vmatpush.bf16.msra.mxu0 %v3713
        %4751 = vmatpush.bf16.msra.mxu0 %v3709
        %4752 = vmatmul.bf16.gmra.mxu0 %v1903
        %v4753 = vpop.f32.mrf.mxu0
        %v4754 = vadd.f32 %v4740, %v4753
        %v4755 = vpop.f32.mrf.mxu0
        %v4756 = vadd.f32 %v4742, %v4755
        %4757 = vdwg.mxu0
        %4758 = vmatpush.bf16.msra.mxu0 %v3769
        %4759 = vmatpush.bf16.msra.mxu0 %v3765
        %4760 = vmatpush.bf16.msra.mxu0 %v3761
        %4761 = vmatpush.bf16.msra.mxu0 %v3757
        %4762 = vmatpush.bf16.msra.mxu0 %v3753
        %4763 = vmatpush.bf16.msra.mxu0 %v3749
        %4764 = vmatpush.bf16.msra.mxu0 %v3745
        %4765 = vmatpush.bf16.msra.mxu0 %v3741
        %4766 = vmatmul.bf16.gmra.mxu0 %v1904
        %v4767 = vpop.f32.mrf.mxu0
        %v4768 = vadd.f32 %v4754, %v4767
        %v4769 = vpop.f32.mrf.mxu0
        %v4770 = vadd.f32 %v4756, %v4769
        %4771 = vdwg.mxu0
        %4772 = vmatpush.bf16.msra.mxu0 %v3801
        %4773 = vmatpush.bf16.msra.mxu0 %v3797
        %4774 = vmatpush.bf16.msra.mxu0 %v3793
        %4775 = vmatpush.bf16.msra.mxu0 %v3789
        %4776 = vmatpush.bf16.msra.mxu0 %v3785
        %4777 = vmatpush.bf16.msra.mxu0 %v3781
        %4778 = vmatpush.bf16.msra.mxu0 %v3777
        %4779 = vmatpush.bf16.msra.mxu0 %v3773
        %4780 = vmatmul.bf16.gmra.mxu0 %v1905
        %v4781 = vpop.f32.mrf.mxu0
        %v4782 = vadd.f32 %v4768, %v4781
        %v4783 = vpop.f32.mrf.mxu0
        %v4784 = vadd.f32 %v4770, %v4783
        %4785 = vdwg.mxu0
        %4786 = vmatpush.bf16.msra.mxu0 %v3833
        %4787 = vmatpush.bf16.msra.mxu0 %v3829
        %4788 = vmatpush.bf16.msra.mxu0 %v3825
        %4789 = vmatpush.bf16.msra.mxu0 %v3821
        %4790 = vmatpush.bf16.msra.mxu0 %v3817
        %4791 = vmatpush.bf16.msra.mxu0 %v3813
        %4792 = vmatpush.bf16.msra.mxu0 %v3809
        %4793 = vmatpush.bf16.msra.mxu0 %v3805
        %4794 = vmatmul.bf16.gmra.mxu0 %v1906
        %v4795 = vpop.f32.mrf.mxu0
        %v4796 = vadd.f32 %v4782, %v4795
        %v4797 = vpop.f32.mrf.mxu0
        %v4798 = vadd.f32 %v4784, %v4797
        %4799 = vdwg.mxu0
        %4800 = vmatpush.bf16.msra.mxu0 %v3865
        %4801 = vmatpush.bf16.msra.mxu0 %v3861
        %4802 = vmatpush.bf16.msra.mxu0 %v3857
        %4803 = vmatpush.bf16.msra.mxu0 %v3853
        %4804 = vmatpush.bf16.msra.mxu0 %v3849
        %4805 = vmatpush.bf16.msra.mxu0 %v3845
        %4806 = vmatpush.bf16.msra.mxu0 %v3841
        %4807 = vmatpush.bf16.msra.mxu0 %v3837
        %4808 = vmatmul.bf16.gmra.mxu0 %v1907
        %v4809 = vpop.f32.mrf.mxu0
        %v4810 = vadd.f32 %v4796, %v4809
        %v4811 = vpop.f32.mrf.mxu0
        %v4812 = vadd.f32 %v4798, %v4811
        %4813 = vdwg.mxu0
        %4814 = vmatpush.bf16.msra.mxu0 0
        %4815 = vmatpush.bf16.msra.mxu0 0
        %4816 = vmatpush.bf16.msra.mxu0 0
        %4817 = vmatpush.bf16.msra.mxu0 0
        %4818 = vmatpush.bf16.msra.mxu0 0
        %4819 = vmatpush.bf16.msra.mxu0 0
        %4820 = vmatpush.bf16.msra.mxu0 %v4372
        %4821 = vmatpush.bf16.msra.mxu0 %v3869
        %4822 = vmatmul.bf16.gmra.mxu0 %v4362
        %v4823 = vpop.f32.mrf.mxu0
        %v4824 = vadd.f32 %v4810, %v4823
        %v4825 = vpop.f32.mrf.mxu0
        %v4826 = vadd.f32 %v4812, %v4825
        %4827 = vdwg.mxu0
        %4828 = vmatpush.bf16.msra.mxu0 %v3418
        %4829 = vmatpush.bf16.msra.mxu0 %v3414
        %4830 = vmatpush.bf16.msra.mxu0 %v3410
        %4831 = vmatpush.bf16.msra.mxu0 %v3406
        %4832 = vmatpush.bf16.msra.mxu0 %v3402
        %4833 = vmatpush.bf16.msra.mxu0 %v3398
        %4834 = vmatpush.bf16.msra.mxu0 %v3394
        %4835 = vmatpush.bf16.msra.mxu0 %v3390
        %4836 = vmatmul.bf16.gmra.mxu0 %v1893
        %v4837 = vpop.f32.mrf.mxu0
        %v4838 = vadd.f32 %v1839, %v4837
        %v4839 = vpop.f32.mrf.mxu0
        %v4840 = vadd.f32 %v1839, %v4839
        %4841 = vdwg.mxu0
        %4842 = vmatpush.bf16.msra.mxu0 %v3450
        %4843 = vmatpush.bf16.msra.mxu0 %v3446
        %4844 = vmatpush.bf16.msra.mxu0 %v3442
        %4845 = vmatpush.bf16.msra.mxu0 %v3438
        %4846 = vmatpush.bf16.msra.mxu0 %v3434
        %4847 = vmatpush.bf16.msra.mxu0 %v3430
        %4848 = vmatpush.bf16.msra.mxu0 %v3426
        %4849 = vmatpush.bf16.msra.mxu0 %v3422
        %4850 = vmatmul.bf16.gmra.mxu0 %v1894
        %v4851 = vpop.f32.mrf.mxu0
        %v4852 = vadd.f32 %v4838, %v4851
        %v4853 = vpop.f32.mrf.mxu0
        %v4854 = vadd.f32 %v4840, %v4853
        %4855 = vdwg.mxu0
        %4856 = vmatpush.bf16.msra.mxu0 %v3482
        %4857 = vmatpush.bf16.msra.mxu0 %v3478
        %4858 = vmatpush.bf16.msra.mxu0 %v3474
        %4859 = vmatpush.bf16.msra.mxu0 %v3470
        %4860 = vmatpush.bf16.msra.mxu0 %v3466
        %4861 = vmatpush.bf16.msra.mxu0 %v3462
        %4862 = vmatpush.bf16.msra.mxu0 %v3458
        %4863 = vmatpush.bf16.msra.mxu0 %v3454
        %4864 = vmatmul.bf16.gmra.mxu0 %v1895
        %v4865 = vpop.f32.mrf.mxu0
        %v4866 = vadd.f32 %v4852, %v4865
        %v4867 = vpop.f32.mrf.mxu0
        %v4868 = vadd.f32 %v4854, %v4867
        %4869 = vdwg.mxu0
        %4870 = vmatpush.bf16.msra.mxu0 %v3514
        %4871 = vmatpush.bf16.msra.mxu0 %v3510
        %4872 = vmatpush.bf16.msra.mxu0 %v3506
        %4873 = vmatpush.bf16.msra.mxu0 %v3502
        %4874 = vmatpush.bf16.msra.mxu0 %v3498
        %4875 = vmatpush.bf16.msra.mxu0 %v3494
        %4876 = vmatpush.bf16.msra.mxu0 %v3490
        %4877 = vmatpush.bf16.msra.mxu0 %v3486
        %4878 = vmatmul.bf16.gmra.mxu0 %v1896
        %v4879 = vpop.f32.mrf.mxu0
        %v4880 = vadd.f32 %v4866, %v4879
        %v4881 = vpop.f32.mrf.mxu0
        %v4882 = vadd.f32 %v4868, %v4881
        %4883 = vdwg.mxu0
        %4884 = vmatpush.bf16.msra.mxu0 %v3546
        %4885 = vmatpush.bf16.msra.mxu0 %v3542
        %4886 = vmatpush.bf16.msra.mxu0 %v3538
        %4887 = vmatpush.bf16.msra.mxu0 %v3534
        %4888 = vmatpush.bf16.msra.mxu0 %v3530
        %4889 = vmatpush.bf16.msra.mxu0 %v3526
        %4890 = vmatpush.bf16.msra.mxu0 %v3522
        %4891 = vmatpush.bf16.msra.mxu0 %v3518
        %4892 = vmatmul.bf16.gmra.mxu0 %v1897
        %v4893 = vpop.f32.mrf.mxu0
        %v4894 = vadd.f32 %v4880, %v4893
        %v4895 = vpop.f32.mrf.mxu0
        %v4896 = vadd.f32 %v4882, %v4895
        %4897 = vdwg.mxu0
        %4898 = vmatpush.bf16.msra.mxu0 %v3578
        %4899 = vmatpush.bf16.msra.mxu0 %v3574
        %4900 = vmatpush.bf16.msra.mxu0 %v3570
        %4901 = vmatpush.bf16.msra.mxu0 %v3566
        %4902 = vmatpush.bf16.msra.mxu0 %v3562
        %4903 = vmatpush.bf16.msra.mxu0 %v3558
        %4904 = vmatpush.bf16.msra.mxu0 %v3554
        %4905 = vmatpush.bf16.msra.mxu0 %v3550
        %4906 = vmatmul.bf16.gmra.mxu0 %v1898
        %v4907 = vpop.f32.mrf.mxu0
        %v4908 = vadd.f32 %v4894, %v4907
        %v4909 = vpop.f32.mrf.mxu0
        %v4910 = vadd.f32 %v4896, %v4909
        %4911 = vdwg.mxu0
        %4912 = vmatpush.bf16.msra.mxu0 %v3610
        %4913 = vmatpush.bf16.msra.mxu0 %v3606
        %4914 = vmatpush.bf16.msra.mxu0 %v3602
        %4915 = vmatpush.bf16.msra.mxu0 %v3598
        %4916 = vmatpush.bf16.msra.mxu0 %v3594
        %4917 = vmatpush.bf16.msra.mxu0 %v3590
        %4918 = vmatpush.bf16.msra.mxu0 %v3586
        %4919 = vmatpush.bf16.msra.mxu0 %v3582
        %4920 = vmatmul.bf16.gmra.mxu0 %v1899
        %v4921 = vpop.f32.mrf.mxu0
        %v4922 = vadd.f32 %v4908, %v4921
        %v4923 = vpop.f32.mrf.mxu0
        %v4924 = vadd.f32 %v4910, %v4923
        %4925 = vdwg.mxu0
        %4926 = vmatpush.bf16.msra.mxu0 %v3642
        %4927 = vmatpush.bf16.msra.mxu0 %v3638
        %4928 = vmatpush.bf16.msra.mxu0 %v3634
        %4929 = vmatpush.bf16.msra.mxu0 %v3630
        %4930 = vmatpush.bf16.msra.mxu0 %v3626
        %4931 = vmatpush.bf16.msra.mxu0 %v3622
        %4932 = vmatpush.bf16.msra.mxu0 %v3618
        %4933 = vmatpush.bf16.msra.mxu0 %v3614
        %4934 = vmatmul.bf16.gmra.mxu0 %v1900
        %v4935 = vpop.f32.mrf.mxu0
        %v4936 = vadd.f32 %v4922, %v4935
        %v4937 = vpop.f32.mrf.mxu0
        %v4938 = vadd.f32 %v4924, %v4937
        %4939 = vdwg.mxu0
        %4940 = vmatpush.bf16.msra.mxu0 %v3674
        %4941 = vmatpush.bf16.msra.mxu0 %v3670
        %4942 = vmatpush.bf16.msra.mxu0 %v3666
        %4943 = vmatpush.bf16.msra.mxu0 %v3662
        %4944 = vmatpush.bf16.msra.mxu0 %v3658
        %4945 = vmatpush.bf16.msra.mxu0 %v3654
        %4946 = vmatpush.bf16.msra.mxu0 %v3650
        %4947 = vmatpush.bf16.msra.mxu0 %v3646
        %4948 = vmatmul.bf16.gmra.mxu0 %v1901
        %v4949 = vpop.f32.mrf.mxu0
        %v4950 = vadd.f32 %v4936, %v4949
        %v4951 = vpop.f32.mrf.mxu0
        %v4952 = vadd.f32 %v4938, %v4951
        %4953 = vdwg.mxu0
        %4954 = vmatpush.bf16.msra.mxu0 %v3706
        %4955 = vmatpush.bf16.msra.mxu0 %v3702
        %4956 = vmatpush.bf16.msra.mxu0 %v3698
        %4957 = vmatpush.bf16.msra.mxu0 %v3694
        %4958 = vmatpush.bf16.msra.mxu0 %v3690
        %4959 = vmatpush.bf16.msra.mxu0 %v3686
        %4960 = vmatpush.bf16.msra.mxu0 %v3682
        %4961 = vmatpush.bf16.msra.mxu0 %v3678
        %4962 = vmatmul.bf16.gmra.mxu0 %v1902
        %v4963 = vpop.f32.mrf.mxu0
        %v4964 = vadd.f32 %v4950, %v4963
        %v4965 = vpop.f32.mrf.mxu0
        %v4966 = vadd.f32 %v4952, %v4965
        %4967 = vdwg.mxu0
        %4968 = vmatpush.bf16.msra.mxu0 %v3738
        %4969 = vmatpush.bf16.msra.mxu0 %v3734
        %4970 = vmatpush.bf16.msra.mxu0 %v3730
        %4971 = vmatpush.bf16.msra.mxu0 %v3726
        %4972 = vmatpush.bf16.msra.mxu0 %v3722
        %4973 = vmatpush.bf16.msra.mxu0 %v3718
        %4974 = vmatpush.bf16.msra.mxu0 %v3714
        %4975 = vmatpush.bf16.msra.mxu0 %v3710
        %4976 = vmatmul.bf16.gmra.mxu0 %v1903
        %v4977 = vpop.f32.mrf.mxu0
        %v4978 = vadd.f32 %v4964, %v4977
        %v4979 = vpop.f32.mrf.mxu0
        %v4980 = vadd.f32 %v4966, %v4979
        %4981 = vdwg.mxu0
        %4982 = vmatpush.bf16.msra.mxu0 %v3770
        %4983 = vmatpush.bf16.msra.mxu0 %v3766
        %4984 = vmatpush.bf16.msra.mxu0 %v3762
        %4985 = vmatpush.bf16.msra.mxu0 %v3758
        %4986 = vmatpush.bf16.msra.mxu0 %v3754
        %4987 = vmatpush.bf16.msra.mxu0 %v3750
        %4988 = vmatpush.bf16.msra.mxu0 %v3746
        %4989 = vmatpush.bf16.msra.mxu0 %v3742
        %4990 = vmatmul.bf16.gmra.mxu0 %v1904
        %v4991 = vpop.f32.mrf.mxu0
        %v4992 = vadd.f32 %v4978, %v4991
        %v4993 = vpop.f32.mrf.mxu0
        %v4994 = vadd.f32 %v4980, %v4993
        %4995 = vdwg.mxu0
        %4996 = vmatpush.bf16.msra.mxu0 %v3802
        %4997 = vmatpush.bf16.msra.mxu0 %v3798
        %4998 = vmatpush.bf16.msra.mxu0 %v3794
        %4999 = vmatpush.bf16.msra.mxu0 %v3790
        %5000 = vmatpush.bf16.msra.mxu0 %v3786
        %5001 = vmatpush.bf16.msra.mxu0 %v3782
        %5002 = vmatpush.bf16.msra.mxu0 %v3778
        %5003 = vmatpush.bf16.msra.mxu0 %v3774
        %5004 = vmatmul.bf16.gmra.mxu0 %v1905
        %v5005 = vpop.f32.mrf.mxu0
        %v5006 = vadd.f32 %v4992, %v5005
        %v5007 = vpop.f32.mrf.mxu0
        %v5008 = vadd.f32 %v4994, %v5007
        %5009 = vdwg.mxu0
        %5010 = vmatpush.bf16.msra.mxu0 %v3834
        %5011 = vmatpush.bf16.msra.mxu0 %v3830
        %5012 = vmatpush.bf16.msra.mxu0 %v3826
        %5013 = vmatpush.bf16.msra.mxu0 %v3822
        %5014 = vmatpush.bf16.msra.mxu0 %v3818
        %5015 = vmatpush.bf16.msra.mxu0 %v3814
        %5016 = vmatpush.bf16.msra.mxu0 %v3810
        %5017 = vmatpush.bf16.msra.mxu0 %v3806
        %5018 = vmatmul.bf16.gmra.mxu0 %v1906
        %v5019 = vpop.f32.mrf.mxu0
        %v5020 = vadd.f32 %v5006, %v5019
        %v5021 = vpop.f32.mrf.mxu0
        %v5022 = vadd.f32 %v5008, %v5021
        %5023 = vdwg.mxu0
        %5024 = vmatpush.bf16.msra.mxu0 %v3866
        %5025 = vmatpush.bf16.msra.mxu0 %v3862
        %5026 = vmatpush.bf16.msra.mxu0 %v3858
        %5027 = vmatpush.bf16.msra.mxu0 %v3854
        %5028 = vmatpush.bf16.msra.mxu0 %v3850
        %5029 = vmatpush.bf16.msra.mxu0 %v3846
        %5030 = vmatpush.bf16.msra.mxu0 %v3842
        %5031 = vmatpush.bf16.msra.mxu0 %v3838
        %5032 = vmatmul.bf16.gmra.mxu0 %v1907
        %v5033 = vpop.f32.mrf.mxu0
        %v5034 = vadd.f32 %v5020, %v5033
        %v5035 = vpop.f32.mrf.mxu0
        %v5036 = vadd.f32 %v5022, %v5035
        %5037 = vdwg.mxu0
        %5038 = vmatpush.bf16.msra.mxu0 0
        %5039 = vmatpush.bf16.msra.mxu0 0
        %5040 = vmatpush.bf16.msra.mxu0 0
        %5041 = vmatpush.bf16.msra.mxu0 0
        %5042 = vmatpush.bf16.msra.mxu0 0
        %5043 = vmatpush.bf16.msra.mxu0 0
        %5044 = vmatpush.bf16.msra.mxu0 %v4375
        %5045 = vmatpush.bf16.msra.mxu0 %v3870
        %5046 = vmatmul.bf16.gmra.mxu0 %v4362
        %v5047 = vpop.f32.mrf.mxu0
        %v5048 = vadd.f32 %v5034, %v5047
        %v5049 = vpop.f32.mrf.mxu0
        %v5050 = vadd.f32 %v5036, %v5049
        %5051 = vdwg.mxu0
        %5052 = vmatpush.bf16.msra.mxu0 %v3419
        %5053 = vmatpush.bf16.msra.mxu0 %v3415
        %5054 = vmatpush.bf16.msra.mxu0 %v3411
        %5055 = vmatpush.bf16.msra.mxu0 %v3407
        %5056 = vmatpush.bf16.msra.mxu0 %v3403
        %5057 = vmatpush.bf16.msra.mxu0 %v3399
        %5058 = vmatpush.bf16.msra.mxu0 %v3395
        %5059 = vmatpush.bf16.msra.mxu0 %v3391
        %5060 = vmatmul.bf16.gmra.mxu0 %v1893
        %v5061 = vpop.f32.mrf.mxu0
        %v5062 = vadd.f32 %v1840, %v5061
        %v5063 = vpop.f32.mrf.mxu0
        %v5064 = vadd.f32 %v1840, %v5063
        %5065 = vdwg.mxu0
        %5066 = vmatpush.bf16.msra.mxu0 %v3451
        %5067 = vmatpush.bf16.msra.mxu0 %v3447
        %5068 = vmatpush.bf16.msra.mxu0 %v3443
        %5069 = vmatpush.bf16.msra.mxu0 %v3439
        %5070 = vmatpush.bf16.msra.mxu0 %v3435
        %5071 = vmatpush.bf16.msra.mxu0 %v3431
        %5072 = vmatpush.bf16.msra.mxu0 %v3427
        %5073 = vmatpush.bf16.msra.mxu0 %v3423
        %5074 = vmatmul.bf16.gmra.mxu0 %v1894
        %v5075 = vpop.f32.mrf.mxu0
        %v5076 = vadd.f32 %v5062, %v5075
        %v5077 = vpop.f32.mrf.mxu0
        %v5078 = vadd.f32 %v5064, %v5077
        %5079 = vdwg.mxu0
        %5080 = vmatpush.bf16.msra.mxu0 %v3483
        %5081 = vmatpush.bf16.msra.mxu0 %v3479
        %5082 = vmatpush.bf16.msra.mxu0 %v3475
        %5083 = vmatpush.bf16.msra.mxu0 %v3471
        %5084 = vmatpush.bf16.msra.mxu0 %v3467
        %5085 = vmatpush.bf16.msra.mxu0 %v3463
        %5086 = vmatpush.bf16.msra.mxu0 %v3459
        %5087 = vmatpush.bf16.msra.mxu0 %v3455
        %5088 = vmatmul.bf16.gmra.mxu0 %v1895
        %v5089 = vpop.f32.mrf.mxu0
        %v5090 = vadd.f32 %v5076, %v5089
        %v5091 = vpop.f32.mrf.mxu0
        %v5092 = vadd.f32 %v5078, %v5091
        %5093 = vdwg.mxu0
        %5094 = vmatpush.bf16.msra.mxu0 %v3515
        %5095 = vmatpush.bf16.msra.mxu0 %v3511
        %5096 = vmatpush.bf16.msra.mxu0 %v3507
        %5097 = vmatpush.bf16.msra.mxu0 %v3503
        %5098 = vmatpush.bf16.msra.mxu0 %v3499
        %5099 = vmatpush.bf16.msra.mxu0 %v3495
        %5100 = vmatpush.bf16.msra.mxu0 %v3491
        %5101 = vmatpush.bf16.msra.mxu0 %v3487
        %5102 = vmatmul.bf16.gmra.mxu0 %v1896
        %v5103 = vpop.f32.mrf.mxu0
        %v5104 = vadd.f32 %v5090, %v5103
        %v5105 = vpop.f32.mrf.mxu0
        %v5106 = vadd.f32 %v5092, %v5105
        %5107 = vdwg.mxu0
        %5108 = vmatpush.bf16.msra.mxu0 %v3547
        %5109 = vmatpush.bf16.msra.mxu0 %v3543
        %5110 = vmatpush.bf16.msra.mxu0 %v3539
        %5111 = vmatpush.bf16.msra.mxu0 %v3535
        %5112 = vmatpush.bf16.msra.mxu0 %v3531
        %5113 = vmatpush.bf16.msra.mxu0 %v3527
        %5114 = vmatpush.bf16.msra.mxu0 %v3523
        %5115 = vmatpush.bf16.msra.mxu0 %v3519
        %5116 = vmatmul.bf16.gmra.mxu0 %v1897
        %v5117 = vpop.f32.mrf.mxu0
        %v5118 = vadd.f32 %v5104, %v5117
        %v5119 = vpop.f32.mrf.mxu0
        %v5120 = vadd.f32 %v5106, %v5119
        %5121 = vdwg.mxu0
        %5122 = vmatpush.bf16.msra.mxu0 %v3579
        %5123 = vmatpush.bf16.msra.mxu0 %v3575
        %5124 = vmatpush.bf16.msra.mxu0 %v3571
        %5125 = vmatpush.bf16.msra.mxu0 %v3567
        %5126 = vmatpush.bf16.msra.mxu0 %v3563
        %5127 = vmatpush.bf16.msra.mxu0 %v3559
        %5128 = vmatpush.bf16.msra.mxu0 %v3555
        %5129 = vmatpush.bf16.msra.mxu0 %v3551
        %5130 = vmatmul.bf16.gmra.mxu0 %v1898
        %v5131 = vpop.f32.mrf.mxu0
        %v5132 = vadd.f32 %v5118, %v5131
        %v5133 = vpop.f32.mrf.mxu0
        %v5134 = vadd.f32 %v5120, %v5133
        %5135 = vdwg.mxu0
        %5136 = vmatpush.bf16.msra.mxu0 %v3611
        %5137 = vmatpush.bf16.msra.mxu0 %v3607
        %5138 = vmatpush.bf16.msra.mxu0 %v3603
        %5139 = vmatpush.bf16.msra.mxu0 %v3599
        %5140 = vmatpush.bf16.msra.mxu0 %v3595
        %5141 = vmatpush.bf16.msra.mxu0 %v3591
        %5142 = vmatpush.bf16.msra.mxu0 %v3587
        %5143 = vmatpush.bf16.msra.mxu0 %v3583
        %5144 = vmatmul.bf16.gmra.mxu0 %v1899
        %v5145 = vpop.f32.mrf.mxu0
        %v5146 = vadd.f32 %v5132, %v5145
        %v5147 = vpop.f32.mrf.mxu0
        %v5148 = vadd.f32 %v5134, %v5147
        %5149 = vdwg.mxu0
        %5150 = vmatpush.bf16.msra.mxu0 %v3643
        %5151 = vmatpush.bf16.msra.mxu0 %v3639
        %5152 = vmatpush.bf16.msra.mxu0 %v3635
        %5153 = vmatpush.bf16.msra.mxu0 %v3631
        %5154 = vmatpush.bf16.msra.mxu0 %v3627
        %5155 = vmatpush.bf16.msra.mxu0 %v3623
        %5156 = vmatpush.bf16.msra.mxu0 %v3619
        %5157 = vmatpush.bf16.msra.mxu0 %v3615
        %5158 = vmatmul.bf16.gmra.mxu0 %v1900
        %v5159 = vpop.f32.mrf.mxu0
        %v5160 = vadd.f32 %v5146, %v5159
        %v5161 = vpop.f32.mrf.mxu0
        %v5162 = vadd.f32 %v5148, %v5161
        %5163 = vdwg.mxu0
        %5164 = vmatpush.bf16.msra.mxu0 %v3675
        %5165 = vmatpush.bf16.msra.mxu0 %v3671
        %5166 = vmatpush.bf16.msra.mxu0 %v3667
        %5167 = vmatpush.bf16.msra.mxu0 %v3663
        %5168 = vmatpush.bf16.msra.mxu0 %v3659
        %5169 = vmatpush.bf16.msra.mxu0 %v3655
        %5170 = vmatpush.bf16.msra.mxu0 %v3651
        %5171 = vmatpush.bf16.msra.mxu0 %v3647
        %5172 = vmatmul.bf16.gmra.mxu0 %v1901
        %v5173 = vpop.f32.mrf.mxu0
        %v5174 = vadd.f32 %v5160, %v5173
        %v5175 = vpop.f32.mrf.mxu0
        %v5176 = vadd.f32 %v5162, %v5175
        %5177 = vdwg.mxu0
        %5178 = vmatpush.bf16.msra.mxu0 %v3707
        %5179 = vmatpush.bf16.msra.mxu0 %v3703
        %5180 = vmatpush.bf16.msra.mxu0 %v3699
        %5181 = vmatpush.bf16.msra.mxu0 %v3695
        %5182 = vmatpush.bf16.msra.mxu0 %v3691
        %5183 = vmatpush.bf16.msra.mxu0 %v3687
        %5184 = vmatpush.bf16.msra.mxu0 %v3683
        %5185 = vmatpush.bf16.msra.mxu0 %v3679
        %5186 = vmatmul.bf16.gmra.mxu0 %v1902
        %v5187 = vpop.f32.mrf.mxu0
        %v5188 = vadd.f32 %v5174, %v5187
        %v5189 = vpop.f32.mrf.mxu0
        %v5190 = vadd.f32 %v5176, %v5189
        %5191 = vdwg.mxu0
        %5192 = vmatpush.bf16.msra.mxu0 %v3739
        %5193 = vmatpush.bf16.msra.mxu0 %v3735
        %5194 = vmatpush.bf16.msra.mxu0 %v3731
        %5195 = vmatpush.bf16.msra.mxu0 %v3727
        %5196 = vmatpush.bf16.msra.mxu0 %v3723
        %5197 = vmatpush.bf16.msra.mxu0 %v3719
        %5198 = vmatpush.bf16.msra.mxu0 %v3715
        %5199 = vmatpush.bf16.msra.mxu0 %v3711
        %5200 = vmatmul.bf16.gmra.mxu0 %v1903
        %v5201 = vpop.f32.mrf.mxu0
        %v5202 = vadd.f32 %v5188, %v5201
        %v5203 = vpop.f32.mrf.mxu0
        %v5204 = vadd.f32 %v5190, %v5203
        %5205 = vdwg.mxu0
        %5206 = vmatpush.bf16.msra.mxu0 %v3771
        %5207 = vmatpush.bf16.msra.mxu0 %v3767
        %5208 = vmatpush.bf16.msra.mxu0 %v3763
        %5209 = vmatpush.bf16.msra.mxu0 %v3759
        %5210 = vmatpush.bf16.msra.mxu0 %v3755
        %5211 = vmatpush.bf16.msra.mxu0 %v3751
        %5212 = vmatpush.bf16.msra.mxu0 %v3747
        %5213 = vmatpush.bf16.msra.mxu0 %v3743
        %5214 = vmatmul.bf16.gmra.mxu0 %v1904
        %v5215 = vpop.f32.mrf.mxu0
        %v5216 = vadd.f32 %v5202, %v5215
        %v5217 = vpop.f32.mrf.mxu0
        %v5218 = vadd.f32 %v5204, %v5217
        %5219 = vdwg.mxu0
        %5220 = vmatpush.bf16.msra.mxu0 %v3803
        %5221 = vmatpush.bf16.msra.mxu0 %v3799
        %5222 = vmatpush.bf16.msra.mxu0 %v3795
        %5223 = vmatpush.bf16.msra.mxu0 %v3791
        %5224 = vmatpush.bf16.msra.mxu0 %v3787
        %5225 = vmatpush.bf16.msra.mxu0 %v3783
        %5226 = vmatpush.bf16.msra.mxu0 %v3779
        %5227 = vmatpush.bf16.msra.mxu0 %v3775
        %5228 = vmatmul.bf16.gmra.mxu0 %v1905
        %v5229 = vpop.f32.mrf.mxu0
        %v5230 = vadd.f32 %v5216, %v5229
        %v5231 = vpop.f32.mrf.mxu0
        %v5232 = vadd.f32 %v5218, %v5231
        %5233 = vdwg.mxu0
        %5234 = vmatpush.bf16.msra.mxu0 %v3835
        %5235 = vmatpush.bf16.msra.mxu0 %v3831
        %5236 = vmatpush.bf16.msra.mxu0 %v3827
        %5237 = vmatpush.bf16.msra.mxu0 %v3823
        %5238 = vmatpush.bf16.msra.mxu0 %v3819
        %5239 = vmatpush.bf16.msra.mxu0 %v3815
        %5240 = vmatpush.bf16.msra.mxu0 %v3811
        %5241 = vmatpush.bf16.msra.mxu0 %v3807
        %5242 = vmatmul.bf16.gmra.mxu0 %v1906
        %v5243 = vpop.f32.mrf.mxu0
        %v5244 = vadd.f32 %v5230, %v5243
        %v5245 = vpop.f32.mrf.mxu0
        %v5246 = vadd.f32 %v5232, %v5245
        %5247 = vdwg.mxu0
        %5248 = vmatpush.bf16.msra.mxu0 %v3867
        %5249 = vmatpush.bf16.msra.mxu0 %v3863
        %5250 = vmatpush.bf16.msra.mxu0 %v3859
        %5251 = vmatpush.bf16.msra.mxu0 %v3855
        %5252 = vmatpush.bf16.msra.mxu0 %v3851
        %5253 = vmatpush.bf16.msra.mxu0 %v3847
        %5254 = vmatpush.bf16.msra.mxu0 %v3843
        %5255 = vmatpush.bf16.msra.mxu0 %v3839
        %5256 = vmatmul.bf16.gmra.mxu0 %v1907
        %v5257 = vpop.f32.mrf.mxu0
        %v5258 = vadd.f32 %v5244, %v5257
        %v5259 = vpop.f32.mrf.mxu0
        %v5260 = vadd.f32 %v5246, %v5259
        %5261 = vdwg.mxu0
        %5262 = vmatpush.bf16.msra.mxu0 0
        %5263 = vmatpush.bf16.msra.mxu0 0
        %5264 = vmatpush.bf16.msra.mxu0 0
        %5265 = vmatpush.bf16.msra.mxu0 0
        %5266 = vmatpush.bf16.msra.mxu0 0
        %5267 = vmatpush.bf16.msra.mxu0 0
        %5268 = vmatpush.bf16.msra.mxu0 %v4378
        %5269 = vmatpush.bf16.msra.mxu0 %v3871
        %5270 = vmatmul.bf16.gmra.mxu0 %v4362
        %v5271 = vpop.f32.mrf.mxu0
        %v5272 = vadd.f32 %v5258, %v5271
        %v5273 = vpop.f32.mrf.mxu0
        %v5274 = vadd.f32 %v5260, %v5273
        %5275 = vdwg.mxu0
        %v5276 = vmax.f32 %v4600, 0.0
        %v5277 = vmax.f32 %v4824, 0.0
        %v5278 = vmax.f32 %v5048, 0.0
        %v5279 = vmax.f32 %v5272, 0.0
        %v5280 = vmax.f32 %v4602, 0.0
        %v5281 = vmax.f32 %v4826, 0.0
        %v5282 = vmax.f32 %v5050, 0.0
        %v5283 = vmax.f32 %v5274, 0.0
        %v5284 = vld [vmem:[#allocation2] sm:$0xff]
        %v5285 = vld [vmem:[#allocation2 + $0x8] sm:$0xff]
        %v5286 = vld [vmem:[#allocation2 + $0x10] sm:$0xff]
        %v5287 = vld [vmem:[#allocation2 + $0x18] sm:$0xff]
        %v5288 = vld [vmem:[#allocation2 + $0x20] sm:$0xff]
        %v5289 = vld [vmem:[#allocation2 + $0x28] sm:$0xff]
        %v5290 = vld [vmem:[#allocation2 + $0x30] sm:$0xff]
        %v5291 = vld [vmem:[#allocation2 + $0x38] sm:$0xff]
        %v5292 = vld [vmem:[#allocation2 + $0x40] sm:$0xff]
        %v5293 = vld [vmem:[#allocation2 + $0x48] sm:$0xff]
        %v5294 = vld [vmem:[#allocation2 + $0x50] sm:$0xff]
        %v5295 = vld [vmem:[#allocation2 + $0x58] sm:$0xff]
        %v5296 = vld [vmem:[#allocation2 + $0x60] sm:$0xff]
        %v5297 = vld [vmem:[#allocation2 + $0x68] sm:$0xff]
        %v5298 = vld [vmem:[#allocation2 + $0x70] sm:$0xff]
        %v5299 = vld [vmem:[#allocation2 + $0x78] sm:$0xff]
        %v5300 = vld [vmem:[#allocation2 + $0x80] sm:$0xff]
        %v5301 = vld [vmem:[#allocation2 + $0x88] sm:$0xff]
        %v5302 = vld [vmem:[#allocation2 + $0x90] sm:$0xff]
        %v5303 = vld [vmem:[#allocation2 + $0x98] sm:$0xff]
        %v5304 = vld [vmem:[#allocation2 + $0xa0] sm:$0xff]
        %v5305 = vld [vmem:[#allocation2 + $0xa8] sm:$0xff]
        %v5306 = vld [vmem:[#allocation2 + $0xb0] sm:$0xff]
        %v5307 = vld [vmem:[#allocation2 + $0xb8] sm:$0xff]
        %v5308 = vld [vmem:[#allocation2 + $0xc0] sm:$0xff]
        %v5309 = vld [vmem:[#allocation2 + $0xc8] sm:$0xff]
        %v5310 = vld [vmem:[#allocation2 + $0xd0] sm:$0xff]
        %v5311 = vld [vmem:[#allocation2 + $0xd8] sm:$0xff]
        %v5312 = vld [vmem:[#allocation2 + $0xe0] sm:$0xff]
        %v5313 = vld [vmem:[#allocation2 + $0xe8] sm:$0xff]
        %v5314 = vld [vmem:[#allocation2 + $0xf0] sm:$0xff]
        %v5315 = vld [vmem:[#allocation2 + $0xf8] sm:$0xff]
        %v5316 = vpack.c.bf16 %v5280, %v5276
        %v5317 = vpack.c.bf16 %v5281, %v5277
        %v5318 = vpack.c.bf16 %v5282, %v5278
        %v5319 = vpack.c.bf16 %v5283, %v5279
        %v5320 = vld [vmem:[%s1290] sm:$0xff]
        %v5321 = vld [vmem:[%s1290 + $0x8] sm:$0xff]
        %v5322 = vld [vmem:[%s1290 + $0x10] sm:$0xff]
        %v5323 = vld [vmem:[%s1290 + $0x18] sm:$0xff]
        %v5324 = vld [vmem:[%s1290 + $0x20] sm:$0xff]
        %v5325 = vld [vmem:[%s1290 + $0x28] sm:$0xff]
        %v5326 = vld [vmem:[%s1290 + $0x30] sm:$0xff]
        %v5327 = vld [vmem:[%s1290 + $0x38] sm:$0xff]
        %v5328 = vld [vmem:[%s1290 + $0x40] sm:$0xff]
        %v5329 = vld [vmem:[%s1290 + $0x48] sm:$0xff]
        %v5330 = vld [vmem:[%s1290 + $0x50] sm:$0xff]
        %v5331 = vld [vmem:[%s1290 + $0x58] sm:$0xff]
        %v5332 = vld [vmem:[%s1290 + $0x60] sm:$0xff]
        %v5333 = vld [vmem:[%s1290 + $0x68] sm:$0xff]
        %v5334 = vld [vmem:[%s1290 + $0x70] sm:$0xff]
        %v5335 = vld [vmem:[%s1290 + $0x78] sm:$0xff]
        %v5336 = vld [vmem:[%s1290 + $0x80] sm:$0xff]
        %v5337 = vld [vmem:[%s1290 + $0x88] sm:$0xff]
        %v5338 = vld [vmem:[%s1290 + $0x90] sm:$0xff]
        %v5339 = vld [vmem:[%s1290 + $0x98] sm:$0xff]
        %v5340 = vld [vmem:[%s1290 + $0xa0] sm:$0xff]
        %v5341 = vld [vmem:[%s1290 + $0xa8] sm:$0xff]
        %v5342 = vld [vmem:[%s1290 + $0xb0] sm:$0xff]
        %v5343 = vld [vmem:[%s1290 + $0xb8] sm:$0xff]
        %v5344 = vld [vmem:[%s1290 + $0xc0] sm:$0xff]
        %v5345 = vld [vmem:[%s1290 + $0xc8] sm:$0xff]
        %v5346 = vld [vmem:[%s1290 + $0xd0] sm:$0xff]
        %v5347 = vld [vmem:[%s1290 + $0xd8] sm:$0xff]
        %v5348 = vld [vmem:[%s1290 + $0xe0] sm:$0xff]
        %v5349 = vld [vmem:[%s1290 + $0xe8] sm:$0xff]
        %v5350 = vld [vmem:[%s1290 + $0xf0] sm:$0xff]
        %v5351 = vld [vmem:[%s1290 + $0xf8] sm:$0xff]
        %v5352 = vld [vmem:[%s1290 + $0x100] sm:$0xff]
        %v5353 = vld [vmem:[%s1290 + $0x108] sm:$0xff]
        %v5354 = vld [vmem:[%s1290 + $0x110] sm:$0xff]
        %v5355 = vld [vmem:[%s1290 + $0x118] sm:$0xff]
        %v5356 = vld [vmem:[%s1290 + $0x120] sm:$0xff]
        %v5357 = vld [vmem:[%s1290 + $0x128] sm:$0xff]
        %v5358 = vld [vmem:[%s1290 + $0x130] sm:$0xff]
        %v5359 = vld [vmem:[%s1290 + $0x138] sm:$0xff]
        %v5360 = vld [vmem:[%s1290 + $0x140] sm:$0xff]
        %v5361 = vld [vmem:[%s1290 + $0x148] sm:$0xff]
        %v5362 = vld [vmem:[%s1290 + $0x150] sm:$0xff]
        %v5363 = vld [vmem:[%s1290 + $0x158] sm:$0xff]
        %v5364 = vld [vmem:[%s1290 + $0x160] sm:$0xff]
        %v5365 = vld [vmem:[%s1290 + $0x168] sm:$0xff]
        %v5366 = vld [vmem:[%s1290 + $0x170] sm:$0xff]
        %v5367 = vld [vmem:[%s1290 + $0x178] sm:$0xff]
        %v5368 = vld [vmem:[%s1290 + $0x180] sm:$0xff]
        %v5369 = vld [vmem:[%s1290 + $0x188] sm:$0xff]
        %v5370 = vld [vmem:[%s1290 + $0x190] sm:$0xff]
        %v5371 = vld [vmem:[%s1290 + $0x198] sm:$0xff]
        %v5372 = vld [vmem:[%s1290 + $0x1a0] sm:$0xff]
        %v5373 = vld [vmem:[%s1290 + $0x1a8] sm:$0xff]
        %v5374 = vld [vmem:[%s1290 + $0x1b0] sm:$0xff]
        %v5375 = vld [vmem:[%s1290 + $0x1b8] sm:$0xff]
        %v5376 = vld [vmem:[%s1290 + $0x1c0] sm:$0xff]
        %v5377 = vld [vmem:[%s1290 + $0x1c8] sm:$0xff]
        %v5378 = vld [vmem:[%s1290 + $0x1d0] sm:$0xff]
        %v5379 = vld [vmem:[%s1290 + $0x1d8] sm:$0xff]
        %v5380 = vld [vmem:[%s1290 + $0x1e0] sm:$0xff]
        %v5381 = vld [vmem:[%s1290 + $0x1e8] sm:$0xff]
        %v5382 = vld [vmem:[%s1290 + $0x1f0] sm:$0xff]
        %v5383 = vld [vmem:[%s1290 + $0x1f8] sm:$0xff]
        %v5384 = vld [vmem:[%s1290 + $0x200] sm:$0xff]
        %v5385 = vld [vmem:[%s1290 + $0x208] sm:$0xff]
        %v5386 = vld [vmem:[%s1290 + $0x210] sm:$0xff]
        %v5387 = vld [vmem:[%s1290 + $0x218] sm:$0xff]
        %v5388 = vld [vmem:[%s1290 + $0x220] sm:$0xff]
        %v5389 = vld [vmem:[%s1290 + $0x228] sm:$0xff]
        %v5390 = vld [vmem:[%s1290 + $0x230] sm:$0xff]
        %v5391 = vld [vmem:[%s1290 + $0x238] sm:$0xff]
        %v5392 = vld [vmem:[%s1290 + $0x240] sm:$0xff]
        %v5393 = vld [vmem:[%s1290 + $0x248] sm:$0xff]
        %v5394 = vld [vmem:[%s1290 + $0x250] sm:$0xff]
        %v5395 = vld [vmem:[%s1290 + $0x258] sm:$0xff]
        %v5396 = vld [vmem:[%s1290 + $0x260] sm:$0xff]
        %v5397 = vld [vmem:[%s1290 + $0x268] sm:$0xff]
        %v5398 = vld [vmem:[%s1290 + $0x270] sm:$0xff]
        %v5399 = vld [vmem:[%s1290 + $0x278] sm:$0xff]
        %v5400 = vld [vmem:[%s1290 + $0x280] sm:$0xff]
        %v5401 = vld [vmem:[%s1290 + $0x288] sm:$0xff]
        %v5402 = vld [vmem:[%s1290 + $0x290] sm:$0xff]
        %v5403 = vld [vmem:[%s1290 + $0x298] sm:$0xff]
        %v5404 = vld [vmem:[%s1290 + $0x2a0] sm:$0xff]
        %v5405 = vld [vmem:[%s1290 + $0x2a8] sm:$0xff]
        %v5406 = vld [vmem:[%s1290 + $0x2b0] sm:$0xff]
        %v5407 = vld [vmem:[%s1290 + $0x2b8] sm:$0xff]
        %v5408 = vld [vmem:[%s1290 + $0x2c0] sm:$0xff]
        %v5409 = vld [vmem:[%s1290 + $0x2c8] sm:$0xff]
        %v5410 = vld [vmem:[%s1290 + $0x2d0] sm:$0xff]
        %v5411 = vld [vmem:[%s1290 + $0x2d8] sm:$0xff]
        %v5412 = vld [vmem:[%s1290 + $0x2e0] sm:$0xff]
        %v5413 = vld [vmem:[%s1290 + $0x2e8] sm:$0xff]
        %v5414 = vld [vmem:[%s1290 + $0x2f0] sm:$0xff]
        %v5415 = vld [vmem:[%s1290 + $0x2f8] sm:$0xff]
        %v5416 = vld [vmem:[%s1290 + $0x300] sm:$0xff]
        %v5417 = vld [vmem:[%s1290 + $0x308] sm:$0xff]
        %v5418 = vld [vmem:[%s1290 + $0x310] sm:$0xff]
        %v5419 = vld [vmem:[%s1290 + $0x318] sm:$0xff]
        %v5420 = vld [vmem:[%s1290 + $0x320] sm:$0xff]
        %v5421 = vld [vmem:[%s1290 + $0x328] sm:$0xff]
        %v5422 = vld [vmem:[%s1290 + $0x330] sm:$0xff]
        %v5423 = vld [vmem:[%s1290 + $0x338] sm:$0xff]
        %v5424 = vld [vmem:[%s1290 + $0x340] sm:$0xff]
        %v5425 = vld [vmem:[%s1290 + $0x348] sm:$0xff]
        %v5426 = vld [vmem:[%s1290 + $0x350] sm:$0xff]
        %v5427 = vld [vmem:[%s1290 + $0x358] sm:$0xff]
        %v5428 = vld [vmem:[%s1290 + $0x360] sm:$0xff]
        %v5429 = vld [vmem:[%s1290 + $0x368] sm:$0xff]
        %v5430 = vld [vmem:[%s1290 + $0x370] sm:$0xff]
        %v5431 = vld [vmem:[%s1290 + $0x378] sm:$0xff]
        %v5432 = vld [vmem:[%s1290 + $0x380] sm:$0xff]
        %v5433 = vld [vmem:[%s1290 + $0x388] sm:$0xff]
        %v5434 = vld [vmem:[%s1290 + $0x390] sm:$0xff]
        %v5435 = vld [vmem:[%s1290 + $0x398] sm:$0xff]
        %v5436 = vld [vmem:[%s1290 + $0x3a0] sm:$0xff]
        %v5437 = vld [vmem:[%s1290 + $0x3a8] sm:$0xff]
        %v5438 = vld [vmem:[%s1290 + $0x3b0] sm:$0xff]
        %v5439 = vld [vmem:[%s1290 + $0x3b8] sm:$0xff]
        %v5440 = vld [vmem:[%s1290 + $0x3c0] sm:$0xff]
        %v5441 = vld [vmem:[%s1290 + $0x3c8] sm:$0xff]
        %v5442 = vld [vmem:[%s1290 + $0x3d0] sm:$0xff]
        %v5443 = vld [vmem:[%s1290 + $0x3d8] sm:$0xff]
        %v5444 = vld [vmem:[%s1290 + $0x3e0] sm:$0xff]
        %v5445 = vld [vmem:[%s1290 + $0x3e8] sm:$0xff]
        %v5446 = vld [vmem:[%s1290 + $0x3f0] sm:$0xff]
        %v5447 = vld [vmem:[%s1290 + $0x3f8] sm:$0xff]
        %v5448 = vld [vmem:[%s1290 + $0x400] sm:$0xff]
        %v5449 = vld [vmem:[%s1290 + $0x408] sm:$0xff]
        %v5450 = vld [vmem:[%s1290 + $0x410] sm:$0xff]
        %v5451 = vld [vmem:[%s1290 + $0x418] sm:$0xff]
        %v5452 = vld [vmem:[%s1290 + $0x420] sm:$0xff]
        %v5453 = vld [vmem:[%s1290 + $0x428] sm:$0xff]
        %v5454 = vld [vmem:[%s1290 + $0x430] sm:$0xff]
        %v5455 = vld [vmem:[%s1290 + $0x438] sm:$0xff]
        %v5456 = vld [vmem:[%s1290 + $0x440] sm:$0xff]
        %v5457 = vld [vmem:[%s1290 + $0x448] sm:$0xff]
        %v5458 = vld [vmem:[%s1290 + $0x450] sm:$0xff]
        %v5459 = vld [vmem:[%s1290 + $0x458] sm:$0xff]
        %v5460 = vld [vmem:[%s1290 + $0x460] sm:$0xff]
        %v5461 = vld [vmem:[%s1290 + $0x468] sm:$0xff]
        %v5462 = vld [vmem:[%s1290 + $0x470] sm:$0xff]
        %v5463 = vld [vmem:[%s1290 + $0x478] sm:$0xff]
        %v5464 = vld [vmem:[%s1290 + $0x480] sm:$0xff]
        %v5465 = vld [vmem:[%s1290 + $0x488] sm:$0xff]
        %v5466 = vld [vmem:[%s1290 + $0x490] sm:$0xff]
        %v5467 = vld [vmem:[%s1290 + $0x498] sm:$0xff]
        %v5468 = vld [vmem:[%s1290 + $0x4a0] sm:$0xff]
        %v5469 = vld [vmem:[%s1290 + $0x4a8] sm:$0xff]
        %v5470 = vld [vmem:[%s1290 + $0x4b0] sm:$0xff]
        %v5471 = vld [vmem:[%s1290 + $0x4b8] sm:$0xff]
        %v5472 = vld [vmem:[%s1290 + $0x4c0] sm:$0xff]
        %v5473 = vld [vmem:[%s1290 + $0x4c8] sm:$0xff]
        %v5474 = vld [vmem:[%s1290 + $0x4d0] sm:$0xff]
        %v5475 = vld [vmem:[%s1290 + $0x4d8] sm:$0xff]
        %v5476 = vld [vmem:[%s1290 + $0x4e0] sm:$0xff]
        %v5477 = vld [vmem:[%s1290 + $0x4e8] sm:$0xff]
        %v5478 = vld [vmem:[%s1290 + $0x4f0] sm:$0xff]
        %v5479 = vld [vmem:[%s1290 + $0x4f8] sm:$0xff]
        %v5480 = vld [vmem:[%s1290 + $0x500] sm:$0xff]
        %v5481 = vld [vmem:[%s1290 + $0x508] sm:$0xff]
        %v5482 = vld [vmem:[%s1290 + $0x510] sm:$0xff]
        %v5483 = vld [vmem:[%s1290 + $0x518] sm:$0xff]
        %v5484 = vld [vmem:[%s1290 + $0x520] sm:$0xff]
        %v5485 = vld [vmem:[%s1290 + $0x528] sm:$0xff]
        %v5486 = vld [vmem:[%s1290 + $0x530] sm:$0xff]
        %v5487 = vld [vmem:[%s1290 + $0x538] sm:$0xff]
        %v5488 = vld [vmem:[%s1290 + $0x540] sm:$0xff]
        %v5489 = vld [vmem:[%s1290 + $0x548] sm:$0xff]
        %v5490 = vld [vmem:[%s1290 + $0x550] sm:$0xff]
        %v5491 = vld [vmem:[%s1290 + $0x558] sm:$0xff]
        %v5492 = vld [vmem:[%s1290 + $0x560] sm:$0xff]
        %v5493 = vld [vmem:[%s1290 + $0x568] sm:$0xff]
        %v5494 = vld [vmem:[%s1290 + $0x570] sm:$0xff]
        %v5495 = vld [vmem:[%s1290 + $0x578] sm:$0xff]
        %v5496 = vld [vmem:[%s1290 + $0x580] sm:$0xff]
        %v5497 = vld [vmem:[%s1290 + $0x588] sm:$0xff]
        %v5498 = vld [vmem:[%s1290 + $0x590] sm:$0xff]
        %v5499 = vld [vmem:[%s1290 + $0x598] sm:$0xff]
        %v5500 = vld [vmem:[%s1290 + $0x5a0] sm:$0xff]
        %v5501 = vld [vmem:[%s1290 + $0x5a8] sm:$0xff]
        %v5502 = vld [vmem:[%s1290 + $0x5b0] sm:$0xff]
        %v5503 = vld [vmem:[%s1290 + $0x5b8] sm:$0xff]
        %v5504 = vld [vmem:[%s1290 + $0x5c0] sm:$0xff]
        %v5505 = vld [vmem:[%s1290 + $0x5c8] sm:$0xff]
        %v5506 = vld [vmem:[%s1290 + $0x5d0] sm:$0xff]
        %v5507 = vld [vmem:[%s1290 + $0x5d8] sm:$0xff]
        %v5508 = vld [vmem:[%s1290 + $0x5e0] sm:$0xff]
        %v5509 = vld [vmem:[%s1290 + $0x5e8] sm:$0xff]
        %v5510 = vld [vmem:[%s1290 + $0x5f0] sm:$0xff]
        %v5511 = vld [vmem:[%s1290 + $0x5f8] sm:$0xff]
        %v5512 = vld [vmem:[%s1290 + $0x600] sm:$0xff]
        %v5513 = vld [vmem:[%s1290 + $0x608] sm:$0xff]
        %v5514 = vld [vmem:[%s1290 + $0x610] sm:$0xff]
        %v5515 = vld [vmem:[%s1290 + $0x618] sm:$0xff]
        %v5516 = vld [vmem:[%s1290 + $0x620] sm:$0xff]
        %v5517 = vld [vmem:[%s1290 + $0x628] sm:$0xff]
        %v5518 = vld [vmem:[%s1290 + $0x630] sm:$0xff]
        %v5519 = vld [vmem:[%s1290 + $0x638] sm:$0xff]
        %v5520 = vld [vmem:[%s1290 + $0x640] sm:$0xff]
        %v5521 = vld [vmem:[%s1290 + $0x648] sm:$0xff]
        %v5522 = vld [vmem:[%s1290 + $0x650] sm:$0xff]
        %v5523 = vld [vmem:[%s1290 + $0x658] sm:$0xff]
        %v5524 = vld [vmem:[%s1290 + $0x660] sm:$0xff]
        %v5525 = vld [vmem:[%s1290 + $0x668] sm:$0xff]
        %v5526 = vld [vmem:[%s1290 + $0x670] sm:$0xff]
        %v5527 = vld [vmem:[%s1290 + $0x678] sm:$0xff]
        %v5528 = vld [vmem:[%s1290 + $0x680] sm:$0xff]
        %v5529 = vld [vmem:[%s1290 + $0x688] sm:$0xff]
        %v5530 = vld [vmem:[%s1290 + $0x690] sm:$0xff]
        %v5531 = vld [vmem:[%s1290 + $0x698] sm:$0xff]
        %v5532 = vld [vmem:[%s1290 + $0x6a0] sm:$0xff]
        %v5533 = vld [vmem:[%s1290 + $0x6a8] sm:$0xff]
        %v5534 = vld [vmem:[%s1290 + $0x6b0] sm:$0xff]
        %v5535 = vld [vmem:[%s1290 + $0x6b8] sm:$0xff]
        %v5536 = vld [vmem:[%s1290 + $0x6c0] sm:$0xff]
        %v5537 = vld [vmem:[%s1290 + $0x6c8] sm:$0xff]
        %v5538 = vld [vmem:[%s1290 + $0x6d0] sm:$0xff]
        %v5539 = vld [vmem:[%s1290 + $0x6d8] sm:$0xff]
        %v5540 = vld [vmem:[%s1290 + $0x6e0] sm:$0xff]
        %v5541 = vld [vmem:[%s1290 + $0x6e8] sm:$0xff]
        %v5542 = vld [vmem:[%s1290 + $0x6f0] sm:$0xff]
        %v5543 = vld [vmem:[%s1290 + $0x6f8] sm:$0xff]
        %v5544 = vld [vmem:[%s1290 + $0x700] sm:$0xff]
        %v5545 = vld [vmem:[%s1290 + $0x708] sm:$0xff]
        %v5546 = vld [vmem:[%s1290 + $0x710] sm:$0xff]
        %v5547 = vld [vmem:[%s1290 + $0x718] sm:$0xff]
        %v5548 = vld [vmem:[%s1290 + $0x720] sm:$0xff]
        %v5549 = vld [vmem:[%s1290 + $0x728] sm:$0xff]
        %v5550 = vld [vmem:[%s1290 + $0x730] sm:$0xff]
        %v5551 = vld [vmem:[%s1290 + $0x738] sm:$0xff]
        %v5552 = vld [vmem:[%s1290 + $0x740] sm:$0xff]
        %v5553 = vld [vmem:[%s1290 + $0x748] sm:$0xff]
        %v5554 = vld [vmem:[%s1290 + $0x750] sm:$0xff]
        %v5555 = vld [vmem:[%s1290 + $0x758] sm:$0xff]
        %v5556 = vld [vmem:[%s1290 + $0x760] sm:$0xff]
        %v5557 = vld [vmem:[%s1290 + $0x768] sm:$0xff]
        %v5558 = vld [vmem:[%s1290 + $0x770] sm:$0xff]
        %v5559 = vld [vmem:[%s1290 + $0x778] sm:$0xff]
        %v5560 = vld [vmem:[%s1290 + $0x780] sm:$0xff]
        %v5561 = vld [vmem:[%s1290 + $0x788] sm:$0xff]
        %v5562 = vld [vmem:[%s1290 + $0x790] sm:$0xff]
        %v5563 = vld [vmem:[%s1290 + $0x798] sm:$0xff]
        %v5564 = vld [vmem:[%s1290 + $0x7a0] sm:$0xff]
        %v5565 = vld [vmem:[%s1290 + $0x7a8] sm:$0xff]
        %v5566 = vld [vmem:[%s1290 + $0x7b0] sm:$0xff]
        %v5567 = vld [vmem:[%s1290 + $0x7b8] sm:$0xff]
        %v5568 = vld [vmem:[%s1290 + $0x7c0] sm:$0xff]
        %v5569 = vld [vmem:[%s1290 + $0x7c8] sm:$0xff]
        %v5570 = vld [vmem:[%s1290 + $0x7d0] sm:$0xff]
        %v5571 = vld [vmem:[%s1290 + $0x7d8] sm:$0xff]
        %v5572 = vld [vmem:[%s1290 + $0x7e0] sm:$0xff]
        %v5573 = vld [vmem:[%s1290 + $0x7e8] sm:$0xff]
        %v5574 = vld [vmem:[%s1290 + $0x7f0] sm:$0xff]
        %v5575 = vld [vmem:[%s1290 + $0x7f8] sm:$0xff]
        %v5576 = vld [vmem:[%s1290 + $0x800] sm:$0xff]
        %v5577 = vld [vmem:[%s1290 + $0x808] sm:$0xff]
        %v5578 = vld [vmem:[%s1290 + $0x810] sm:$0xff]
        %v5579 = vld [vmem:[%s1290 + $0x818] sm:$0xff]
        %v5580 = vld [vmem:[%s1290 + $0x820] sm:$0xff]
        %v5581 = vld [vmem:[%s1290 + $0x828] sm:$0xff]
        %v5582 = vld [vmem:[%s1290 + $0x830] sm:$0xff]
        %v5583 = vld [vmem:[%s1290 + $0x838] sm:$0xff]
        %v5584 = vld [vmem:[%s1290 + $0x840] sm:$0xff]
        %v5585 = vld [vmem:[%s1290 + $0x848] sm:$0xff]
        %v5586 = vld [vmem:[%s1290 + $0x850] sm:$0xff]
        %v5587 = vld [vmem:[%s1290 + $0x858] sm:$0xff]
        %v5588 = vld [vmem:[%s1290 + $0x860] sm:$0xff]
        %v5589 = vld [vmem:[%s1290 + $0x868] sm:$0xff]
        %v5590 = vld [vmem:[%s1290 + $0x870] sm:$0xff]
        %v5591 = vld [vmem:[%s1290 + $0x878] sm:$0xff]
        %v5592 = vld [vmem:[%s1290 + $0x880] sm:$0xff]
        %v5593 = vld [vmem:[%s1290 + $0x888] sm:$0xff]
        %v5594 = vld [vmem:[%s1290 + $0x890] sm:$0xff]
        %v5595 = vld [vmem:[%s1290 + $0x898] sm:$0xff]
        %v5596 = vld [vmem:[%s1290 + $0x8a0] sm:$0xff]
        %v5597 = vld [vmem:[%s1290 + $0x8a8] sm:$0xff]
        %v5598 = vld [vmem:[%s1290 + $0x8b0] sm:$0xff]
        %v5599 = vld [vmem:[%s1290 + $0x8b8] sm:$0xff]
        %v5600 = vld [vmem:[%s1290 + $0x8c0] sm:$0xff]
        %v5601 = vld [vmem:[%s1290 + $0x8c8] sm:$0xff]
        %v5602 = vld [vmem:[%s1290 + $0x8d0] sm:$0xff]
        %v5603 = vld [vmem:[%s1290 + $0x8d8] sm:$0xff]
        %v5604 = vld [vmem:[%s1290 + $0x8e0] sm:$0xff]
        %v5605 = vld [vmem:[%s1290 + $0x8e8] sm:$0xff]
        %v5606 = vld [vmem:[%s1290 + $0x8f0] sm:$0xff]
        %v5607 = vld [vmem:[%s1290 + $0x8f8] sm:$0xff]
        %v5608 = vld [vmem:[%s1290 + $0x900] sm:$0xff]
        %v5609 = vld [vmem:[%s1290 + $0x908] sm:$0xff]
        %v5610 = vld [vmem:[%s1290 + $0x910] sm:$0xff]
        %v5611 = vld [vmem:[%s1290 + $0x918] sm:$0xff]
        %v5612 = vld [vmem:[%s1290 + $0x920] sm:$0xff]
        %v5613 = vld [vmem:[%s1290 + $0x928] sm:$0xff]
        %v5614 = vld [vmem:[%s1290 + $0x930] sm:$0xff]
        %v5615 = vld [vmem:[%s1290 + $0x938] sm:$0xff]
        %v5616 = vld [vmem:[%s1290 + $0x940] sm:$0xff]
        %v5617 = vld [vmem:[%s1290 + $0x948] sm:$0xff]
        %v5618 = vld [vmem:[%s1290 + $0x950] sm:$0xff]
        %v5619 = vld [vmem:[%s1290 + $0x958] sm:$0xff]
        %v5620 = vld [vmem:[%s1290 + $0x960] sm:$0xff]
        %v5621 = vld [vmem:[%s1290 + $0x968] sm:$0xff]
        %v5622 = vld [vmem:[%s1290 + $0x970] sm:$0xff]
        %v5623 = vld [vmem:[%s1290 + $0x978] sm:$0xff]
        %v5624 = vld [vmem:[%s1290 + $0x980] sm:$0xff]
        %v5625 = vld [vmem:[%s1290 + $0x988] sm:$0xff]
        %v5626 = vld [vmem:[%s1290 + $0x990] sm:$0xff]
        %v5627 = vld [vmem:[%s1290 + $0x998] sm:$0xff]
        %v5628 = vld [vmem:[%s1290 + $0x9a0] sm:$0xff]
        %v5629 = vld [vmem:[%s1290 + $0x9a8] sm:$0xff]
        %v5630 = vld [vmem:[%s1290 + $0x9b0] sm:$0xff]
        %v5631 = vld [vmem:[%s1290 + $0x9b8] sm:$0xff]
        %v5632 = vld [vmem:[%s1290 + $0x9c0] sm:$0xff]
        %v5633 = vld [vmem:[%s1290 + $0x9c8] sm:$0xff]
        %v5634 = vld [vmem:[%s1290 + $0x9d0] sm:$0xff]
        %v5635 = vld [vmem:[%s1290 + $0x9d8] sm:$0xff]
        %v5636 = vld [vmem:[%s1290 + $0x9e0] sm:$0xff]
        %v5637 = vld [vmem:[%s1290 + $0x9e8] sm:$0xff]
        %v5638 = vld [vmem:[%s1290 + $0x9f0] sm:$0xff]
        %v5639 = vld [vmem:[%s1290 + $0x9f8] sm:$0xff]
        %v5640 = vld [vmem:[%s1290 + $0xa00] sm:$0xff]
        %v5641 = vld [vmem:[%s1290 + $0xa08] sm:$0xff]
        %v5642 = vld [vmem:[%s1290 + $0xa10] sm:$0xff]
        %v5643 = vld [vmem:[%s1290 + $0xa18] sm:$0xff]
        %v5644 = vld [vmem:[%s1290 + $0xa20] sm:$0xff]
        %v5645 = vld [vmem:[%s1290 + $0xa28] sm:$0xff]
        %v5646 = vld [vmem:[%s1290 + $0xa30] sm:$0xff]
        %v5647 = vld [vmem:[%s1290 + $0xa38] sm:$0xff]
        %v5648 = vld [vmem:[%s1290 + $0xa40] sm:$0xff]
        %v5649 = vld [vmem:[%s1290 + $0xa48] sm:$0xff]
        %v5650 = vld [vmem:[%s1290 + $0xa50] sm:$0xff]
        %v5651 = vld [vmem:[%s1290 + $0xa58] sm:$0xff]
        %v5652 = vld [vmem:[%s1290 + $0xa60] sm:$0xff]
        %v5653 = vld [vmem:[%s1290 + $0xa68] sm:$0xff]
        %v5654 = vld [vmem:[%s1290 + $0xa70] sm:$0xff]
        %v5655 = vld [vmem:[%s1290 + $0xa78] sm:$0xff]
        %v5656 = vld [vmem:[%s1290 + $0xa80] sm:$0xff]
        %v5657 = vld [vmem:[%s1290 + $0xa88] sm:$0xff]
        %v5658 = vld [vmem:[%s1290 + $0xa90] sm:$0xff]
        %v5659 = vld [vmem:[%s1290 + $0xa98] sm:$0xff]
        %v5660 = vld [vmem:[%s1290 + $0xaa0] sm:$0xff]
        %v5661 = vld [vmem:[%s1290 + $0xaa8] sm:$0xff]
        %v5662 = vld [vmem:[%s1290 + $0xab0] sm:$0xff]
        %v5663 = vld [vmem:[%s1290 + $0xab8] sm:$0xff]
        %v5664 = vld [vmem:[%s1290 + $0xac0] sm:$0xff]
        %v5665 = vld [vmem:[%s1290 + $0xac8] sm:$0xff]
        %v5666 = vld [vmem:[%s1290 + $0xad0] sm:$0xff]
        %v5667 = vld [vmem:[%s1290 + $0xad8] sm:$0xff]
        %v5668 = vld [vmem:[%s1290 + $0xae0] sm:$0xff]
        %v5669 = vld [vmem:[%s1290 + $0xae8] sm:$0xff]
        %v5670 = vld [vmem:[%s1290 + $0xaf0] sm:$0xff]
        %v5671 = vld [vmem:[%s1290 + $0xaf8] sm:$0xff]
        %v5672 = vld [vmem:[%s1290 + $0xb00] sm:$0xff]
        %v5673 = vld [vmem:[%s1290 + $0xb08] sm:$0xff]
        %v5674 = vld [vmem:[%s1290 + $0xb10] sm:$0xff]
        %v5675 = vld [vmem:[%s1290 + $0xb18] sm:$0xff]
        %v5676 = vld [vmem:[%s1290 + $0xb20] sm:$0xff]
        %v5677 = vld [vmem:[%s1290 + $0xb28] sm:$0xff]
        %v5678 = vld [vmem:[%s1290 + $0xb30] sm:$0xff]
        %v5679 = vld [vmem:[%s1290 + $0xb38] sm:$0xff]
        %v5680 = vld [vmem:[%s1290 + $0xb40] sm:$0xff]
        %v5681 = vld [vmem:[%s1290 + $0xb48] sm:$0xff]
        %v5682 = vld [vmem:[%s1290 + $0xb50] sm:$0xff]
        %v5683 = vld [vmem:[%s1290 + $0xb58] sm:$0xff]
        %v5684 = vld [vmem:[%s1290 + $0xb60] sm:$0xff]
        %v5685 = vld [vmem:[%s1290 + $0xb68] sm:$0xff]
        %v5686 = vld [vmem:[%s1290 + $0xb70] sm:$0xff]
        %v5687 = vld [vmem:[%s1290 + $0xb78] sm:$0xff]
        %v5688 = vld [vmem:[%s1290 + $0xb80] sm:$0xff]
        %v5689 = vld [vmem:[%s1290 + $0xb88] sm:$0xff]
        %v5690 = vld [vmem:[%s1290 + $0xb90] sm:$0xff]
        %v5691 = vld [vmem:[%s1290 + $0xb98] sm:$0xff]
        %v5692 = vld [vmem:[%s1290 + $0xba0] sm:$0xff]
        %v5693 = vld [vmem:[%s1290 + $0xba8] sm:$0xff]
        %v5694 = vld [vmem:[%s1290 + $0xbb0] sm:$0xff]
        %v5695 = vld [vmem:[%s1290 + $0xbb8] sm:$0xff]
        %v5696 = vld [vmem:[%s1290 + $0xbc0] sm:$0xff]
        %v5697 = vld [vmem:[%s1290 + $0xbc8] sm:$0xff]
        %v5698 = vld [vmem:[%s1290 + $0xbd0] sm:$0xff]
        %v5699 = vld [vmem:[%s1290 + $0xbd8] sm:$0xff]
        %v5700 = vld [vmem:[%s1290 + $0xbe0] sm:$0xff]
        %v5701 = vld [vmem:[%s1290 + $0xbe8] sm:$0xff]
        %v5702 = vld [vmem:[%s1290 + $0xbf0] sm:$0xff]
        %v5703 = vld [vmem:[%s1290 + $0xbf8] sm:$0xff]
        %v5704 = vld [vmem:[%s1290 + $0xc00] sm:$0xff]
        %v5705 = vld [vmem:[%s1290 + $0xc08] sm:$0xff]
        %v5706 = vld [vmem:[%s1290 + $0xc10] sm:$0xff]
        %v5707 = vld [vmem:[%s1290 + $0xc18] sm:$0xff]
        %v5708 = vld [vmem:[%s1290 + $0xc20] sm:$0xff]
        %v5709 = vld [vmem:[%s1290 + $0xc28] sm:$0xff]
        %v5710 = vld [vmem:[%s1290 + $0xc30] sm:$0xff]
        %v5711 = vld [vmem:[%s1290 + $0xc38] sm:$0xff]
        %v5712 = vld [vmem:[%s1290 + $0xc40] sm:$0xff]
        %v5713 = vld [vmem:[%s1290 + $0xc48] sm:$0xff]
        %v5714 = vld [vmem:[%s1290 + $0xc50] sm:$0xff]
        %v5715 = vld [vmem:[%s1290 + $0xc58] sm:$0xff]
        %v5716 = vld [vmem:[%s1290 + $0xc60] sm:$0xff]
        %v5717 = vld [vmem:[%s1290 + $0xc68] sm:$0xff]
        %v5718 = vld [vmem:[%s1290 + $0xc70] sm:$0xff]
        %v5719 = vld [vmem:[%s1290 + $0xc78] sm:$0xff]
        %v5720 = vld [vmem:[%s1290 + $0xc80] sm:$0xff]
        %v5721 = vld [vmem:[%s1290 + $0xc88] sm:$0xff]
        %v5722 = vld [vmem:[%s1290 + $0xc90] sm:$0xff]
        %v5723 = vld [vmem:[%s1290 + $0xc98] sm:$0xff]
        %v5724 = vld [vmem:[%s1290 + $0xca0] sm:$0xff]
        %v5725 = vld [vmem:[%s1290 + $0xca8] sm:$0xff]
        %v5726 = vld [vmem:[%s1290 + $0xcb0] sm:$0xff]
        %v5727 = vld [vmem:[%s1290 + $0xcb8] sm:$0xff]
        %v5728 = vld [vmem:[%s1290 + $0xcc0] sm:$0xff]
        %v5729 = vld [vmem:[%s1290 + $0xcc8] sm:$0xff]
        %v5730 = vld [vmem:[%s1290 + $0xcd0] sm:$0xff]
        %v5731 = vld [vmem:[%s1290 + $0xcd8] sm:$0xff]
        %v5732 = vld [vmem:[%s1290 + $0xce0] sm:$0xff]
        %v5733 = vld [vmem:[%s1290 + $0xce8] sm:$0xff]
        %v5734 = vld [vmem:[%s1290 + $0xcf0] sm:$0xff]
        %v5735 = vld [vmem:[%s1290 + $0xcf8] sm:$0xff]
        %v5736 = vld [vmem:[%s1290 + $0xd00] sm:$0xff]
        %v5737 = vld [vmem:[%s1290 + $0xd08] sm:$0xff]
        %v5738 = vld [vmem:[%s1290 + $0xd10] sm:$0xff]
        %v5739 = vld [vmem:[%s1290 + $0xd18] sm:$0xff]
        %v5740 = vld [vmem:[%s1290 + $0xd20] sm:$0xff]
        %v5741 = vld [vmem:[%s1290 + $0xd28] sm:$0xff]
        %v5742 = vld [vmem:[%s1290 + $0xd30] sm:$0xff]
        %v5743 = vld [vmem:[%s1290 + $0xd38] sm:$0xff]
        %v5744 = vld [vmem:[%s1290 + $0xd40] sm:$0xff]
        %v5745 = vld [vmem:[%s1290 + $0xd48] sm:$0xff]
        %v5746 = vld [vmem:[%s1290 + $0xd50] sm:$0xff]
        %v5747 = vld [vmem:[%s1290 + $0xd58] sm:$0xff]
        %v5748 = vld [vmem:[%s1290 + $0xd60] sm:$0xff]
        %v5749 = vld [vmem:[%s1290 + $0xd68] sm:$0xff]
        %v5750 = vld [vmem:[%s1290 + $0xd70] sm:$0xff]
        %v5751 = vld [vmem:[%s1290 + $0xd78] sm:$0xff]
        %v5752 = vld [vmem:[%s1290 + $0xd80] sm:$0xff]
        %v5753 = vld [vmem:[%s1290 + $0xd88] sm:$0xff]
        %v5754 = vld [vmem:[%s1290 + $0xd90] sm:$0xff]
        %v5755 = vld [vmem:[%s1290 + $0xd98] sm:$0xff]
        %v5756 = vld [vmem:[%s1290 + $0xda0] sm:$0xff]
        %v5757 = vld [vmem:[%s1290 + $0xda8] sm:$0xff]
        %v5758 = vld [vmem:[%s1290 + $0xdb0] sm:$0xff]
        %v5759 = vld [vmem:[%s1290 + $0xdb8] sm:$0xff]
        %v5760 = vld [vmem:[%s1290 + $0xdc0] sm:$0xff]
        %v5761 = vld [vmem:[%s1290 + $0xdc8] sm:$0xff]
        %v5762 = vld [vmem:[%s1290 + $0xdd0] sm:$0xff]
        %v5763 = vld [vmem:[%s1290 + $0xdd8] sm:$0xff]
        %v5764 = vld [vmem:[%s1290 + $0xde0] sm:$0xff]
        %v5765 = vld [vmem:[%s1290 + $0xde8] sm:$0xff]
        %v5766 = vld [vmem:[%s1290 + $0xdf0] sm:$0xff]
        %v5767 = vld [vmem:[%s1290 + $0xdf8] sm:$0xff]
        %v5768 = vld [vmem:[%s1290 + $0xe00] sm:$0xff]
        %v5769 = vld [vmem:[%s1290 + $0xe08] sm:$0xff]
        %v5770 = vld [vmem:[%s1290 + $0xe10] sm:$0xff]
        %v5771 = vld [vmem:[%s1290 + $0xe18] sm:$0xff]
        %v5772 = vld [vmem:[%s1290 + $0xe20] sm:$0xff]
        %v5773 = vld [vmem:[%s1290 + $0xe28] sm:$0xff]
        %v5774 = vld [vmem:[%s1290 + $0xe30] sm:$0xff]
        %v5775 = vld [vmem:[%s1290 + $0xe38] sm:$0xff]
        %v5776 = vld [vmem:[%s1290 + $0xe40] sm:$0xff]
        %v5777 = vld [vmem:[%s1290 + $0xe48] sm:$0xff]
        %v5778 = vld [vmem:[%s1290 + $0xe50] sm:$0xff]
        %v5779 = vld [vmem:[%s1290 + $0xe58] sm:$0xff]
        %v5780 = vld [vmem:[%s1290 + $0xe60] sm:$0xff]
        %v5781 = vld [vmem:[%s1290 + $0xe68] sm:$0xff]
        %v5782 = vld [vmem:[%s1290 + $0xe70] sm:$0xff]
        %v5783 = vld [vmem:[%s1290 + $0xe78] sm:$0xff]
        %v5784 = vld [vmem:[%s1290 + $0xe80] sm:$0xff]
        %v5785 = vld [vmem:[%s1290 + $0xe88] sm:$0xff]
        %v5786 = vld [vmem:[%s1290 + $0xe90] sm:$0xff]
        %v5787 = vld [vmem:[%s1290 + $0xe98] sm:$0xff]
        %v5788 = vld [vmem:[%s1290 + $0xea0] sm:$0xff]
        %v5789 = vld [vmem:[%s1290 + $0xea8] sm:$0xff]
        %v5790 = vld [vmem:[%s1290 + $0xeb0] sm:$0xff]
        %v5791 = vld [vmem:[%s1290 + $0xeb8] sm:$0xff]
        %v5792 = vld [vmem:[%s1290 + $0xec0] sm:$0xff]
        %v5793 = vld [vmem:[%s1290 + $0xec8] sm:$0xff]
        %v5794 = vld [vmem:[%s1290 + $0xed0] sm:$0xff]
        %v5795 = vld [vmem:[%s1290 + $0xed8] sm:$0xff]
        %v5796 = vld [vmem:[%s1290 + $0xee0] sm:$0xff]
        %v5797 = vld [vmem:[%s1290 + $0xee8] sm:$0xff]
        %v5798 = vld [vmem:[%s1290 + $0xef0] sm:$0xff]
        %v5799 = vld [vmem:[%s1290 + $0xef8] sm:$0xff]
        %v5800 = vld [vmem:[%s1290 + $0xf00] sm:$0xff]
        %v5801 = vld [vmem:[%s1290 + $0xf08] sm:$0xff]
        %v5802 = vld [vmem:[%s1290 + $0xf10] sm:$0xff]
        %v5803 = vld [vmem:[%s1290 + $0xf18] sm:$0xff]
        %v5804 = vld [vmem:[%s1290 + $0xf20] sm:$0xff]
        %v5805 = vld [vmem:[%s1290 + $0xf28] sm:$0xff]
        %v5806 = vld [vmem:[%s1290 + $0xf30] sm:$0xff]
        %v5807 = vld [vmem:[%s1290 + $0xf38] sm:$0xff]
        %v5808 = vld [vmem:[%s1290 + $0xf40] sm:$0xff]
        %v5809 = vld [vmem:[%s1290 + $0xf48] sm:$0xff]
        %v5810 = vld [vmem:[%s1290 + $0xf50] sm:$0xff]
        %v5811 = vld [vmem:[%s1290 + $0xf58] sm:$0xff]
        %v5812 = vld [vmem:[%s1290 + $0xf60] sm:$0xff]
        %v5813 = vld [vmem:[%s1290 + $0xf68] sm:$0xff]
        %v5814 = vld [vmem:[%s1290 + $0xf70] sm:$0xff]
        %v5815 = vld [vmem:[%s1290 + $0xf78] sm:$0xff]
        %v5816 = vld [vmem:[%s1290 + $0xf80] sm:$0xff]
        %v5817 = vld [vmem:[%s1290 + $0xf88] sm:$0xff]
        %v5818 = vld [vmem:[%s1290 + $0xf90] sm:$0xff]
        %v5819 = vld [vmem:[%s1290 + $0xf98] sm:$0xff]
        %v5820 = vld [vmem:[%s1290 + $0xfa0] sm:$0xff]
        %v5821 = vld [vmem:[%s1290 + $0xfa8] sm:$0xff]
        %v5822 = vld [vmem:[%s1290 + $0xfb0] sm:$0xff]
        %v5823 = vld [vmem:[%s1290 + $0xfb8] sm:$0xff]
        %v5824 = vld [vmem:[%s1290 + $0xfc0] sm:$0xff]
        %v5825 = vld [vmem:[%s1290 + $0xfc8] sm:$0xff]
        %v5826 = vld [vmem:[%s1290 + $0xfd0] sm:$0xff]
        %v5827 = vld [vmem:[%s1290 + $0xfd8] sm:$0xff]
        %v5828 = vld [vmem:[%s1290 + $0xfe0] sm:$0xff]
        %v5829 = vld [vmem:[%s1290 + $0xfe8] sm:$0xff]
        %v5830 = vld [vmem:[%s1290 + $0xff0] sm:$0xff]
        %v5831 = vld [vmem:[%s1290 + $0xff8] sm:$0xff]
        %v6344 = vunpack.c.l.b16 %v5320
        %v6345 = vunpack.c.h.b16 %v5320
        %v6346 = vunpack.c.l.b16 %v5321
        %v6347 = vunpack.c.h.b16 %v5321
        %v6348 = vunpack.c.l.b16 %v5322
        %v6349 = vunpack.c.h.b16 %v5322
        %v6350 = vunpack.c.l.b16 %v5323
        %v6351 = vunpack.c.h.b16 %v5323
        %v6352 = vunpack.c.l.b16 %v5324
        %v6353 = vunpack.c.h.b16 %v5324
        %v6354 = vunpack.c.l.b16 %v5325
        %v6355 = vunpack.c.h.b16 %v5325
        %v6356 = vunpack.c.l.b16 %v5326
        %v6357 = vunpack.c.h.b16 %v5326
        %v6358 = vunpack.c.l.b16 %v5327
        %v6359 = vunpack.c.h.b16 %v5327
        %v6360 = vunpack.c.l.b16 %v5328
        %v6361 = vunpack.c.h.b16 %v5328
        %v6362 = vunpack.c.l.b16 %v5329
        %v6363 = vunpack.c.h.b16 %v5329
        %v6364 = vunpack.c.l.b16 %v5330
        %v6365 = vunpack.c.h.b16 %v5330
        %v6366 = vunpack.c.l.b16 %v5331
        %v6367 = vunpack.c.h.b16 %v5331
        %v6368 = vunpack.c.l.b16 %v5332
        %v6369 = vunpack.c.h.b16 %v5332
        %v6370 = vunpack.c.l.b16 %v5333
        %v6371 = vunpack.c.h.b16 %v5333
        %v6372 = vunpack.c.l.b16 %v5334
        %v6373 = vunpack.c.h.b16 %v5334
        %v6374 = vunpack.c.l.b16 %v5335
        %v6375 = vunpack.c.h.b16 %v5335
        %v6376 = vunpack.c.l.b16 %v5336
        %v6377 = vunpack.c.h.b16 %v5336
        %v6378 = vunpack.c.l.b16 %v5337
        %v6379 = vunpack.c.h.b16 %v5337
        %v6380 = vunpack.c.l.b16 %v5338
        %v6381 = vunpack.c.h.b16 %v5338
        %v6382 = vunpack.c.l.b16 %v5339
        %v6383 = vunpack.c.h.b16 %v5339
        %v6384 = vunpack.c.l.b16 %v5340
        %v6385 = vunpack.c.h.b16 %v5340
        %v6386 = vunpack.c.l.b16 %v5341
        %v6387 = vunpack.c.h.b16 %v5341
        %v6388 = vunpack.c.l.b16 %v5342
        %v6389 = vunpack.c.h.b16 %v5342
        %v6390 = vunpack.c.l.b16 %v5343
        %v6391 = vunpack.c.h.b16 %v5343
        %v6392 = vunpack.c.l.b16 %v5344
        %v6393 = vunpack.c.h.b16 %v5344
        %v6394 = vunpack.c.l.b16 %v5345
        %v6395 = vunpack.c.h.b16 %v5345
        %v6396 = vunpack.c.l.b16 %v5346
        %v6397 = vunpack.c.h.b16 %v5346
        %v6398 = vunpack.c.l.b16 %v5347
        %v6399 = vunpack.c.h.b16 %v5347
        %v6400 = vunpack.c.l.b16 %v5348
        %v6401 = vunpack.c.h.b16 %v5348
        %v6402 = vunpack.c.l.b16 %v5349
        %v6403 = vunpack.c.h.b16 %v5349
        %v6404 = vunpack.c.l.b16 %v5350
        %v6405 = vunpack.c.h.b16 %v5350
        %v6406 = vunpack.c.l.b16 %v5351
        %v6407 = vunpack.c.h.b16 %v5351
        %v6408 = vunpack.c.l.b16 %v5352
        %v6409 = vunpack.c.h.b16 %v5352
        %v6410 = vunpack.c.l.b16 %v5353
        %v6411 = vunpack.c.h.b16 %v5353
        %v6412 = vunpack.c.l.b16 %v5354
        %v6413 = vunpack.c.h.b16 %v5354
        %v6414 = vunpack.c.l.b16 %v5355
        %v6415 = vunpack.c.h.b16 %v5355
        %v6416 = vunpack.c.l.b16 %v5356
        %v6417 = vunpack.c.h.b16 %v5356
        %v6418 = vunpack.c.l.b16 %v5357
        %v6419 = vunpack.c.h.b16 %v5357
        %v6420 = vunpack.c.l.b16 %v5358
        %v6421 = vunpack.c.h.b16 %v5358
        %v6422 = vunpack.c.l.b16 %v5359
        %v6423 = vunpack.c.h.b16 %v5359
        %v6424 = vunpack.c.l.b16 %v5360
        %v6425 = vunpack.c.h.b16 %v5360
        %v6426 = vunpack.c.l.b16 %v5361
        %v6427 = vunpack.c.h.b16 %v5361
        %v6428 = vunpack.c.l.b16 %v5362
        %v6429 = vunpack.c.h.b16 %v5362
        %v6430 = vunpack.c.l.b16 %v5363
        %v6431 = vunpack.c.h.b16 %v5363
        %v6432 = vunpack.c.l.b16 %v5364
        %v6433 = vunpack.c.h.b16 %v5364
        %v6434 = vunpack.c.l.b16 %v5365
        %v6435 = vunpack.c.h.b16 %v5365
        %v6436 = vunpack.c.l.b16 %v5366
        %v6437 = vunpack.c.h.b16 %v5366
        %v6438 = vunpack.c.l.b16 %v5367
        %v6439 = vunpack.c.h.b16 %v5367
        %v6440 = vunpack.c.l.b16 %v5368
        %v6441 = vunpack.c.h.b16 %v5368
        %v6442 = vunpack.c.l.b16 %v5369
        %v6443 = vunpack.c.h.b16 %v5369
        %v6444 = vunpack.c.l.b16 %v5370
        %v6445 = vunpack.c.h.b16 %v5370
        %v6446 = vunpack.c.l.b16 %v5371
        %v6447 = vunpack.c.h.b16 %v5371
        %v6448 = vunpack.c.l.b16 %v5372
        %v6449 = vunpack.c.h.b16 %v5372
        %v6450 = vunpack.c.l.b16 %v5373
        %v6451 = vunpack.c.h.b16 %v5373
        %v6452 = vunpack.c.l.b16 %v5374
        %v6453 = vunpack.c.h.b16 %v5374
        %v6454 = vunpack.c.l.b16 %v5375
        %v6455 = vunpack.c.h.b16 %v5375
        %v6456 = vunpack.c.l.b16 %v5376
        %v6457 = vunpack.c.h.b16 %v5376
        %v6458 = vunpack.c.l.b16 %v5377
        %v6459 = vunpack.c.h.b16 %v5377
        %v6460 = vunpack.c.l.b16 %v5378
        %v6461 = vunpack.c.h.b16 %v5378
        %v6462 = vunpack.c.l.b16 %v5379
        %v6463 = vunpack.c.h.b16 %v5379
        %v6464 = vunpack.c.l.b16 %v5380
        %v6465 = vunpack.c.h.b16 %v5380
        %v6466 = vunpack.c.l.b16 %v5381
        %v6467 = vunpack.c.h.b16 %v5381
        %v6468 = vunpack.c.l.b16 %v5382
        %v6469 = vunpack.c.h.b16 %v5382
        %v6470 = vunpack.c.l.b16 %v5383
        %v6471 = vunpack.c.h.b16 %v5383
        %v6472 = vunpack.c.l.b16 %v5384
        %v6473 = vunpack.c.h.b16 %v5384
        %v6474 = vunpack.c.l.b16 %v5385
        %v6475 = vunpack.c.h.b16 %v5385
        %v6476 = vunpack.c.l.b16 %v5386
        %v6477 = vunpack.c.h.b16 %v5386
        %v6478 = vunpack.c.l.b16 %v5387
        %v6479 = vunpack.c.h.b16 %v5387
        %v6480 = vunpack.c.l.b16 %v5388
        %v6481 = vunpack.c.h.b16 %v5388
        %v6482 = vunpack.c.l.b16 %v5389
        %v6483 = vunpack.c.h.b16 %v5389
        %v6484 = vunpack.c.l.b16 %v5390
        %v6485 = vunpack.c.h.b16 %v5390
        %v6486 = vunpack.c.l.b16 %v5391
        %v6487 = vunpack.c.h.b16 %v5391
        %v6488 = vunpack.c.l.b16 %v5392
        %v6489 = vunpack.c.h.b16 %v5392
        %v6490 = vunpack.c.l.b16 %v5393
        %v6491 = vunpack.c.h.b16 %v5393
        %v6492 = vunpack.c.l.b16 %v5394
        %v6493 = vunpack.c.h.b16 %v5394
        %v6494 = vunpack.c.l.b16 %v5395
        %v6495 = vunpack.c.h.b16 %v5395
        %v6496 = vunpack.c.l.b16 %v5396
        %v6497 = vunpack.c.h.b16 %v5396
        %v6498 = vunpack.c.l.b16 %v5397
        %v6499 = vunpack.c.h.b16 %v5397
        %v6500 = vunpack.c.l.b16 %v5398
        %v6501 = vunpack.c.h.b16 %v5398
        %v6502 = vunpack.c.l.b16 %v5399
        %v6503 = vunpack.c.h.b16 %v5399
        %v6504 = vunpack.c.l.b16 %v5400
        %v6505 = vunpack.c.h.b16 %v5400
        %v6506 = vunpack.c.l.b16 %v5401
        %v6507 = vunpack.c.h.b16 %v5401
        %v6508 = vunpack.c.l.b16 %v5402
        %v6509 = vunpack.c.h.b16 %v5402
        %v6510 = vunpack.c.l.b16 %v5403
        %v6511 = vunpack.c.h.b16 %v5403
        %v6512 = vunpack.c.l.b16 %v5404
        %v6513 = vunpack.c.h.b16 %v5404
        %v6514 = vunpack.c.l.b16 %v5405
        %v6515 = vunpack.c.h.b16 %v5405
        %v6516 = vunpack.c.l.b16 %v5406
        %v6517 = vunpack.c.h.b16 %v5406
        %v6518 = vunpack.c.l.b16 %v5407
        %v6519 = vunpack.c.h.b16 %v5407
        %v6520 = vunpack.c.l.b16 %v5408
        %v6521 = vunpack.c.h.b16 %v5408
        %v6522 = vunpack.c.l.b16 %v5409
        %v6523 = vunpack.c.h.b16 %v5409
        %v6524 = vunpack.c.l.b16 %v5410
        %v6525 = vunpack.c.h.b16 %v5410
        %v6526 = vunpack.c.l.b16 %v5411
        %v6527 = vunpack.c.h.b16 %v5411
        %v6528 = vunpack.c.l.b16 %v5412
        %v6529 = vunpack.c.h.b16 %v5412
        %v6530 = vunpack.c.l.b16 %v5413
        %v6531 = vunpack.c.h.b16 %v5413
        %v6532 = vunpack.c.l.b16 %v5414
        %v6533 = vunpack.c.h.b16 %v5414
        %v6534 = vunpack.c.l.b16 %v5415
        %v6535 = vunpack.c.h.b16 %v5415
        %v6536 = vunpack.c.l.b16 %v5416
        %v6537 = vunpack.c.h.b16 %v5416
        %v6538 = vunpack.c.l.b16 %v5417
        %v6539 = vunpack.c.h.b16 %v5417
        %v6540 = vunpack.c.l.b16 %v5418
        %v6541 = vunpack.c.h.b16 %v5418
        %v6542 = vunpack.c.l.b16 %v5419
        %v6543 = vunpack.c.h.b16 %v5419
        %v6544 = vunpack.c.l.b16 %v5420
        %v6545 = vunpack.c.h.b16 %v5420
        %v6546 = vunpack.c.l.b16 %v5421
        %v6547 = vunpack.c.h.b16 %v5421
        %v6548 = vunpack.c.l.b16 %v5422
        %v6549 = vunpack.c.h.b16 %v5422
        %v6550 = vunpack.c.l.b16 %v5423
        %v6551 = vunpack.c.h.b16 %v5423
        %v6552 = vunpack.c.l.b16 %v5424
        %v6553 = vunpack.c.h.b16 %v5424
        %v6554 = vunpack.c.l.b16 %v5425
        %v6555 = vunpack.c.h.b16 %v5425
        %v6556 = vunpack.c.l.b16 %v5426
        %v6557 = vunpack.c.h.b16 %v5426
        %v6558 = vunpack.c.l.b16 %v5427
        %v6559 = vunpack.c.h.b16 %v5427
        %v6560 = vunpack.c.l.b16 %v5428
        %v6561 = vunpack.c.h.b16 %v5428
        %v6562 = vunpack.c.l.b16 %v5429
        %v6563 = vunpack.c.h.b16 %v5429
        %v6564 = vunpack.c.l.b16 %v5430
        %v6565 = vunpack.c.h.b16 %v5430
        %v6566 = vunpack.c.l.b16 %v5431
        %v6567 = vunpack.c.h.b16 %v5431
        %v6568 = vunpack.c.l.b16 %v5432
        %v6569 = vunpack.c.h.b16 %v5432
        %v6570 = vunpack.c.l.b16 %v5433
        %v6571 = vunpack.c.h.b16 %v5433
        %v6572 = vunpack.c.l.b16 %v5434
        %v6573 = vunpack.c.h.b16 %v5434
        %v6574 = vunpack.c.l.b16 %v5435
        %v6575 = vunpack.c.h.b16 %v5435
        %v6576 = vunpack.c.l.b16 %v5436
        %v6577 = vunpack.c.h.b16 %v5436
        %v6578 = vunpack.c.l.b16 %v5437
        %v6579 = vunpack.c.h.b16 %v5437
        %v6580 = vunpack.c.l.b16 %v5438
        %v6581 = vunpack.c.h.b16 %v5438
        %v6582 = vunpack.c.l.b16 %v5439
        %v6583 = vunpack.c.h.b16 %v5439
        %v6584 = vunpack.c.l.b16 %v5440
        %v6585 = vunpack.c.h.b16 %v5440
        %v6586 = vunpack.c.l.b16 %v5441
        %v6587 = vunpack.c.h.b16 %v5441
        %v6588 = vunpack.c.l.b16 %v5442
        %v6589 = vunpack.c.h.b16 %v5442
        %v6590 = vunpack.c.l.b16 %v5443
        %v6591 = vunpack.c.h.b16 %v5443
        %v6592 = vunpack.c.l.b16 %v5444
        %v6593 = vunpack.c.h.b16 %v5444
        %v6594 = vunpack.c.l.b16 %v5445
        %v6595 = vunpack.c.h.b16 %v5445
        %v6596 = vunpack.c.l.b16 %v5446
        %v6597 = vunpack.c.h.b16 %v5446
        %v6598 = vunpack.c.l.b16 %v5447
        %v6599 = vunpack.c.h.b16 %v5447
        %v6600 = vunpack.c.l.b16 %v5448
        %v6601 = vunpack.c.h.b16 %v5448
        %v6602 = vunpack.c.l.b16 %v5449
        %v6603 = vunpack.c.h.b16 %v5449
        %v6604 = vunpack.c.l.b16 %v5450
        %v6605 = vunpack.c.h.b16 %v5450
        %v6606 = vunpack.c.l.b16 %v5451
        %v6607 = vunpack.c.h.b16 %v5451
        %v6608 = vunpack.c.l.b16 %v5452
        %v6609 = vunpack.c.h.b16 %v5452
        %v6610 = vunpack.c.l.b16 %v5453
        %v6611 = vunpack.c.h.b16 %v5453
        %v6612 = vunpack.c.l.b16 %v5454
        %v6613 = vunpack.c.h.b16 %v5454
        %v6614 = vunpack.c.l.b16 %v5455
        %v6615 = vunpack.c.h.b16 %v5455
        %v6616 = vunpack.c.l.b16 %v5456
        %v6617 = vunpack.c.h.b16 %v5456
        %v6618 = vunpack.c.l.b16 %v5457
        %v6619 = vunpack.c.h.b16 %v5457
        %v6620 = vunpack.c.l.b16 %v5458
        %v6621 = vunpack.c.h.b16 %v5458
        %v6622 = vunpack.c.l.b16 %v5459
        %v6623 = vunpack.c.h.b16 %v5459
        %v6624 = vunpack.c.l.b16 %v5460
        %v6625 = vunpack.c.h.b16 %v5460
        %v6626 = vunpack.c.l.b16 %v5461
        %v6627 = vunpack.c.h.b16 %v5461
        %v6628 = vunpack.c.l.b16 %v5462
        %v6629 = vunpack.c.h.b16 %v5462
        %v6630 = vunpack.c.l.b16 %v5463
        %v6631 = vunpack.c.h.b16 %v5463
        %v6632 = vunpack.c.l.b16 %v5464
        %v6633 = vunpack.c.h.b16 %v5464
        %v6634 = vunpack.c.l.b16 %v5465
        %v6635 = vunpack.c.h.b16 %v5465
        %v6636 = vunpack.c.l.b16 %v5466
        %v6637 = vunpack.c.h.b16 %v5466
        %v6638 = vunpack.c.l.b16 %v5467
        %v6639 = vunpack.c.h.b16 %v5467
        %v6640 = vunpack.c.l.b16 %v5468
        %v6641 = vunpack.c.h.b16 %v5468
        %v6642 = vunpack.c.l.b16 %v5469
        %v6643 = vunpack.c.h.b16 %v5469
        %v6644 = vunpack.c.l.b16 %v5470
        %v6645 = vunpack.c.h.b16 %v5470
        %v6646 = vunpack.c.l.b16 %v5471
        %v6647 = vunpack.c.h.b16 %v5471
        %v6648 = vunpack.c.l.b16 %v5472
        %v6649 = vunpack.c.h.b16 %v5472
        %v6650 = vunpack.c.l.b16 %v5473
        %v6651 = vunpack.c.h.b16 %v5473
        %v6652 = vunpack.c.l.b16 %v5474
        %v6653 = vunpack.c.h.b16 %v5474
        %v6654 = vunpack.c.l.b16 %v5475
        %v6655 = vunpack.c.h.b16 %v5475
        %v6656 = vunpack.c.l.b16 %v5476
        %v6657 = vunpack.c.h.b16 %v5476
        %v6658 = vunpack.c.l.b16 %v5477
        %v6659 = vunpack.c.h.b16 %v5477
        %v6660 = vunpack.c.l.b16 %v5478
        %v6661 = vunpack.c.h.b16 %v5478
        %v6662 = vunpack.c.l.b16 %v5479
        %v6663 = vunpack.c.h.b16 %v5479
        %v6664 = vunpack.c.l.b16 %v5480
        %v6665 = vunpack.c.h.b16 %v5480
        %v6666 = vunpack.c.l.b16 %v5481
        %v6667 = vunpack.c.h.b16 %v5481
        %v6668 = vunpack.c.l.b16 %v5482
        %v6669 = vunpack.c.h.b16 %v5482
        %v6670 = vunpack.c.l.b16 %v5483
        %v6671 = vunpack.c.h.b16 %v5483
        %v6672 = vunpack.c.l.b16 %v5484
        %v6673 = vunpack.c.h.b16 %v5484
        %v6674 = vunpack.c.l.b16 %v5485
        %v6675 = vunpack.c.h.b16 %v5485
        %v6676 = vunpack.c.l.b16 %v5486
        %v6677 = vunpack.c.h.b16 %v5486
        %v6678 = vunpack.c.l.b16 %v5487
        %v6679 = vunpack.c.h.b16 %v5487
        %v6680 = vunpack.c.l.b16 %v5488
        %v6681 = vunpack.c.h.b16 %v5488
        %v6682 = vunpack.c.l.b16 %v5489
        %v6683 = vunpack.c.h.b16 %v5489
        %v6684 = vunpack.c.l.b16 %v5490
        %v6685 = vunpack.c.h.b16 %v5490
        %v6686 = vunpack.c.l.b16 %v5491
        %v6687 = vunpack.c.h.b16 %v5491
        %v6688 = vunpack.c.l.b16 %v5492
        %v6689 = vunpack.c.h.b16 %v5492
        %v6690 = vunpack.c.l.b16 %v5493
        %v6691 = vunpack.c.h.b16 %v5493
        %v6692 = vunpack.c.l.b16 %v5494
        %v6693 = vunpack.c.h.b16 %v5494
        %v6694 = vunpack.c.l.b16 %v5495
        %v6695 = vunpack.c.h.b16 %v5495
        %v6696 = vunpack.c.l.b16 %v5496
        %v6697 = vunpack.c.h.b16 %v5496
        %v6698 = vunpack.c.l.b16 %v5497
        %v6699 = vunpack.c.h.b16 %v5497
        %v6700 = vunpack.c.l.b16 %v5498
        %v6701 = vunpack.c.h.b16 %v5498
        %v6702 = vunpack.c.l.b16 %v5499
        %v6703 = vunpack.c.h.b16 %v5499
        %v6704 = vunpack.c.l.b16 %v5500
        %v6705 = vunpack.c.h.b16 %v5500
        %v6706 = vunpack.c.l.b16 %v5501
        %v6707 = vunpack.c.h.b16 %v5501
        %v6708 = vunpack.c.l.b16 %v5502
        %v6709 = vunpack.c.h.b16 %v5502
        %v6710 = vunpack.c.l.b16 %v5503
        %v6711 = vunpack.c.h.b16 %v5503
        %v6712 = vunpack.c.l.b16 %v5504
        %v6713 = vunpack.c.h.b16 %v5504
        %v6714 = vunpack.c.l.b16 %v5505
        %v6715 = vunpack.c.h.b16 %v5505
        %v6716 = vunpack.c.l.b16 %v5506
        %v6717 = vunpack.c.h.b16 %v5506
        %v6718 = vunpack.c.l.b16 %v5507
        %v6719 = vunpack.c.h.b16 %v5507
        %v6720 = vunpack.c.l.b16 %v5508
        %v6721 = vunpack.c.h.b16 %v5508
        %v6722 = vunpack.c.l.b16 %v5509
        %v6723 = vunpack.c.h.b16 %v5509
        %v6724 = vunpack.c.l.b16 %v5510
        %v6725 = vunpack.c.h.b16 %v5510
        %v6726 = vunpack.c.l.b16 %v5511
        %v6727 = vunpack.c.h.b16 %v5511
        %v6728 = vunpack.c.l.b16 %v5512
        %v6729 = vunpack.c.h.b16 %v5512
        %v6730 = vunpack.c.l.b16 %v5513
        %v6731 = vunpack.c.h.b16 %v5513
        %v6732 = vunpack.c.l.b16 %v5514
        %v6733 = vunpack.c.h.b16 %v5514
        %v6734 = vunpack.c.l.b16 %v5515
        %v6735 = vunpack.c.h.b16 %v5515
        %v6736 = vunpack.c.l.b16 %v5516
        %v6737 = vunpack.c.h.b16 %v5516
        %v6738 = vunpack.c.l.b16 %v5517
        %v6739 = vunpack.c.h.b16 %v5517
        %v6740 = vunpack.c.l.b16 %v5518
        %v6741 = vunpack.c.h.b16 %v5518
        %v6742 = vunpack.c.l.b16 %v5519
        %v6743 = vunpack.c.h.b16 %v5519
        %v6744 = vunpack.c.l.b16 %v5520
        %v6745 = vunpack.c.h.b16 %v5520
        %v6746 = vunpack.c.l.b16 %v5521
        %v6747 = vunpack.c.h.b16 %v5521
        %v6748 = vunpack.c.l.b16 %v5522
        %v6749 = vunpack.c.h.b16 %v5522
        %v6750 = vunpack.c.l.b16 %v5523
        %v6751 = vunpack.c.h.b16 %v5523
        %v6752 = vunpack.c.l.b16 %v5524
        %v6753 = vunpack.c.h.b16 %v5524
        %v6754 = vunpack.c.l.b16 %v5525
        %v6755 = vunpack.c.h.b16 %v5525
        %v6756 = vunpack.c.l.b16 %v5526
        %v6757 = vunpack.c.h.b16 %v5526
        %v6758 = vunpack.c.l.b16 %v5527
        %v6759 = vunpack.c.h.b16 %v5527
        %v6760 = vunpack.c.l.b16 %v5528
        %v6761 = vunpack.c.h.b16 %v5528
        %v6762 = vunpack.c.l.b16 %v5529
        %v6763 = vunpack.c.h.b16 %v5529
        %v6764 = vunpack.c.l.b16 %v5530
        %v6765 = vunpack.c.h.b16 %v5530
        %v6766 = vunpack.c.l.b16 %v5531
        %v6767 = vunpack.c.h.b16 %v5531
        %v6768 = vunpack.c.l.b16 %v5532
        %v6769 = vunpack.c.h.b16 %v5532
        %v6770 = vunpack.c.l.b16 %v5533
        %v6771 = vunpack.c.h.b16 %v5533
        %v6772 = vunpack.c.l.b16 %v5534
        %v6773 = vunpack.c.h.b16 %v5534
        %v6774 = vunpack.c.l.b16 %v5535
        %v6775 = vunpack.c.h.b16 %v5535
        %v6776 = vunpack.c.l.b16 %v5536
        %v6777 = vunpack.c.h.b16 %v5536
        %v6778 = vunpack.c.l.b16 %v5537
        %v6779 = vunpack.c.h.b16 %v5537
        %v6780 = vunpack.c.l.b16 %v5538
        %v6781 = vunpack.c.h.b16 %v5538
        %v6782 = vunpack.c.l.b16 %v5539
        %v6783 = vunpack.c.h.b16 %v5539
        %v6784 = vunpack.c.l.b16 %v5540
        %v6785 = vunpack.c.h.b16 %v5540
        %v6786 = vunpack.c.l.b16 %v5541
        %v6787 = vunpack.c.h.b16 %v5541
        %v6788 = vunpack.c.l.b16 %v5542
        %v6789 = vunpack.c.h.b16 %v5542
        %v6790 = vunpack.c.l.b16 %v5543
        %v6791 = vunpack.c.h.b16 %v5543
        %v6792 = vunpack.c.l.b16 %v5544
        %v6793 = vunpack.c.h.b16 %v5544
        %v6794 = vunpack.c.l.b16 %v5545
        %v6795 = vunpack.c.h.b16 %v5545
        %v6796 = vunpack.c.l.b16 %v5546
        %v6797 = vunpack.c.h.b16 %v5546
        %v6798 = vunpack.c.l.b16 %v5547
        %v6799 = vunpack.c.h.b16 %v5547
        %v6800 = vunpack.c.l.b16 %v5548
        %v6801 = vunpack.c.h.b16 %v5548
        %v6802 = vunpack.c.l.b16 %v5549
        %v6803 = vunpack.c.h.b16 %v5549
        %v6804 = vunpack.c.l.b16 %v5550
        %v6805 = vunpack.c.h.b16 %v5550
        %v6806 = vunpack.c.l.b16 %v5551
        %v6807 = vunpack.c.h.b16 %v5551
        %v6808 = vunpack.c.l.b16 %v5552
        %v6809 = vunpack.c.h.b16 %v5552
        %v6810 = vunpack.c.l.b16 %v5553
        %v6811 = vunpack.c.h.b16 %v5553
        %v6812 = vunpack.c.l.b16 %v5554
        %v6813 = vunpack.c.h.b16 %v5554
        %v6814 = vunpack.c.l.b16 %v5555
        %v6815 = vunpack.c.h.b16 %v5555
        %v6816 = vunpack.c.l.b16 %v5556
        %v6817 = vunpack.c.h.b16 %v5556
        %v6818 = vunpack.c.l.b16 %v5557
        %v6819 = vunpack.c.h.b16 %v5557
        %v6820 = vunpack.c.l.b16 %v5558
        %v6821 = vunpack.c.h.b16 %v5558
        %v6822 = vunpack.c.l.b16 %v5559
        %v6823 = vunpack.c.h.b16 %v5559
        %v6824 = vunpack.c.l.b16 %v5560
        %v6825 = vunpack.c.h.b16 %v5560
        %v6826 = vunpack.c.l.b16 %v5561
        %v6827 = vunpack.c.h.b16 %v5561
        %v6828 = vunpack.c.l.b16 %v5562
        %v6829 = vunpack.c.h.b16 %v5562
        %v6830 = vunpack.c.l.b16 %v5563
        %v6831 = vunpack.c.h.b16 %v5563
        %v6832 = vunpack.c.l.b16 %v5564
        %v6833 = vunpack.c.h.b16 %v5564
        %v6834 = vunpack.c.l.b16 %v5565
        %v6835 = vunpack.c.h.b16 %v5565
        %v6836 = vunpack.c.l.b16 %v5566
        %v6837 = vunpack.c.h.b16 %v5566
        %v6838 = vunpack.c.l.b16 %v5567
        %v6839 = vunpack.c.h.b16 %v5567
        %v6840 = vunpack.c.l.b16 %v5568
        %v6841 = vunpack.c.h.b16 %v5568
        %v6842 = vunpack.c.l.b16 %v5569
        %v6843 = vunpack.c.h.b16 %v5569
        %v6844 = vunpack.c.l.b16 %v5570
        %v6845 = vunpack.c.h.b16 %v5570
        %v6846 = vunpack.c.l.b16 %v5571
        %v6847 = vunpack.c.h.b16 %v5571
        %v6848 = vunpack.c.l.b16 %v5572
        %v6849 = vunpack.c.h.b16 %v5572
        %v6850 = vunpack.c.l.b16 %v5573
        %v6851 = vunpack.c.h.b16 %v5573
        %v6852 = vunpack.c.l.b16 %v5574
        %v6853 = vunpack.c.h.b16 %v5574
        %v6854 = vunpack.c.l.b16 %v5575
        %v6855 = vunpack.c.h.b16 %v5575
        %v6856 = vunpack.c.l.b16 %v5576
        %v6857 = vunpack.c.h.b16 %v5576
        %v6858 = vunpack.c.l.b16 %v5577
        %v6859 = vunpack.c.h.b16 %v5577
        %v6860 = vunpack.c.l.b16 %v5578
        %v6861 = vunpack.c.h.b16 %v5578
        %v6862 = vunpack.c.l.b16 %v5579
        %v6863 = vunpack.c.h.b16 %v5579
        %v6864 = vunpack.c.l.b16 %v5580
        %v6865 = vunpack.c.h.b16 %v5580
        %v6866 = vunpack.c.l.b16 %v5581
        %v6867 = vunpack.c.h.b16 %v5581
        %v6868 = vunpack.c.l.b16 %v5582
        %v6869 = vunpack.c.h.b16 %v5582
        %v6870 = vunpack.c.l.b16 %v5583
        %v6871 = vunpack.c.h.b16 %v5583
        %v6872 = vunpack.c.l.b16 %v5584
        %v6873 = vunpack.c.h.b16 %v5584
        %v6874 = vunpack.c.l.b16 %v5585
        %v6875 = vunpack.c.h.b16 %v5585
        %v6876 = vunpack.c.l.b16 %v5586
        %v6877 = vunpack.c.h.b16 %v5586
        %v6878 = vunpack.c.l.b16 %v5587
        %v6879 = vunpack.c.h.b16 %v5587
        %v6880 = vunpack.c.l.b16 %v5588
        %v6881 = vunpack.c.h.b16 %v5588
        %v6882 = vunpack.c.l.b16 %v5589
        %v6883 = vunpack.c.h.b16 %v5589
        %v6884 = vunpack.c.l.b16 %v5590
        %v6885 = vunpack.c.h.b16 %v5590
        %v6886 = vunpack.c.l.b16 %v5591
        %v6887 = vunpack.c.h.b16 %v5591
        %v6888 = vunpack.c.l.b16 %v5592
        %v6889 = vunpack.c.h.b16 %v5592
        %v6890 = vunpack.c.l.b16 %v5593
        %v6891 = vunpack.c.h.b16 %v5593
        %v6892 = vunpack.c.l.b16 %v5594
        %v6893 = vunpack.c.h.b16 %v5594
        %v6894 = vunpack.c.l.b16 %v5595
        %v6895 = vunpack.c.h.b16 %v5595
        %v6896 = vunpack.c.l.b16 %v5596
        %v6897 = vunpack.c.h.b16 %v5596
        %v6898 = vunpack.c.l.b16 %v5597
        %v6899 = vunpack.c.h.b16 %v5597
        %v6900 = vunpack.c.l.b16 %v5598
        %v6901 = vunpack.c.h.b16 %v5598
        %v6902 = vunpack.c.l.b16 %v5599
        %v6903 = vunpack.c.h.b16 %v5599
        %v6904 = vunpack.c.l.b16 %v5600
        %v6905 = vunpack.c.h.b16 %v5600
        %v6906 = vunpack.c.l.b16 %v5601
        %v6907 = vunpack.c.h.b16 %v5601
        %v6908 = vunpack.c.l.b16 %v5602
        %v6909 = vunpack.c.h.b16 %v5602
        %v6910 = vunpack.c.l.b16 %v5603
        %v6911 = vunpack.c.h.b16 %v5603
        %v6912 = vunpack.c.l.b16 %v5604
        %v6913 = vunpack.c.h.b16 %v5604
        %v6914 = vunpack.c.l.b16 %v5605
        %v6915 = vunpack.c.h.b16 %v5605
        %v6916 = vunpack.c.l.b16 %v5606
        %v6917 = vunpack.c.h.b16 %v5606
        %v6918 = vunpack.c.l.b16 %v5607
        %v6919 = vunpack.c.h.b16 %v5607
        %v6920 = vunpack.c.l.b16 %v5608
        %v6921 = vunpack.c.h.b16 %v5608
        %v6922 = vunpack.c.l.b16 %v5609
        %v6923 = vunpack.c.h.b16 %v5609
        %v6924 = vunpack.c.l.b16 %v5610
        %v6925 = vunpack.c.h.b16 %v5610
        %v6926 = vunpack.c.l.b16 %v5611
        %v6927 = vunpack.c.h.b16 %v5611
        %v6928 = vunpack.c.l.b16 %v5612
        %v6929 = vunpack.c.h.b16 %v5612
        %v6930 = vunpack.c.l.b16 %v5613
        %v6931 = vunpack.c.h.b16 %v5613
        %v6932 = vunpack.c.l.b16 %v5614
        %v6933 = vunpack.c.h.b16 %v5614
        %v6934 = vunpack.c.l.b16 %v5615
        %v6935 = vunpack.c.h.b16 %v5615
        %v6936 = vunpack.c.l.b16 %v5616
        %v6937 = vunpack.c.h.b16 %v5616
        %v6938 = vunpack.c.l.b16 %v5617
        %v6939 = vunpack.c.h.b16 %v5617
        %v6940 = vunpack.c.l.b16 %v5618
        %v6941 = vunpack.c.h.b16 %v5618
        %v6942 = vunpack.c.l.b16 %v5619
        %v6943 = vunpack.c.h.b16 %v5619
        %v6944 = vunpack.c.l.b16 %v5620
        %v6945 = vunpack.c.h.b16 %v5620
        %v6946 = vunpack.c.l.b16 %v5621
        %v6947 = vunpack.c.h.b16 %v5621
        %v6948 = vunpack.c.l.b16 %v5622
        %v6949 = vunpack.c.h.b16 %v5622
        %v6950 = vunpack.c.l.b16 %v5623
        %v6951 = vunpack.c.h.b16 %v5623
        %v6952 = vunpack.c.l.b16 %v5624
        %v6953 = vunpack.c.h.b16 %v5624
        %v6954 = vunpack.c.l.b16 %v5625
        %v6955 = vunpack.c.h.b16 %v5625
        %v6956 = vunpack.c.l.b16 %v5626
        %v6957 = vunpack.c.h.b16 %v5626
        %v6958 = vunpack.c.l.b16 %v5627
        %v6959 = vunpack.c.h.b16 %v5627
        %v6960 = vunpack.c.l.b16 %v5628
        %v6961 = vunpack.c.h.b16 %v5628
        %v6962 = vunpack.c.l.b16 %v5629
        %v6963 = vunpack.c.h.b16 %v5629
        %v6964 = vunpack.c.l.b16 %v5630
        %v6965 = vunpack.c.h.b16 %v5630
        %v6966 = vunpack.c.l.b16 %v5631
        %v6967 = vunpack.c.h.b16 %v5631
        %v6968 = vunpack.c.l.b16 %v5632
        %v6969 = vunpack.c.h.b16 %v5632
        %v6970 = vunpack.c.l.b16 %v5633
        %v6971 = vunpack.c.h.b16 %v5633
        %v6972 = vunpack.c.l.b16 %v5634
        %v6973 = vunpack.c.h.b16 %v5634
        %v6974 = vunpack.c.l.b16 %v5635
        %v6975 = vunpack.c.h.b16 %v5635
        %v6976 = vunpack.c.l.b16 %v5636
        %v6977 = vunpack.c.h.b16 %v5636
        %v6978 = vunpack.c.l.b16 %v5637
        %v6979 = vunpack.c.h.b16 %v5637
        %v6980 = vunpack.c.l.b16 %v5638
        %v6981 = vunpack.c.h.b16 %v5638
        %v6982 = vunpack.c.l.b16 %v5639
        %v6983 = vunpack.c.h.b16 %v5639
        %v6984 = vunpack.c.l.b16 %v5640
        %v6985 = vunpack.c.h.b16 %v5640
        %v6986 = vunpack.c.l.b16 %v5641
        %v6987 = vunpack.c.h.b16 %v5641
        %v6988 = vunpack.c.l.b16 %v5642
        %v6989 = vunpack.c.h.b16 %v5642
        %v6990 = vunpack.c.l.b16 %v5643
        %v6991 = vunpack.c.h.b16 %v5643
        %v6992 = vunpack.c.l.b16 %v5644
        %v6993 = vunpack.c.h.b16 %v5644
        %v6994 = vunpack.c.l.b16 %v5645
        %v6995 = vunpack.c.h.b16 %v5645
        %v6996 = vunpack.c.l.b16 %v5646
        %v6997 = vunpack.c.h.b16 %v5646
        %v6998 = vunpack.c.l.b16 %v5647
        %v6999 = vunpack.c.h.b16 %v5647
        %v7000 = vunpack.c.l.b16 %v5648
        %v7001 = vunpack.c.h.b16 %v5648
        %v7002 = vunpack.c.l.b16 %v5649
        %v7003 = vunpack.c.h.b16 %v5649
        %v7004 = vunpack.c.l.b16 %v5650
        %v7005 = vunpack.c.h.b16 %v5650
        %v7006 = vunpack.c.l.b16 %v5651
        %v7007 = vunpack.c.h.b16 %v5651
        %v7008 = vunpack.c.l.b16 %v5652
        %v7009 = vunpack.c.h.b16 %v5652
        %v7010 = vunpack.c.l.b16 %v5653
        %v7011 = vunpack.c.h.b16 %v5653
        %v7012 = vunpack.c.l.b16 %v5654
        %v7013 = vunpack.c.h.b16 %v5654
        %v7014 = vunpack.c.l.b16 %v5655
        %v7015 = vunpack.c.h.b16 %v5655
        %v7016 = vunpack.c.l.b16 %v5656
        %v7017 = vunpack.c.h.b16 %v5656
        %v7018 = vunpack.c.l.b16 %v5657
        %v7019 = vunpack.c.h.b16 %v5657
        %v7020 = vunpack.c.l.b16 %v5658
        %v7021 = vunpack.c.h.b16 %v5658
        %v7022 = vunpack.c.l.b16 %v5659
        %v7023 = vunpack.c.h.b16 %v5659
        %v7024 = vunpack.c.l.b16 %v5660
        %v7025 = vunpack.c.h.b16 %v5660
        %v7026 = vunpack.c.l.b16 %v5661
        %v7027 = vunpack.c.h.b16 %v5661
        %v7028 = vunpack.c.l.b16 %v5662
        %v7029 = vunpack.c.h.b16 %v5662
        %v7030 = vunpack.c.l.b16 %v5663
        %v7031 = vunpack.c.h.b16 %v5663
        %v7032 = vunpack.c.l.b16 %v5664
        %v7033 = vunpack.c.h.b16 %v5664
        %v7034 = vunpack.c.l.b16 %v5665
        %v7035 = vunpack.c.h.b16 %v5665
        %v7036 = vunpack.c.l.b16 %v5666
        %v7037 = vunpack.c.h.b16 %v5666
        %v7038 = vunpack.c.l.b16 %v5667
        %v7039 = vunpack.c.h.b16 %v5667
        %v7040 = vunpack.c.l.b16 %v5668
        %v7041 = vunpack.c.h.b16 %v5668
        %v7042 = vunpack.c.l.b16 %v5669
        %v7043 = vunpack.c.h.b16 %v5669
        %v7044 = vunpack.c.l.b16 %v5670
        %v7045 = vunpack.c.h.b16 %v5670
        %v7046 = vunpack.c.l.b16 %v5671
        %v7047 = vunpack.c.h.b16 %v5671
        %v7048 = vunpack.c.l.b16 %v5672
        %v7049 = vunpack.c.h.b16 %v5672
        %v7050 = vunpack.c.l.b16 %v5673
        %v7051 = vunpack.c.h.b16 %v5673
        %v7052 = vunpack.c.l.b16 %v5674
        %v7053 = vunpack.c.h.b16 %v5674
        %v7054 = vunpack.c.l.b16 %v5675
        %v7055 = vunpack.c.h.b16 %v5675
        %v7056 = vunpack.c.l.b16 %v5676
        %v7057 = vunpack.c.h.b16 %v5676
        %v7058 = vunpack.c.l.b16 %v5677
        %v7059 = vunpack.c.h.b16 %v5677
        %v7060 = vunpack.c.l.b16 %v5678
        %v7061 = vunpack.c.h.b16 %v5678
        %v7062 = vunpack.c.l.b16 %v5679
        %v7063 = vunpack.c.h.b16 %v5679
        %v7064 = vunpack.c.l.b16 %v5680
        %v7065 = vunpack.c.h.b16 %v5680
        %v7066 = vunpack.c.l.b16 %v5681
        %v7067 = vunpack.c.h.b16 %v5681
        %v7068 = vunpack.c.l.b16 %v5682
        %v7069 = vunpack.c.h.b16 %v5682
        %v7070 = vunpack.c.l.b16 %v5683
        %v7071 = vunpack.c.h.b16 %v5683
        %v7072 = vunpack.c.l.b16 %v5684
        %v7073 = vunpack.c.h.b16 %v5684
        %v7074 = vunpack.c.l.b16 %v5685
        %v7075 = vunpack.c.h.b16 %v5685
        %v7076 = vunpack.c.l.b16 %v5686
        %v7077 = vunpack.c.h.b16 %v5686
        %v7078 = vunpack.c.l.b16 %v5687
        %v7079 = vunpack.c.h.b16 %v5687
        %v7080 = vunpack.c.l.b16 %v5688
        %v7081 = vunpack.c.h.b16 %v5688
        %v7082 = vunpack.c.l.b16 %v5689
        %v7083 = vunpack.c.h.b16 %v5689
        %v7084 = vunpack.c.l.b16 %v5690
        %v7085 = vunpack.c.h.b16 %v5690
        %v7086 = vunpack.c.l.b16 %v5691
        %v7087 = vunpack.c.h.b16 %v5691
        %v7088 = vunpack.c.l.b16 %v5692
        %v7089 = vunpack.c.h.b16 %v5692
        %v7090 = vunpack.c.l.b16 %v5693
        %v7091 = vunpack.c.h.b16 %v5693
        %v7092 = vunpack.c.l.b16 %v5694
        %v7093 = vunpack.c.h.b16 %v5694
        %v7094 = vunpack.c.l.b16 %v5695
        %v7095 = vunpack.c.h.b16 %v5695
        %v7096 = vunpack.c.l.b16 %v5696
        %v7097 = vunpack.c.h.b16 %v5696
        %v7098 = vunpack.c.l.b16 %v5697
        %v7099 = vunpack.c.h.b16 %v5697
        %v7100 = vunpack.c.l.b16 %v5698
        %v7101 = vunpack.c.h.b16 %v5698
        %v7102 = vunpack.c.l.b16 %v5699
        %v7103 = vunpack.c.h.b16 %v5699
        %v7104 = vunpack.c.l.b16 %v5700
        %v7105 = vunpack.c.h.b16 %v5700
        %v7106 = vunpack.c.l.b16 %v5701
        %v7107 = vunpack.c.h.b16 %v5701
        %v7108 = vunpack.c.l.b16 %v5702
        %v7109 = vunpack.c.h.b16 %v5702
        %v7110 = vunpack.c.l.b16 %v5703
        %v7111 = vunpack.c.h.b16 %v5703
        %v7112 = vunpack.c.l.b16 %v5704
        %v7113 = vunpack.c.h.b16 %v5704
        %v7114 = vunpack.c.l.b16 %v5705
        %v7115 = vunpack.c.h.b16 %v5705
        %v7116 = vunpack.c.l.b16 %v5706
        %v7117 = vunpack.c.h.b16 %v5706
        %v7118 = vunpack.c.l.b16 %v5707
        %v7119 = vunpack.c.h.b16 %v5707
        %v7120 = vunpack.c.l.b16 %v5708
        %v7121 = vunpack.c.h.b16 %v5708
        %v7122 = vunpack.c.l.b16 %v5709
        %v7123 = vunpack.c.h.b16 %v5709
        %v7124 = vunpack.c.l.b16 %v5710
        %v7125 = vunpack.c.h.b16 %v5710
        %v7126 = vunpack.c.l.b16 %v5711
        %v7127 = vunpack.c.h.b16 %v5711
        %v7128 = vunpack.c.l.b16 %v5712
        %v7129 = vunpack.c.h.b16 %v5712
        %v7130 = vunpack.c.l.b16 %v5713
        %v7131 = vunpack.c.h.b16 %v5713
        %v7132 = vunpack.c.l.b16 %v5714
        %v7133 = vunpack.c.h.b16 %v5714
        %v7134 = vunpack.c.l.b16 %v5715
        %v7135 = vunpack.c.h.b16 %v5715
        %v7136 = vunpack.c.l.b16 %v5716
        %v7137 = vunpack.c.h.b16 %v5716
        %v7138 = vunpack.c.l.b16 %v5717
        %v7139 = vunpack.c.h.b16 %v5717
        %v7140 = vunpack.c.l.b16 %v5718
        %v7141 = vunpack.c.h.b16 %v5718
        %v7142 = vunpack.c.l.b16 %v5719
        %v7143 = vunpack.c.h.b16 %v5719
        %v7144 = vunpack.c.l.b16 %v5720
        %v7145 = vunpack.c.h.b16 %v5720
        %v7146 = vunpack.c.l.b16 %v5721
        %v7147 = vunpack.c.h.b16 %v5721
        %v7148 = vunpack.c.l.b16 %v5722
        %v7149 = vunpack.c.h.b16 %v5722
        %v7150 = vunpack.c.l.b16 %v5723
        %v7151 = vunpack.c.h.b16 %v5723
        %v7152 = vunpack.c.l.b16 %v5724
        %v7153 = vunpack.c.h.b16 %v5724
        %v7154 = vunpack.c.l.b16 %v5725
        %v7155 = vunpack.c.h.b16 %v5725
        %v7156 = vunpack.c.l.b16 %v5726
        %v7157 = vunpack.c.h.b16 %v5726
        %v7158 = vunpack.c.l.b16 %v5727
        %v7159 = vunpack.c.h.b16 %v5727
        %v7160 = vunpack.c.l.b16 %v5728
        %v7161 = vunpack.c.h.b16 %v5728
        %v7162 = vunpack.c.l.b16 %v5729
        %v7163 = vunpack.c.h.b16 %v5729
        %v7164 = vunpack.c.l.b16 %v5730
        %v7165 = vunpack.c.h.b16 %v5730
        %v7166 = vunpack.c.l.b16 %v5731
        %v7167 = vunpack.c.h.b16 %v5731
        %v7168 = vunpack.c.l.b16 %v5732
        %v7169 = vunpack.c.h.b16 %v5732
        %v7170 = vunpack.c.l.b16 %v5733
        %v7171 = vunpack.c.h.b16 %v5733
        %v7172 = vunpack.c.l.b16 %v5734
        %v7173 = vunpack.c.h.b16 %v5734
        %v7174 = vunpack.c.l.b16 %v5735
        %v7175 = vunpack.c.h.b16 %v5735
        %v7176 = vunpack.c.l.b16 %v5736
        %v7177 = vunpack.c.h.b16 %v5736
        %v7178 = vunpack.c.l.b16 %v5737
        %v7179 = vunpack.c.h.b16 %v5737
        %v7180 = vunpack.c.l.b16 %v5738
        %v7181 = vunpack.c.h.b16 %v5738
        %v7182 = vunpack.c.l.b16 %v5739
        %v7183 = vunpack.c.h.b16 %v5739
        %v7184 = vunpack.c.l.b16 %v5740
        %v7185 = vunpack.c.h.b16 %v5740
        %v7186 = vunpack.c.l.b16 %v5741
        %v7187 = vunpack.c.h.b16 %v5741
        %v7188 = vunpack.c.l.b16 %v5742
        %v7189 = vunpack.c.h.b16 %v5742
        %v7190 = vunpack.c.l.b16 %v5743
        %v7191 = vunpack.c.h.b16 %v5743
        %v7192 = vunpack.c.l.b16 %v5744
        %v7193 = vunpack.c.h.b16 %v5744
        %v7194 = vunpack.c.l.b16 %v5745
        %v7195 = vunpack.c.h.b16 %v5745
        %v7196 = vunpack.c.l.b16 %v5746
        %v7197 = vunpack.c.h.b16 %v5746
        %v7198 = vunpack.c.l.b16 %v5747
        %v7199 = vunpack.c.h.b16 %v5747
        %v7200 = vunpack.c.l.b16 %v5748
        %v7201 = vunpack.c.h.b16 %v5748
        %v7202 = vunpack.c.l.b16 %v5749
        %v7203 = vunpack.c.h.b16 %v5749
        %v7204 = vunpack.c.l.b16 %v5750
        %v7205 = vunpack.c.h.b16 %v5750
        %v7206 = vunpack.c.l.b16 %v5751
        %v7207 = vunpack.c.h.b16 %v5751
        %v7208 = vunpack.c.l.b16 %v5752
        %v7209 = vunpack.c.h.b16 %v5752
        %v7210 = vunpack.c.l.b16 %v5753
        %v7211 = vunpack.c.h.b16 %v5753
        %v7212 = vunpack.c.l.b16 %v5754
        %v7213 = vunpack.c.h.b16 %v5754
        %v7214 = vunpack.c.l.b16 %v5755
        %v7215 = vunpack.c.h.b16 %v5755
        %v7216 = vunpack.c.l.b16 %v5756
        %v7217 = vunpack.c.h.b16 %v5756
        %v7218 = vunpack.c.l.b16 %v5757
        %v7219 = vunpack.c.h.b16 %v5757
        %v7220 = vunpack.c.l.b16 %v5758
        %v7221 = vunpack.c.h.b16 %v5758
        %v7222 = vunpack.c.l.b16 %v5759
        %v7223 = vunpack.c.h.b16 %v5759
        %v7224 = vunpack.c.l.b16 %v5760
        %v7225 = vunpack.c.h.b16 %v5760
        %v7226 = vunpack.c.l.b16 %v5761
        %v7227 = vunpack.c.h.b16 %v5761
        %v7228 = vunpack.c.l.b16 %v5762
        %v7229 = vunpack.c.h.b16 %v5762
        %v7230 = vunpack.c.l.b16 %v5763
        %v7231 = vunpack.c.h.b16 %v5763
        %v7232 = vunpack.c.l.b16 %v5764
        %v7233 = vunpack.c.h.b16 %v5764
        %v7234 = vunpack.c.l.b16 %v5765
        %v7235 = vunpack.c.h.b16 %v5765
        %v7236 = vunpack.c.l.b16 %v5766
        %v7237 = vunpack.c.h.b16 %v5766
        %v7238 = vunpack.c.l.b16 %v5767
        %v7239 = vunpack.c.h.b16 %v5767
        %v7240 = vunpack.c.l.b16 %v5768
        %v7241 = vunpack.c.h.b16 %v5768
        %v7242 = vunpack.c.l.b16 %v5769
        %v7243 = vunpack.c.h.b16 %v5769
        %v7244 = vunpack.c.l.b16 %v5770
        %v7245 = vunpack.c.h.b16 %v5770
        %v7246 = vunpack.c.l.b16 %v5771
        %v7247 = vunpack.c.h.b16 %v5771
        %v7248 = vunpack.c.l.b16 %v5772
        %v7249 = vunpack.c.h.b16 %v5772
        %v7250 = vunpack.c.l.b16 %v5773
        %v7251 = vunpack.c.h.b16 %v5773
        %v7252 = vunpack.c.l.b16 %v5774
        %v7253 = vunpack.c.h.b16 %v5774
        %v7254 = vunpack.c.l.b16 %v5775
        %v7255 = vunpack.c.h.b16 %v5775
        %v7256 = vunpack.c.l.b16 %v5776
        %v7257 = vunpack.c.h.b16 %v5776
        %v7258 = vunpack.c.l.b16 %v5777
        %v7259 = vunpack.c.h.b16 %v5777
        %v7260 = vunpack.c.l.b16 %v5778
        %v7261 = vunpack.c.h.b16 %v5778
        %v7262 = vunpack.c.l.b16 %v5779
        %v7263 = vunpack.c.h.b16 %v5779
        %v7264 = vunpack.c.l.b16 %v5780
        %v7265 = vunpack.c.h.b16 %v5780
        %v7266 = vunpack.c.l.b16 %v5781
        %v7267 = vunpack.c.h.b16 %v5781
        %v7268 = vunpack.c.l.b16 %v5782
        %v7269 = vunpack.c.h.b16 %v5782
        %v7270 = vunpack.c.l.b16 %v5783
        %v7271 = vunpack.c.h.b16 %v5783
        %v7272 = vunpack.c.l.b16 %v5784
        %v7273 = vunpack.c.h.b16 %v5784
        %v7274 = vunpack.c.l.b16 %v5785
        %v7275 = vunpack.c.h.b16 %v5785
        %v7276 = vunpack.c.l.b16 %v5786
        %v7277 = vunpack.c.h.b16 %v5786
        %v7278 = vunpack.c.l.b16 %v5787
        %v7279 = vunpack.c.h.b16 %v5787
        %v7280 = vunpack.c.l.b16 %v5788
        %v7281 = vunpack.c.h.b16 %v5788
        %v7282 = vunpack.c.l.b16 %v5789
        %v7283 = vunpack.c.h.b16 %v5789
        %v7284 = vunpack.c.l.b16 %v5790
        %v7285 = vunpack.c.h.b16 %v5790
        %v7286 = vunpack.c.l.b16 %v5791
        %v7287 = vunpack.c.h.b16 %v5791
        %v7288 = vunpack.c.l.b16 %v5792
        %v7289 = vunpack.c.h.b16 %v5792
        %v7290 = vunpack.c.l.b16 %v5793
        %v7291 = vunpack.c.h.b16 %v5793
        %v7292 = vunpack.c.l.b16 %v5794
        %v7293 = vunpack.c.h.b16 %v5794
        %v7294 = vunpack.c.l.b16 %v5795
        %v7295 = vunpack.c.h.b16 %v5795
        %v7296 = vunpack.c.l.b16 %v5796
        %v7297 = vunpack.c.h.b16 %v5796
        %v7298 = vunpack.c.l.b16 %v5797
        %v7299 = vunpack.c.h.b16 %v5797
        %v7300 = vunpack.c.l.b16 %v5798
        %v7301 = vunpack.c.h.b16 %v5798
        %v7302 = vunpack.c.l.b16 %v5799
        %v7303 = vunpack.c.h.b16 %v5799
        %v7304 = vunpack.c.l.b16 %v5800
        %v7305 = vunpack.c.h.b16 %v5800
        %v7306 = vunpack.c.l.b16 %v5801
        %v7307 = vunpack.c.h.b16 %v5801
        %v7308 = vunpack.c.l.b16 %v5802
        %v7309 = vunpack.c.h.b16 %v5802
        %v7310 = vunpack.c.l.b16 %v5803
        %v7311 = vunpack.c.h.b16 %v5803
        %v7312 = vunpack.c.l.b16 %v5804
        %v7313 = vunpack.c.h.b16 %v5804
        %v7314 = vunpack.c.l.b16 %v5805
        %v7315 = vunpack.c.h.b16 %v5805
        %v7316 = vunpack.c.l.b16 %v5806
        %v7317 = vunpack.c.h.b16 %v5806
        %v7318 = vunpack.c.l.b16 %v5807
        %v7319 = vunpack.c.h.b16 %v5807
        %v7320 = vunpack.c.l.b16 %v5808
        %v7321 = vunpack.c.h.b16 %v5808
        %v7322 = vunpack.c.l.b16 %v5809
        %v7323 = vunpack.c.h.b16 %v5809
        %v7324 = vunpack.c.l.b16 %v5810
        %v7325 = vunpack.c.h.b16 %v5810
        %v7326 = vunpack.c.l.b16 %v5811
        %v7327 = vunpack.c.h.b16 %v5811
        %v7328 = vunpack.c.l.b16 %v5812
        %v7329 = vunpack.c.h.b16 %v5812
        %v7330 = vunpack.c.l.b16 %v5813
        %v7331 = vunpack.c.h.b16 %v5813
        %v7332 = vunpack.c.l.b16 %v5814
        %v7333 = vunpack.c.h.b16 %v5814
        %v7334 = vunpack.c.l.b16 %v5815
        %v7335 = vunpack.c.h.b16 %v5815
        %v7336 = vunpack.c.l.b16 %v5816
        %v7337 = vunpack.c.h.b16 %v5816
        %v7338 = vunpack.c.l.b16 %v5817
        %v7339 = vunpack.c.h.b16 %v5817
        %v7340 = vunpack.c.l.b16 %v5818
        %v7341 = vunpack.c.h.b16 %v5818
        %v7342 = vunpack.c.l.b16 %v5819
        %v7343 = vunpack.c.h.b16 %v5819
        %v7344 = vunpack.c.l.b16 %v5820
        %v7345 = vunpack.c.h.b16 %v5820
        %v7346 = vunpack.c.l.b16 %v5821
        %v7347 = vunpack.c.h.b16 %v5821
        %v7348 = vunpack.c.l.b16 %v5822
        %v7349 = vunpack.c.h.b16 %v5822
        %v7350 = vunpack.c.l.b16 %v5823
        %v7351 = vunpack.c.h.b16 %v5823
        %v7352 = vunpack.c.l.b16 %v5824
        %v7353 = vunpack.c.h.b16 %v5824
        %v7354 = vunpack.c.l.b16 %v5825
        %v7355 = vunpack.c.h.b16 %v5825
        %v7356 = vunpack.c.l.b16 %v5826
        %v7357 = vunpack.c.h.b16 %v5826
        %v7358 = vunpack.c.l.b16 %v5827
        %v7359 = vunpack.c.h.b16 %v5827
        %v7360 = vunpack.c.l.b16 %v5828
        %v7361 = vunpack.c.h.b16 %v5828
        %v7362 = vunpack.c.l.b16 %v5829
        %v7363 = vunpack.c.h.b16 %v5829
        %v7364 = vunpack.c.l.b16 %v5830
        %v7365 = vunpack.c.h.b16 %v5830
        %v7366 = vunpack.c.l.b16 %v5831
        %v7367 = vunpack.c.h.b16 %v5831
        %v7368 = vpack.c.b16 %v6360, %v6344
        %v7369 = vpack.c.b16 %v6361, %v6345
        %v7370 = vpack.c.b16 %v6362, %v6346
        %v7371 = vpack.c.b16 %v6363, %v6347
        %v7372 = vpack.c.b16 %v6364, %v6348
        %v7373 = vpack.c.b16 %v6365, %v6349
        %v7374 = vpack.c.b16 %v6366, %v6350
        %v7375 = vpack.c.b16 %v6367, %v6351
        %v7376 = vpack.c.b16 %v6368, %v6352
        %v7377 = vpack.c.b16 %v6369, %v6353
        %v7378 = vpack.c.b16 %v6370, %v6354
        %v7379 = vpack.c.b16 %v6371, %v6355
        %v7380 = vpack.c.b16 %v6372, %v6356
        %v7381 = vpack.c.b16 %v6373, %v6357
        %v7382 = vpack.c.b16 %v6374, %v6358
        %v7383 = vpack.c.b16 %v6375, %v6359
        %v7384 = vpack.c.b16 %v6392, %v6376
        %v7385 = vpack.c.b16 %v6393, %v6377
        %v7386 = vpack.c.b16 %v6394, %v6378
        %v7387 = vpack.c.b16 %v6395, %v6379
        %v7388 = vpack.c.b16 %v6396, %v6380
        %v7389 = vpack.c.b16 %v6397, %v6381
        %v7390 = vpack.c.b16 %v6398, %v6382
        %v7391 = vpack.c.b16 %v6399, %v6383
        %v7392 = vpack.c.b16 %v6400, %v6384
        %v7393 = vpack.c.b16 %v6401, %v6385
        %v7394 = vpack.c.b16 %v6402, %v6386
        %v7395 = vpack.c.b16 %v6403, %v6387
        %v7396 = vpack.c.b16 %v6404, %v6388
        %v7397 = vpack.c.b16 %v6405, %v6389
        %v7398 = vpack.c.b16 %v6406, %v6390
        %v7399 = vpack.c.b16 %v6407, %v6391
        %v7400 = vpack.c.b16 %v6424, %v6408
        %v7401 = vpack.c.b16 %v6425, %v6409
        %v7402 = vpack.c.b16 %v6426, %v6410
        %v7403 = vpack.c.b16 %v6427, %v6411
        %v7404 = vpack.c.b16 %v6428, %v6412
        %v7405 = vpack.c.b16 %v6429, %v6413
        %v7406 = vpack.c.b16 %v6430, %v6414
        %v7407 = vpack.c.b16 %v6431, %v6415
        %v7408 = vpack.c.b16 %v6432, %v6416
        %v7409 = vpack.c.b16 %v6433, %v6417
        %v7410 = vpack.c.b16 %v6434, %v6418
        %v7411 = vpack.c.b16 %v6435, %v6419
        %v7412 = vpack.c.b16 %v6436, %v6420
        %v7413 = vpack.c.b16 %v6437, %v6421
        %v7414 = vpack.c.b16 %v6438, %v6422
        %v7415 = vpack.c.b16 %v6439, %v6423
        %v7416 = vpack.c.b16 %v6456, %v6440
        %v7417 = vpack.c.b16 %v6457, %v6441
        %v7418 = vpack.c.b16 %v6458, %v6442
        %v7419 = vpack.c.b16 %v6459, %v6443
        %v7420 = vpack.c.b16 %v6460, %v6444
        %v7421 = vpack.c.b16 %v6461, %v6445
        %v7422 = vpack.c.b16 %v6462, %v6446
        %v7423 = vpack.c.b16 %v6463, %v6447
        %v7424 = vpack.c.b16 %v6464, %v6448
        %v7425 = vpack.c.b16 %v6465, %v6449
        %v7426 = vpack.c.b16 %v6466, %v6450
        %v7427 = vpack.c.b16 %v6467, %v6451
        %v7428 = vpack.c.b16 %v6468, %v6452
        %v7429 = vpack.c.b16 %v6469, %v6453
        %v7430 = vpack.c.b16 %v6470, %v6454
        %v7431 = vpack.c.b16 %v6471, %v6455
        %v7432 = vpack.c.b16 %v6488, %v6472
        %v7433 = vpack.c.b16 %v6489, %v6473
        %v7434 = vpack.c.b16 %v6490, %v6474
        %v7435 = vpack.c.b16 %v6491, %v6475
        %v7436 = vpack.c.b16 %v6492, %v6476
        %v7437 = vpack.c.b16 %v6493, %v6477
        %v7438 = vpack.c.b16 %v6494, %v6478
        %v7439 = vpack.c.b16 %v6495, %v6479
        %v7440 = vpack.c.b16 %v6496, %v6480
        %v7441 = vpack.c.b16 %v6497, %v6481
        %v7442 = vpack.c.b16 %v6498, %v6482
        %v7443 = vpack.c.b16 %v6499, %v6483
        %v7444 = vpack.c.b16 %v6500, %v6484
        %v7445 = vpack.c.b16 %v6501, %v6485
        %v7446 = vpack.c.b16 %v6502, %v6486
        %v7447 = vpack.c.b16 %v6503, %v6487
        %v7448 = vpack.c.b16 %v6520, %v6504
        %v7449 = vpack.c.b16 %v6521, %v6505
        %v7450 = vpack.c.b16 %v6522, %v6506
        %v7451 = vpack.c.b16 %v6523, %v6507
        %v7452 = vpack.c.b16 %v6524, %v6508
        %v7453 = vpack.c.b16 %v6525, %v6509
        %v7454 = vpack.c.b16 %v6526, %v6510
        %v7455 = vpack.c.b16 %v6527, %v6511
        %v7456 = vpack.c.b16 %v6528, %v6512
        %v7457 = vpack.c.b16 %v6529, %v6513
        %v7458 = vpack.c.b16 %v6530, %v6514
        %v7459 = vpack.c.b16 %v6531, %v6515
        %v7460 = vpack.c.b16 %v6532, %v6516
        %v7461 = vpack.c.b16 %v6533, %v6517
        %v7462 = vpack.c.b16 %v6534, %v6518
        %v7463 = vpack.c.b16 %v6535, %v6519
        %v7464 = vpack.c.b16 %v6552, %v6536
        %v7465 = vpack.c.b16 %v6553, %v6537
        %v7466 = vpack.c.b16 %v6554, %v6538
        %v7467 = vpack.c.b16 %v6555, %v6539
        %v7468 = vpack.c.b16 %v6556, %v6540
        %v7469 = vpack.c.b16 %v6557, %v6541
        %v7470 = vpack.c.b16 %v6558, %v6542
        %v7471 = vpack.c.b16 %v6559, %v6543
        %v7472 = vpack.c.b16 %v6560, %v6544
        %v7473 = vpack.c.b16 %v6561, %v6545
        %v7474 = vpack.c.b16 %v6562, %v6546
        %v7475 = vpack.c.b16 %v6563, %v6547
        %v7476 = vpack.c.b16 %v6564, %v6548
        %v7477 = vpack.c.b16 %v6565, %v6549
        %v7478 = vpack.c.b16 %v6566, %v6550
        %v7479 = vpack.c.b16 %v6567, %v6551
        %v7480 = vpack.c.b16 %v6584, %v6568
        %v7481 = vpack.c.b16 %v6585, %v6569
        %v7482 = vpack.c.b16 %v6586, %v6570
        %v7483 = vpack.c.b16 %v6587, %v6571
        %v7484 = vpack.c.b16 %v6588, %v6572
        %v7485 = vpack.c.b16 %v6589, %v6573
        %v7486 = vpack.c.b16 %v6590, %v6574
        %v7487 = vpack.c.b16 %v6591, %v6575
        %v7488 = vpack.c.b16 %v6592, %v6576
        %v7489 = vpack.c.b16 %v6593, %v6577
        %v7490 = vpack.c.b16 %v6594, %v6578
        %v7491 = vpack.c.b16 %v6595, %v6579
        %v7492 = vpack.c.b16 %v6596, %v6580
        %v7493 = vpack.c.b16 %v6597, %v6581
        %v7494 = vpack.c.b16 %v6598, %v6582
        %v7495 = vpack.c.b16 %v6599, %v6583
        %v7496 = vpack.c.b16 %v6616, %v6600
        %v7497 = vpack.c.b16 %v6617, %v6601
        %v7498 = vpack.c.b16 %v6618, %v6602
        %v7499 = vpack.c.b16 %v6619, %v6603
        %v7500 = vpack.c.b16 %v6620, %v6604
        %v7501 = vpack.c.b16 %v6621, %v6605
        %v7502 = vpack.c.b16 %v6622, %v6606
        %v7503 = vpack.c.b16 %v6623, %v6607
        %v7504 = vpack.c.b16 %v6624, %v6608
        %v7505 = vpack.c.b16 %v6625, %v6609
        %v7506 = vpack.c.b16 %v6626, %v6610
        %v7507 = vpack.c.b16 %v6627, %v6611
        %v7508 = vpack.c.b16 %v6628, %v6612
        %v7509 = vpack.c.b16 %v6629, %v6613
        %v7510 = vpack.c.b16 %v6630, %v6614
        %v7511 = vpack.c.b16 %v6631, %v6615
        %v7512 = vpack.c.b16 %v6648, %v6632
        %v7513 = vpack.c.b16 %v6649, %v6633
        %v7514 = vpack.c.b16 %v6650, %v6634
        %v7515 = vpack.c.b16 %v6651, %v6635
        %v7516 = vpack.c.b16 %v6652, %v6636
        %v7517 = vpack.c.b16 %v6653, %v6637
        %v7518 = vpack.c.b16 %v6654, %v6638
        %v7519 = vpack.c.b16 %v6655, %v6639
        %v7520 = vpack.c.b16 %v6656, %v6640
        %v7521 = vpack.c.b16 %v6657, %v6641
        %v7522 = vpack.c.b16 %v6658, %v6642
        %v7523 = vpack.c.b16 %v6659, %v6643
        %v7524 = vpack.c.b16 %v6660, %v6644
        %v7525 = vpack.c.b16 %v6661, %v6645
        %v7526 = vpack.c.b16 %v6662, %v6646
        %v7527 = vpack.c.b16 %v6663, %v6647
        %v7528 = vpack.c.b16 %v6680, %v6664
        %v7529 = vpack.c.b16 %v6681, %v6665
        %v7530 = vpack.c.b16 %v6682, %v6666
        %v7531 = vpack.c.b16 %v6683, %v6667
        %v7532 = vpack.c.b16 %v6684, %v6668
        %v7533 = vpack.c.b16 %v6685, %v6669
        %v7534 = vpack.c.b16 %v6686, %v6670
        %v7535 = vpack.c.b16 %v6687, %v6671
        %v7536 = vpack.c.b16 %v6688, %v6672
        %v7537 = vpack.c.b16 %v6689, %v6673
        %v7538 = vpack.c.b16 %v6690, %v6674
        %v7539 = vpack.c.b16 %v6691, %v6675
        %v7540 = vpack.c.b16 %v6692, %v6676
        %v7541 = vpack.c.b16 %v6693, %v6677
        %v7542 = vpack.c.b16 %v6694, %v6678
        %v7543 = vpack.c.b16 %v6695, %v6679
        %v7544 = vpack.c.b16 %v6712, %v6696
        %v7545 = vpack.c.b16 %v6713, %v6697
        %v7546 = vpack.c.b16 %v6714, %v6698
        %v7547 = vpack.c.b16 %v6715, %v6699
        %v7548 = vpack.c.b16 %v6716, %v6700
        %v7549 = vpack.c.b16 %v6717, %v6701
        %v7550 = vpack.c.b16 %v6718, %v6702
        %v7551 = vpack.c.b16 %v6719, %v6703
        %v7552 = vpack.c.b16 %v6720, %v6704
        %v7553 = vpack.c.b16 %v6721, %v6705
        %v7554 = vpack.c.b16 %v6722, %v6706
        %v7555 = vpack.c.b16 %v6723, %v6707
        %v7556 = vpack.c.b16 %v6724, %v6708
        %v7557 = vpack.c.b16 %v6725, %v6709
        %v7558 = vpack.c.b16 %v6726, %v6710
        %v7559 = vpack.c.b16 %v6727, %v6711
        %v7560 = vpack.c.b16 %v6744, %v6728
        %v7561 = vpack.c.b16 %v6745, %v6729
        %v7562 = vpack.c.b16 %v6746, %v6730
        %v7563 = vpack.c.b16 %v6747, %v6731
        %v7564 = vpack.c.b16 %v6748, %v6732
        %v7565 = vpack.c.b16 %v6749, %v6733
        %v7566 = vpack.c.b16 %v6750, %v6734
        %v7567 = vpack.c.b16 %v6751, %v6735
        %v7568 = vpack.c.b16 %v6752, %v6736
        %v7569 = vpack.c.b16 %v6753, %v6737
        %v7570 = vpack.c.b16 %v6754, %v6738
        %v7571 = vpack.c.b16 %v6755, %v6739
        %v7572 = vpack.c.b16 %v6756, %v6740
        %v7573 = vpack.c.b16 %v6757, %v6741
        %v7574 = vpack.c.b16 %v6758, %v6742
        %v7575 = vpack.c.b16 %v6759, %v6743
        %v7576 = vpack.c.b16 %v6776, %v6760
        %v7577 = vpack.c.b16 %v6777, %v6761
        %v7578 = vpack.c.b16 %v6778, %v6762
        %v7579 = vpack.c.b16 %v6779, %v6763
        %v7580 = vpack.c.b16 %v6780, %v6764
        %v7581 = vpack.c.b16 %v6781, %v6765
        %v7582 = vpack.c.b16 %v6782, %v6766
        %v7583 = vpack.c.b16 %v6783, %v6767
        %v7584 = vpack.c.b16 %v6784, %v6768
        %v7585 = vpack.c.b16 %v6785, %v6769
        %v7586 = vpack.c.b16 %v6786, %v6770
        %v7587 = vpack.c.b16 %v6787, %v6771
        %v7588 = vpack.c.b16 %v6788, %v6772
        %v7589 = vpack.c.b16 %v6789, %v6773
        %v7590 = vpack.c.b16 %v6790, %v6774
        %v7591 = vpack.c.b16 %v6791, %v6775
        %v7592 = vpack.c.b16 %v6808, %v6792
        %v7593 = vpack.c.b16 %v6809, %v6793
        %v7594 = vpack.c.b16 %v6810, %v6794
        %v7595 = vpack.c.b16 %v6811, %v6795
        %v7596 = vpack.c.b16 %v6812, %v6796
        %v7597 = vpack.c.b16 %v6813, %v6797
        %v7598 = vpack.c.b16 %v6814, %v6798
        %v7599 = vpack.c.b16 %v6815, %v6799
        %v7600 = vpack.c.b16 %v6816, %v6800
        %v7601 = vpack.c.b16 %v6817, %v6801
        %v7602 = vpack.c.b16 %v6818, %v6802
        %v7603 = vpack.c.b16 %v6819, %v6803
        %v7604 = vpack.c.b16 %v6820, %v6804
        %v7605 = vpack.c.b16 %v6821, %v6805
        %v7606 = vpack.c.b16 %v6822, %v6806
        %v7607 = vpack.c.b16 %v6823, %v6807
        %v7608 = vpack.c.b16 %v6840, %v6824
        %v7609 = vpack.c.b16 %v6841, %v6825
        %v7610 = vpack.c.b16 %v6842, %v6826
        %v7611 = vpack.c.b16 %v6843, %v6827
        %v7612 = vpack.c.b16 %v6844, %v6828
        %v7613 = vpack.c.b16 %v6845, %v6829
        %v7614 = vpack.c.b16 %v6846, %v6830
        %v7615 = vpack.c.b16 %v6847, %v6831
        %v7616 = vpack.c.b16 %v6848, %v6832
        %v7617 = vpack.c.b16 %v6849, %v6833
        %v7618 = vpack.c.b16 %v6850, %v6834
        %v7619 = vpack.c.b16 %v6851, %v6835
        %v7620 = vpack.c.b16 %v6852, %v6836
        %v7621 = vpack.c.b16 %v6853, %v6837
        %v7622 = vpack.c.b16 %v6854, %v6838
        %v7623 = vpack.c.b16 %v6855, %v6839
        %v7624 = vpack.c.b16 %v6872, %v6856
        %v7625 = vpack.c.b16 %v6873, %v6857
        %v7626 = vpack.c.b16 %v6874, %v6858
        %v7627 = vpack.c.b16 %v6875, %v6859
        %v7628 = vpack.c.b16 %v6876, %v6860
        %v7629 = vpack.c.b16 %v6877, %v6861
        %v7630 = vpack.c.b16 %v6878, %v6862
        %v7631 = vpack.c.b16 %v6879, %v6863
        %v7632 = vpack.c.b16 %v6880, %v6864
        %v7633 = vpack.c.b16 %v6881, %v6865
        %v7634 = vpack.c.b16 %v6882, %v6866
        %v7635 = vpack.c.b16 %v6883, %v6867
        %v7636 = vpack.c.b16 %v6884, %v6868
        %v7637 = vpack.c.b16 %v6885, %v6869
        %v7638 = vpack.c.b16 %v6886, %v6870
        %v7639 = vpack.c.b16 %v6887, %v6871
        %v7640 = vpack.c.b16 %v6904, %v6888
        %v7641 = vpack.c.b16 %v6905, %v6889
        %v7642 = vpack.c.b16 %v6906, %v6890
        %v7643 = vpack.c.b16 %v6907, %v6891
        %v7644 = vpack.c.b16 %v6908, %v6892
        %v7645 = vpack.c.b16 %v6909, %v6893
        %v7646 = vpack.c.b16 %v6910, %v6894
        %v7647 = vpack.c.b16 %v6911, %v6895
        %v7648 = vpack.c.b16 %v6912, %v6896
        %v7649 = vpack.c.b16 %v6913, %v6897
        %v7650 = vpack.c.b16 %v6914, %v6898
        %v7651 = vpack.c.b16 %v6915, %v6899
        %v7652 = vpack.c.b16 %v6916, %v6900
        %v7653 = vpack.c.b16 %v6917, %v6901
        %v7654 = vpack.c.b16 %v6918, %v6902
        %v7655 = vpack.c.b16 %v6919, %v6903
        %v7656 = vpack.c.b16 %v6936, %v6920
        %v7657 = vpack.c.b16 %v6937, %v6921
        %v7658 = vpack.c.b16 %v6938, %v6922
        %v7659 = vpack.c.b16 %v6939, %v6923
        %v7660 = vpack.c.b16 %v6940, %v6924
        %v7661 = vpack.c.b16 %v6941, %v6925
        %v7662 = vpack.c.b16 %v6942, %v6926
        %v7663 = vpack.c.b16 %v6943, %v6927
        %v7664 = vpack.c.b16 %v6944, %v6928
        %v7665 = vpack.c.b16 %v6945, %v6929
        %v7666 = vpack.c.b16 %v6946, %v6930
        %v7667 = vpack.c.b16 %v6947, %v6931
        %v7668 = vpack.c.b16 %v6948, %v6932
        %v7669 = vpack.c.b16 %v6949, %v6933
        %v7670 = vpack.c.b16 %v6950, %v6934
        %v7671 = vpack.c.b16 %v6951, %v6935
        %v7672 = vpack.c.b16 %v6968, %v6952
        %v7673 = vpack.c.b16 %v6969, %v6953
        %v7674 = vpack.c.b16 %v6970, %v6954
        %v7675 = vpack.c.b16 %v6971, %v6955
        %v7676 = vpack.c.b16 %v6972, %v6956
        %v7677 = vpack.c.b16 %v6973, %v6957
        %v7678 = vpack.c.b16 %v6974, %v6958
        %v7679 = vpack.c.b16 %v6975, %v6959
        %v7680 = vpack.c.b16 %v6976, %v6960
        %v7681 = vpack.c.b16 %v6977, %v6961
        %v7682 = vpack.c.b16 %v6978, %v6962
        %v7683 = vpack.c.b16 %v6979, %v6963
        %v7684 = vpack.c.b16 %v6980, %v6964
        %v7685 = vpack.c.b16 %v6981, %v6965
        %v7686 = vpack.c.b16 %v6982, %v6966
        %v7687 = vpack.c.b16 %v6983, %v6967
        %v7688 = vpack.c.b16 %v7000, %v6984
        %v7689 = vpack.c.b16 %v7001, %v6985
        %v7690 = vpack.c.b16 %v7002, %v6986
        %v7691 = vpack.c.b16 %v7003, %v6987
        %v7692 = vpack.c.b16 %v7004, %v6988
        %v7693 = vpack.c.b16 %v7005, %v6989
        %v7694 = vpack.c.b16 %v7006, %v6990
        %v7695 = vpack.c.b16 %v7007, %v6991
        %v7696 = vpack.c.b16 %v7008, %v6992
        %v7697 = vpack.c.b16 %v7009, %v6993
        %v7698 = vpack.c.b16 %v7010, %v6994
        %v7699 = vpack.c.b16 %v7011, %v6995
        %v7700 = vpack.c.b16 %v7012, %v6996
        %v7701 = vpack.c.b16 %v7013, %v6997
        %v7702 = vpack.c.b16 %v7014, %v6998
        %v7703 = vpack.c.b16 %v7015, %v6999
        %v7704 = vpack.c.b16 %v7032, %v7016
        %v7705 = vpack.c.b16 %v7033, %v7017
        %v7706 = vpack.c.b16 %v7034, %v7018
        %v7707 = vpack.c.b16 %v7035, %v7019
        %v7708 = vpack.c.b16 %v7036, %v7020
        %v7709 = vpack.c.b16 %v7037, %v7021
        %v7710 = vpack.c.b16 %v7038, %v7022
        %v7711 = vpack.c.b16 %v7039, %v7023
        %v7712 = vpack.c.b16 %v7040, %v7024
        %v7713 = vpack.c.b16 %v7041, %v7025
        %v7714 = vpack.c.b16 %v7042, %v7026
        %v7715 = vpack.c.b16 %v7043, %v7027
        %v7716 = vpack.c.b16 %v7044, %v7028
        %v7717 = vpack.c.b16 %v7045, %v7029
        %v7718 = vpack.c.b16 %v7046, %v7030
        %v7719 = vpack.c.b16 %v7047, %v7031
        %v7720 = vpack.c.b16 %v7064, %v7048
        %v7721 = vpack.c.b16 %v7065, %v7049
        %v7722 = vpack.c.b16 %v7066, %v7050
        %v7723 = vpack.c.b16 %v7067, %v7051
        %v7724 = vpack.c.b16 %v7068, %v7052
        %v7725 = vpack.c.b16 %v7069, %v7053
        %v7726 = vpack.c.b16 %v7070, %v7054
        %v7727 = vpack.c.b16 %v7071, %v7055
        %v7728 = vpack.c.b16 %v7072, %v7056
        %v7729 = vpack.c.b16 %v7073, %v7057
        %v7730 = vpack.c.b16 %v7074, %v7058
        %v7731 = vpack.c.b16 %v7075, %v7059
        %v7732 = vpack.c.b16 %v7076, %v7060
        %v7733 = vpack.c.b16 %v7077, %v7061
        %v7734 = vpack.c.b16 %v7078, %v7062
        %v7735 = vpack.c.b16 %v7079, %v7063
        %v7736 = vpack.c.b16 %v7096, %v7080
        %v7737 = vpack.c.b16 %v7097, %v7081
        %v7738 = vpack.c.b16 %v7098, %v7082
        %v7739 = vpack.c.b16 %v7099, %v7083
        %v7740 = vpack.c.b16 %v7100, %v7084
        %v7741 = vpack.c.b16 %v7101, %v7085
        %v7742 = vpack.c.b16 %v7102, %v7086
        %v7743 = vpack.c.b16 %v7103, %v7087
        %v7744 = vpack.c.b16 %v7104, %v7088
        %v7745 = vpack.c.b16 %v7105, %v7089
        %v7746 = vpack.c.b16 %v7106, %v7090
        %v7747 = vpack.c.b16 %v7107, %v7091
        %v7748 = vpack.c.b16 %v7108, %v7092
        %v7749 = vpack.c.b16 %v7109, %v7093
        %v7750 = vpack.c.b16 %v7110, %v7094
        %v7751 = vpack.c.b16 %v7111, %v7095
        %v7752 = vpack.c.b16 %v7128, %v7112
        %v7753 = vpack.c.b16 %v7129, %v7113
        %v7754 = vpack.c.b16 %v7130, %v7114
        %v7755 = vpack.c.b16 %v7131, %v7115
        %v7756 = vpack.c.b16 %v7132, %v7116
        %v7757 = vpack.c.b16 %v7133, %v7117
        %v7758 = vpack.c.b16 %v7134, %v7118
        %v7759 = vpack.c.b16 %v7135, %v7119
        %v7760 = vpack.c.b16 %v7136, %v7120
        %v7761 = vpack.c.b16 %v7137, %v7121
        %v7762 = vpack.c.b16 %v7138, %v7122
        %v7763 = vpack.c.b16 %v7139, %v7123
        %v7764 = vpack.c.b16 %v7140, %v7124
        %v7765 = vpack.c.b16 %v7141, %v7125
        %v7766 = vpack.c.b16 %v7142, %v7126
        %v7767 = vpack.c.b16 %v7143, %v7127
        %v7768 = vpack.c.b16 %v7160, %v7144
        %v7769 = vpack.c.b16 %v7161, %v7145
        %v7770 = vpack.c.b16 %v7162, %v7146
        %v7771 = vpack.c.b16 %v7163, %v7147
        %v7772 = vpack.c.b16 %v7164, %v7148
        %v7773 = vpack.c.b16 %v7165, %v7149
        %v7774 = vpack.c.b16 %v7166, %v7150
        %v7775 = vpack.c.b16 %v7167, %v7151
        %v7776 = vpack.c.b16 %v7168, %v7152
        %v7777 = vpack.c.b16 %v7169, %v7153
        %v7778 = vpack.c.b16 %v7170, %v7154
        %v7779 = vpack.c.b16 %v7171, %v7155
        %v7780 = vpack.c.b16 %v7172, %v7156
        %v7781 = vpack.c.b16 %v7173, %v7157
        %v7782 = vpack.c.b16 %v7174, %v7158
        %v7783 = vpack.c.b16 %v7175, %v7159
        %v7784 = vpack.c.b16 %v7192, %v7176
        %v7785 = vpack.c.b16 %v7193, %v7177
        %v7786 = vpack.c.b16 %v7194, %v7178
        %v7787 = vpack.c.b16 %v7195, %v7179
        %v7788 = vpack.c.b16 %v7196, %v7180
        %v7789 = vpack.c.b16 %v7197, %v7181
        %v7790 = vpack.c.b16 %v7198, %v7182
        %v7791 = vpack.c.b16 %v7199, %v7183
        %v7792 = vpack.c.b16 %v7200, %v7184
        %v7793 = vpack.c.b16 %v7201, %v7185
        %v7794 = vpack.c.b16 %v7202, %v7186
        %v7795 = vpack.c.b16 %v7203, %v7187
        %v7796 = vpack.c.b16 %v7204, %v7188
        %v7797 = vpack.c.b16 %v7205, %v7189
        %v7798 = vpack.c.b16 %v7206, %v7190
        %v7799 = vpack.c.b16 %v7207, %v7191
        %v7800 = vpack.c.b16 %v7224, %v7208
        %v7801 = vpack.c.b16 %v7225, %v7209
        %v7802 = vpack.c.b16 %v7226, %v7210
        %v7803 = vpack.c.b16 %v7227, %v7211
        %v7804 = vpack.c.b16 %v7228, %v7212
        %v7805 = vpack.c.b16 %v7229, %v7213
        %v7806 = vpack.c.b16 %v7230, %v7214
        %v7807 = vpack.c.b16 %v7231, %v7215
        %v7808 = vpack.c.b16 %v7232, %v7216
        %v7809 = vpack.c.b16 %v7233, %v7217
        %v7810 = vpack.c.b16 %v7234, %v7218
        %v7811 = vpack.c.b16 %v7235, %v7219
        %v7812 = vpack.c.b16 %v7236, %v7220
        %v7813 = vpack.c.b16 %v7237, %v7221
        %v7814 = vpack.c.b16 %v7238, %v7222
        %v7815 = vpack.c.b16 %v7239, %v7223
        %v7816 = vpack.c.b16 %v7256, %v7240
        %v7817 = vpack.c.b16 %v7257, %v7241
        %v7818 = vpack.c.b16 %v7258, %v7242
        %v7819 = vpack.c.b16 %v7259, %v7243
        %v7820 = vpack.c.b16 %v7260, %v7244
        %v7821 = vpack.c.b16 %v7261, %v7245
        %v7822 = vpack.c.b16 %v7262, %v7246
        %v7823 = vpack.c.b16 %v7263, %v7247
        %v7824 = vpack.c.b16 %v7264, %v7248
        %v7825 = vpack.c.b16 %v7265, %v7249
        %v7826 = vpack.c.b16 %v7266, %v7250
        %v7827 = vpack.c.b16 %v7267, %v7251
        %v7828 = vpack.c.b16 %v7268, %v7252
        %v7829 = vpack.c.b16 %v7269, %v7253
        %v7830 = vpack.c.b16 %v7270, %v7254
        %v7831 = vpack.c.b16 %v7271, %v7255
        %v7832 = vpack.c.b16 %v7288, %v7272
        %v7833 = vpack.c.b16 %v7289, %v7273
        %v7834 = vpack.c.b16 %v7290, %v7274
        %v7835 = vpack.c.b16 %v7291, %v7275
        %v7836 = vpack.c.b16 %v7292, %v7276
        %v7837 = vpack.c.b16 %v7293, %v7277
        %v7838 = vpack.c.b16 %v7294, %v7278
        %v7839 = vpack.c.b16 %v7295, %v7279
        %v7840 = vpack.c.b16 %v7296, %v7280
        %v7841 = vpack.c.b16 %v7297, %v7281
        %v7842 = vpack.c.b16 %v7298, %v7282
        %v7843 = vpack.c.b16 %v7299, %v7283
        %v7844 = vpack.c.b16 %v7300, %v7284
        %v7845 = vpack.c.b16 %v7301, %v7285
        %v7846 = vpack.c.b16 %v7302, %v7286
        %v7847 = vpack.c.b16 %v7303, %v7287
        %v7848 = vpack.c.b16 %v7320, %v7304
        %v7849 = vpack.c.b16 %v7321, %v7305
        %v7850 = vpack.c.b16 %v7322, %v7306
        %v7851 = vpack.c.b16 %v7323, %v7307
        %v7852 = vpack.c.b16 %v7324, %v7308
        %v7853 = vpack.c.b16 %v7325, %v7309
        %v7854 = vpack.c.b16 %v7326, %v7310
        %v7855 = vpack.c.b16 %v7327, %v7311
        %v7856 = vpack.c.b16 %v7328, %v7312
        %v7857 = vpack.c.b16 %v7329, %v7313
        %v7858 = vpack.c.b16 %v7330, %v7314
        %v7859 = vpack.c.b16 %v7331, %v7315
        %v7860 = vpack.c.b16 %v7332, %v7316
        %v7861 = vpack.c.b16 %v7333, %v7317
        %v7862 = vpack.c.b16 %v7334, %v7318
        %v7863 = vpack.c.b16 %v7335, %v7319
        %v7864 = vpack.c.b16 %v7352, %v7336
        %v7865 = vpack.c.b16 %v7353, %v7337
        %v7866 = vpack.c.b16 %v7354, %v7338
        %v7867 = vpack.c.b16 %v7355, %v7339
        %v7868 = vpack.c.b16 %v7356, %v7340
        %v7869 = vpack.c.b16 %v7357, %v7341
        %v7870 = vpack.c.b16 %v7358, %v7342
        %v7871 = vpack.c.b16 %v7359, %v7343
        %v7872 = vpack.c.b16 %v7360, %v7344
        %v7873 = vpack.c.b16 %v7361, %v7345
        %v7874 = vpack.c.b16 %v7362, %v7346
        %v7875 = vpack.c.b16 %v7363, %v7347
        %v7876 = vpack.c.b16 %v7364, %v7348
        %v7877 = vpack.c.b16 %v7365, %v7349
        %v7878 = vpack.c.b16 %v7366, %v7350
        %v7879 = vpack.c.b16 %v7367, %v7351
        %8392 = vmatpush.bf16.msra.mxu0 %v7480
        %8393 = vmatpush.bf16.msra.mxu0 %v7464
        %8394 = vmatpush.bf16.msra.mxu0 %v7448
        %8395 = vmatpush.bf16.msra.mxu0 %v7432
        %8396 = vmatpush.bf16.msra.mxu0 %v7416
        %8397 = vmatpush.bf16.msra.mxu0 %v7400
        %8398 = vmatpush.bf16.msra.mxu0 %v7384
        %8399 = vmatpush.bf16.msra.mxu0 %v7368
        %8400 = vmatmul.bf16.gmra.mxu0 %v5316
        %v8401 = vpop.f32.mrf.mxu0
        %v8402 = vadd.f32 0.0, %v8401
        %v8403 = vpop.f32.mrf.mxu0
        %v8404 = vadd.f32 0.0, %v8403
        %8405 = vdwg.mxu0
        %8406 = vmatpush.bf16.msra.mxu0 %v7608
        %8407 = vmatpush.bf16.msra.mxu0 %v7592
        %8408 = vmatpush.bf16.msra.mxu0 %v7576
        %8409 = vmatpush.bf16.msra.mxu0 %v7560
        %8410 = vmatpush.bf16.msra.mxu0 %v7544
        %8411 = vmatpush.bf16.msra.mxu0 %v7528
        %8412 = vmatpush.bf16.msra.mxu0 %v7512
        %8413 = vmatpush.bf16.msra.mxu0 %v7496
        %8414 = vmatmul.bf16.gmra.mxu0 %v5317
        %v8415 = vpop.f32.mrf.mxu0
        %v8416 = vadd.f32 %v8402, %v8415
        %v8417 = vpop.f32.mrf.mxu0
        %v8418 = vadd.f32 %v8404, %v8417
        %8419 = vdwg.mxu0
        %8420 = vmatpush.bf16.msra.mxu0 %v7736
        %8421 = vmatpush.bf16.msra.mxu0 %v7720
        %8422 = vmatpush.bf16.msra.mxu0 %v7704
        %8423 = vmatpush.bf16.msra.mxu0 %v7688
        %8424 = vmatpush.bf16.msra.mxu0 %v7672
        %8425 = vmatpush.bf16.msra.mxu0 %v7656
        %8426 = vmatpush.bf16.msra.mxu0 %v7640
        %8427 = vmatpush.bf16.msra.mxu0 %v7624
        %8428 = vmatmul.bf16.gmra.mxu0 %v5318
        %v8429 = vpop.f32.mrf.mxu0
        %v8430 = vadd.f32 %v8416, %v8429
        %v8431 = vpop.f32.mrf.mxu0
        %v8432 = vadd.f32 %v8418, %v8431
        %8433 = vdwg.mxu0
        %8434 = vmatpush.bf16.msra.mxu0 %v7864
        %8435 = vmatpush.bf16.msra.mxu0 %v7848
        %8436 = vmatpush.bf16.msra.mxu0 %v7832
        %8437 = vmatpush.bf16.msra.mxu0 %v7816
        %8438 = vmatpush.bf16.msra.mxu0 %v7800
        %8439 = vmatpush.bf16.msra.mxu0 %v7784
        %8440 = vmatpush.bf16.msra.mxu0 %v7768
        %8441 = vmatpush.bf16.msra.mxu0 %v7752
        %8442 = vmatmul.bf16.gmra.mxu0 %v5319
        %v8443 = vpop.f32.mrf.mxu0
        %v8444 = vadd.f32 %v8430, %v8443
        %v8445 = vpop.f32.mrf.mxu0
        %v8446 = vadd.f32 %v8432, %v8445
        %8447 = vdwg.mxu0
        %8448 = vmatpush.bf16.msra.mxu0 %v7481
        %8449 = vmatpush.bf16.msra.mxu0 %v7465
        %8450 = vmatpush.bf16.msra.mxu0 %v7449
        %8451 = vmatpush.bf16.msra.mxu0 %v7433
        %8452 = vmatpush.bf16.msra.mxu0 %v7417
        %8453 = vmatpush.bf16.msra.mxu0 %v7401
        %8454 = vmatpush.bf16.msra.mxu0 %v7385
        %8455 = vmatpush.bf16.msra.mxu0 %v7369
        %8456 = vmatmul.bf16.gmra.mxu0 %v5316
        %v8457 = vpop.f32.mrf.mxu0
        %v8458 = vadd.f32 0.0, %v8457
        %v8459 = vpop.f32.mrf.mxu0
        %v8460 = vadd.f32 0.0, %v8459
        %8461 = vdwg.mxu0
        %8462 = vmatpush.bf16.msra.mxu0 %v7609
        %8463 = vmatpush.bf16.msra.mxu0 %v7593
        %8464 = vmatpush.bf16.msra.mxu0 %v7577
        %8465 = vmatpush.bf16.msra.mxu0 %v7561
        %8466 = vmatpush.bf16.msra.mxu0 %v7545
        %8467 = vmatpush.bf16.msra.mxu0 %v7529
        %8468 = vmatpush.bf16.msra.mxu0 %v7513
        %8469 = vmatpush.bf16.msra.mxu0 %v7497
        %8470 = vmatmul.bf16.gmra.mxu0 %v5317
        %v8471 = vpop.f32.mrf.mxu0
        %v8472 = vadd.f32 %v8458, %v8471
        %v8473 = vpop.f32.mrf.mxu0
        %v8474 = vadd.f32 %v8460, %v8473
        %8475 = vdwg.mxu0
        %8476 = vmatpush.bf16.msra.mxu0 %v7737
        %8477 = vmatpush.bf16.msra.mxu0 %v7721
        %8478 = vmatpush.bf16.msra.mxu0 %v7705
        %8479 = vmatpush.bf16.msra.mxu0 %v7689
        %8480 = vmatpush.bf16.msra.mxu0 %v7673
        %8481 = vmatpush.bf16.msra.mxu0 %v7657
        %8482 = vmatpush.bf16.msra.mxu0 %v7641
        %8483 = vmatpush.bf16.msra.mxu0 %v7625
        %8484 = vmatmul.bf16.gmra.mxu0 %v5318
        %v8485 = vpop.f32.mrf.mxu0
        %v8486 = vadd.f32 %v8472, %v8485
        %v8487 = vpop.f32.mrf.mxu0
        %v8488 = vadd.f32 %v8474, %v8487
        %8489 = vdwg.mxu0
        %8490 = vmatpush.bf16.msra.mxu0 %v7865
        %8491 = vmatpush.bf16.msra.mxu0 %v7849
        %8492 = vmatpush.bf16.msra.mxu0 %v7833
        %8493 = vmatpush.bf16.msra.mxu0 %v7817
        %8494 = vmatpush.bf16.msra.mxu0 %v7801
        %8495 = vmatpush.bf16.msra.mxu0 %v7785
        %8496 = vmatpush.bf16.msra.mxu0 %v7769
        %8497 = vmatpush.bf16.msra.mxu0 %v7753
        %8498 = vmatmul.bf16.gmra.mxu0 %v5319
        %v8499 = vpop.f32.mrf.mxu0
        %v8500 = vadd.f32 %v8486, %v8499
        %v8501 = vpop.f32.mrf.mxu0
        %v8502 = vadd.f32 %v8488, %v8501
        %8503 = vdwg.mxu0
        %8504 = vmatpush.bf16.msra.mxu0 %v7482
        %8505 = vmatpush.bf16.msra.mxu0 %v7466
        %8506 = vmatpush.bf16.msra.mxu0 %v7450
        %8507 = vmatpush.bf16.msra.mxu0 %v7434
        %8508 = vmatpush.bf16.msra.mxu0 %v7418
        %8509 = vmatpush.bf16.msra.mxu0 %v7402
        %8510 = vmatpush.bf16.msra.mxu0 %v7386
        %8511 = vmatpush.bf16.msra.mxu0 %v7370
        %8512 = vmatmul.bf16.gmra.mxu0 %v5316
        %v8513 = vpop.f32.mrf.mxu0
        %v8514 = vadd.f32 0.0, %v8513
        %v8515 = vpop.f32.mrf.mxu0
        %v8516 = vadd.f32 0.0, %v8515
        %8517 = vdwg.mxu0
        %8518 = vmatpush.bf16.msra.mxu0 %v7610
        %8519 = vmatpush.bf16.msra.mxu0 %v7594
        %8520 = vmatpush.bf16.msra.mxu0 %v7578
        %8521 = vmatpush.bf16.msra.mxu0 %v7562
        %8522 = vmatpush.bf16.msra.mxu0 %v7546
        %8523 = vmatpush.bf16.msra.mxu0 %v7530
        %8524 = vmatpush.bf16.msra.mxu0 %v7514
        %8525 = vmatpush.bf16.msra.mxu0 %v7498
        %8526 = vmatmul.bf16.gmra.mxu0 %v5317
        %v8527 = vpop.f32.mrf.mxu0
        %v8528 = vadd.f32 %v8514, %v8527
        %v8529 = vpop.f32.mrf.mxu0
        %v8530 = vadd.f32 %v8516, %v8529
        %8531 = vdwg.mxu0
        %8532 = vmatpush.bf16.msra.mxu0 %v7738
        %8533 = vmatpush.bf16.msra.mxu0 %v7722
        %8534 = vmatpush.bf16.msra.mxu0 %v7706
        %8535 = vmatpush.bf16.msra.mxu0 %v7690
        %8536 = vmatpush.bf16.msra.mxu0 %v7674
        %8537 = vmatpush.bf16.msra.mxu0 %v7658
        %8538 = vmatpush.bf16.msra.mxu0 %v7642
        %8539 = vmatpush.bf16.msra.mxu0 %v7626
        %8540 = vmatmul.bf16.gmra.mxu0 %v5318
        %v8541 = vpop.f32.mrf.mxu0
        %v8542 = vadd.f32 %v8528, %v8541
        %v8543 = vpop.f32.mrf.mxu0
        %v8544 = vadd.f32 %v8530, %v8543
        %8545 = vdwg.mxu0
        %8546 = vmatpush.bf16.msra.mxu0 %v7866
        %8547 = vmatpush.bf16.msra.mxu0 %v7850
        %8548 = vmatpush.bf16.msra.mxu0 %v7834
        %8549 = vmatpush.bf16.msra.mxu0 %v7818
        %8550 = vmatpush.bf16.msra.mxu0 %v7802
        %8551 = vmatpush.bf16.msra.mxu0 %v7786
        %8552 = vmatpush.bf16.msra.mxu0 %v7770
        %8553 = vmatpush.bf16.msra.mxu0 %v7754
        %8554 = vmatmul.bf16.gmra.mxu0 %v5319
        %v8555 = vpop.f32.mrf.mxu0
        %v8556 = vadd.f32 %v8542, %v8555
        %v8557 = vpop.f32.mrf.mxu0
        %v8558 = vadd.f32 %v8544, %v8557
        %8559 = vdwg.mxu0
        %8560 = vmatpush.bf16.msra.mxu0 %v7483
        %8561 = vmatpush.bf16.msra.mxu0 %v7467
        %8562 = vmatpush.bf16.msra.mxu0 %v7451
        %8563 = vmatpush.bf16.msra.mxu0 %v7435
        %8564 = vmatpush.bf16.msra.mxu0 %v7419
        %8565 = vmatpush.bf16.msra.mxu0 %v7403
        %8566 = vmatpush.bf16.msra.mxu0 %v7387
        %8567 = vmatpush.bf16.msra.mxu0 %v7371
        %8568 = vmatmul.bf16.gmra.mxu0 %v5316
        %v8569 = vpop.f32.mrf.mxu0
        %v8570 = vadd.f32 0.0, %v8569
        %v8571 = vpop.f32.mrf.mxu0
        %v8572 = vadd.f32 0.0, %v8571
        %8573 = vdwg.mxu0
        %8574 = vmatpush.bf16.msra.mxu0 %v7611
        %8575 = vmatpush.bf16.msra.mxu0 %v7595
        %8576 = vmatpush.bf16.msra.mxu0 %v7579
        %8577 = vmatpush.bf16.msra.mxu0 %v7563
        %8578 = vmatpush.bf16.msra.mxu0 %v7547
        %8579 = vmatpush.bf16.msra.mxu0 %v7531
        %8580 = vmatpush.bf16.msra.mxu0 %v7515
        %8581 = vmatpush.bf16.msra.mxu0 %v7499
        %8582 = vmatmul.bf16.gmra.mxu0 %v5317
        %v8583 = vpop.f32.mrf.mxu0
        %v8584 = vadd.f32 %v8570, %v8583
        %v8585 = vpop.f32.mrf.mxu0
        %v8586 = vadd.f32 %v8572, %v8585
        %8587 = vdwg.mxu0
        %8588 = vmatpush.bf16.msra.mxu0 %v7739
        %8589 = vmatpush.bf16.msra.mxu0 %v7723
        %8590 = vmatpush.bf16.msra.mxu0 %v7707
        %8591 = vmatpush.bf16.msra.mxu0 %v7691
        %8592 = vmatpush.bf16.msra.mxu0 %v7675
        %8593 = vmatpush.bf16.msra.mxu0 %v7659
        %8594 = vmatpush.bf16.msra.mxu0 %v7643
        %8595 = vmatpush.bf16.msra.mxu0 %v7627
        %8596 = vmatmul.bf16.gmra.mxu0 %v5318
        %v8597 = vpop.f32.mrf.mxu0
        %v8598 = vadd.f32 %v8584, %v8597
        %v8599 = vpop.f32.mrf.mxu0
        %v8600 = vadd.f32 %v8586, %v8599
        %8601 = vdwg.mxu0
        %8602 = vmatpush.bf16.msra.mxu0 %v7867
        %8603 = vmatpush.bf16.msra.mxu0 %v7851
        %8604 = vmatpush.bf16.msra.mxu0 %v7835
        %8605 = vmatpush.bf16.msra.mxu0 %v7819
        %8606 = vmatpush.bf16.msra.mxu0 %v7803
        %8607 = vmatpush.bf16.msra.mxu0 %v7787
        %8608 = vmatpush.bf16.msra.mxu0 %v7771
        %8609 = vmatpush.bf16.msra.mxu0 %v7755
        %8610 = vmatmul.bf16.gmra.mxu0 %v5319
        %v8611 = vpop.f32.mrf.mxu0
        %v8612 = vadd.f32 %v8598, %v8611
        %v8613 = vpop.f32.mrf.mxu0
        %v8614 = vadd.f32 %v8600, %v8613
        %8615 = vdwg.mxu0
        %8616 = vmatpush.bf16.msra.mxu0 %v7484
        %8617 = vmatpush.bf16.msra.mxu0 %v7468
        %8618 = vmatpush.bf16.msra.mxu0 %v7452
        %8619 = vmatpush.bf16.msra.mxu0 %v7436
        %8620 = vmatpush.bf16.msra.mxu0 %v7420
        %8621 = vmatpush.bf16.msra.mxu0 %v7404
        %8622 = vmatpush.bf16.msra.mxu0 %v7388
        %8623 = vmatpush.bf16.msra.mxu0 %v7372
        %8624 = vmatmul.bf16.gmra.mxu0 %v5316
        %v8625 = vpop.f32.mrf.mxu0
        %v8626 = vadd.f32 0.0, %v8625
        %v8627 = vpop.f32.mrf.mxu0
        %v8628 = vadd.f32 0.0, %v8627
        %8629 = vdwg.mxu0
        %8630 = vmatpush.bf16.msra.mxu0 %v7612
        %8631 = vmatpush.bf16.msra.mxu0 %v7596
        %8632 = vmatpush.bf16.msra.mxu0 %v7580
        %8633 = vmatpush.bf16.msra.mxu0 %v7564
        %8634 = vmatpush.bf16.msra.mxu0 %v7548
        %8635 = vmatpush.bf16.msra.mxu0 %v7532
        %8636 = vmatpush.bf16.msra.mxu0 %v7516
        %8637 = vmatpush.bf16.msra.mxu0 %v7500
        %8638 = vmatmul.bf16.gmra.mxu0 %v5317
        %v8639 = vpop.f32.mrf.mxu0
        %v8640 = vadd.f32 %v8626, %v8639
        %v8641 = vpop.f32.mrf.mxu0
        %v8642 = vadd.f32 %v8628, %v8641
        %8643 = vdwg.mxu0
        %8644 = vmatpush.bf16.msra.mxu0 %v7740
        %8645 = vmatpush.bf16.msra.mxu0 %v7724
        %8646 = vmatpush.bf16.msra.mxu0 %v7708
        %8647 = vmatpush.bf16.msra.mxu0 %v7692
        %8648 = vmatpush.bf16.msra.mxu0 %v7676
        %8649 = vmatpush.bf16.msra.mxu0 %v7660
        %8650 = vmatpush.bf16.msra.mxu0 %v7644
        %8651 = vmatpush.bf16.msra.mxu0 %v7628
        %8652 = vmatmul.bf16.gmra.mxu0 %v5318
        %v8653 = vpop.f32.mrf.mxu0
        %v8654 = vadd.f32 %v8640, %v8653
        %v8655 = vpop.f32.mrf.mxu0
        %v8656 = vadd.f32 %v8642, %v8655
        %8657 = vdwg.mxu0
        %8658 = vmatpush.bf16.msra.mxu0 %v7868
        %8659 = vmatpush.bf16.msra.mxu0 %v7852
        %8660 = vmatpush.bf16.msra.mxu0 %v7836
        %8661 = vmatpush.bf16.msra.mxu0 %v7820
        %8662 = vmatpush.bf16.msra.mxu0 %v7804
        %8663 = vmatpush.bf16.msra.mxu0 %v7788
        %8664 = vmatpush.bf16.msra.mxu0 %v7772
        %8665 = vmatpush.bf16.msra.mxu0 %v7756
        %8666 = vmatmul.bf16.gmra.mxu0 %v5319
        %v8667 = vpop.f32.mrf.mxu0
        %v8668 = vadd.f32 %v8654, %v8667
        %v8669 = vpop.f32.mrf.mxu0
        %v8670 = vadd.f32 %v8656, %v8669
        %8671 = vdwg.mxu0
        %8672 = vmatpush.bf16.msra.mxu0 %v7485
        %8673 = vmatpush.bf16.msra.mxu0 %v7469
        %8674 = vmatpush.bf16.msra.mxu0 %v7453
        %8675 = vmatpush.bf16.msra.mxu0 %v7437
        %8676 = vmatpush.bf16.msra.mxu0 %v7421
        %8677 = vmatpush.bf16.msra.mxu0 %v7405
        %8678 = vmatpush.bf16.msra.mxu0 %v7389
        %8679 = vmatpush.bf16.msra.mxu0 %v7373
        %8680 = vmatmul.bf16.gmra.mxu0 %v5316
        %v8681 = vpop.f32.mrf.mxu0
        %v8682 = vadd.f32 0.0, %v8681
        %v8683 = vpop.f32.mrf.mxu0
        %v8684 = vadd.f32 0.0, %v8683
        %8685 = vdwg.mxu0
        %8686 = vmatpush.bf16.msra.mxu0 %v7613
        %8687 = vmatpush.bf16.msra.mxu0 %v7597
        %8688 = vmatpush.bf16.msra.mxu0 %v7581
        %8689 = vmatpush.bf16.msra.mxu0 %v7565
        %8690 = vmatpush.bf16.msra.mxu0 %v7549
        %8691 = vmatpush.bf16.msra.mxu0 %v7533
        %8692 = vmatpush.bf16.msra.mxu0 %v7517
        %8693 = vmatpush.bf16.msra.mxu0 %v7501
        %8694 = vmatmul.bf16.gmra.mxu0 %v5317
        %v8695 = vpop.f32.mrf.mxu0
        %v8696 = vadd.f32 %v8682, %v8695
        %v8697 = vpop.f32.mrf.mxu0
        %v8698 = vadd.f32 %v8684, %v8697
        %8699 = vdwg.mxu0
        %8700 = vmatpush.bf16.msra.mxu0 %v7741
        %8701 = vmatpush.bf16.msra.mxu0 %v7725
        %8702 = vmatpush.bf16.msra.mxu0 %v7709
        %8703 = vmatpush.bf16.msra.mxu0 %v7693
        %8704 = vmatpush.bf16.msra.mxu0 %v7677
        %8705 = vmatpush.bf16.msra.mxu0 %v7661
        %8706 = vmatpush.bf16.msra.mxu0 %v7645
        %8707 = vmatpush.bf16.msra.mxu0 %v7629
        %8708 = vmatmul.bf16.gmra.mxu0 %v5318
        %v8709 = vpop.f32.mrf.mxu0
        %v8710 = vadd.f32 %v8696, %v8709
        %v8711 = vpop.f32.mrf.mxu0
        %v8712 = vadd.f32 %v8698, %v8711
        %8713 = vdwg.mxu0
        %8714 = vmatpush.bf16.msra.mxu0 %v7869
        %8715 = vmatpush.bf16.msra.mxu0 %v7853
        %8716 = vmatpush.bf16.msra.mxu0 %v7837
        %8717 = vmatpush.bf16.msra.mxu0 %v7821
        %8718 = vmatpush.bf16.msra.mxu0 %v7805
        %8719 = vmatpush.bf16.msra.mxu0 %v7789
        %8720 = vmatpush.bf16.msra.mxu0 %v7773
        %8721 = vmatpush.bf16.msra.mxu0 %v7757
        %8722 = vmatmul.bf16.gmra.mxu0 %v5319
        %v8723 = vpop.f32.mrf.mxu0
        %v8724 = vadd.f32 %v8710, %v8723
        %v8725 = vpop.f32.mrf.mxu0
        %v8726 = vadd.f32 %v8712, %v8725
        %8727 = vdwg.mxu0
        %8728 = vmatpush.bf16.msra.mxu0 %v7486
        %8729 = vmatpush.bf16.msra.mxu0 %v7470
        %8730 = vmatpush.bf16.msra.mxu0 %v7454
        %8731 = vmatpush.bf16.msra.mxu0 %v7438
        %8732 = vmatpush.bf16.msra.mxu0 %v7422
        %8733 = vmatpush.bf16.msra.mxu0 %v7406
        %8734 = vmatpush.bf16.msra.mxu0 %v7390
        %8735 = vmatpush.bf16.msra.mxu0 %v7374
        %8736 = vmatmul.bf16.gmra.mxu0 %v5316
        %v8737 = vpop.f32.mrf.mxu0
        %v8738 = vadd.f32 0.0, %v8737
        %v8739 = vpop.f32.mrf.mxu0
        %v8740 = vadd.f32 0.0, %v8739
        %8741 = vdwg.mxu0
        %8742 = vmatpush.bf16.msra.mxu0 %v7614
        %8743 = vmatpush.bf16.msra.mxu0 %v7598
        %8744 = vmatpush.bf16.msra.mxu0 %v7582
        %8745 = vmatpush.bf16.msra.mxu0 %v7566
        %8746 = vmatpush.bf16.msra.mxu0 %v7550
        %8747 = vmatpush.bf16.msra.mxu0 %v7534
        %8748 = vmatpush.bf16.msra.mxu0 %v7518
        %8749 = vmatpush.bf16.msra.mxu0 %v7502
        %8750 = vmatmul.bf16.gmra.mxu0 %v5317
        %v8751 = vpop.f32.mrf.mxu0
        %v8752 = vadd.f32 %v8738, %v8751
        %v8753 = vpop.f32.mrf.mxu0
        %v8754 = vadd.f32 %v8740, %v8753
        %8755 = vdwg.mxu0
        %8756 = vmatpush.bf16.msra.mxu0 %v7742
        %8757 = vmatpush.bf16.msra.mxu0 %v7726
        %8758 = vmatpush.bf16.msra.mxu0 %v7710
        %8759 = vmatpush.bf16.msra.mxu0 %v7694
        %8760 = vmatpush.bf16.msra.mxu0 %v7678
        %8761 = vmatpush.bf16.msra.mxu0 %v7662
        %8762 = vmatpush.bf16.msra.mxu0 %v7646
        %8763 = vmatpush.bf16.msra.mxu0 %v7630
        %8764 = vmatmul.bf16.gmra.mxu0 %v5318
        %v8765 = vpop.f32.mrf.mxu0
        %v8766 = vadd.f32 %v8752, %v8765
        %v8767 = vpop.f32.mrf.mxu0
        %v8768 = vadd.f32 %v8754, %v8767
        %8769 = vdwg.mxu0
        %8770 = vmatpush.bf16.msra.mxu0 %v7870
        %8771 = vmatpush.bf16.msra.mxu0 %v7854
        %8772 = vmatpush.bf16.msra.mxu0 %v7838
        %8773 = vmatpush.bf16.msra.mxu0 %v7822
        %8774 = vmatpush.bf16.msra.mxu0 %v7806
        %8775 = vmatpush.bf16.msra.mxu0 %v7790
        %8776 = vmatpush.bf16.msra.mxu0 %v7774
        %8777 = vmatpush.bf16.msra.mxu0 %v7758
        %8778 = vmatmul.bf16.gmra.mxu0 %v5319
        %v8779 = vpop.f32.mrf.mxu0
        %v8780 = vadd.f32 %v8766, %v8779
        %v8781 = vpop.f32.mrf.mxu0
        %v8782 = vadd.f32 %v8768, %v8781
        %8783 = vdwg.mxu0
        %8784 = vmatpush.bf16.msra.mxu0 %v7487
        %8785 = vmatpush.bf16.msra.mxu0 %v7471
        %8786 = vmatpush.bf16.msra.mxu0 %v7455
        %8787 = vmatpush.bf16.msra.mxu0 %v7439
        %8788 = vmatpush.bf16.msra.mxu0 %v7423
        %8789 = vmatpush.bf16.msra.mxu0 %v7407
        %8790 = vmatpush.bf16.msra.mxu0 %v7391
        %8791 = vmatpush.bf16.msra.mxu0 %v7375
        %8792 = vmatmul.bf16.gmra.mxu0 %v5316
        %v8793 = vpop.f32.mrf.mxu0
        %v8794 = vadd.f32 0.0, %v8793
        %v8795 = vpop.f32.mrf.mxu0
        %v8796 = vadd.f32 0.0, %v8795
        %8797 = vdwg.mxu0
        %8798 = vmatpush.bf16.msra.mxu0 %v7615
        %8799 = vmatpush.bf16.msra.mxu0 %v7599
        %8800 = vmatpush.bf16.msra.mxu0 %v7583
        %8801 = vmatpush.bf16.msra.mxu0 %v7567
        %8802 = vmatpush.bf16.msra.mxu0 %v7551
        %8803 = vmatpush.bf16.msra.mxu0 %v7535
        %8804 = vmatpush.bf16.msra.mxu0 %v7519
        %8805 = vmatpush.bf16.msra.mxu0 %v7503
        %8806 = vmatmul.bf16.gmra.mxu0 %v5317
        %v8807 = vpop.f32.mrf.mxu0
        %v8808 = vadd.f32 %v8794, %v8807
        %v8809 = vpop.f32.mrf.mxu0
        %v8810 = vadd.f32 %v8796, %v8809
        %8811 = vdwg.mxu0
        %8812 = vmatpush.bf16.msra.mxu0 %v7743
        %8813 = vmatpush.bf16.msra.mxu0 %v7727
        %8814 = vmatpush.bf16.msra.mxu0 %v7711
        %8815 = vmatpush.bf16.msra.mxu0 %v7695
        %8816 = vmatpush.bf16.msra.mxu0 %v7679
        %8817 = vmatpush.bf16.msra.mxu0 %v7663
        %8818 = vmatpush.bf16.msra.mxu0 %v7647
        %8819 = vmatpush.bf16.msra.mxu0 %v7631
        %8820 = vmatmul.bf16.gmra.mxu0 %v5318
        %v8821 = vpop.f32.mrf.mxu0
        %v8822 = vadd.f32 %v8808, %v8821
        %v8823 = vpop.f32.mrf.mxu0
        %v8824 = vadd.f32 %v8810, %v8823
        %8825 = vdwg.mxu0
        %8826 = vmatpush.bf16.msra.mxu0 %v7871
        %8827 = vmatpush.bf16.msra.mxu0 %v7855
        %8828 = vmatpush.bf16.msra.mxu0 %v7839
        %8829 = vmatpush.bf16.msra.mxu0 %v7823
        %8830 = vmatpush.bf16.msra.mxu0 %v7807
        %8831 = vmatpush.bf16.msra.mxu0 %v7791
        %8832 = vmatpush.bf16.msra.mxu0 %v7775
        %8833 = vmatpush.bf16.msra.mxu0 %v7759
        %8834 = vmatmul.bf16.gmra.mxu0 %v5319
        %v8835 = vpop.f32.mrf.mxu0
        %v8836 = vadd.f32 %v8822, %v8835
        %v8837 = vpop.f32.mrf.mxu0
        %v8838 = vadd.f32 %v8824, %v8837
        %8839 = vdwg.mxu0
        %8840 = vmatpush.bf16.msra.mxu0 %v7488
        %8841 = vmatpush.bf16.msra.mxu0 %v7472
        %8842 = vmatpush.bf16.msra.mxu0 %v7456
        %8843 = vmatpush.bf16.msra.mxu0 %v7440
        %8844 = vmatpush.bf16.msra.mxu0 %v7424
        %8845 = vmatpush.bf16.msra.mxu0 %v7408
        %8846 = vmatpush.bf16.msra.mxu0 %v7392
        %8847 = vmatpush.bf16.msra.mxu0 %v7376
        %8848 = vmatmul.bf16.gmra.mxu0 %v5316
        %v8849 = vpop.f32.mrf.mxu0
        %v8850 = vadd.f32 0.0, %v8849
        %v8851 = vpop.f32.mrf.mxu0
        %v8852 = vadd.f32 0.0, %v8851
        %8853 = vdwg.mxu0
        %8854 = vmatpush.bf16.msra.mxu0 %v7616
        %8855 = vmatpush.bf16.msra.mxu0 %v7600
        %8856 = vmatpush.bf16.msra.mxu0 %v7584
        %8857 = vmatpush.bf16.msra.mxu0 %v7568
        %8858 = vmatpush.bf16.msra.mxu0 %v7552
        %8859 = vmatpush.bf16.msra.mxu0 %v7536
        %8860 = vmatpush.bf16.msra.mxu0 %v7520
        %8861 = vmatpush.bf16.msra.mxu0 %v7504
        %8862 = vmatmul.bf16.gmra.mxu0 %v5317
        %v8863 = vpop.f32.mrf.mxu0
        %v8864 = vadd.f32 %v8850, %v8863
        %v8865 = vpop.f32.mrf.mxu0
        %v8866 = vadd.f32 %v8852, %v8865
        %8867 = vdwg.mxu0
        %8868 = vmatpush.bf16.msra.mxu0 %v7744
        %8869 = vmatpush.bf16.msra.mxu0 %v7728
        %8870 = vmatpush.bf16.msra.mxu0 %v7712
        %8871 = vmatpush.bf16.msra.mxu0 %v7696
        %8872 = vmatpush.bf16.msra.mxu0 %v7680
        %8873 = vmatpush.bf16.msra.mxu0 %v7664
        %8874 = vmatpush.bf16.msra.mxu0 %v7648
        %8875 = vmatpush.bf16.msra.mxu0 %v7632
        %8876 = vmatmul.bf16.gmra.mxu0 %v5318
        %v8877 = vpop.f32.mrf.mxu0
        %v8878 = vadd.f32 %v8864, %v8877
        %v8879 = vpop.f32.mrf.mxu0
        %v8880 = vadd.f32 %v8866, %v8879
        %8881 = vdwg.mxu0
        %8882 = vmatpush.bf16.msra.mxu0 %v7872
        %8883 = vmatpush.bf16.msra.mxu0 %v7856
        %8884 = vmatpush.bf16.msra.mxu0 %v7840
        %8885 = vmatpush.bf16.msra.mxu0 %v7824
        %8886 = vmatpush.bf16.msra.mxu0 %v7808
        %8887 = vmatpush.bf16.msra.mxu0 %v7792
        %8888 = vmatpush.bf16.msra.mxu0 %v7776
        %8889 = vmatpush.bf16.msra.mxu0 %v7760
        %8890 = vmatmul.bf16.gmra.mxu0 %v5319
        %v8891 = vpop.f32.mrf.mxu0
        %v8892 = vadd.f32 %v8878, %v8891
        %v8893 = vpop.f32.mrf.mxu0
        %v8894 = vadd.f32 %v8880, %v8893
        %8895 = vdwg.mxu0
        %8896 = vmatpush.bf16.msra.mxu0 %v7489
        %8897 = vmatpush.bf16.msra.mxu0 %v7473
        %8898 = vmatpush.bf16.msra.mxu0 %v7457
        %8899 = vmatpush.bf16.msra.mxu0 %v7441
        %8900 = vmatpush.bf16.msra.mxu0 %v7425
        %8901 = vmatpush.bf16.msra.mxu0 %v7409
        %8902 = vmatpush.bf16.msra.mxu0 %v7393
        %8903 = vmatpush.bf16.msra.mxu0 %v7377
        %8904 = vmatmul.bf16.gmra.mxu0 %v5316
        %v8905 = vpop.f32.mrf.mxu0
        %v8906 = vadd.f32 0.0, %v8905
        %v8907 = vpop.f32.mrf.mxu0
        %v8908 = vadd.f32 0.0, %v8907
        %8909 = vdwg.mxu0
        %8910 = vmatpush.bf16.msra.mxu0 %v7617
        %8911 = vmatpush.bf16.msra.mxu0 %v7601
        %8912 = vmatpush.bf16.msra.mxu0 %v7585
        %8913 = vmatpush.bf16.msra.mxu0 %v7569
        %8914 = vmatpush.bf16.msra.mxu0 %v7553
        %8915 = vmatpush.bf16.msra.mxu0 %v7537
        %8916 = vmatpush.bf16.msra.mxu0 %v7521
        %8917 = vmatpush.bf16.msra.mxu0 %v7505
        %8918 = vmatmul.bf16.gmra.mxu0 %v5317
        %v8919 = vpop.f32.mrf.mxu0
        %v8920 = vadd.f32 %v8906, %v8919
        %v8921 = vpop.f32.mrf.mxu0
        %v8922 = vadd.f32 %v8908, %v8921
        %8923 = vdwg.mxu0
        %8924 = vmatpush.bf16.msra.mxu0 %v7745
        %8925 = vmatpush.bf16.msra.mxu0 %v7729
        %8926 = vmatpush.bf16.msra.mxu0 %v7713
        %8927 = vmatpush.bf16.msra.mxu0 %v7697
        %8928 = vmatpush.bf16.msra.mxu0 %v7681
        %8929 = vmatpush.bf16.msra.mxu0 %v7665
        %8930 = vmatpush.bf16.msra.mxu0 %v7649
        %8931 = vmatpush.bf16.msra.mxu0 %v7633
        %8932 = vmatmul.bf16.gmra.mxu0 %v5318
        %v8933 = vpop.f32.mrf.mxu0
        %v8934 = vadd.f32 %v8920, %v8933
        %v8935 = vpop.f32.mrf.mxu0
        %v8936 = vadd.f32 %v8922, %v8935
        %8937 = vdwg.mxu0
        %8938 = vmatpush.bf16.msra.mxu0 %v7873
        %8939 = vmatpush.bf16.msra.mxu0 %v7857
        %8940 = vmatpush.bf16.msra.mxu0 %v7841
        %8941 = vmatpush.bf16.msra.mxu0 %v7825
        %8942 = vmatpush.bf16.msra.mxu0 %v7809
        %8943 = vmatpush.bf16.msra.mxu0 %v7793
        %8944 = vmatpush.bf16.msra.mxu0 %v7777
        %8945 = vmatpush.bf16.msra.mxu0 %v7761
        %8946 = vmatmul.bf16.gmra.mxu0 %v5319
        %v8947 = vpop.f32.mrf.mxu0
        %v8948 = vadd.f32 %v8934, %v8947
        %v8949 = vpop.f32.mrf.mxu0
        %v8950 = vadd.f32 %v8936, %v8949
        %8951 = vdwg.mxu0
        %8952 = vmatpush.bf16.msra.mxu0 %v7490
        %8953 = vmatpush.bf16.msra.mxu0 %v7474
        %8954 = vmatpush.bf16.msra.mxu0 %v7458
        %8955 = vmatpush.bf16.msra.mxu0 %v7442
        %8956 = vmatpush.bf16.msra.mxu0 %v7426
        %8957 = vmatpush.bf16.msra.mxu0 %v7410
        %8958 = vmatpush.bf16.msra.mxu0 %v7394
        %8959 = vmatpush.bf16.msra.mxu0 %v7378
        %8960 = vmatmul.bf16.gmra.mxu0 %v5316
        %v8961 = vpop.f32.mrf.mxu0
        %v8962 = vadd.f32 0.0, %v8961
        %v8963 = vpop.f32.mrf.mxu0
        %v8964 = vadd.f32 0.0, %v8963
        %8965 = vdwg.mxu0
        %8966 = vmatpush.bf16.msra.mxu0 %v7618
        %8967 = vmatpush.bf16.msra.mxu0 %v7602
        %8968 = vmatpush.bf16.msra.mxu0 %v7586
        %8969 = vmatpush.bf16.msra.mxu0 %v7570
        %8970 = vmatpush.bf16.msra.mxu0 %v7554
        %8971 = vmatpush.bf16.msra.mxu0 %v7538
        %8972 = vmatpush.bf16.msra.mxu0 %v7522
        %8973 = vmatpush.bf16.msra.mxu0 %v7506
        %8974 = vmatmul.bf16.gmra.mxu0 %v5317
        %v8975 = vpop.f32.mrf.mxu0
        %v8976 = vadd.f32 %v8962, %v8975
        %v8977 = vpop.f32.mrf.mxu0
        %v8978 = vadd.f32 %v8964, %v8977
        %8979 = vdwg.mxu0
        %8980 = vmatpush.bf16.msra.mxu0 %v7746
        %8981 = vmatpush.bf16.msra.mxu0 %v7730
        %8982 = vmatpush.bf16.msra.mxu0 %v7714
        %8983 = vmatpush.bf16.msra.mxu0 %v7698
        %8984 = vmatpush.bf16.msra.mxu0 %v7682
        %8985 = vmatpush.bf16.msra.mxu0 %v7666
        %8986 = vmatpush.bf16.msra.mxu0 %v7650
        %8987 = vmatpush.bf16.msra.mxu0 %v7634
        %8988 = vmatmul.bf16.gmra.mxu0 %v5318
        %v8989 = vpop.f32.mrf.mxu0
        %v8990 = vadd.f32 %v8976, %v8989
        %v8991 = vpop.f32.mrf.mxu0
        %v8992 = vadd.f32 %v8978, %v8991
        %8993 = vdwg.mxu0
        %8994 = vmatpush.bf16.msra.mxu0 %v7874
        %8995 = vmatpush.bf16.msra.mxu0 %v7858
        %8996 = vmatpush.bf16.msra.mxu0 %v7842
        %8997 = vmatpush.bf16.msra.mxu0 %v7826
        %8998 = vmatpush.bf16.msra.mxu0 %v7810
        %8999 = vmatpush.bf16.msra.mxu0 %v7794
        %9000 = vmatpush.bf16.msra.mxu0 %v7778
        %9001 = vmatpush.bf16.msra.mxu0 %v7762
        %9002 = vmatmul.bf16.gmra.mxu0 %v5319
        %v9003 = vpop.f32.mrf.mxu0
        %v9004 = vadd.f32 %v8990, %v9003
        %v9005 = vpop.f32.mrf.mxu0
        %v9006 = vadd.f32 %v8992, %v9005
        %9007 = vdwg.mxu0
        %9008 = vmatpush.bf16.msra.mxu0 %v7491
        %9009 = vmatpush.bf16.msra.mxu0 %v7475
        %9010 = vmatpush.bf16.msra.mxu0 %v7459
        %9011 = vmatpush.bf16.msra.mxu0 %v7443
        %9012 = vmatpush.bf16.msra.mxu0 %v7427
        %9013 = vmatpush.bf16.msra.mxu0 %v7411
        %9014 = vmatpush.bf16.msra.mxu0 %v7395
        %9015 = vmatpush.bf16.msra.mxu0 %v7379
        %9016 = vmatmul.bf16.gmra.mxu0 %v5316
        %v9017 = vpop.f32.mrf.mxu0
        %v9018 = vadd.f32 0.0, %v9017
        %v9019 = vpop.f32.mrf.mxu0
        %v9020 = vadd.f32 0.0, %v9019
        %9021 = vdwg.mxu0
        %9022 = vmatpush.bf16.msra.mxu0 %v7619
        %9023 = vmatpush.bf16.msra.mxu0 %v7603
        %9024 = vmatpush.bf16.msra.mxu0 %v7587
        %9025 = vmatpush.bf16.msra.mxu0 %v7571
        %9026 = vmatpush.bf16.msra.mxu0 %v7555
        %9027 = vmatpush.bf16.msra.mxu0 %v7539
        %9028 = vmatpush.bf16.msra.mxu0 %v7523
        %9029 = vmatpush.bf16.msra.mxu0 %v7507
        %9030 = vmatmul.bf16.gmra.mxu0 %v5317
        %v9031 = vpop.f32.mrf.mxu0
        %v9032 = vadd.f32 %v9018, %v9031
        %v9033 = vpop.f32.mrf.mxu0
        %v9034 = vadd.f32 %v9020, %v9033
        %9035 = vdwg.mxu0
        %9036 = vmatpush.bf16.msra.mxu0 %v7747
        %9037 = vmatpush.bf16.msra.mxu0 %v7731
        %9038 = vmatpush.bf16.msra.mxu0 %v7715
        %9039 = vmatpush.bf16.msra.mxu0 %v7699
        %9040 = vmatpush.bf16.msra.mxu0 %v7683
        %9041 = vmatpush.bf16.msra.mxu0 %v7667
        %9042 = vmatpush.bf16.msra.mxu0 %v7651
        %9043 = vmatpush.bf16.msra.mxu0 %v7635
        %9044 = vmatmul.bf16.gmra.mxu0 %v5318
        %v9045 = vpop.f32.mrf.mxu0
        %v9046 = vadd.f32 %v9032, %v9045
        %v9047 = vpop.f32.mrf.mxu0
        %v9048 = vadd.f32 %v9034, %v9047
        %9049 = vdwg.mxu0
        %9050 = vmatpush.bf16.msra.mxu0 %v7875
        %9051 = vmatpush.bf16.msra.mxu0 %v7859
        %9052 = vmatpush.bf16.msra.mxu0 %v7843
        %9053 = vmatpush.bf16.msra.mxu0 %v7827
        %9054 = vmatpush.bf16.msra.mxu0 %v7811
        %9055 = vmatpush.bf16.msra.mxu0 %v7795
        %9056 = vmatpush.bf16.msra.mxu0 %v7779
        %9057 = vmatpush.bf16.msra.mxu0 %v7763
        %9058 = vmatmul.bf16.gmra.mxu0 %v5319
        %v9059 = vpop.f32.mrf.mxu0
        %v9060 = vadd.f32 %v9046, %v9059
        %v9061 = vpop.f32.mrf.mxu0
        %v9062 = vadd.f32 %v9048, %v9061
        %9063 = vdwg.mxu0
        %9064 = vmatpush.bf16.msra.mxu0 %v7492
        %9065 = vmatpush.bf16.msra.mxu0 %v7476
        %9066 = vmatpush.bf16.msra.mxu0 %v7460
        %9067 = vmatpush.bf16.msra.mxu0 %v7444
        %9068 = vmatpush.bf16.msra.mxu0 %v7428
        %9069 = vmatpush.bf16.msra.mxu0 %v7412
        %9070 = vmatpush.bf16.msra.mxu0 %v7396
        %9071 = vmatpush.bf16.msra.mxu0 %v7380
        %9072 = vmatmul.bf16.gmra.mxu0 %v5316
        %v9073 = vpop.f32.mrf.mxu0
        %v9074 = vadd.f32 0.0, %v9073
        %v9075 = vpop.f32.mrf.mxu0
        %v9076 = vadd.f32 0.0, %v9075
        %9077 = vdwg.mxu0
        %9078 = vmatpush.bf16.msra.mxu0 %v7620
        %9079 = vmatpush.bf16.msra.mxu0 %v7604
        %9080 = vmatpush.bf16.msra.mxu0 %v7588
        %9081 = vmatpush.bf16.msra.mxu0 %v7572
        %9082 = vmatpush.bf16.msra.mxu0 %v7556
        %9083 = vmatpush.bf16.msra.mxu0 %v7540
        %9084 = vmatpush.bf16.msra.mxu0 %v7524
        %9085 = vmatpush.bf16.msra.mxu0 %v7508
        %9086 = vmatmul.bf16.gmra.mxu0 %v5317
        %v9087 = vpop.f32.mrf.mxu0
        %v9088 = vadd.f32 %v9074, %v9087
        %v9089 = vpop.f32.mrf.mxu0
        %v9090 = vadd.f32 %v9076, %v9089
        %9091 = vdwg.mxu0
        %9092 = vmatpush.bf16.msra.mxu0 %v7748
        %9093 = vmatpush.bf16.msra.mxu0 %v7732
        %9094 = vmatpush.bf16.msra.mxu0 %v7716
        %9095 = vmatpush.bf16.msra.mxu0 %v7700
        %9096 = vmatpush.bf16.msra.mxu0 %v7684
        %9097 = vmatpush.bf16.msra.mxu0 %v7668
        %9098 = vmatpush.bf16.msra.mxu0 %v7652
        %9099 = vmatpush.bf16.msra.mxu0 %v7636
        %9100 = vmatmul.bf16.gmra.mxu0 %v5318
        %v9101 = vpop.f32.mrf.mxu0
        %v9102 = vadd.f32 %v9088, %v9101
        %v9103 = vpop.f32.mrf.mxu0
        %v9104 = vadd.f32 %v9090, %v9103
        %9105 = vdwg.mxu0
        %9106 = vmatpush.bf16.msra.mxu0 %v7876
        %9107 = vmatpush.bf16.msra.mxu0 %v7860
        %9108 = vmatpush.bf16.msra.mxu0 %v7844
        %9109 = vmatpush.bf16.msra.mxu0 %v7828
        %9110 = vmatpush.bf16.msra.mxu0 %v7812
        %9111 = vmatpush.bf16.msra.mxu0 %v7796
        %9112 = vmatpush.bf16.msra.mxu0 %v7780
        %9113 = vmatpush.bf16.msra.mxu0 %v7764
        %9114 = vmatmul.bf16.gmra.mxu0 %v5319
        %v9115 = vpop.f32.mrf.mxu0
        %v9116 = vadd.f32 %v9102, %v9115
        %v9117 = vpop.f32.mrf.mxu0
        %v9118 = vadd.f32 %v9104, %v9117
        %9119 = vdwg.mxu0
        %9120 = vmatpush.bf16.msra.mxu0 %v7493
        %9121 = vmatpush.bf16.msra.mxu0 %v7477
        %9122 = vmatpush.bf16.msra.mxu0 %v7461
        %9123 = vmatpush.bf16.msra.mxu0 %v7445
        %9124 = vmatpush.bf16.msra.mxu0 %v7429
        %9125 = vmatpush.bf16.msra.mxu0 %v7413
        %9126 = vmatpush.bf16.msra.mxu0 %v7397
        %9127 = vmatpush.bf16.msra.mxu0 %v7381
        %9128 = vmatmul.bf16.gmra.mxu0 %v5316
        %v9129 = vpop.f32.mrf.mxu0
        %v9130 = vadd.f32 0.0, %v9129
        %v9131 = vpop.f32.mrf.mxu0
        %v9132 = vadd.f32 0.0, %v9131
        %9133 = vdwg.mxu0
        %9134 = vmatpush.bf16.msra.mxu0 %v7621
        %9135 = vmatpush.bf16.msra.mxu0 %v7605
        %9136 = vmatpush.bf16.msra.mxu0 %v7589
        %9137 = vmatpush.bf16.msra.mxu0 %v7573
        %9138 = vmatpush.bf16.msra.mxu0 %v7557
        %9139 = vmatpush.bf16.msra.mxu0 %v7541
        %9140 = vmatpush.bf16.msra.mxu0 %v7525
        %9141 = vmatpush.bf16.msra.mxu0 %v7509
        %9142 = vmatmul.bf16.gmra.mxu0 %v5317
        %v9143 = vpop.f32.mrf.mxu0
        %v9144 = vadd.f32 %v9130, %v9143
        %v9145 = vpop.f32.mrf.mxu0
        %v9146 = vadd.f32 %v9132, %v9145
        %9147 = vdwg.mxu0
        %9148 = vmatpush.bf16.msra.mxu0 %v7749
        %9149 = vmatpush.bf16.msra.mxu0 %v7733
        %9150 = vmatpush.bf16.msra.mxu0 %v7717
        %9151 = vmatpush.bf16.msra.mxu0 %v7701
        %9152 = vmatpush.bf16.msra.mxu0 %v7685
        %9153 = vmatpush.bf16.msra.mxu0 %v7669
        %9154 = vmatpush.bf16.msra.mxu0 %v7653
        %9155 = vmatpush.bf16.msra.mxu0 %v7637
        %9156 = vmatmul.bf16.gmra.mxu0 %v5318
        %v9157 = vpop.f32.mrf.mxu0
        %v9158 = vadd.f32 %v9144, %v9157
        %v9159 = vpop.f32.mrf.mxu0
        %v9160 = vadd.f32 %v9146, %v9159
        %9161 = vdwg.mxu0
        %9162 = vmatpush.bf16.msra.mxu0 %v7877
        %9163 = vmatpush.bf16.msra.mxu0 %v7861
        %9164 = vmatpush.bf16.msra.mxu0 %v7845
        %9165 = vmatpush.bf16.msra.mxu0 %v7829
        %9166 = vmatpush.bf16.msra.mxu0 %v7813
        %9167 = vmatpush.bf16.msra.mxu0 %v7797
        %9168 = vmatpush.bf16.msra.mxu0 %v7781
        %9169 = vmatpush.bf16.msra.mxu0 %v7765
        %9170 = vmatmul.bf16.gmra.mxu0 %v5319
        %v9171 = vpop.f32.mrf.mxu0
        %v9172 = vadd.f32 %v9158, %v9171
        %v9173 = vpop.f32.mrf.mxu0
        %v9174 = vadd.f32 %v9160, %v9173
        %9175 = vdwg.mxu0
        %9176 = vmatpush.bf16.msra.mxu0 %v7494
        %9177 = vmatpush.bf16.msra.mxu0 %v7478
        %9178 = vmatpush.bf16.msra.mxu0 %v7462
        %9179 = vmatpush.bf16.msra.mxu0 %v7446
        %9180 = vmatpush.bf16.msra.mxu0 %v7430
        %9181 = vmatpush.bf16.msra.mxu0 %v7414
        %9182 = vmatpush.bf16.msra.mxu0 %v7398
        %9183 = vmatpush.bf16.msra.mxu0 %v7382
        %9184 = vmatmul.bf16.gmra.mxu0 %v5316
        %v9185 = vpop.f32.mrf.mxu0
        %v9186 = vadd.f32 0.0, %v9185
        %v9187 = vpop.f32.mrf.mxu0
        %v9188 = vadd.f32 0.0, %v9187
        %9189 = vdwg.mxu0
        %9190 = vmatpush.bf16.msra.mxu0 %v7622
        %9191 = vmatpush.bf16.msra.mxu0 %v7606
        %9192 = vmatpush.bf16.msra.mxu0 %v7590
        %9193 = vmatpush.bf16.msra.mxu0 %v7574
        %9194 = vmatpush.bf16.msra.mxu0 %v7558
        %9195 = vmatpush.bf16.msra.mxu0 %v7542
        %9196 = vmatpush.bf16.msra.mxu0 %v7526
        %9197 = vmatpush.bf16.msra.mxu0 %v7510
        %9198 = vmatmul.bf16.gmra.mxu0 %v5317
        %v9199 = vpop.f32.mrf.mxu0
        %v9200 = vadd.f32 %v9186, %v9199
        %v9201 = vpop.f32.mrf.mxu0
        %v9202 = vadd.f32 %v9188, %v9201
        %9203 = vdwg.mxu0
        %9204 = vmatpush.bf16.msra.mxu0 %v7750
        %9205 = vmatpush.bf16.msra.mxu0 %v7734
        %9206 = vmatpush.bf16.msra.mxu0 %v7718
        %9207 = vmatpush.bf16.msra.mxu0 %v7702
        %9208 = vmatpush.bf16.msra.mxu0 %v7686
        %9209 = vmatpush.bf16.msra.mxu0 %v7670
        %9210 = vmatpush.bf16.msra.mxu0 %v7654
        %9211 = vmatpush.bf16.msra.mxu0 %v7638
        %9212 = vmatmul.bf16.gmra.mxu0 %v5318
        %v9213 = vpop.f32.mrf.mxu0
        %v9214 = vadd.f32 %v9200, %v9213
        %v9215 = vpop.f32.mrf.mxu0
        %v9216 = vadd.f32 %v9202, %v9215
        %9217 = vdwg.mxu0
        %9218 = vmatpush.bf16.msra.mxu0 %v7878
        %9219 = vmatpush.bf16.msra.mxu0 %v7862
        %9220 = vmatpush.bf16.msra.mxu0 %v7846
        %9221 = vmatpush.bf16.msra.mxu0 %v7830
        %9222 = vmatpush.bf16.msra.mxu0 %v7814
        %9223 = vmatpush.bf16.msra.mxu0 %v7798
        %9224 = vmatpush.bf16.msra.mxu0 %v7782
        %9225 = vmatpush.bf16.msra.mxu0 %v7766
        %9226 = vmatmul.bf16.gmra.mxu0 %v5319
        %v9227 = vpop.f32.mrf.mxu0
        %v9228 = vadd.f32 %v9214, %v9227
        %v9229 = vpop.f32.mrf.mxu0
        %v9230 = vadd.f32 %v9216, %v9229
        %9231 = vdwg.mxu0
        %9232 = vmatpush.bf16.msra.mxu0 %v7495
        %9233 = vmatpush.bf16.msra.mxu0 %v7479
        %9234 = vmatpush.bf16.msra.mxu0 %v7463
        %9235 = vmatpush.bf16.msra.mxu0 %v7447
        %9236 = vmatpush.bf16.msra.mxu0 %v7431
        %9237 = vmatpush.bf16.msra.mxu0 %v7415
        %9238 = vmatpush.bf16.msra.mxu0 %v7399
        %9239 = vmatpush.bf16.msra.mxu0 %v7383
        %9240 = vmatmul.bf16.gmra.mxu0 %v5316
        %v9241 = vpop.f32.mrf.mxu0
        %v9242 = vadd.f32 0.0, %v9241
        %v9243 = vpop.f32.mrf.mxu0
        %v9244 = vadd.f32 0.0, %v9243
        %9245 = vdwg.mxu0
        %9246 = vmatpush.bf16.msra.mxu0 %v7623
        %9247 = vmatpush.bf16.msra.mxu0 %v7607
        %9248 = vmatpush.bf16.msra.mxu0 %v7591
        %9249 = vmatpush.bf16.msra.mxu0 %v7575
        %9250 = vmatpush.bf16.msra.mxu0 %v7559
        %9251 = vmatpush.bf16.msra.mxu0 %v7543
        %9252 = vmatpush.bf16.msra.mxu0 %v7527
        %9253 = vmatpush.bf16.msra.mxu0 %v7511
        %9254 = vmatmul.bf16.gmra.mxu0 %v5317
        %v9255 = vpop.f32.mrf.mxu0
        %v9256 = vadd.f32 %v9242, %v9255
        %v9257 = vpop.f32.mrf.mxu0
        %v9258 = vadd.f32 %v9244, %v9257
        %9259 = vdwg.mxu0
        %9260 = vmatpush.bf16.msra.mxu0 %v7751
        %9261 = vmatpush.bf16.msra.mxu0 %v7735
        %9262 = vmatpush.bf16.msra.mxu0 %v7719
        %9263 = vmatpush.bf16.msra.mxu0 %v7703
        %9264 = vmatpush.bf16.msra.mxu0 %v7687
        %9265 = vmatpush.bf16.msra.mxu0 %v7671
        %9266 = vmatpush.bf16.msra.mxu0 %v7655
        %9267 = vmatpush.bf16.msra.mxu0 %v7639
        %9268 = vmatmul.bf16.gmra.mxu0 %v5318
        %v9269 = vpop.f32.mrf.mxu0
        %v9270 = vadd.f32 %v9256, %v9269
        %v9271 = vpop.f32.mrf.mxu0
        %v9272 = vadd.f32 %v9258, %v9271
        %9273 = vdwg.mxu0
        %9274 = vmatpush.bf16.msra.mxu0 %v7879
        %9275 = vmatpush.bf16.msra.mxu0 %v7863
        %9276 = vmatpush.bf16.msra.mxu0 %v7847
        %9277 = vmatpush.bf16.msra.mxu0 %v7831
        %9278 = vmatpush.bf16.msra.mxu0 %v7815
        %9279 = vmatpush.bf16.msra.mxu0 %v7799
        %9280 = vmatpush.bf16.msra.mxu0 %v7783
        %9281 = vmatpush.bf16.msra.mxu0 %v7767
        %9282 = vmatmul.bf16.gmra.mxu0 %v5319
        %v9283 = vpop.f32.mrf.mxu0
        %v9284 = vadd.f32 %v9270, %v9283
        %v9285 = vpop.f32.mrf.mxu0
        %v9286 = vadd.f32 %v9272, %v9285
        %9287 = vdwg.mxu0
        %v9288 = vadd.f32 %v5284, %v8444
        %v9289 = vadd.f32 %v5285, %v8500
        %v9290 = vadd.f32 %v5286, %v8556
        %v9291 = vadd.f32 %v5287, %v8612
        %v9292 = vadd.f32 %v5288, %v8668
        %v9293 = vadd.f32 %v5289, %v8724
        %v9294 = vadd.f32 %v5290, %v8780
        %v9295 = vadd.f32 %v5291, %v8836
        %v9296 = vadd.f32 %v5292, %v8892
        %v9297 = vadd.f32 %v5293, %v8948
        %v9298 = vadd.f32 %v5294, %v9004
        %v9299 = vadd.f32 %v5295, %v9060
        %v9300 = vadd.f32 %v5296, %v9116
        %v9301 = vadd.f32 %v5297, %v9172
        %v9302 = vadd.f32 %v5298, %v9228
        %v9303 = vadd.f32 %v5299, %v9284
        %v9304 = vadd.f32 %v5300, %v8446
        %v9305 = vadd.f32 %v5301, %v8502
        %v9306 = vadd.f32 %v5302, %v8558
        %v9307 = vadd.f32 %v5303, %v8614
        %v9308 = vadd.f32 %v5304, %v8670
        %v9309 = vadd.f32 %v5305, %v8726
        %v9310 = vadd.f32 %v5306, %v8782
        %v9311 = vadd.f32 %v5307, %v8838
        %v9312 = vadd.f32 %v5308, %v8894
        %v9313 = vadd.f32 %v5309, %v8950
        %v9314 = vadd.f32 %v5310, %v9006
        %v9315 = vadd.f32 %v5311, %v9062
        %v9316 = vadd.f32 %v5312, %v9118
        %v9317 = vadd.f32 %v5313, %v9174
        %v9318 = vadd.f32 %v5314, %v9230
        %v9319 = vadd.f32 %v5315, %v9286
        %9320 = vst [vmem:[#allocation2] sm:$0xff] %v9288
        %9321 = vst [vmem:[#allocation2 + $0x8] sm:$0xff] %v9289
        %9322 = vst [vmem:[#allocation2 + $0x10] sm:$0xff] %v9290
        %9323 = vst [vmem:[#allocation2 + $0x18] sm:$0xff] %v9291
        %9324 = vst [vmem:[#allocation2 + $0x20] sm:$0xff] %v9292
        %9325 = vst [vmem:[#allocation2 + $0x28] sm:$0xff] %v9293
        %9326 = vst [vmem:[#allocation2 + $0x30] sm:$0xff] %v9294
        %9327 = vst [vmem:[#allocation2 + $0x38] sm:$0xff] %v9295
        %9328 = vst [vmem:[#allocation2 + $0x40] sm:$0xff] %v9296
        %9329 = vst [vmem:[#allocation2 + $0x48] sm:$0xff] %v9297
        %9330 = vst [vmem:[#allocation2 + $0x50] sm:$0xff] %v9298
        %9331 = vst [vmem:[#allocation2 + $0x58] sm:$0xff] %v9299
        %9332 = vst [vmem:[#allocation2 + $0x60] sm:$0xff] %v9300
        %9333 = vst [vmem:[#allocation2 + $0x68] sm:$0xff] %v9301
        %9334 = vst [vmem:[#allocation2 + $0x70] sm:$0xff] %v9302
        %9335 = vst.msk [vmem:[#allocation2 + $0x78] sm:$0xff] %vm4360, %v9303
        %9336 = vst [vmem:[#allocation2 + $0x80] sm:$0xff] %v9304
        %9337 = vst [vmem:[#allocation2 + $0x88] sm:$0xff] %v9305
        %9338 = vst [vmem:[#allocation2 + $0x90] sm:$0xff] %v9306
        %9339 = vst [vmem:[#allocation2 + $0x98] sm:$0xff] %v9307
        %9340 = vst [vmem:[#allocation2 + $0xa0] sm:$0xff] %v9308
        %9341 = vst [vmem:[#allocation2 + $0xa8] sm:$0xff] %v9309
        %9342 = vst [vmem:[#allocation2 + $0xb0] sm:$0xff] %v9310
        %9343 = vst [vmem:[#allocation2 + $0xb8] sm:$0xff] %v9311
        %9344 = vst [vmem:[#allocation2 + $0xc0] sm:$0xff] %v9312
        %9345 = vst [vmem:[#allocation2 + $0xc8] sm:$0xff] %v9313
        %9346 = vst [vmem:[#allocation2 + $0xd0] sm:$0xff] %v9314
        %9347 = vst [vmem:[#allocation2 + $0xd8] sm:$0xff] %v9315
        %9348 = vst [vmem:[#allocation2 + $0xe0] sm:$0xff] %v9316
        %9349 = vst [vmem:[#allocation2 + $0xe8] sm:$0xff] %v9317
        %9350 = vst [vmem:[#allocation2 + $0xf0] sm:$0xff] %v9318
        %9351 = vst.msk [vmem:[#allocation2 + $0xf8] sm:$0xff] %vm4360, %v9319
        %p9352 = scmp.eq.s32.totalorder %s22, 15
        // Predicated region
        $region68: #{feed_forward.1} parent=58 // pred_check
          %p9353 = pneg %p9352
        $region69: #{feed_forward.1} parent=58 // pred_check_branch
          %9355 = sbr.rel (%p9353) target = $region71
        $region70: #{feed_forward.1} parent=58 // pred_region
          %v9356 = vld [vmem:[#allocation2] sm:$0xff]
          %v9357 = vld [vmem:[#allocation2 + $0x8] sm:$0xff]
          %v9358 = vld [vmem:[#allocation2 + $0x10] sm:$0xff]
          %v9359 = vld [vmem:[#allocation2 + $0x18] sm:$0xff]
          %v9360 = vld [vmem:[#allocation2 + $0x20] sm:$0xff]
          %v9361 = vld [vmem:[#allocation2 + $0x28] sm:$0xff]
          %v9362 = vld [vmem:[#allocation2 + $0x30] sm:$0xff]
          %v9363 = vld [vmem:[#allocation2 + $0x38] sm:$0xff]
          %v9364 = vld [vmem:[#allocation2 + $0x40] sm:$0xff]
          %v9365 = vld [vmem:[#allocation2 + $0x48] sm:$0xff]
          %v9366 = vld [vmem:[#allocation2 + $0x50] sm:$0xff]
          %v9367 = vld [vmem:[#allocation2 + $0x58] sm:$0xff]
          %v9368 = vld [vmem:[#allocation2 + $0x60] sm:$0xff]
          %v9369 = vld [vmem:[#allocation2 + $0x68] sm:$0xff]
          %v9370 = vld [vmem:[#allocation2 + $0x70] sm:$0xff]
          %v9371 = vld [vmem:[#allocation2 + $0x78] sm:$0xff]
          %v9372 = vld [vmem:[#allocation2 + $0x80] sm:$0xff]
          %v9373 = vld [vmem:[#allocation2 + $0x88] sm:$0xff]
          %v9374 = vld [vmem:[#allocation2 + $0x90] sm:$0xff]
          %v9375 = vld [vmem:[#allocation2 + $0x98] sm:$0xff]
          %v9376 = vld [vmem:[#allocation2 + $0xa0] sm:$0xff]
          %v9377 = vld [vmem:[#allocation2 + $0xa8] sm:$0xff]
          %v9378 = vld [vmem:[#allocation2 + $0xb0] sm:$0xff]
          %v9379 = vld [vmem:[#allocation2 + $0xb8] sm:$0xff]
          %v9380 = vld [vmem:[#allocation2 + $0xc0] sm:$0xff]
          %v9381 = vld [vmem:[#allocation2 + $0xc8] sm:$0xff]
          %v9382 = vld [vmem:[#allocation2 + $0xd0] sm:$0xff]
          %v9383 = vld [vmem:[#allocation2 + $0xd8] sm:$0xff]
          %v9384 = vld [vmem:[#allocation2 + $0xe0] sm:$0xff]
          %v9385 = vld [vmem:[#allocation2 + $0xe8] sm:$0xff]
          %v9386 = vld [vmem:[#allocation2 + $0xf0] sm:$0xff]
          %v9387 = vld [vmem:[#allocation2 + $0xf8] sm:$0xff]
          %v9388 = vld [vmem:[%s4] sm:$0xff]
          %v9389 = vld [vmem:[%s4 + $0x8] sm:$0xff]
          %v9392 = vperm.slane %v9388, 0
          %v9393 = vperm.slane %v9388, 1
          %v9394 = vperm.slane %v9388, 2
          %v9395 = vperm.slane %v9388, 3
          %v9396 = vperm.slane %v9388, 4
          %v9397 = vperm.slane %v9388, 5
          %v9398 = vperm.slane %v9388, 6
          %v9399 = vperm.slane %v9388, 7
          %v9400 = vperm.slane %v9389, 0
          %v9401 = vperm.slane %v9389, 1
          %v9402 = vperm.slane %v9389, 2
          %v9403 = vperm.slane %v9389, 3
          %v9404 = vperm.slane %v9389, 4
          %v9405 = vperm.slane %v9389, 5
          %v9406 = vperm.slane %v9389, 6
          %v9407 = vperm.slane %v9389, 7
          %v9424 = vadd.f32 %v9356, %v9392
          %v9425 = vadd.f32 %v9357, %v9393
          %v9426 = vadd.f32 %v9358, %v9394
          %v9427 = vadd.f32 %v9359, %v9395
          %v9428 = vadd.f32 %v9360, %v9396
          %v9429 = vadd.f32 %v9361, %v9397
          %v9430 = vadd.f32 %v9362, %v9398
          %v9431 = vadd.f32 %v9363, %v9399
          %v9432 = vadd.f32 %v9364, %v9400
          %v9433 = vadd.f32 %v9365, %v9401
          %v9434 = vadd.f32 %v9366, %v9402
          %v9435 = vadd.f32 %v9367, %v9403
          %v9436 = vadd.f32 %v9368, %v9404
          %v9437 = vadd.f32 %v9369, %v9405
          %v9438 = vadd.f32 %v9370, %v9406
          %v9439 = vadd.f32 %v9371, %v9407
          %v9440 = vadd.f32 %v9372, %v9392
          %v9441 = vadd.f32 %v9373, %v9393
          %v9442 = vadd.f32 %v9374, %v9394
          %v9443 = vadd.f32 %v9375, %v9395
          %v9444 = vadd.f32 %v9376, %v9396
          %v9445 = vadd.f32 %v9377, %v9397
          %v9446 = vadd.f32 %v9378, %v9398
          %v9447 = vadd.f32 %v9379, %v9399
          %v9448 = vadd.f32 %v9380, %v9400
          %v9449 = vadd.f32 %v9381, %v9401
          %v9450 = vadd.f32 %v9382, %v9402
          %v9451 = vadd.f32 %v9383, %v9403
          %v9452 = vadd.f32 %v9384, %v9404
          %v9453 = vadd.f32 %v9385, %v9405
          %v9454 = vadd.f32 %v9386, %v9406
          %v9455 = vadd.f32 %v9387, %v9407
          %9456 = vst [vmem:[#allocation4] sm:$0xff] %v9424
          %9457 = vst [vmem:[#allocation4 + $0x8] sm:$0xff] %v9425
          %9458 = vst [vmem:[#allocation4 + $0x10] sm:$0xff] %v9426
          %9459 = vst [vmem:[#allocation4 + $0x18] sm:$0xff] %v9427
          %9460 = vst [vmem:[#allocation4 + $0x20] sm:$0xff] %v9428
          %9461 = vst [vmem:[#allocation4 + $0x28] sm:$0xff] %v9429
          %9462 = vst [vmem:[#allocation4 + $0x30] sm:$0xff] %v9430
          %9463 = vst [vmem:[#allocation4 + $0x38] sm:$0xff] %v9431
          %9464 = vst [vmem:[#allocation4 + $0x40] sm:$0xff] %v9432
          %9465 = vst [vmem:[#allocation4 + $0x48] sm:$0xff] %v9433
          %9466 = vst [vmem:[#allocation4 + $0x50] sm:$0xff] %v9434
          %9467 = vst [vmem:[#allocation4 + $0x58] sm:$0xff] %v9435
          %9468 = vst [vmem:[#allocation4 + $0x60] sm:$0xff] %v9436
          %9469 = vst [vmem:[#allocation4 + $0x68] sm:$0xff] %v9437
          %9470 = vst [vmem:[#allocation4 + $0x70] sm:$0xff] %v9438
          %9471 = vst.msk [vmem:[#allocation4 + $0x78] sm:$0xff] %vm4360, %v9439
          %9472 = vst [vmem:[#allocation4 + $0x80] sm:$0xff] %v9440
          %9473 = vst [vmem:[#allocation4 + $0x88] sm:$0xff] %v9441
          %9474 = vst [vmem:[#allocation4 + $0x90] sm:$0xff] %v9442
          %9475 = vst [vmem:[#allocation4 + $0x98] sm:$0xff] %v9443
          %9476 = vst [vmem:[#allocation4 + $0xa0] sm:$0xff] %v9444
          %9477 = vst [vmem:[#allocation4 + $0xa8] sm:$0xff] %v9445
          %9478 = vst [vmem:[#allocation4 + $0xb0] sm:$0xff] %v9446
          %9479 = vst [vmem:[#allocation4 + $0xb8] sm:$0xff] %v9447
          %9480 = vst [vmem:[#allocation4 + $0xc0] sm:$0xff] %v9448
          %9481 = vst [vmem:[#allocation4 + $0xc8] sm:$0xff] %v9449
          %9482 = vst [vmem:[#allocation4 + $0xd0] sm:$0xff] %v9450
          %9483 = vst [vmem:[#allocation4 + $0xd8] sm:$0xff] %v9451
          %9484 = vst [vmem:[#allocation4 + $0xe0] sm:$0xff] %v9452
          %9485 = vst [vmem:[#allocation4 + $0xe8] sm:$0xff] %v9453
          %9486 = vst [vmem:[#allocation4 + $0xf0] sm:$0xff] %v9454
          %9487 = vst.msk [vmem:[#allocation4 + $0xf8] sm:$0xff] %vm4360, %v9455
        $region71: #{feed_forward.1} parent=58 // pred_fallthru
          _
        // Predicated region
        $region72: #{feed_forward.1} parent=58 // pred_check
          %p9488 = pneg %p172
        $region73: #{feed_forward.1} parent=58 // pred_check_branch
          %9490 = sbr.rel (%p9488) target = $region75
        $region74: #{feed_forward.1} parent=58 // pred_region
          %s9491 = smul.u32 2, %s21
          %9493 = vsyncadd [#allocation5], 0
          %s9494 = smul.addr %s9491, 16
          %s9495 = smul.addr %s9494, 8
          %s9496 = scalar_lea.hbm %s5, %s9495
          %s9497 = sshll.u32 [#allocation4], 4
          %s9498 = int_to_ptr.vmem [resolvable:$true] %s9497
          %s9499 = sshll.u32 %s9496, 4
          %s9500 = int_to_ptr.hbm [resolvable:$true] %s9499
          %9505 = dma.vmem_to_hbm [thread:$0]  %s9498, 4096, %s9500, [#allocation5], 2048, 2048, 128
        $region75: #{feed_forward.1} parent=58 // pred_fallthru
          _
        // Predicated region
        $region76: #{feed_forward.1} parent=58 // pred_check
          %p9506 = pneg %p172
        $region77: #{feed_forward.1} parent=58 // pred_check_branch
          %9508 = sbr.rel (%p9506) target = $region79
        $region78: #{feed_forward.1} parent=58 // pred_region
          %9510 = dma.done [#allocation5], 4096
        $region79: #{feed_forward.1} parent=58 // pred_fallthru
          _
      $region59: #{feed_forward.1} parent=5 // pred_fallthru
        _
      %p9511 = scmp.le.s32.totalorder 2, %s12
      // Predicated region
      $region80: #{feed_forward.1} parent=5 // pred_check
        %p9512 = pneg %p9511
      $region81: #{feed_forward.1} parent=5 // pred_check_branch
        %9514 = sbr.rel (%p9512) target = $region83
      $region82: #{feed_forward.1} parent=5 // pred_region
        %s9515 = ssub.s32 %s12, 2
      $region83: #{feed_forward.1} parent=5 // pred_fallthru
        _
    $region6: #{feed_forward.1} parent=1 // loop_footer
      %s16 = sadd.s32 1, %s12
    $region7: #{feed_forward.1} parent=1 // loop_footer_branch
      %11 = sbr.rel target = $region3
    $region8: #{feed_forward.1} parent=1 // loop_exit
      _
    %9516 = vsyncpa [#allocation5], 1
    %s9517 = scalar_lea.sflag [#allocation5], 1
    %9518 = vsyncpa %s9517, 1

</llo_original>
